<compile_context>
chip_gen: v6e
topology: v6e:2x2x1
jax: 0.10.0
libtpu: 0.0.40
codegen_flags: <defaults>
</compile_context>

<pallas_src>
import functools

import jax
import jax.numpy as jnp
from jax.experimental import pallas as pl
from jax.experimental.pallas import tpu as pltpu

EPS = 1e-5  # nn.BatchNorm2d default eps


# ---------------------------------------------------------------------------
# Pallas kernel: per-image block = BN(scale/shift) + ReLU + reflection-padded
# 3x3 conv (9 accumulated bf16 dots) + optional bias/residual epilogue.
# ---------------------------------------------------------------------------
def bn_relu_conv3x3_kernel(scale_ref, shift_ref, apad_ref, w_ref, *rest,
                           hw, has_bias, skip, res_scale):
    H, W = hw
    i = 0
    b_ref = None
    x_ref = None
    if has_bias:
        b_ref = rest[i]
        i += 1
    if skip:
        x_ref = rest[i]
        i += 1
    o_ref = rest[i]
    a_ref = rest[i + 1]          # bf16 VMEM scratch, (H+2, W+2, C)

    # --- BN (precomputed per-channel scale/shift) + ReLU on the padded tile,
    #     stored once as bf16 (sole consumer is the bf16 MXU path). ---
    ap = apad_ref[0]                                   # (H+2, W+2, C) f32
    scale = scale_ref[...].reshape(1, 1, -1)
    shift = shift_ref[...].reshape(1, 1, -1)
    a_ref[...] = jnp.maximum(ap * scale + shift, 0.0).astype(jnp.bfloat16)

    # --- 3x3 conv as 9 accumulated MXU dots on shifted bf16 slices. ---
    C = ap.shape[-1]
    Co = w_ref.shape[-1]
    M = H * W
    acc = jnp.zeros((M, Co), jnp.float32)
    for t in range(9):
        dy, dx = divmod(t, 3)
        tap = a_ref[dy:dy + H, dx:dx + W, :].reshape(M, C)       # bf16
        acc = acc + jnp.dot(tap, w_ref[t],
                            preferred_element_type=jnp.float32)  # f32 acc
    acc = acc.reshape(H, W, Co)

    # --- epilogue: bias (pre-scaled by res_scale when skip) + residual FMA ---
    if skip:
        res = x_ref[0]
        if has_bias:
            res = res + b_ref[...].reshape(1, 1, -1)
        out = res_scale * acc + res
    else:
        out = acc
        if has_bias:
            out = out + b_ref[...].reshape(1, 1, -1)
    o_ref[0] = out.astype(o_ref.dtype)


# ---------------------------------------------------------------------------
# wrapper: NCHW <-> NHWC glue, BN batch stats, reflection pad, two pallas_calls
# ---------------------------------------------------------------------------
def res_3x3_block1(x_nchw, params, *, res_scale=0.25):
    w1, b1, w2, b2, g1, be1, g2, be2 = params
    N, Cin, H, W = x_nchw.shape
    Cmid = w1.shape[-1]
    Cout = w2.shape[-1]
    skip = (Cin == Cout)
    del b1  # conv1 bias is exactly cancelled by training-mode BN2 mean-subtract

    x = jnp.transpose(x_nchw, (0, 2, 3, 1)).astype(jnp.float32)   # NHWC

    # ---- BN1 folded scale/shift (training-mode batch stats, biased var) ----
    mean1 = jnp.mean(x, axis=(0, 1, 2))
    var1 = jnp.mean(jnp.square(x - mean1), axis=(0, 1, 2))
    inv1 = jax.lax.rsqrt(var1 + EPS)
    scale1 = (g1 * inv1).reshape(1, Cin).astype(jnp.float32)
    shift1 = (be1 - mean1 * g1 * inv1).reshape(1, Cin).astype(jnp.float32)

    # Reflection pad in HBM (elementwise BN+ReLU commutes with padding).
    xpad = jnp.pad(x, ((0, 0), (1, 1), (1, 1), (0, 0)), mode="reflect")
    w1_r = w1.reshape(9, Cin, Cmid).astype(jnp.bfloat16)

    parallel = pltpu.CompilerParams(dimension_semantics=("parallel",))

    # ---- pass 1: BN1 + ReLU + conv1 (no bias, cancelled by BN2) ----
    y1 = pl.pallas_call(
        functools.partial(bn_relu_conv3x3_kernel, hw=(H, W),
                          has_bias=False, skip=False, res_scale=1.0),
        out_shape=jax.ShapeDtypeStruct((N, H, W, Cmid), jnp.float32),
        grid=(N,),
        in_specs=[
            pl.BlockSpec((1, Cin), lambda n: (0, 0)),
            pl.BlockSpec((1, Cin), lambda n: (0, 0)),
            pl.BlockSpec((1, H + 2, W + 2, Cin), lambda n: (n, 0, 0, 0)),
            pl.BlockSpec((9, Cin, Cmid), lambda n: (0, 0, 0)),
        ],
        out_specs=pl.BlockSpec((1, H, W, Cmid), lambda n: (n, 0, 0, 0)),
        scratch_shapes=[pltpu.VMEM((H + 2, W + 2, Cin), jnp.bfloat16)],
        compiler_params=parallel,
    )(scale1, shift1, xpad, w1_r)

    # ---- BN2 folded scale/shift from conv1 output (cheap channel reduce) ----
    mean2 = jnp.mean(y1, axis=(0, 1, 2))
    var2 = jnp.mean(jnp.square(y1 - mean2), axis=(0, 1, 2))
    inv2 = jax.lax.rsqrt(var2 + EPS)
    scale2 = (g2 * inv2).reshape(1, Cmid).astype(jnp.float32)
    shift2 = (be2 - mean2 * g2 * inv2).reshape(1, Cmid).astype(jnp.float32)

    y1pad = jnp.pad(y1, ((0, 0), (1, 1), (1, 1), (0, 0)), mode="reflect")
    w2_r = w2.reshape(9, Cmid, Cout).astype(jnp.bfloat16)
    # bias2 pre-scaled by res_scale when it is fused into the residual FMA.
    b2_eff = ((res_scale * b2) if skip else b2).reshape(1, Cout).astype(jnp.float32)

    # ---- pass 2: BN2 + ReLU + conv2 + (bias, residual) ----
    in_specs = [
        pl.BlockSpec((1, Cmid), lambda n: (0, 0)),
        pl.BlockSpec((1, Cmid), lambda n: (0, 0)),
        pl.BlockSpec((1, H + 2, W + 2, Cmid), lambda n: (n, 0, 0, 0)),
        pl.BlockSpec((9, Cmid, Cout), lambda n: (0, 0, 0)),
        pl.BlockSpec((1, Cout), lambda n: (0, 0)),
    ]
    args = [scale2, shift2, y1pad, w2_r, b2_eff]
    if skip:
        in_specs.append(pl.BlockSpec((1, H, W, Cout), lambda n: (n, 0, 0, 0)))
        args.append(x)

    out = pl.pallas_call(
        functools.partial(bn_relu_conv3x3_kernel, hw=(H, W),
                          has_bias=True, skip=skip,
                          res_scale=float(res_scale)),
        out_shape=jax.ShapeDtypeStruct((N, H, W, Cout), jnp.float32),
        grid=(N,),
        in_specs=in_specs,
        out_specs=pl.BlockSpec((1, H, W, Cout), lambda n: (n, 0, 0, 0)),
        scratch_shapes=[pltpu.VMEM((H + 2, W + 2, Cmid), jnp.bfloat16)],
        compiler_params=parallel,
    )(*args)

    return jnp.transpose(out, (0, 3, 1, 2))   # back to NCHW


# ---------------------------------------------------------------------------
# pure-JAX reference (f32 end-to-end) for correctness check
# ---------------------------------------------------------------------------
def reference(x_nchw, params, *, res_scale=0.25):
    w1, b1, w2, b2, g1, be1, g2, be2 = params
    x = jnp.transpose(x_nchw, (0, 2, 3, 1)).astype(jnp.float32)
    Cin, Cout = x.shape[-1], w2.shape[-1]

    def bn_relu(y, g, b):
        m = y.mean(axis=(0, 1, 2), keepdims=True)
        v = ((y - m) ** 2).mean(axis=(0, 1, 2), keepdims=True)
        yn = (y - m) / jnp.sqrt(v + EPS) * g.reshape(1, 1, 1, -1) + b.reshape(1, 1, 1, -1)
        return jnp.maximum(yn, 0.0)

    def conv(y, w, b):
        yp = jnp.pad(y, ((0, 0), (1, 1), (1, 1), (0, 0)), mode="reflect")
        return jax.lax.conv_general_dilated(
            yp, w, (1, 1), "VALID",
            dimension_numbers=("NHWC", "HWIO", "NHWC")) + b.reshape(1, 1, 1, -1)

    y = conv(bn_relu(x, g1, be1), w1, b1)
    y = conv(bn_relu(y, g2, be2), w2, b2)
    out = res_scale * y + x if Cin == Cout else y
    return jnp.transpose(out, (0, 3, 1, 2))


# ---------------------------------------------------------------------------
def make_params(key, in_ch, out_ch, ker=3, squeeze=2):
    mid = out_ch // squeeze
    ks = jax.random.split(key, 8)
    w1 = 0.1 * jax.random.normal(ks[0], (ker, ker, in_ch, mid), jnp.float32)
    b1 = 0.1 * jax.random.normal(ks[1], (mid,), jnp.float32)
    w2 = 0.1 * jax.random.normal(ks[2], (ker, ker, mid, out_ch), jnp.float32)
    b2 = 0.1 * jax.random.normal(ks[3], (out_ch,), jnp.float32)
    g1 = 1.0 + 0.1 * jax.random.normal(ks[4], (in_ch,), jnp.float32)
    be1 = 0.1 * jax.random.normal(ks[5], (in_ch,), jnp.float32)
    g2 = 1.0 + 0.1 * jax.random.normal(ks[6], (mid,), jnp.float32)
    be2 = 0.1 * jax.random.normal(ks[7], (mid,), jnp.float32)
    return (w1, b1, w2, b2, g1, be1, g2, be2)


if __name__ == "__main__":
    key = jax.random.PRNGKey(0)
    k_x, k_p = jax.random.split(key)

    N, C, Hh, Ww = 2, 4, 16, 16          # in_ch == out_ch -> skip path active
    x = jax.random.normal(k_x, (N, C, Hh, Ww), jnp.float32)
    params = make_params(k_p, in_ch=C, out_ch=C, ker=3, squeeze=2)

    fwd = jax.jit(lambda xx, pp: res_3x3_block1(xx, pp, res_scale=0.25))
    out = jax.block_until_ready(fwd(x, params))
    ref = jax.block_until_ready(reference(x, params, res_scale=0.25))

    assert out.shape == (N, C, Hh, Ww), out.shape
    max_err = float(jnp.max(jnp.abs(out - ref)))
    # bf16 MXU operands vs f32 reference -> loosened (but still tight) tolerance.
    assert max_err < 5e-2, max_err

    print("KERNEL_OK")
</pallas_src>

<mosaic_0001>
module attributes {stable_mosaic.version = 11 : i64} {
  func.func @bn_relu_conv3x3_kernel(%arg0: i32, %arg1: memref<1x4xf32, #tpu.memory_space<vmem>>, %arg2: memref<1x4xf32, #tpu.memory_space<vmem>>, %arg3: memref<1x18x18x4xf32, #tpu.memory_space<vmem>>, %arg4: memref<9x4x2xbf16, #tpu.memory_space<vmem>>, %arg5: memref<1x16x16x2xf32, #tpu.memory_space<vmem>>, %arg6: memref<18x18x4xbf16, #tpu.memory_space<vmem>>) attributes {dimension_semantics = [#tpu.dimension_semantics<parallel>], iteration_bounds = array<i64: 2>, scalar_prefetch = 0 : i64, scratch_operands = 1 : i64, tpu.core_type = #tpu.core_type<tc>, window_params = [{pipeline_mode = #tpu.pipeline_mode<synchronous>, transform_indices = @transform_0, window_bounds = array<i64: 1, 4>}, {pipeline_mode = #tpu.pipeline_mode<synchronous>, transform_indices = @transform_1, window_bounds = array<i64: 1, 4>}, {transform_indices = @transform_2, window_bounds = array<i64: 1, 18, 18, 4>}, {pipeline_mode = #tpu.pipeline_mode<synchronous>, transform_indices = @transform_3, window_bounds = array<i64: 9, 4, 2>}, {transform_indices = @transform_4, window_bounds = array<i64: 1, 16, 16, 2>}]} {
    %c0 = arith.constant 0 : index
    %c0_0 = arith.constant 0 : index
    %c0_1 = arith.constant 0 : index
    %c0_2 = arith.constant 0 : index
    %0 = vector.load %arg3[%c0, %c0_0, %c0_1, %c0_2] : memref<1x18x18x4xf32, #tpu.memory_space<vmem>>, vector<1x18x18x4xf32>
    %1 = vector.shape_cast %0 : vector<1x18x18x4xf32> to vector<18x18x4xf32>
    %c0_3 = arith.constant 0 : index
    %c0_4 = arith.constant 0 : index
    %2 = vector.load %arg1[%c0_3, %c0_4] : memref<1x4xf32, #tpu.memory_space<vmem>>, vector<1x4xf32>
    %3 = vector.shape_cast %2 : vector<1x4xf32> to vector<1x1x4xf32>
    %c0_5 = arith.constant 0 : index
    %c0_6 = arith.constant 0 : index
    %4 = vector.load %arg2[%c0_5, %c0_6] : memref<1x4xf32, #tpu.memory_space<vmem>>, vector<1x4xf32>
    %5 = vector.shape_cast %4 : vector<1x4xf32> to vector<1x1x4xf32>
    %6 = vector.broadcast %3 : vector<1x1x4xf32> to vector<18x18x4xf32>
    %7 = arith.mulf %1, %6 : vector<18x18x4xf32>
    %8 = vector.broadcast %5 : vector<1x1x4xf32> to vector<18x18x4xf32>
    %9 = arith.addf %7, %8 : vector<18x18x4xf32>
    %cst = arith.constant 0.000000e+00 : f32
    %10 = vector.broadcast %cst : f32 to vector<18x18x4xf32>
    %11 = arith.maximumf %9, %10 : vector<18x18x4xf32>
    %12 = arith.truncf %11 : vector<18x18x4xf32> to vector<18x18x4xbf16>
    %c0_7 = arith.constant 0 : index
    %c0_8 = arith.constant 0 : index
    %c0_9 = arith.constant 0 : index
    %13 = vector.load %arg6[%c0_7, %c0_8, %c0_9] : memref<18x18x4xbf16, #tpu.memory_space<vmem>>, vector<18x18x4xbf16>
    tpu.vector_store %arg6[%c0_7, %c0_8, %c0_9], %12 {strides = array<i32>} : memref<18x18x4xbf16, #tpu.memory_space<vmem>>, vector<18x18x4xbf16>,
    %cst_10 = arith.constant 0.000000e+00 : f32
    %14 = vector.broadcast %cst_10 : f32 to vector<256x2xf32>
    %c0_11 = arith.constant 0 : index
    %c0_12 = arith.constant 0 : index
    %c0_13 = arith.constant 0 : index
    %15 = vector.load %arg6[%c0_11, %c0_12, %c0_13] : memref<18x18x4xbf16, #tpu.memory_space<vmem>>, vector<16x16x4xbf16>
    %16 = vector.shape_cast %15 : vector<16x16x4xbf16> to vector<256x4xbf16>
    %c0_14 = arith.constant 0 : index
    %c0_15 = arith.constant 0 : index
    %c0_16 = arith.constant 0 : index
    %17 = vector.load %arg4[%c0_14, %c0_15, %c0_16] : memref<9x4x2xbf16, #tpu.memory_space<vmem>>, vector<1x4x2xbf16>
    %18 = vector.shape_cast %17 : vector<1x4x2xbf16> to vector<4x2xbf16>
    %cst_17 = arith.constant dense<0.000000e+00> : vector<256x2xf32>
    %19 = tpu.matmul %16, %18, %cst_17 {dimension_numbers = #tpu.dot_dimension_numbers<[1], [0], [0], [1], [0, 0, 1, 1], [], []>} : vector<256x4xbf16>, vector<4x2xbf16>, vector<256x2xf32> -> vector<256x2xf32>
    %20 = arith.addf %14, %19 : vector<256x2xf32>
    %c0_18 = arith.constant 0 : index
    %c1 = arith.constant 1 : index
    %c0_19 = arith.constant 0 : index
    %21 = vector.load %arg6[%c0_18, %c1, %c0_19] : memref<18x18x4xbf16, #tpu.memory_space<vmem>>, vector<16x16x4xbf16>
    %22 = vector.shape_cast %21 : vector<16x16x4xbf16> to vector<256x4xbf16>
    %c1_20 = arith.constant 1 : index
    %c0_21 = arith.constant 0 : index
    %c0_22 = arith.constant 0 : index
    %23 = vector.load %arg4[%c1_20, %c0_21, %c0_22] : memref<9x4x2xbf16, #tpu.memory_space<vmem>>, vector<1x4x2xbf16>
    %24 = vector.shape_cast %23 : vector<1x4x2xbf16> to vector<4x2xbf16>
    %cst_23 = arith.constant dense<0.000000e+00> : vector<256x2xf32>
    %25 = tpu.matmul %22, %24, %cst_23 {dimension_numbers = #tpu.dot_dimension_numbers<[1], [0], [0], [1], [0, 0, 1, 1], [], []>} : vector<256x4xbf16>, vector<4x2xbf16>, vector<256x2xf32> -> vector<256x2xf32>
    %26 = arith.addf %20, %25 : vector<256x2xf32>
    %c0_24 = arith.constant 0 : index
    %c2 = arith.constant 2 : index
    %c0_25 = arith.constant 0 : index
    %27 = vector.load %arg6[%c0_24, %c2, %c0_25] : memref<18x18x4xbf16, #tpu.memory_space<vmem>>, vector<16x16x4xbf16>
    %28 = vector.shape_cast %27 : vector<16x16x4xbf16> to vector<256x4xbf16>
    %c2_26 = arith.constant 2 : index
    %c0_27 = arith.constant 0 : index
    %c0_28 = arith.constant 0 : index
    %29 = vector.load %arg4[%c2_26, %c0_27, %c0_28] : memref<9x4x2xbf16, #tpu.memory_space<vmem>>, vector<1x4x2xbf16>
    %30 = vector.shape_cast %29 : vector<1x4x2xbf16> to vector<4x2xbf16>
    %cst_29 = arith.constant dense<0.000000e+00> : vector<256x2xf32>
    %31 = tpu.matmul %28, %30, %cst_29 {dimension_numbers = #tpu.dot_dimension_numbers<[1], [0], [0], [1], [0, 0, 1, 1], [], []>} : vector<256x4xbf16>, vector<4x2xbf16>, vector<256x2xf32> -> vector<256x2xf32>
    %32 = arith.addf %26, %31 : vector<256x2xf32>
    %c1_30 = arith.constant 1 : index
    %c0_31 = arith.constant 0 : index
    %c0_32 = arith.constant 0 : index
    %33 = vector.load %arg6[%c1_30, %c0_31, %c0_32] : memref<18x18x4xbf16, #tpu.memory_space<vmem>>, vector<16x16x4xbf16>
    %34 = vector.shape_cast %33 : vector<16x16x4xbf16> to vector<256x4xbf16>
    %c3 = arith.constant 3 : index
    %c0_33 = arith.constant 0 : index
    %c0_34 = arith.constant 0 : index
    %35 = vector.load %arg4[%c3, %c0_33, %c0_34] : memref<9x4x2xbf16, #tpu.memory_space<vmem>>, vector<1x4x2xbf16>
    %36 = vector.shape_cast %35 : vector<1x4x2xbf16> to vector<4x2xbf16>
    %cst_35 = arith.constant dense<0.000000e+00> : vector<256x2xf32>
    %37 = tpu.matmul %34, %36, %cst_35 {dimension_numbers = #tpu.dot_dimension_numbers<[1], [0], [0], [1], [0, 0, 1, 1], [], []>} : vector<256x4xbf16>, vector<4x2xbf16>, vector<256x2xf32> -> vector<256x2xf32>
    %38 = arith.addf %32, %37 : vector<256x2xf32>
    %c1_36 = arith.constant 1 : index
    %c1_37 = arith.constant 1 : index
    %c0_38 = arith.constant 0 : index
    %39 = vector.load %arg6[%c1_36, %c1_37, %c0_38] : memref<18x18x4xbf16, #tpu.memory_space<vmem>>, vector<16x16x4xbf16>
    %40 = vector.shape_cast %39 : vector<16x16x4xbf16> to vector<256x4xbf16>
    %c4 = arith.constant 4 : index
    %c0_39 = arith.constant 0 : index
    %c0_40 = arith.constant 0 : index
    %41 = vector.load %arg4[%c4, %c0_39, %c0_40] : memref<9x4x2xbf16, #tpu.memory_space<vmem>>, vector<1x4x2xbf16>
    %42 = vector.shape_cast %41 : vector<1x4x2xbf16> to vector<4x2xbf16>
    %cst_41 = arith.constant dense<0.000000e+00> : vector<256x2xf32>
    %43 = tpu.matmul %40, %42, %cst_41 {dimension_numbers = #tpu.dot_dimension_numbers<[1], [0], [0], [1], [0, 0, 1, 1], [], []>} : vector<256x4xbf16>, vector<4x2xbf16>, vector<256x2xf32> -> vector<256x2xf32>
    %44 = arith.addf %38, %43 : vector<256x2xf32>
    %c1_42 = arith.constant 1 : index
    %c2_43 = arith.constant 2 : index
    %c0_44 = arith.constant 0 : index
    %45 = vector.load %arg6[%c1_42, %c2_43, %c0_44] : memref<18x18x4xbf16, #tpu.memory_space<vmem>>, vector<16x16x4xbf16>
    %46 = vector.shape_cast %45 : vector<16x16x4xbf16> to vector<256x4xbf16>
    %c5 = arith.constant 5 : index
    %c0_45 = arith.constant 0 : index
    %c0_46 = arith.constant 0 : index
    %47 = vector.load %arg4[%c5, %c0_45, %c0_46] : memref<9x4x2xbf16, #tpu.memory_space<vmem>>, vector<1x4x2xbf16>
    %48 = vector.shape_cast %47 : vector<1x4x2xbf16> to vector<4x2xbf16>
    %cst_47 = arith.constant dense<0.000000e+00> : vector<256x2xf32>
    %49 = tpu.matmul %46, %48, %cst_47 {dimension_numbers = #tpu.dot_dimension_numbers<[1], [0], [0], [1], [0, 0, 1, 1], [], []>} : vector<256x4xbf16>, vector<4x2xbf16>, vector<256x2xf32> -> vector<256x2xf32>
    %50 = arith.addf %44, %49 : vector<256x2xf32>
    %c2_48 = arith.constant 2 : index
    %c0_49 = arith.constant 0 : index
    %c0_50 = arith.constant 0 : index
    %51 = vector.load %arg6[%c2_48, %c0_49, %c0_50] : memref<18x18x4xbf16, #tpu.memory_space<vmem>>, vector<16x16x4xbf16>
    %52 = vector.shape_cast %51 : vector<16x16x4xbf16> to vector<256x4xbf16>
    %c6 = arith.constant 6 : index
    %c0_51 = arith.constant 0 : index
    %c0_52 = arith.constant 0 : index
    %53 = vector.load %arg4[%c6, %c0_51, %c0_52] : memref<9x4x2xbf16, #tpu.memory_space<vmem>>, vector<1x4x2xbf16>
    %54 = vector.shape_cast %53 : vector<1x4x2xbf16> to vector<4x2xbf16>
    %cst_53 = arith.constant dense<0.000000e+00> : vector<256x2xf32>
    %55 = tpu.matmul %52, %54, %cst_53 {dimension_numbers = #tpu.dot_dimension_numbers<[1], [0], [0], [1], [0, 0, 1, 1], [], []>} : vector<256x4xbf16>, vector<4x2xbf16>, vector<256x2xf32> -> vector<256x2xf32>
    %56 = arith.addf %50, %55 : vector<256x2xf32>
    %c2_54 = arith.constant 2 : index
    %c1_55 = arith.constant 1 : index
    %c0_56 = arith.constant 0 : index
    %57 = vector.load %arg6[%c2_54, %c1_55, %c0_56] : memref<18x18x4xbf16, #tpu.memory_space<vmem>>, vector<16x16x4xbf16>
    %58 = vector.shape_cast %57 : vector<16x16x4xbf16> to vector<256x4xbf16>
    %c7 = arith.constant 7 : index
    %c0_57 = arith.constant 0 : index
    %c0_58 = arith.constant 0 : index
    %59 = vector.load %arg4[%c7, %c0_57, %c0_58] : memref<9x4x2xbf16, #tpu.memory_space<vmem>>, vector<1x4x2xbf16>
    %60 = vector.shape_cast %59 : vector<1x4x2xbf16> to vector<4x2xbf16>
    %cst_59 = arith.constant dense<0.000000e+00> : vector<256x2xf32>
    %61 = tpu.matmul %58, %60, %cst_59 {dimension_numbers = #tpu.dot_dimension_numbers<[1], [0], [0], [1], [0, 0, 1, 1], [], []>} : vector<256x4xbf16>, vector<4x2xbf16>, vector<256x2xf32> -> vector<256x2xf32>
    %62 = arith.addf %56, %61 : vector<256x2xf32>
    %c2_60 = arith.constant 2 : index
    %c2_61 = arith.constant 2 : index
    %c0_62 = arith.constant 0 : index
    %63 = vector.load %arg6[%c2_60, %c2_61, %c0_62] : memref<18x18x4xbf16, #tpu.memory_space<vmem>>, vector<16x16x4xbf16>
    %64 = vector.shape_cast %63 : vector<16x16x4xbf16> to vector<256x4xbf16>
    %c8 = arith.constant 8 : index
    %c0_63 = arith.constant 0 : index
    %c0_64 = arith.constant 0 : index
    %65 = vector.load %arg4[%c8, %c0_63, %c0_64] : memref<9x4x2xbf16, #tpu.memory_space<vmem>>, vector<1x4x2xbf16>
    %66 = vector.shape_cast %65 : vector<1x4x2xbf16> to vector<4x2xbf16>
    %cst_65 = arith.constant dense<0.000000e+00> : vector<256x2xf32>
    %67 = tpu.matmul %64, %66, %cst_65 {dimension_numbers = #tpu.dot_dimension_numbers<[1], [0], [0], [1], [0, 0, 1, 1], [], []>} : vector<256x4xbf16>, vector<4x2xbf16>, vector<256x2xf32> -> vector<256x2xf32>
    %68 = arith.addf %62, %67 : vector<256x2xf32>
    %69 = vector.shape_cast %68 : vector<256x2xf32> to vector<16x16x2xf32>
    %c0_66 = arith.constant 0 : index
    %c0_67 = arith.constant 0 : index
    %c0_68 = arith.constant 0 : index
    %c0_69 = arith.constant 0 : index
    %70 = vector.load %arg5[%c0_66, %c0_67, %c0_68, %c0_69] : memref<1x16x16x2xf32, #tpu.memory_space<vmem>>, vector<1x16x16x2xf32>
    %71 = vector.shape_cast %70 : vector<1x16x16x2xf32> to vector<16x16x2xf32>
    %72 = vector.shape_cast %69 : vector<16x16x2xf32> to vector<1x16x16x2xf32>
    tpu.vector_store %arg5[%c0_66, %c0_67, %c0_68, %c0_69], %72 {strides = array<i32>} : memref<1x16x16x2xf32, #tpu.memory_space<vmem>>, vector<1x16x16x2xf32>,
    return
  }
  func.func @transform_0(%arg0: i32) -> (i32, i32) {
    %c0_i32 = arith.constant 0 : i32
    %c0_i32_0 = arith.constant 0 : i32
    %c0_i32_1 = arith.constant 0 : i32
    return %c0_i32, %c0_i32_0 : i32, i32
  }
  func.func @transform_1(%arg0: i32) -> (i32, i32) {
    %c0_i32 = arith.constant 0 : i32
    %c0_i32_0 = arith.constant 0 : i32
    %c0_i32_1 = arith.constant 0 : i32
    return %c0_i32, %c0_i32_0 : i32, i32
  }
  func.func @transform_2(%arg0: i32) -> (i32, i32, i32, i32) {
    %c0_i32 = arith.constant 0 : i32
    %c0_i32_0 = arith.constant 0 : i32
    %c0_i32_1 = arith.constant 0 : i32
    %c0_i32_2 = arith.constant 0 : i32
    return %arg0, %c0_i32, %c0_i32_0, %c0_i32_1 : i32, i32, i32, i32
  }
  func.func @transform_3(%arg0: i32) -> (i32, i32, i32) {
    %c0_i32 = arith.constant 0 : i32
    %c0_i32_0 = arith.constant 0 : i32
    %c0_i32_1 = arith.constant 0 : i32
    %c0_i32_2 = arith.constant 0 : i32
    return %c0_i32, %c0_i32_0, %c0_i32_1 : i32, i32, i32
  }
  func.func @transform_4(%arg0: i32) -> (i32, i32, i32, i32) {
    %c0_i32 = arith.constant 0 : i32
    %c0_i32_0 = arith.constant 0 : i32
    %c0_i32_1 = arith.constant 0 : i32
    %c0_i32_2 = arith.constant 0 : i32
    return %arg0, %c0_i32, %c0_i32_0, %c0_i32_1 : i32, i32, i32, i32
  }
}

module attributes {stable_mosaic.version = 11 : i64} {
  func.func @bn_relu_conv3x3_kernel(%arg0: i32, %arg1: memref<1x2xf32, #tpu.memory_space<vmem>>, %arg2: memref<1x2xf32, #tpu.memory_space<vmem>>, %arg3: memref<1x18x18x2xf32, #tpu.memory_space<vmem>>, %arg4: memref<9x2x4xbf16, #tpu.memory_space<vmem>>, %arg5: memref<1x4xf32, #tpu.memory_space<vmem>>, %arg6: memref<1x16x16x4xf32, #tpu.memory_space<vmem>>, %arg7: memref<1x16x16x4xf32, #tpu.memory_space<vmem>>, %arg8: memref<18x18x2xbf16, #tpu.memory_space<vmem>>) attributes {dimension_semantics = [#tpu.dimension_semantics<parallel>], iteration_bounds = array<i64: 2>, scalar_prefetch = 0 : i64, scratch_operands = 1 : i64, tpu.core_type = #tpu.core_type<tc>, window_params = [{pipeline_mode = #tpu.pipeline_mode<synchronous>, transform_indices = @transform_0, window_bounds = array<i64: 1, 2>}, {pipeline_mode = #tpu.pipeline_mode<synchronous>, transform_indices = @transform_1, window_bounds = array<i64: 1, 2>}, {transform_indices = @transform_2, window_bounds = array<i64: 1, 18, 18, 2>}, {pipeline_mode = #tpu.pipeline_mode<synchronous>, transform_indices = @transform_3, window_bounds = array<i64: 9, 2, 4>}, {pipeline_mode = #tpu.pipeline_mode<synchronous>, transform_indices = @transform_4, window_bounds = array<i64: 1, 4>}, {transform_indices = @transform_5, window_bounds = array<i64: 1, 16, 16, 4>}, {transform_indices = @transform_6, window_bounds = array<i64: 1, 16, 16, 4>}]} {
    %c0 = arith.constant 0 : index
    %c0_0 = arith.constant 0 : index
    %c0_1 = arith.constant 0 : index
    %c0_2 = arith.constant 0 : index
    %0 = vector.load %arg3[%c0, %c0_0, %c0_1, %c0_2] : memref<1x18x18x2xf32, #tpu.memory_space<vmem>>, vector<1x18x18x2xf32>
    %1 = vector.shape_cast %0 : vector<1x18x18x2xf32> to vector<18x18x2xf32>
    %c0_3 = arith.constant 0 : index
    %c0_4 = arith.constant 0 : index
    %2 = vector.load %arg1[%c0_3, %c0_4] : memref<1x2xf32, #tpu.memory_space<vmem>>, vector<1x2xf32>
    %3 = vector.shape_cast %2 : vector<1x2xf32> to vector<1x1x2xf32>
    %c0_5 = arith.constant 0 : index
    %c0_6 = arith.constant 0 : index
    %4 = vector.load %arg2[%c0_5, %c0_6] : memref<1x2xf32, #tpu.memory_space<vmem>>, vector<1x2xf32>
    %5 = vector.shape_cast %4 : vector<1x2xf32> to vector<1x1x2xf32>
    %6 = vector.broadcast %3 : vector<1x1x2xf32> to vector<18x18x2xf32>
    %7 = arith.mulf %1, %6 : vector<18x18x2xf32>
    %8 = vector.broadcast %5 : vector<1x1x2xf32> to vector<18x18x2xf32>
    %9 = arith.addf %7, %8 : vector<18x18x2xf32>
    %cst = arith.constant 0.000000e+00 : f32
    %10 = vector.broadcast %cst : f32 to vector<18x18x2xf32>
    %11 = arith.maximumf %9, %10 : vector<18x18x2xf32>
    %12 = arith.truncf %11 : vector<18x18x2xf32> to vector<18x18x2xbf16>
    %c0_7 = arith.constant 0 : index
    %c0_8 = arith.constant 0 : index
    %c0_9 = arith.constant 0 : index
    %13 = vector.load %arg8[%c0_7, %c0_8, %c0_9] : memref<18x18x2xbf16, #tpu.memory_space<vmem>>, vector<18x18x2xbf16>
    tpu.vector_store %arg8[%c0_7, %c0_8, %c0_9], %12 {strides = array<i32>} : memref<18x18x2xbf16, #tpu.memory_space<vmem>>, vector<18x18x2xbf16>,
    %cst_10 = arith.constant 0.000000e+00 : f32
    %14 = vector.broadcast %cst_10 : f32 to vector<256x4xf32>
    %c0_11 = arith.constant 0 : index
    %c0_12 = arith.constant 0 : index
    %c0_13 = arith.constant 0 : index
    %15 = vector.load %arg8[%c0_11, %c0_12, %c0_13] : memref<18x18x2xbf16, #tpu.memory_space<vmem>>, vector<16x16x2xbf16>
    %16 = vector.shape_cast %15 : vector<16x16x2xbf16> to vector<256x2xbf16>
    %c0_14 = arith.constant 0 : index
    %c0_15 = arith.constant 0 : index
    %c0_16 = arith.constant 0 : index
    %17 = vector.load %arg4[%c0_14, %c0_15, %c0_16] : memref<9x2x4xbf16, #tpu.memory_space<vmem>>, vector<1x2x4xbf16>
    %18 = vector.shape_cast %17 : vector<1x2x4xbf16> to vector<2x4xbf16>
    %cst_17 = arith.constant dense<0.000000e+00> : vector<256x4xf32>
    %19 = tpu.matmul %16, %18, %cst_17 {dimension_numbers = #tpu.dot_dimension_numbers<[1], [0], [0], [1], [0, 0, 1, 1], [], []>} : vector<256x2xbf16>, vector<2x4xbf16>, vector<256x4xf32> -> vector<256x4xf32>
    %20 = arith.addf %14, %19 : vector<256x4xf32>
    %c0_18 = arith.constant 0 : index
    %c1 = arith.constant 1 : index
    %c0_19 = arith.constant 0 : index
    %21 = vector.load %arg8[%c0_18, %c1, %c0_19] : memref<18x18x2xbf16, #tpu.memory_space<vmem>>, vector<16x16x2xbf16>
    %22 = vector.shape_cast %21 : vector<16x16x2xbf16> to vector<256x2xbf16>
    %c1_20 = arith.constant 1 : index
    %c0_21 = arith.constant 0 : index
    %c0_22 = arith.constant 0 : index
    %23 = vector.load %arg4[%c1_20, %c0_21, %c0_22] : memref<9x2x4xbf16, #tpu.memory_space<vmem>>, vector<1x2x4xbf16>
    %24 = vector.shape_cast %23 : vector<1x2x4xbf16> to vector<2x4xbf16>
    %cst_23 = arith.constant dense<0.000000e+00> : vector<256x4xf32>
    %25 = tpu.matmul %22, %24, %cst_23 {dimension_numbers = #tpu.dot_dimension_numbers<[1], [0], [0], [1], [0, 0, 1, 1], [], []>} : vector<256x2xbf16>, vector<2x4xbf16>, vector<256x4xf32> -> vector<256x4xf32>
    %26 = arith.addf %20, %25 : vector<256x4xf32>
    %c0_24 = arith.constant 0 : index
    %c2 = arith.constant 2 : index
    %c0_25 = arith.constant 0 : index
    %27 = vector.load %arg8[%c0_24, %c2, %c0_25] : memref<18x18x2xbf16, #tpu.memory_space<vmem>>, vector<16x16x2xbf16>
    %28 = vector.shape_cast %27 : vector<16x16x2xbf16> to vector<256x2xbf16>
    %c2_26 = arith.constant 2 : index
    %c0_27 = arith.constant 0 : index
    %c0_28 = arith.constant 0 : index
    %29 = vector.load %arg4[%c2_26, %c0_27, %c0_28] : memref<9x2x4xbf16, #tpu.memory_space<vmem>>, vector<1x2x4xbf16>
    %30 = vector.shape_cast %29 : vector<1x2x4xbf16> to vector<2x4xbf16>
    %cst_29 = arith.constant dense<0.000000e+00> : vector<256x4xf32>
    %31 = tpu.matmul %28, %30, %cst_29 {dimension_numbers = #tpu.dot_dimension_numbers<[1], [0], [0], [1], [0, 0, 1, 1], [], []>} : vector<256x2xbf16>, vector<2x4xbf16>, vector<256x4xf32> -> vector<256x4xf32>
    %32 = arith.addf %26, %31 : vector<256x4xf32>
    %c1_30 = arith.constant 1 : index
    %c0_31 = arith.constant 0 : index
    %c0_32 = arith.constant 0 : index
    %33 = vector.load %arg8[%c1_30, %c0_31, %c0_32] : memref<18x18x2xbf16, #tpu.memory_space<vmem>>, vector<16x16x2xbf16>
    %34 = vector.shape_cast %33 : vector<16x16x2xbf16> to vector<256x2xbf16>
    %c3 = arith.constant 3 : index
    %c0_33 = arith.constant 0 : index
    %c0_34 = arith.constant 0 : index
    %35 = vector.load %arg4[%c3, %c0_33, %c0_34] : memref<9x2x4xbf16, #tpu.memory_space<vmem>>, vector<1x2x4xbf16>
    %36 = vector.shape_cast %35 : vector<1x2x4xbf16> to vector<2x4xbf16>
    %cst_35 = arith.constant dense<0.000000e+00> : vector<256x4xf32>
    %37 = tpu.matmul %34, %36, %cst_35 {dimension_numbers = #tpu.dot_dimension_numbers<[1], [0], [0], [1], [0, 0, 1, 1], [], []>} : vector<256x2xbf16>, vector<2x4xbf16>, vector<256x4xf32> -> vector<256x4xf32>
    %38 = arith.addf %32, %37 : vector<256x4xf32>
    %c1_36 = arith.constant 1 : index
    %c1_37 = arith.constant 1 : index
    %c0_38 = arith.constant 0 : index
    %39 = vector.load %arg8[%c1_36, %c1_37, %c0_38] : memref<18x18x2xbf16, #tpu.memory_space<vmem>>, vector<16x16x2xbf16>
    %40 = vector.shape_cast %39 : vector<16x16x2xbf16> to vector<256x2xbf16>
    %c4 = arith.constant 4 : index
    %c0_39 = arith.constant 0 : index
    %c0_40 = arith.constant 0 : index
    %41 = vector.load %arg4[%c4, %c0_39, %c0_40] : memref<9x2x4xbf16, #tpu.memory_space<vmem>>, vector<1x2x4xbf16>
    %42 = vector.shape_cast %41 : vector<1x2x4xbf16> to vector<2x4xbf16>
    %cst_41 = arith.constant dense<0.000000e+00> : vector<256x4xf32>
    %43 = tpu.matmul %40, %42, %cst_41 {dimension_numbers = #tpu.dot_dimension_numbers<[1], [0], [0], [1], [0, 0, 1, 1], [], []>} : vector<256x2xbf16>, vector<2x4xbf16>, vector<256x4xf32> -> vector<256x4xf32>
    %44 = arith.addf %38, %43 : vector<256x4xf32>
    %c1_42 = arith.constant 1 : index
    %c2_43 = arith.constant 2 : index
    %c0_44 = arith.constant 0 : index
    %45 = vector.load %arg8[%c1_42, %c2_43, %c0_44] : memref<18x18x2xbf16, #tpu.memory_space<vmem>>, vector<16x16x2xbf16>
    %46 = vector.shape_cast %45 : vector<16x16x2xbf16> to vector<256x2xbf16>
    %c5 = arith.constant 5 : index
    %c0_45 = arith.constant 0 : index
    %c0_46 = arith.constant 0 : index
    %47 = vector.load %arg4[%c5, %c0_45, %c0_46] : memref<9x2x4xbf16, #tpu.memory_space<vmem>>, vector<1x2x4xbf16>
    %48 = vector.shape_cast %47 : vector<1x2x4xbf16> to vector<2x4xbf16>
    %cst_47 = arith.constant dense<0.000000e+00> : vector<256x4xf32>
    %49 = tpu.matmul %46, %48, %cst_47 {dimension_numbers = #tpu.dot_dimension_numbers<[1], [0], [0], [1], [0, 0, 1, 1], [], []>} : vector<256x2xbf16>, vector<2x4xbf16>, vector<256x4xf32> -> vector<256x4xf32>
    %50 = arith.addf %44, %49 : vector<256x4xf32>
    %c2_48 = arith.constant 2 : index
    %c0_49 = arith.constant 0 : index
    %c0_50 = arith.constant 0 : index
    %51 = vector.load %arg8[%c2_48, %c0_49, %c0_50] : memref<18x18x2xbf16, #tpu.memory_space<vmem>>, vector<16x16x2xbf16>
    %52 = vector.shape_cast %51 : vector<16x16x2xbf16> to vector<256x2xbf16>
    %c6 = arith.constant 6 : index
    %c0_51 = arith.constant 0 : index
    %c0_52 = arith.constant 0 : index
    %53 = vector.load %arg4[%c6, %c0_51, %c0_52] : memref<9x2x4xbf16, #tpu.memory_space<vmem>>, vector<1x2x4xbf16>
    %54 = vector.shape_cast %53 : vector<1x2x4xbf16> to vector<2x4xbf16>
    %cst_53 = arith.constant dense<0.000000e+00> : vector<256x4xf32>
    %55 = tpu.matmul %52, %54, %cst_53 {dimension_numbers = #tpu.dot_dimension_numbers<[1], [0], [0], [1], [0, 0, 1, 1], [], []>} : vector<256x2xbf16>, vector<2x4xbf16>, vector<256x4xf32> -> vector<256x4xf32>
    %56 = arith.addf %50, %55 : vector<256x4xf32>
    %c2_54 = arith.constant 2 : index
    %c1_55 = arith.constant 1 : index
    %c0_56 = arith.constant 0 : index
    %57 = vector.load %arg8[%c2_54, %c1_55, %c0_56] : memref<18x18x2xbf16, #tpu.memory_space<vmem>>, vector<16x16x2xbf16>
    %58 = vector.shape_cast %57 : vector<16x16x2xbf16> to vector<256x2xbf16>
    %c7 = arith.constant 7 : index
    %c0_57 = arith.constant 0 : index
    %c0_58 = arith.constant 0 : index
    %59 = vector.load %arg4[%c7, %c0_57, %c0_58] : memref<9x2x4xbf16, #tpu.memory_space<vmem>>, vector<1x2x4xbf16>
    %60 = vector.shape_cast %59 : vector<1x2x4xbf16> to vector<2x4xbf16>
    %cst_59 = arith.constant dense<0.000000e+00> : vector<256x4xf32>
    %61 = tpu.matmul %58, %60, %cst_59 {dimension_numbers = #tpu.dot_dimension_numbers<[1], [0], [0], [1], [0, 0, 1, 1], [], []>} : vector<256x2xbf16>, vector<2x4xbf16>, vector<256x4xf32> -> vector<256x4xf32>
    %62 = arith.addf %56, %61 : vector<256x4xf32>
    %c2_60 = arith.constant 2 : index
    %c2_61 = arith.constant 2 : index
    %c0_62 = arith.constant 0 : index
    %63 = vector.load %arg8[%c2_60, %c2_61, %c0_62] : memref<18x18x2xbf16, #tpu.memory_space<vmem>>, vector<16x16x2xbf16>
    %64 = vector.shape_cast %63 : vector<16x16x2xbf16> to vector<256x2xbf16>
    %c8 = arith.constant 8 : index
    %c0_63 = arith.constant 0 : index
    %c0_64 = arith.constant 0 : index
    %65 = vector.load %arg4[%c8, %c0_63, %c0_64] : memref<9x2x4xbf16, #tpu.memory_space<vmem>>, vector<1x2x4xbf16>
    %66 = vector.shape_cast %65 : vector<1x2x4xbf16> to vector<2x4xbf16>
    %cst_65 = arith.constant dense<0.000000e+00> : vector<256x4xf32>
    %67 = tpu.matmul %64, %66, %cst_65 {dimension_numbers = #tpu.dot_dimension_numbers<[1], [0], [0], [1], [0, 0, 1, 1], [], []>} : vector<256x2xbf16>, vector<2x4xbf16>, vector<256x4xf32> -> vector<256x4xf32>
    %68 = arith.addf %62, %67 : vector<256x4xf32>
    %69 = vector.shape_cast %68 : vector<256x4xf32> to vector<16x16x4xf32>
    %c0_66 = arith.constant 0 : index
    %c0_67 = arith.constant 0 : index
    %c0_68 = arith.constant 0 : index
    %c0_69 = arith.constant 0 : index
    %70 = vector.load %arg6[%c0_66, %c0_67, %c0_68, %c0_69] : memref<1x16x16x4xf32, #tpu.memory_space<vmem>>, vector<1x16x16x4xf32>
    %71 = vector.shape_cast %70 : vector<1x16x16x4xf32> to vector<16x16x4xf32>
    %c0_70 = arith.constant 0 : index
    %c0_71 = arith.constant 0 : index
    %72 = vector.load %arg5[%c0_70, %c0_71] : memref<1x4xf32, #tpu.memory_space<vmem>>, vector<1x4xf32>
    %73 = vector.shape_cast %72 : vector<1x4xf32> to vector<1x1x4xf32>
    %74 = vector.broadcast %73 : vector<1x1x4xf32> to vector<16x16x4xf32>
    %75 = arith.addf %71, %74 : vector<16x16x4xf32>
    %cst_72 = arith.constant 2.500000e-01 : f32
    %76 = vector.broadcast %cst_72 : f32 to vector<16x16x4xf32>
    %77 = arith.mulf %76, %69 : vector<16x16x4xf32>
    %78 = arith.addf %77, %75 : vector<16x16x4xf32>
    %c0_73 = arith.constant 0 : index
    %c0_74 = arith.constant 0 : index
    %c0_75 = arith.constant 0 : index
    %c0_76 = arith.constant 0 : index
    %79 = vector.load %arg7[%c0_73, %c0_74, %c0_75, %c0_76] : memref<1x16x16x4xf32, #tpu.memory_space<vmem>>, vector<1x16x16x4xf32>
    %80 = vector.shape_cast %79 : vector<1x16x16x4xf32> to vector<16x16x4xf32>
    %81 = vector.shape_cast %78 : vector<16x16x4xf32> to vector<1x16x16x4xf32>
    tpu.vector_store %arg7[%c0_73, %c0_74, %c0_75, %c0_76], %81 {strides = array<i32>} : memref<1x16x16x4xf32, #tpu.memory_space<vmem>>, vector<1x16x16x4xf32>,
    return
  }
  func.func @transform_0(%arg0: i32) -> (i32, i32) {
    %c0_i32 = arith.constant 0 : i32
    %c0_i32_0 = arith.constant 0 : i32
    %c0_i32_1 = arith.constant 0 : i32
    return %c0_i32, %c0_i32_0 : i32, i32
  }
  func.func @transform_1(%arg0: i32) -> (i32, i32) {
    %c0_i32 = arith.constant 0 : i32
    %c0_i32_0 = arith.constant 0 : i32
    %c0_i32_1 = arith.constant 0 : i32
    return %c0_i32, %c0_i32_0 : i32, i32
  }
  func.func @transform_2(%arg0: i32) -> (i32, i32, i32, i32) {
    %c0_i32 = arith.constant 0 : i32
    %c0_i32_0 = arith.constant 0 : i32
    %c0_i32_1 = arith.constant 0 : i32
    %c0_i32_2 = arith.constant 0 : i32
    return %arg0, %c0_i32, %c0_i32_0, %c0_i32_1 : i32, i32, i32, i32
  }
  func.func @transform_3(%arg0: i32) -> (i32, i32, i32) {
    %c0_i32 = arith.constant 0 : i32
    %c0_i32_0 = arith.constant 0 : i32
    %c0_i32_1 = arith.constant 0 : i32
    %c0_i32_2 = arith.constant 0 : i32
    return %c0_i32, %c0_i32_0, %c0_i32_1 : i32, i32, i32
  }
  func.func @transform_4(%arg0: i32) -> (i32, i32) {
    %c0_i32 = arith.constant 0 : i32
    %c0_i32_0 = arith.constant 0 : i32
    %c0_i32_1 = arith.constant 0 : i32
    return %c0_i32, %c0_i32_0 : i32, i32
  }
  func.func @transform_5(%arg0: i32) -> (i32, i32, i32, i32) {
    %c0_i32 = arith.constant 0 : i32
    %c0_i32_0 = arith.constant 0 : i32
    %c0_i32_1 = arith.constant 0 : i32
    %c0_i32_2 = arith.constant 0 : i32
    return %arg0, %c0_i32, %c0_i32_0, %c0_i32_1 : i32, i32, i32, i32
  }
  func.func @transform_6(%arg0: i32) -> (i32, i32, i32, i32) {
    %c0_i32 = arith.constant 0 : i32
    %c0_i32_0 = arith.constant 0 : i32
    %c0_i32_1 = arith.constant 0 : i32
    %c0_i32_2 = arith.constant 0 : i32
    return %arg0, %c0_i32, %c0_i32_0, %c0_i32_1 : i32, i32, i32, i32
  }
}

</mosaic_0001>

<llo_original>
// kernel: _lambda_.3
$region0: #{_lambda_.3}
  #allocation0 [shape = 'u32[]', space=smem, size = 0x4, offset = 0x4, fixed_abs, tag = 'smem constant byte address 0x4 - core index']
  #allocation1 [shape = 'u32[144,128]{1,0:T(1,128)}', space=vmem, size = 0x12000, scoped, tag = 'internal scratch']
  #allocation2 [shape = 'bf16[18,18,2]{2,1,0:T(8,128)(2,1)}', space=vmem, size = 0x1b000, scoped, tag = 'scratch operand']
  %s0 = inlined_call_operand.vmem [shape: f32[1,2], index: 0, kind: input, shape index: {}]
  %s1 = inlined_call_operand.vmem [shape: f32[1,2], index: 1, kind: input, shape index: {}]
  %s2 = inlined_call_operand.vmem [shape: f32[2,18,18,2], index: 2, kind: input, shape index: {}]
  %s3 = inlined_call_operand.vmem [shape: bf16[9,2,4], index: 3, kind: input, shape index: {}]
  %s4 = inlined_call_operand.vmem [shape: f32[1,4], index: 4, kind: input, shape index: {}]
  %s5 = inlined_call_operand.vmem [shape: f32[2,16,16,4], index: 5, kind: input, shape index: {}]
  %s6 = inlined_call_operand.vmem [shape: f32[2,16,16,4], index: 6, kind: output, shape index: {}]
  %s7 = sld [smem:[#allocation0]]
  $region57: #{_lambda_.3} parent=0
    _
  %s9 = ssub.s32 1, %s7
  %s10 = scalar_select 0, %s9, %s7
  loop: start=0, step=1, limit=4
  $region2: #{_lambda_.3} parent=0 // loop_pre_header
    _
  $region3: #{_lambda_.3} parent=0 // loop_header
    %s12 = sphi 0, %s16
    %p13 = scmp.ge.s32.totalorder %s12, 4
    %s20 = sphi 0, %s20
    %s22 = sphi 0, %s20
    %s23 = sphi 0, %s22
    %s37 = sphi 0, %s23
    %s41 = sphi 0, %s41
    %s43 = sphi 0, %s41
    %s44 = sphi 0, %s43
    %s58 = sphi 0, %s44
    %s64 = sphi 0, %s66
    %s67 = sphi 0, %s64
    %s68 = sphi 0, %s67
    %s84 = sphi 0, %s68
    %s88 = sphi 0, %s88
    %s90 = sphi 0, %s88
    %s91 = sphi 0, %s90
    %s105 = sphi 0, %s91
    %s109 = sphi 0, %s109
    %s111 = sphi 0, %s109
    %s112 = sphi 0, %s111
    %s126 = sphi 0, %s112
    %s132 = sphi 0, %s134
    %s135 = sphi 0, %s132
    %s136 = sphi 0, %s135
    %s152 = sphi 0, %s136
    %s158 = sphi 0, %s160
    %s161 = sphi 0, %s158
    %s162 = sphi 0, %s161
    %s178 = sphi 0, %s162
  $region4: #{_lambda_.3} parent=0 // loop_header_branch
    %15 = sbr.rel (%p13) target = $region8
  $region5: #{_lambda_.3} parent=0 // loop_body
    %s17 = ssub.s32 %s12, 1
    %s18 = ssub.s32 %s12, 2
    %s19 = sadd.s32 %s12, 1
    %s21 = sadd.s32 %s20, 1
    %p24 = scmp.eq.s32.totalorder %s12, 1
    %p25 = scmp.ne.s32.totalorder %s20, %s22
    %p26 = scmp.eq.s32.totalorder %s12, 0
    %p27 = por %p25, %p26
    %p28 = scmp.ne.s32.totalorder %s20, %s22
    %p29 = scmp.eq.s32.totalorder %s17, 1
    %p30 = por %p28, %p29
    %p31 = scmp.ne.s32.totalorder %s22, %s23
    %p32 = scmp.eq.s32.totalorder %s17, 0
    %p33 = por %p31, %p32
    %p34 = scmp.ne.s32.totalorder %s22, %s23
    %p35 = scmp.eq.s32.totalorder %s18, 1
    %p36 = por %p34, %p35
    %p38 = scmp.ne.s32.totalorder %s23, %s37
    %p39 = scmp.eq.s32.totalorder %s18, 0
    %p40 = por %p38, %p39
    %s42 = sadd.s32 %s41, 1
    %p45 = scmp.eq.s32.totalorder %s12, 1
    %p46 = scmp.ne.s32.totalorder %s41, %s43
    %p47 = scmp.eq.s32.totalorder %s12, 0
    %p48 = por %p46, %p47
    %p49 = scmp.ne.s32.totalorder %s41, %s43
    %p50 = scmp.eq.s32.totalorder %s17, 1
    %p51 = por %p49, %p50
    %p52 = scmp.ne.s32.totalorder %s43, %s44
    %p53 = scmp.eq.s32.totalorder %s17, 0
    %p54 = por %p52, %p53
    %p55 = scmp.ne.s32.totalorder %s43, %s44
    %p56 = scmp.eq.s32.totalorder %s18, 1
    %p57 = por %p55, %p56
    %p59 = scmp.ne.s32.totalorder %s44, %s58
    %p60 = scmp.eq.s32.totalorder %s18, 0
    %p61 = por %p59, %p60
    %s62 = ssub.s32 %s12, %s19
    %p63 = scmp.eq.s32.totalorder %s62, 0
    %s65 = sadd.s32 %s64, 1
    %s66 = scalar_select %p63, %s64, %s65
    %p69 = pneg %p63
    %p70 = scmp.eq.s32.totalorder %s12, 1
    %p71 = por %p69, %p70
    %p72 = scmp.ne.s32.totalorder %s64, %s67
    %p73 = scmp.eq.s32.totalorder %s12, 0
    %p74 = por %p72, %p73
    %p75 = scmp.ne.s32.totalorder %s64, %s67
    %p76 = scmp.eq.s32.totalorder %s17, 1
    %p77 = por %p75, %p76
    %p78 = scmp.ne.s32.totalorder %s67, %s68
    %p79 = scmp.eq.s32.totalorder %s17, 0
    %p80 = por %p78, %p79
    %p81 = scmp.ne.s32.totalorder %s67, %s68
    %p82 = scmp.eq.s32.totalorder %s18, 1
    %p83 = por %p81, %p82
    %p85 = scmp.ne.s32.totalorder %s68, %s84
    %p86 = scmp.eq.s32.totalorder %s18, 0
    %p87 = por %p85, %p86
    %s89 = sadd.s32 %s88, 1
    %p92 = scmp.eq.s32.totalorder %s12, 1
    %p93 = scmp.ne.s32.totalorder %s88, %s90
    %p94 = scmp.eq.s32.totalorder %s12, 0
    %p95 = por %p93, %p94
    %p96 = scmp.ne.s32.totalorder %s88, %s90
    %p97 = scmp.eq.s32.totalorder %s17, 1
    %p98 = por %p96, %p97
    %p99 = scmp.ne.s32.totalorder %s90, %s91
    %p100 = scmp.eq.s32.totalorder %s17, 0
    %p101 = por %p99, %p100
    %p102 = scmp.ne.s32.totalorder %s90, %s91
    %p103 = scmp.eq.s32.totalorder %s18, 1
    %p104 = por %p102, %p103
    %p106 = scmp.ne.s32.totalorder %s91, %s105
    %p107 = scmp.eq.s32.totalorder %s18, 0
    %p108 = por %p106, %p107
    %s110 = sadd.s32 %s109, 1
    %p113 = scmp.eq.s32.totalorder %s12, 1
    %p114 = scmp.ne.s32.totalorder %s109, %s111
    %p115 = scmp.eq.s32.totalorder %s12, 0
    %p116 = por %p114, %p115
    %p117 = scmp.ne.s32.totalorder %s109, %s111
    %p118 = scmp.eq.s32.totalorder %s17, 1
    %p119 = por %p117, %p118
    %p120 = scmp.ne.s32.totalorder %s111, %s112
    %p121 = scmp.eq.s32.totalorder %s17, 0
    %p122 = por %p120, %p121
    %p123 = scmp.ne.s32.totalorder %s111, %s112
    %p124 = scmp.eq.s32.totalorder %s18, 1
    %p125 = por %p123, %p124
    %p127 = scmp.ne.s32.totalorder %s112, %s126
    %p128 = scmp.eq.s32.totalorder %s18, 0
    %p129 = por %p127, %p128
    %s130 = ssub.s32 %s12, %s19
    %p131 = scmp.eq.s32.totalorder %s130, 0
    %s133 = sadd.s32 %s132, 1
    %s134 = scalar_select %p131, %s132, %s133
    %p137 = pneg %p131
    %p138 = scmp.eq.s32.totalorder %s12, 1
    %p139 = por %p137, %p138
    %p140 = scmp.ne.s32.totalorder %s132, %s135
    %p141 = scmp.eq.s32.totalorder %s12, 0
    %p142 = por %p140, %p141
    %p143 = scmp.ne.s32.totalorder %s132, %s135
    %p144 = scmp.eq.s32.totalorder %s17, 1
    %p145 = por %p143, %p144
    %p146 = scmp.ne.s32.totalorder %s135, %s136
    %p147 = scmp.eq.s32.totalorder %s17, 0
    %p148 = por %p146, %p147
    %p149 = scmp.ne.s32.totalorder %s135, %s136
    %p150 = scmp.eq.s32.totalorder %s18, 1
    %p151 = por %p149, %p150
    %p153 = scmp.ne.s32.totalorder %s136, %s152
    %p154 = scmp.eq.s32.totalorder %s18, 0
    %p155 = por %p153, %p154
    %s156 = ssub.s32 %s12, %s19
    %p157 = scmp.eq.s32.totalorder %s156, 0
    %s159 = sadd.s32 %s158, 1
    %s160 = scalar_select %p157, %s158, %s159
    %p163 = pneg %p157
    %p164 = scmp.eq.s32.totalorder %s12, 1
    %p165 = por %p163, %p164
    %p166 = scmp.ne.s32.totalorder %s158, %s161
    %p167 = scmp.eq.s32.totalorder %s12, 0
    %p168 = por %p166, %p167
    %p169 = scmp.ne.s32.totalorder %s158, %s161
    %p170 = scmp.eq.s32.totalorder %s17, 1
    %p171 = por %p169, %p170
    %p172 = scmp.ne.s32.totalorder %s161, %s162
    %p173 = scmp.eq.s32.totalorder %s17, 0
    %p174 = por %p172, %p173
    %p175 = scmp.ne.s32.totalorder %s161, %s162
    %p176 = scmp.eq.s32.totalorder %s18, 1
    %p177 = por %p175, %p176
    %p179 = scmp.ne.s32.totalorder %s162, %s178
    %p180 = scmp.eq.s32.totalorder %s18, 0
    %p181 = por %p179, %p180
    %p182 = scmp.le.s32.totalorder 1, %s12
    %p183 = scmp.lt.s32.totalorder %s12, 3
    %p184 = pnand %p182, %p183
    %p185 = pneg %p184
    // Predicated region
    $region9: #{_lambda_.3} parent=5 // pred_check
      _
    $region10: #{_lambda_.3} parent=5 // pred_check_branch
      %187 = sbr.rel (%p184) target = $region12
    $region11: #{_lambda_.3} parent=5 // pred_region
      %s188 = ssub.s32 %s12, 1
      // Predicated region
      $region13: #{_lambda_.3} parent=11 // pred_check
        %p189 = pneg %p33
      $region14: #{_lambda_.3} parent=11 // pred_check_branch
        %191 = sbr.rel (%p189) target = $region16
      $region15: #{_lambda_.3} parent=11 // pred_region
        _
      $region16: #{_lambda_.3} parent=11 // pred_fallthru
        _
      // Predicated region
      $region17: #{_lambda_.3} parent=11 // pred_check
        %p192 = pneg %p54
      $region18: #{_lambda_.3} parent=11 // pred_check_branch
        %194 = sbr.rel (%p192) target = $region20
      $region19: #{_lambda_.3} parent=11 // pred_region
        _
      $region20: #{_lambda_.3} parent=11 // pred_fallthru
        _
      // Predicated region
      $region21: #{_lambda_.3} parent=11 // pred_check
        %p195 = pneg %p101
      $region22: #{_lambda_.3} parent=11 // pred_check_branch
        %197 = sbr.rel (%p195) target = $region24
      $region23: #{_lambda_.3} parent=11 // pred_region
        _
      $region24: #{_lambda_.3} parent=11 // pred_fallthru
        _
      // Predicated region
      $region25: #{_lambda_.3} parent=11 // pred_check
        %p198 = pneg %p122
      $region26: #{_lambda_.3} parent=11 // pred_check_branch
        %200 = sbr.rel (%p198) target = $region28
      $region27: #{_lambda_.3} parent=11 // pred_region
        _
      $region28: #{_lambda_.3} parent=11 // pred_fallthru
        _
    $region12: #{_lambda_.3} parent=5 // pred_fallthru
      _
    %p201 = scmp.lt.s32.totalorder %s12, 2
    // Predicated region
    $region29: #{_lambda_.3} parent=5 // pred_check
      %p202 = pneg %p201
    $region30: #{_lambda_.3} parent=5 // pred_check_branch
      %204 = sbr.rel (%p202) target = $region32
    $region31: #{_lambda_.3} parent=5 // pred_region
      // Predicated region
      $region33: #{_lambda_.3} parent=31 // pred_check
        %p205 = pneg %p74
      $region34: #{_lambda_.3} parent=31 // pred_check_branch
        %207 = sbr.rel (%p205) target = $region36
      $region35: #{_lambda_.3} parent=31 // pred_region
        %p208 = scmp.lt.s32.totalorder %s12, 1
        %s209 = scalar_select %p208, %s12, 1
        %s210 = smul.addr %s209, 54
        %s211 = smul.addr %s210, 8
        %s212 = scalar_lea.vmem %s2, %s211
      $region36: #{_lambda_.3} parent=31 // pred_fallthru
        _
      // Predicated region
      $region37: #{_lambda_.3} parent=31 // pred_check
        %p213 = pneg %p142
      $region38: #{_lambda_.3} parent=31 // pred_check_branch
        %215 = sbr.rel (%p213) target = $region40
      $region39: #{_lambda_.3} parent=31 // pred_region
        %p216 = scmp.lt.s32.totalorder %s12, 1
        %s217 = scalar_select %p216, %s12, 1
        %s218 = smul.addr %s217, 32
        %s219 = smul.addr %s218, 8
        %s220 = scalar_lea.vmem %s5, %s219
      $region40: #{_lambda_.3} parent=31 // pred_fallthru
        _
    $region32: #{_lambda_.3} parent=5 // pred_fallthru
      _
    %p221 = scmp.le.s32.totalorder 1, %s12
    %p222 = scmp.lt.s32.totalorder %s12, 3
    %p223 = pnand %p221, %p222
    %p224 = pneg %p223
    // Predicated region
    $region41: #{_lambda_.3} parent=5 // pred_check
      _
    $region42: #{_lambda_.3} parent=5 // pred_check_branch
      %226 = sbr.rel (%p223) target = $region44
    $region43: #{_lambda_.3} parent=5 // pred_region
      %s227 = ssub.s32 %s12, 1
      %p228 = pneg %p33
      %p229 = pneg %p30
      %p230 = pneg %p54
      %p231 = pneg %p51
      %p232 = scmp.lt.s32.totalorder %s17, 1
      %s233 = scalar_select %p232, %s17, 1
      %s234 = smul.addr %s233, 54
      %s235 = smul.addr %s234, 8
      %s236 = scalar_lea.vmem %s2, %s235
      %p237 = pneg %p80
      %p238 = pneg %p77
      %p239 = pneg %p101
      %p240 = pneg %p98
      %p241 = pneg %p122
      %p242 = pneg %p119
      %p243 = scmp.lt.s32.totalorder %s17, 1
      %s244 = scalar_select %p243, %s17, 1
      %s245 = smul.addr %s244, 32
      %s246 = smul.addr %s245, 8
      %s247 = scalar_lea.vmem %s5, %s246
      %p248 = pneg %p148
      %p249 = pneg %p145
      %p250 = pneg %p174
      %p251 = pneg %p171
      %p252 = scmp.lt.s32.totalorder %s17, 1
      %s253 = scalar_select %p252, %s17, 1
      %s254 = smul.addr %s253, 32
      %s255 = smul.addr %s254, 8
      %s256 = scalar_lea.vmem %s6, %s255
      %p257 = scmp.lt.s32.totalorder %s17, 1
      %s258 = scalar_select %p257, %s17, 1
      %s259 = smul.addr %s258, 54
      %s260 = smul.addr %s259, 8
      %s261 = scalar_lea.vmem %s2, %s260
      %p262 = scmp.lt.s32.totalorder %s17, 1
      %s263 = scalar_select %p262, %s17, 1
      %s264 = smul.addr %s263, 32
      %s265 = smul.addr %s264, 8
      %s266 = scalar_lea.vmem %s5, %s265
      %p267 = scmp.lt.s32.totalorder %s17, 1
      %s268 = scalar_select %p267, %s17, 1
      %s269 = smul.addr %s268, 32
      %s270 = smul.addr %s269, 8
      %s271 = scalar_lea.vmem %s6, %s270
      %v273 = vld [vmem:[%s261] sm:$0xff]
      %v274 = vld [vmem:[%s261 + $0x8] sm:$0xff]
      %v275 = vld [vmem:[%s261 + $0x10] sm:$0x3]
      %v276 = vld [vmem:[%s261 + $0x18] sm:$0xff]
      %v277 = vld [vmem:[%s261 + $0x20] sm:$0xff]
      %v278 = vld [vmem:[%s261 + $0x28] sm:$0x3]
      %v279 = vld [vmem:[%s261 + $0x30] sm:$0xff]
      %v280 = vld [vmem:[%s261 + $0x38] sm:$0xff]
      %v281 = vld [vmem:[%s261 + $0x40] sm:$0x3]
      %v282 = vld [vmem:[%s261 + $0x48] sm:$0xff]
      %v283 = vld [vmem:[%s261 + $0x50] sm:$0xff]
      %v284 = vld [vmem:[%s261 + $0x58] sm:$0x3]
      %v285 = vld [vmem:[%s261 + $0x60] sm:$0xff]
      %v286 = vld [vmem:[%s261 + $0x68] sm:$0xff]
      %v287 = vld [vmem:[%s261 + $0x70] sm:$0x3]
      %v288 = vld [vmem:[%s261 + $0x78] sm:$0xff]
      %v289 = vld [vmem:[%s261 + $0x80] sm:$0xff]
      %v290 = vld [vmem:[%s261 + $0x88] sm:$0x3]
      %v291 = vld [vmem:[%s261 + $0x90] sm:$0xff]
      %v292 = vld [vmem:[%s261 + $0x98] sm:$0xff]
      %v293 = vld [vmem:[%s261 + $0xa0] sm:$0x3]
      %v294 = vld [vmem:[%s261 + $0xa8] sm:$0xff]
      %v295 = vld [vmem:[%s261 + $0xb0] sm:$0xff]
      %v296 = vld [vmem:[%s261 + $0xb8] sm:$0x3]
      %v297 = vld [vmem:[%s261 + $0xc0] sm:$0xff]
      %v298 = vld [vmem:[%s261 + $0xc8] sm:$0xff]
      %v299 = vld [vmem:[%s261 + $0xd0] sm:$0x3]
      %v300 = vld [vmem:[%s261 + $0xd8] sm:$0xff]
      %v301 = vld [vmem:[%s261 + $0xe0] sm:$0xff]
      %v302 = vld [vmem:[%s261 + $0xe8] sm:$0x3]
      %v303 = vld [vmem:[%s261 + $0xf0] sm:$0xff]
      %v304 = vld [vmem:[%s261 + $0xf8] sm:$0xff]
      %v305 = vld [vmem:[%s261 + $0x100] sm:$0x3]
      %v306 = vld [vmem:[%s261 + $0x108] sm:$0xff]
      %v307 = vld [vmem:[%s261 + $0x110] sm:$0xff]
      %v308 = vld [vmem:[%s261 + $0x118] sm:$0x3]
      %v309 = vld [vmem:[%s261 + $0x120] sm:$0xff]
      %v310 = vld [vmem:[%s261 + $0x128] sm:$0xff]
      %v311 = vld [vmem:[%s261 + $0x130] sm:$0x3]
      %v312 = vld [vmem:[%s261 + $0x138] sm:$0xff]
      %v313 = vld [vmem:[%s261 + $0x140] sm:$0xff]
      %v314 = vld [vmem:[%s261 + $0x148] sm:$0x3]
      %v315 = vld [vmem:[%s261 + $0x150] sm:$0xff]
      %v316 = vld [vmem:[%s261 + $0x158] sm:$0xff]
      %v317 = vld [vmem:[%s261 + $0x160] sm:$0x3]
      %v318 = vld [vmem:[%s261 + $0x168] sm:$0xff]
      %v319 = vld [vmem:[%s261 + $0x170] sm:$0xff]
      %v320 = vld [vmem:[%s261 + $0x178] sm:$0x3]
      %v321 = vld [vmem:[%s261 + $0x180] sm:$0xff]
      %v322 = vld [vmem:[%s261 + $0x188] sm:$0xff]
      %v323 = vld [vmem:[%s261 + $0x190] sm:$0x3]
      %v324 = vld [vmem:[%s261 + $0x198] sm:$0xff]
      %v325 = vld [vmem:[%s261 + $0x1a0] sm:$0xff]
      %v326 = vld [vmem:[%s261 + $0x1a8] sm:$0x3]
      %v327 = vld [vmem:[%s0] sm:$0x1]
      %v328 = vld [vmem:[%s1] sm:$0x1]
      %v330 = vlaneseq
      %v331 = vshrl.u32 %v330, 7
      %v332 = vsub.s32 0, %v331
      %v333 = vrot.slane %v327, %v332
      %v335 = vmul.f32 %v273, %v333
      %v336 = vmul.f32 %v274, %v333
      %v337 = vmul.f32 %v275, %v333
      %v338 = vmul.f32 %v276, %v333
      %v339 = vmul.f32 %v277, %v333
      %v340 = vmul.f32 %v278, %v333
      %v341 = vmul.f32 %v279, %v333
      %v342 = vmul.f32 %v280, %v333
      %v343 = vmul.f32 %v281, %v333
      %v344 = vmul.f32 %v282, %v333
      %v345 = vmul.f32 %v283, %v333
      %v346 = vmul.f32 %v284, %v333
      %v347 = vmul.f32 %v285, %v333
      %v348 = vmul.f32 %v286, %v333
      %v349 = vmul.f32 %v287, %v333
      %v350 = vmul.f32 %v288, %v333
      %v351 = vmul.f32 %v289, %v333
      %v352 = vmul.f32 %v290, %v333
      %v353 = vmul.f32 %v291, %v333
      %v354 = vmul.f32 %v292, %v333
      %v355 = vmul.f32 %v293, %v333
      %v356 = vmul.f32 %v294, %v333
      %v357 = vmul.f32 %v295, %v333
      %v358 = vmul.f32 %v296, %v333
      %v359 = vmul.f32 %v297, %v333
      %v360 = vmul.f32 %v298, %v333
      %v361 = vmul.f32 %v299, %v333
      %v362 = vmul.f32 %v300, %v333
      %v363 = vmul.f32 %v301, %v333
      %v364 = vmul.f32 %v302, %v333
      %v365 = vmul.f32 %v303, %v333
      %v366 = vmul.f32 %v304, %v333
      %v367 = vmul.f32 %v305, %v333
      %v368 = vmul.f32 %v306, %v333
      %v369 = vmul.f32 %v307, %v333
      %v370 = vmul.f32 %v308, %v333
      %v371 = vmul.f32 %v309, %v333
      %v372 = vmul.f32 %v310, %v333
      %v373 = vmul.f32 %v311, %v333
      %v374 = vmul.f32 %v312, %v333
      %v375 = vmul.f32 %v313, %v333
      %v376 = vmul.f32 %v314, %v333
      %v377 = vmul.f32 %v315, %v333
      %v378 = vmul.f32 %v316, %v333
      %v379 = vmul.f32 %v317, %v333
      %v380 = vmul.f32 %v318, %v333
      %v381 = vmul.f32 %v319, %v333
      %v382 = vmul.f32 %v320, %v333
      %v383 = vmul.f32 %v321, %v333
      %v384 = vmul.f32 %v322, %v333
      %v385 = vmul.f32 %v323, %v333
      %v386 = vmul.f32 %v324, %v333
      %v387 = vmul.f32 %v325, %v333
      %v388 = vmul.f32 %v326, %v333
      %v390 = vlaneseq
      %v391 = vshrl.u32 %v390, 7
      %v392 = vsub.s32 0, %v391
      %v393 = vrot.slane %v328, %v392
      %v395 = vadd.f32 %v335, %v393
      %v396 = vadd.f32 %v336, %v393
      %v397 = vadd.f32 %v337, %v393
      %v398 = vadd.f32 %v338, %v393
      %v399 = vadd.f32 %v339, %v393
      %v400 = vadd.f32 %v340, %v393
      %v401 = vadd.f32 %v341, %v393
      %v402 = vadd.f32 %v342, %v393
      %v403 = vadd.f32 %v343, %v393
      %v404 = vadd.f32 %v344, %v393
      %v405 = vadd.f32 %v345, %v393
      %v406 = vadd.f32 %v346, %v393
      %v407 = vadd.f32 %v347, %v393
      %v408 = vadd.f32 %v348, %v393
      %v409 = vadd.f32 %v349, %v393
      %v410 = vadd.f32 %v350, %v393
      %v411 = vadd.f32 %v351, %v393
      %v412 = vadd.f32 %v352, %v393
      %v413 = vadd.f32 %v353, %v393
      %v414 = vadd.f32 %v354, %v393
      %v415 = vadd.f32 %v355, %v393
      %v416 = vadd.f32 %v356, %v393
      %v417 = vadd.f32 %v357, %v393
      %v418 = vadd.f32 %v358, %v393
      %v419 = vadd.f32 %v359, %v393
      %v420 = vadd.f32 %v360, %v393
      %v421 = vadd.f32 %v361, %v393
      %v422 = vadd.f32 %v362, %v393
      %v423 = vadd.f32 %v363, %v393
      %v424 = vadd.f32 %v364, %v393
      %v425 = vadd.f32 %v365, %v393
      %v426 = vadd.f32 %v366, %v393
      %v427 = vadd.f32 %v367, %v393
      %v428 = vadd.f32 %v368, %v393
      %v429 = vadd.f32 %v369, %v393
      %v430 = vadd.f32 %v370, %v393
      %v431 = vadd.f32 %v371, %v393
      %v432 = vadd.f32 %v372, %v393
      %v433 = vadd.f32 %v373, %v393
      %v434 = vadd.f32 %v374, %v393
      %v435 = vadd.f32 %v375, %v393
      %v436 = vadd.f32 %v376, %v393
      %v437 = vadd.f32 %v377, %v393
      %v438 = vadd.f32 %v378, %v393
      %v439 = vadd.f32 %v379, %v393
      %v440 = vadd.f32 %v380, %v393
      %v441 = vadd.f32 %v381, %v393
      %v442 = vadd.f32 %v382, %v393
      %v443 = vadd.f32 %v383, %v393
      %v444 = vadd.f32 %v384, %v393
      %v445 = vadd.f32 %v385, %v393
      %v446 = vadd.f32 %v386, %v393
      %v447 = vadd.f32 %v387, %v393
      %v448 = vadd.f32 %v388, %v393
      %v449 = vmax.f32 %v395, 0.0
      %v450 = vmax.f32 %v396, 0.0
      %v451 = vmax.f32 %v397, 0.0
      %v452 = vmax.f32 %v398, 0.0
      %v453 = vmax.f32 %v399, 0.0
      %v454 = vmax.f32 %v400, 0.0
      %v455 = vmax.f32 %v401, 0.0
      %v456 = vmax.f32 %v402, 0.0
      %v457 = vmax.f32 %v403, 0.0
      %v458 = vmax.f32 %v404, 0.0
      %v459 = vmax.f32 %v405, 0.0
      %v460 = vmax.f32 %v406, 0.0
      %v461 = vmax.f32 %v407, 0.0
      %v462 = vmax.f32 %v408, 0.0
      %v463 = vmax.f32 %v409, 0.0
      %v464 = vmax.f32 %v410, 0.0
      %v465 = vmax.f32 %v411, 0.0
      %v466 = vmax.f32 %v412, 0.0
      %v467 = vmax.f32 %v413, 0.0
      %v468 = vmax.f32 %v414, 0.0
      %v469 = vmax.f32 %v415, 0.0
      %v470 = vmax.f32 %v416, 0.0
      %v471 = vmax.f32 %v417, 0.0
      %v472 = vmax.f32 %v418, 0.0
      %v473 = vmax.f32 %v419, 0.0
      %v474 = vmax.f32 %v420, 0.0
      %v475 = vmax.f32 %v421, 0.0
      %v476 = vmax.f32 %v422, 0.0
      %v477 = vmax.f32 %v423, 0.0
      %v478 = vmax.f32 %v424, 0.0
      %v479 = vmax.f32 %v425, 0.0
      %v480 = vmax.f32 %v426, 0.0
      %v481 = vmax.f32 %v427, 0.0
      %v482 = vmax.f32 %v428, 0.0
      %v483 = vmax.f32 %v429, 0.0
      %v484 = vmax.f32 %v430, 0.0
      %v485 = vmax.f32 %v431, 0.0
      %v486 = vmax.f32 %v432, 0.0
      %v487 = vmax.f32 %v433, 0.0
      %v488 = vmax.f32 %v434, 0.0
      %v489 = vmax.f32 %v435, 0.0
      %v490 = vmax.f32 %v436, 0.0
      %v491 = vmax.f32 %v437, 0.0
      %v492 = vmax.f32 %v438, 0.0
      %v493 = vmax.f32 %v439, 0.0
      %v494 = vmax.f32 %v440, 0.0
      %v495 = vmax.f32 %v441, 0.0
      %v496 = vmax.f32 %v442, 0.0
      %v497 = vmax.f32 %v443, 0.0
      %v498 = vmax.f32 %v444, 0.0
      %v499 = vmax.f32 %v445, 0.0
      %v500 = vmax.f32 %v446, 0.0
      %v501 = vmax.f32 %v447, 0.0
      %v502 = vmax.f32 %v448, 0.0
      %v503 = vpack.c.bf16 %v450, %v449
      %v504 = vpack.c.bf16 %v451, %v451
      %v505 = vpack.c.bf16 %v453, %v452
      %v506 = vpack.c.bf16 %v454, %v454
      %v507 = vpack.c.bf16 %v456, %v455
      %v508 = vpack.c.bf16 %v457, %v457
      %v509 = vpack.c.bf16 %v459, %v458
      %v510 = vpack.c.bf16 %v460, %v460
      %v511 = vpack.c.bf16 %v462, %v461
      %v512 = vpack.c.bf16 %v463, %v463
      %v513 = vpack.c.bf16 %v465, %v464
      %v514 = vpack.c.bf16 %v466, %v466
      %v515 = vpack.c.bf16 %v468, %v467
      %v516 = vpack.c.bf16 %v469, %v469
      %v517 = vpack.c.bf16 %v471, %v470
      %v518 = vpack.c.bf16 %v472, %v472
      %v519 = vpack.c.bf16 %v474, %v473
      %v520 = vpack.c.bf16 %v475, %v475
      %v521 = vpack.c.bf16 %v477, %v476
      %v522 = vpack.c.bf16 %v478, %v478
      %v523 = vpack.c.bf16 %v480, %v479
      %v524 = vpack.c.bf16 %v481, %v481
      %v525 = vpack.c.bf16 %v483, %v482
      %v526 = vpack.c.bf16 %v484, %v484
      %v527 = vpack.c.bf16 %v486, %v485
      %v528 = vpack.c.bf16 %v487, %v487
      %v529 = vpack.c.bf16 %v489, %v488
      %v530 = vpack.c.bf16 %v490, %v490
      %v531 = vpack.c.bf16 %v492, %v491
      %v532 = vpack.c.bf16 %v493, %v493
      %v533 = vpack.c.bf16 %v495, %v494
      %v534 = vpack.c.bf16 %v496, %v496
      %v535 = vpack.c.bf16 %v498, %v497
      %v536 = vpack.c.bf16 %v499, %v499
      %v537 = vpack.c.bf16 %v501, %v500
      %v538 = vpack.c.bf16 %v502, %v502
      %v575 = vunpack.c.l.b16 %v503
      %v576 = vunpack.c.h.b16 %v503
      %v577 = vunpack.c.l.b16 %v504
      %v578 = vunpack.c.l.b16 %v505
      %v579 = vunpack.c.h.b16 %v505
      %v580 = vunpack.c.l.b16 %v506
      %v581 = vunpack.c.l.b16 %v507
      %v582 = vunpack.c.h.b16 %v507
      %v583 = vunpack.c.l.b16 %v508
      %v584 = vunpack.c.l.b16 %v509
      %v585 = vunpack.c.h.b16 %v509
      %v586 = vunpack.c.l.b16 %v510
      %v587 = vunpack.c.l.b16 %v511
      %v588 = vunpack.c.h.b16 %v511
      %v589 = vunpack.c.l.b16 %v512
      %v590 = vunpack.c.l.b16 %v513
      %v591 = vunpack.c.h.b16 %v513
      %v592 = vunpack.c.l.b16 %v514
      %v593 = vunpack.c.l.b16 %v515
      %v594 = vunpack.c.h.b16 %v515
      %v595 = vunpack.c.l.b16 %v516
      %v596 = vunpack.c.l.b16 %v517
      %v597 = vunpack.c.h.b16 %v517
      %v598 = vunpack.c.l.b16 %v518
      %v599 = vunpack.c.l.b16 %v519
      %v600 = vunpack.c.h.b16 %v519
      %v601 = vunpack.c.l.b16 %v520
      %v602 = vunpack.c.l.b16 %v521
      %v603 = vunpack.c.h.b16 %v521
      %v604 = vunpack.c.l.b16 %v522
      %v605 = vunpack.c.l.b16 %v523
      %v606 = vunpack.c.h.b16 %v523
      %v607 = vunpack.c.l.b16 %v524
      %v608 = vunpack.c.l.b16 %v525
      %v609 = vunpack.c.h.b16 %v525
      %v610 = vunpack.c.l.b16 %v526
      %v611 = vunpack.c.l.b16 %v527
      %v612 = vunpack.c.h.b16 %v527
      %v613 = vunpack.c.l.b16 %v528
      %v614 = vunpack.c.l.b16 %v529
      %v615 = vunpack.c.h.b16 %v529
      %v616 = vunpack.c.l.b16 %v530
      %v617 = vunpack.c.l.b16 %v531
      %v618 = vunpack.c.h.b16 %v531
      %v619 = vunpack.c.l.b16 %v532
      %v620 = vunpack.c.l.b16 %v533
      %v621 = vunpack.c.h.b16 %v533
      %v622 = vunpack.c.l.b16 %v534
      %v623 = vunpack.c.l.b16 %v535
      %v624 = vunpack.c.h.b16 %v535
      %v625 = vunpack.c.l.b16 %v536
      %v626 = vunpack.c.l.b16 %v537
      %v627 = vunpack.c.h.b16 %v537
      %v628 = vunpack.c.l.b16 %v538
      %v629 = vpack.c.b16 %v575, %v575
      %v630 = vpack.c.b16 %v576, %v576
      %v631 = vpack.c.b16 %v577, %v577
      %v632 = vpack.c.b16 %v578, %v578
      %v633 = vpack.c.b16 %v579, %v579
      %v634 = vpack.c.b16 %v580, %v580
      %v635 = vpack.c.b16 %v581, %v581
      %v636 = vpack.c.b16 %v582, %v582
      %v637 = vpack.c.b16 %v583, %v583
      %v638 = vpack.c.b16 %v584, %v584
      %v639 = vpack.c.b16 %v585, %v585
      %v640 = vpack.c.b16 %v586, %v586
      %v641 = vpack.c.b16 %v587, %v587
      %v642 = vpack.c.b16 %v588, %v588
      %v643 = vpack.c.b16 %v589, %v589
      %v644 = vpack.c.b16 %v590, %v590
      %v645 = vpack.c.b16 %v591, %v591
      %v646 = vpack.c.b16 %v592, %v592
      %v647 = vpack.c.b16 %v593, %v593
      %v648 = vpack.c.b16 %v594, %v594
      %v649 = vpack.c.b16 %v595, %v595
      %v650 = vpack.c.b16 %v596, %v596
      %v651 = vpack.c.b16 %v597, %v597
      %v652 = vpack.c.b16 %v598, %v598
      %v653 = vpack.c.b16 %v599, %v599
      %v654 = vpack.c.b16 %v600, %v600
      %v655 = vpack.c.b16 %v601, %v601
      %v656 = vpack.c.b16 %v602, %v602
      %v657 = vpack.c.b16 %v603, %v603
      %v658 = vpack.c.b16 %v604, %v604
      %v659 = vpack.c.b16 %v605, %v605
      %v660 = vpack.c.b16 %v606, %v606
      %v661 = vpack.c.b16 %v607, %v607
      %v662 = vpack.c.b16 %v608, %v608
      %v663 = vpack.c.b16 %v609, %v609
      %v664 = vpack.c.b16 %v610, %v610
      %v665 = vpack.c.b16 %v611, %v611
      %v666 = vpack.c.b16 %v612, %v612
      %v667 = vpack.c.b16 %v613, %v613
      %v668 = vpack.c.b16 %v614, %v614
      %v669 = vpack.c.b16 %v615, %v615
      %v670 = vpack.c.b16 %v616, %v616
      %v671 = vpack.c.b16 %v617, %v617
      %v672 = vpack.c.b16 %v618, %v618
      %v673 = vpack.c.b16 %v619, %v619
      %v674 = vpack.c.b16 %v620, %v620
      %v675 = vpack.c.b16 %v621, %v621
      %v676 = vpack.c.b16 %v622, %v622
      %v677 = vpack.c.b16 %v623, %v623
      %v678 = vpack.c.b16 %v624, %v624
      %v679 = vpack.c.b16 %v625, %v625
      %v680 = vpack.c.b16 %v626, %v626
      %v681 = vpack.c.b16 %v627, %v627
      %v682 = vpack.c.b16 %v628, %v628
      %vm737 = vcmask 11264
      %738 = vst.msk [vmem:[#allocation2] sm:$0xf] %vm737, %v629
      %739 = vst.msk [vmem:[#allocation2 + $0x4] sm:$0xf] %vm737, %v630
      %vm740 = vcmask 8192
      %741 = vst.msk [vmem:[#allocation2 + $0x8] sm:$0x1] %vm740, %v631
      %742 = vst.msk [vmem:[#allocation2 + $0xc] sm:$0xf] %vm737, %v632
      %743 = vst.msk [vmem:[#allocation2 + $0x10] sm:$0xf] %vm737, %v633
      %744 = vst.msk [vmem:[#allocation2 + $0x14] sm:$0x1] %vm740, %v634
      %745 = vst.msk [vmem:[#allocation2 + $0x18] sm:$0xf] %vm737, %v635
      %746 = vst.msk [vmem:[#allocation2 + $0x1c] sm:$0xf] %vm737, %v636
      %747 = vst.msk [vmem:[#allocation2 + $0x20] sm:$0x1] %vm740, %v637
      %748 = vst.msk [vmem:[#allocation2 + $0x24] sm:$0xf] %vm737, %v638
      %749 = vst.msk [vmem:[#allocation2 + $0x28] sm:$0xf] %vm737, %v639
      %750 = vst.msk [vmem:[#allocation2 + $0x2c] sm:$0x1] %vm740, %v640
      %751 = vst.msk [vmem:[#allocation2 + $0x30] sm:$0xf] %vm737, %v641
      %752 = vst.msk [vmem:[#allocation2 + $0x34] sm:$0xf] %vm737, %v642
      %753 = vst.msk [vmem:[#allocation2 + $0x38] sm:$0x1] %vm740, %v643
      %754 = vst.msk [vmem:[#allocation2 + $0x3c] sm:$0xf] %vm737, %v644
      %755 = vst.msk [vmem:[#allocation2 + $0x40] sm:$0xf] %vm737, %v645
      %756 = vst.msk [vmem:[#allocation2 + $0x44] sm:$0x1] %vm740, %v646
      %757 = vst.msk [vmem:[#allocation2 + $0x48] sm:$0xf] %vm737, %v647
      %758 = vst.msk [vmem:[#allocation2 + $0x4c] sm:$0xf] %vm737, %v648
      %759 = vst.msk [vmem:[#allocation2 + $0x50] sm:$0x1] %vm740, %v649
      %760 = vst.msk [vmem:[#allocation2 + $0x54] sm:$0xf] %vm737, %v650
      %761 = vst.msk [vmem:[#allocation2 + $0x58] sm:$0xf] %vm737, %v651
      %762 = vst.msk [vmem:[#allocation2 + $0x5c] sm:$0x1] %vm740, %v652
      %763 = vst.msk [vmem:[#allocation2 + $0x60] sm:$0xf] %vm737, %v653
      %764 = vst.msk [vmem:[#allocation2 + $0x64] sm:$0xf] %vm737, %v654
      %765 = vst.msk [vmem:[#allocation2 + $0x68] sm:$0x1] %vm740, %v655
      %766 = vst.msk [vmem:[#allocation2 + $0x6c] sm:$0xf] %vm737, %v656
      %767 = vst.msk [vmem:[#allocation2 + $0x70] sm:$0xf] %vm737, %v657
      %768 = vst.msk [vmem:[#allocation2 + $0x74] sm:$0x1] %vm740, %v658
      %769 = vst.msk [vmem:[#allocation2 + $0x78] sm:$0xf] %vm737, %v659
      %770 = vst.msk [vmem:[#allocation2 + $0x7c] sm:$0xf] %vm737, %v660
      %771 = vst.msk [vmem:[#allocation2 + $0x80] sm:$0x1] %vm740, %v661
      %772 = vst.msk [vmem:[#allocation2 + $0x84] sm:$0xf] %vm737, %v662
      %773 = vst.msk [vmem:[#allocation2 + $0x88] sm:$0xf] %vm737, %v663
      %774 = vst.msk [vmem:[#allocation2 + $0x8c] sm:$0x1] %vm740, %v664
      %775 = vst.msk [vmem:[#allocation2 + $0x90] sm:$0xf] %vm737, %v665
      %776 = vst.msk [vmem:[#allocation2 + $0x94] sm:$0xf] %vm737, %v666
      %777 = vst.msk [vmem:[#allocation2 + $0x98] sm:$0x1] %vm740, %v667
      %778 = vst.msk [vmem:[#allocation2 + $0x9c] sm:$0xf] %vm737, %v668
      %779 = vst.msk [vmem:[#allocation2 + $0xa0] sm:$0xf] %vm737, %v669
      %780 = vst.msk [vmem:[#allocation2 + $0xa4] sm:$0x1] %vm740, %v670
      %781 = vst.msk [vmem:[#allocation2 + $0xa8] sm:$0xf] %vm737, %v671
      %782 = vst.msk [vmem:[#allocation2 + $0xac] sm:$0xf] %vm737, %v672
      %783 = vst.msk [vmem:[#allocation2 + $0xb0] sm:$0x1] %vm740, %v673
      %784 = vst.msk [vmem:[#allocation2 + $0xb4] sm:$0xf] %vm737, %v674
      %785 = vst.msk [vmem:[#allocation2 + $0xb8] sm:$0xf] %vm737, %v675
      %786 = vst.msk [vmem:[#allocation2 + $0xbc] sm:$0x1] %vm740, %v676
      %787 = vst.msk [vmem:[#allocation2 + $0xc0] sm:$0xf] %vm737, %v677
      %788 = vst.msk [vmem:[#allocation2 + $0xc4] sm:$0xf] %vm737, %v678
      %789 = vst.msk [vmem:[#allocation2 + $0xc8] sm:$0x1] %vm740, %v679
      %790 = vst.msk [vmem:[#allocation2 + $0xcc] sm:$0xf] %vm737, %v680
      %791 = vst.msk [vmem:[#allocation2 + $0xd0] sm:$0xf] %vm737, %v681
      %792 = vst.msk [vmem:[#allocation2 + $0xd4] sm:$0x1] %vm740, %v682
      %v793 = vld [vmem:[#allocation2] sm:$0xf]
      %v794 = vld [vmem:[#allocation2 + $0x4] sm:$0xf]
      %v795 = vld [vmem:[#allocation2 + $0xc] sm:$0xf]
      %v796 = vld [vmem:[#allocation2 + $0x10] sm:$0xf]
      %v797 = vld [vmem:[#allocation2 + $0x18] sm:$0xf]
      %v798 = vld [vmem:[#allocation2 + $0x1c] sm:$0xf]
      %v799 = vld [vmem:[#allocation2 + $0x24] sm:$0xf]
      %v800 = vld [vmem:[#allocation2 + $0x28] sm:$0xf]
      %v801 = vld [vmem:[#allocation2 + $0x30] sm:$0xf]
      %v802 = vld [vmem:[#allocation2 + $0x34] sm:$0xf]
      %v803 = vld [vmem:[#allocation2 + $0x3c] sm:$0xf]
      %v804 = vld [vmem:[#allocation2 + $0x40] sm:$0xf]
      %v805 = vld [vmem:[#allocation2 + $0x48] sm:$0xf]
      %v806 = vld [vmem:[#allocation2 + $0x4c] sm:$0xf]
      %v807 = vld [vmem:[#allocation2 + $0x54] sm:$0xf]
      %v808 = vld [vmem:[#allocation2 + $0x58] sm:$0xf]
      %v809 = vld [vmem:[#allocation2 + $0x60] sm:$0xf]
      %v810 = vld [vmem:[#allocation2 + $0x64] sm:$0xf]
      %v811 = vld [vmem:[#allocation2 + $0x6c] sm:$0xf]
      %v812 = vld [vmem:[#allocation2 + $0x70] sm:$0xf]
      %v813 = vld [vmem:[#allocation2 + $0x78] sm:$0xf]
      %v814 = vld [vmem:[#allocation2 + $0x7c] sm:$0xf]
      %v815 = vld [vmem:[#allocation2 + $0x84] sm:$0xf]
      %v816 = vld [vmem:[#allocation2 + $0x88] sm:$0xf]
      %v817 = vld [vmem:[#allocation2 + $0x90] sm:$0xf]
      %v818 = vld [vmem:[#allocation2 + $0x94] sm:$0xf]
      %v819 = vld [vmem:[#allocation2 + $0x9c] sm:$0xf]
      %v820 = vld [vmem:[#allocation2 + $0xa0] sm:$0xf]
      %v821 = vld [vmem:[#allocation2 + $0xa8] sm:$0xf]
      %v822 = vld [vmem:[#allocation2 + $0xac] sm:$0xf]
      %v823 = vld [vmem:[#allocation2 + $0xb4] sm:$0xf]
      %v824 = vld [vmem:[#allocation2 + $0xb8] sm:$0xf]
      %v825 = vld [vmem:[%s3] sm:$0x1]
      %v826 = vld [vmem:[#allocation2 + $0x8] sm:$0x1]
      %v827 = vld [vmem:[#allocation2 + $0x14] sm:$0x1]
      %v828 = vld [vmem:[#allocation2 + $0x20] sm:$0x1]
      %v829 = vld [vmem:[#allocation2 + $0x2c] sm:$0x1]
      %v830 = vld [vmem:[#allocation2 + $0x38] sm:$0x1]
      %v831 = vld [vmem:[#allocation2 + $0x44] sm:$0x1]
      %v832 = vld [vmem:[#allocation2 + $0x50] sm:$0x1]
      %v833 = vld [vmem:[#allocation2 + $0x5c] sm:$0x1]
      %v834 = vld [vmem:[#allocation2 + $0x68] sm:$0x1]
      %v835 = vld [vmem:[#allocation2 + $0x74] sm:$0x1]
      %v836 = vld [vmem:[#allocation2 + $0x80] sm:$0x1]
      %v837 = vld [vmem:[#allocation2 + $0x8c] sm:$0x1]
      %v838 = vld [vmem:[#allocation2 + $0x98] sm:$0x1]
      %v839 = vld [vmem:[#allocation2 + $0xa4] sm:$0x1]
      %v840 = vld [vmem:[#allocation2 + $0xb0] sm:$0x1]
      %v841 = vld [vmem:[#allocation2 + $0xbc] sm:$0x1]
      %vm842 = vsmask.f32 3328
      %vm843 = vsmask.f32 7440
      %vm844 = vmor %vm842, %vm843
      %v846 = vshrl.u32 %v793, 16
      %v848 = vrot.slane %v846, 4
      %v849 = vshll.u32 %v793, 16
      %v851 = vrot.slane %v849, 5
      %v852 = vor.u32 %v848, %v851
      %v853 = vrot.slane %v852, 4
      %v855 = vshll.u32 %v794, 16
      %v857 = vrot.slane %v855, 5
      %v858 = vsel %vm844, %v853, %v857
      %v859 = vshrl.u32 %v794, 16
      %v861 = vrot.slane %v859, 4
      %v862 = vor.u32 %v861, %v857
      %v863 = vrot.slane %v862, 4
      %v865 = vshll.u32 %v826, 16
      %v867 = vrot.slane %v865, 5
      %v868 = vsel %vm844, %v863, %v867
      %v870 = vshrl.u32 %v795, 16
      %v872 = vrot.slane %v870, 4
      %v873 = vshll.u32 %v795, 16
      %v875 = vrot.slane %v873, 5
      %v876 = vor.u32 %v872, %v875
      %v877 = vrot.slane %v876, 4
      %v879 = vshll.u32 %v796, 16
      %v881 = vrot.slane %v879, 5
      %v882 = vsel %vm844, %v877, %v881
      %v883 = vshrl.u32 %v796, 16
      %v885 = vrot.slane %v883, 4
      %v886 = vor.u32 %v885, %v881
      %v887 = vrot.slane %v886, 4
      %v889 = vshll.u32 %v827, 16
      %v891 = vrot.slane %v889, 5
      %v892 = vsel %vm844, %v887, %v891
      %v894 = vshrl.u32 %v797, 16
      %v896 = vrot.slane %v894, 4
      %v897 = vshll.u32 %v797, 16
      %v899 = vrot.slane %v897, 5
      %v900 = vor.u32 %v896, %v899
      %v901 = vrot.slane %v900, 4
      %v903 = vshll.u32 %v798, 16
      %v905 = vrot.slane %v903, 5
      %v906 = vsel %vm844, %v901, %v905
      %v907 = vshrl.u32 %v798, 16
      %v909 = vrot.slane %v907, 4
      %v910 = vor.u32 %v909, %v905
      %v911 = vrot.slane %v910, 4
      %v913 = vshll.u32 %v828, 16
      %v915 = vrot.slane %v913, 5
      %v916 = vsel %vm844, %v911, %v915
      %v918 = vshrl.u32 %v799, 16
      %v920 = vrot.slane %v918, 4
      %v921 = vshll.u32 %v799, 16
      %v923 = vrot.slane %v921, 5
      %v924 = vor.u32 %v920, %v923
      %v925 = vrot.slane %v924, 4
      %v927 = vshll.u32 %v800, 16
      %v929 = vrot.slane %v927, 5
      %v930 = vsel %vm844, %v925, %v929
      %v931 = vshrl.u32 %v800, 16
      %v933 = vrot.slane %v931, 4
      %v934 = vor.u32 %v933, %v929
      %v935 = vrot.slane %v934, 4
      %v937 = vshll.u32 %v829, 16
      %v939 = vrot.slane %v937, 5
      %v940 = vsel %vm844, %v935, %v939
      %v942 = vshrl.u32 %v801, 16
      %v944 = vrot.slane %v942, 4
      %v945 = vshll.u32 %v801, 16
      %v947 = vrot.slane %v945, 5
      %v948 = vor.u32 %v944, %v947
      %v949 = vrot.slane %v948, 4
      %v951 = vshll.u32 %v802, 16
      %v953 = vrot.slane %v951, 5
      %v954 = vsel %vm844, %v949, %v953
      %v955 = vshrl.u32 %v802, 16
      %v957 = vrot.slane %v955, 4
      %v958 = vor.u32 %v957, %v953
      %v959 = vrot.slane %v958, 4
      %v961 = vshll.u32 %v830, 16
      %v963 = vrot.slane %v961, 5
      %v964 = vsel %vm844, %v959, %v963
      %v966 = vshrl.u32 %v803, 16
      %v968 = vrot.slane %v966, 4
      %v969 = vshll.u32 %v803, 16
      %v971 = vrot.slane %v969, 5
      %v972 = vor.u32 %v968, %v971
      %v973 = vrot.slane %v972, 4
      %v975 = vshll.u32 %v804, 16
      %v977 = vrot.slane %v975, 5
      %v978 = vsel %vm844, %v973, %v977
      %v979 = vshrl.u32 %v804, 16
      %v981 = vrot.slane %v979, 4
      %v982 = vor.u32 %v981, %v977
      %v983 = vrot.slane %v982, 4
      %v985 = vshll.u32 %v831, 16
      %v987 = vrot.slane %v985, 5
      %v988 = vsel %vm844, %v983, %v987
      %v990 = vshrl.u32 %v805, 16
      %v992 = vrot.slane %v990, 4
      %v993 = vshll.u32 %v805, 16
      %v995 = vrot.slane %v993, 5
      %v996 = vor.u32 %v992, %v995
      %v997 = vrot.slane %v996, 4
      %v999 = vshll.u32 %v806, 16
      %v1001 = vrot.slane %v999, 5
      %v1002 = vsel %vm844, %v997, %v1001
      %v1003 = vshrl.u32 %v806, 16
      %v1005 = vrot.slane %v1003, 4
      %v1006 = vor.u32 %v1005, %v1001
      %v1007 = vrot.slane %v1006, 4
      %v1009 = vshll.u32 %v832, 16
      %v1011 = vrot.slane %v1009, 5
      %v1012 = vsel %vm844, %v1007, %v1011
      %v1014 = vshrl.u32 %v807, 16
      %v1016 = vrot.slane %v1014, 4
      %v1017 = vshll.u32 %v807, 16
      %v1019 = vrot.slane %v1017, 5
      %v1020 = vor.u32 %v1016, %v1019
      %v1021 = vrot.slane %v1020, 4
      %v1023 = vshll.u32 %v808, 16
      %v1025 = vrot.slane %v1023, 5
      %v1026 = vsel %vm844, %v1021, %v1025
      %v1027 = vshrl.u32 %v808, 16
      %v1029 = vrot.slane %v1027, 4
      %v1030 = vor.u32 %v1029, %v1025
      %v1031 = vrot.slane %v1030, 4
      %v1033 = vshll.u32 %v833, 16
      %v1035 = vrot.slane %v1033, 5
      %v1036 = vsel %vm844, %v1031, %v1035
      %v1038 = vshrl.u32 %v809, 16
      %v1040 = vrot.slane %v1038, 4
      %v1041 = vshll.u32 %v809, 16
      %v1043 = vrot.slane %v1041, 5
      %v1044 = vor.u32 %v1040, %v1043
      %v1045 = vrot.slane %v1044, 4
      %v1047 = vshll.u32 %v810, 16
      %v1049 = vrot.slane %v1047, 5
      %v1050 = vsel %vm844, %v1045, %v1049
      %v1051 = vshrl.u32 %v810, 16
      %v1053 = vrot.slane %v1051, 4
      %v1054 = vor.u32 %v1053, %v1049
      %v1055 = vrot.slane %v1054, 4
      %v1057 = vshll.u32 %v834, 16
      %v1059 = vrot.slane %v1057, 5
      %v1060 = vsel %vm844, %v1055, %v1059
      %v1062 = vshrl.u32 %v811, 16
      %v1064 = vrot.slane %v1062, 4
      %v1065 = vshll.u32 %v811, 16
      %v1067 = vrot.slane %v1065, 5
      %v1068 = vor.u32 %v1064, %v1067
      %v1069 = vrot.slane %v1068, 4
      %v1071 = vshll.u32 %v812, 16
      %v1073 = vrot.slane %v1071, 5
      %v1074 = vsel %vm844, %v1069, %v1073
      %v1075 = vshrl.u32 %v812, 16
      %v1077 = vrot.slane %v1075, 4
      %v1078 = vor.u32 %v1077, %v1073
      %v1079 = vrot.slane %v1078, 4
      %v1081 = vshll.u32 %v835, 16
      %v1083 = vrot.slane %v1081, 5
      %v1084 = vsel %vm844, %v1079, %v1083
      %v1086 = vshrl.u32 %v813, 16
      %v1088 = vrot.slane %v1086, 4
      %v1089 = vshll.u32 %v813, 16
      %v1091 = vrot.slane %v1089, 5
      %v1092 = vor.u32 %v1088, %v1091
      %v1093 = vrot.slane %v1092, 4
      %v1095 = vshll.u32 %v814, 16
      %v1097 = vrot.slane %v1095, 5
      %v1098 = vsel %vm844, %v1093, %v1097
      %v1099 = vshrl.u32 %v814, 16
      %v1101 = vrot.slane %v1099, 4
      %v1102 = vor.u32 %v1101, %v1097
      %v1103 = vrot.slane %v1102, 4
      %v1105 = vshll.u32 %v836, 16
      %v1107 = vrot.slane %v1105, 5
      %v1108 = vsel %vm844, %v1103, %v1107
      %v1110 = vshrl.u32 %v815, 16
      %v1112 = vrot.slane %v1110, 4
      %v1113 = vshll.u32 %v815, 16
      %v1115 = vrot.slane %v1113, 5
      %v1116 = vor.u32 %v1112, %v1115
      %v1117 = vrot.slane %v1116, 4
      %v1119 = vshll.u32 %v816, 16
      %v1121 = vrot.slane %v1119, 5
      %v1122 = vsel %vm844, %v1117, %v1121
      %v1123 = vshrl.u32 %v816, 16
      %v1125 = vrot.slane %v1123, 4
      %v1126 = vor.u32 %v1125, %v1121
      %v1127 = vrot.slane %v1126, 4
      %v1129 = vshll.u32 %v837, 16
      %v1131 = vrot.slane %v1129, 5
      %v1132 = vsel %vm844, %v1127, %v1131
      %v1134 = vshrl.u32 %v817, 16
      %v1136 = vrot.slane %v1134, 4
      %v1137 = vshll.u32 %v817, 16
      %v1139 = vrot.slane %v1137, 5
      %v1140 = vor.u32 %v1136, %v1139
      %v1141 = vrot.slane %v1140, 4
      %v1143 = vshll.u32 %v818, 16
      %v1145 = vrot.slane %v1143, 5
      %v1146 = vsel %vm844, %v1141, %v1145
      %v1147 = vshrl.u32 %v818, 16
      %v1149 = vrot.slane %v1147, 4
      %v1150 = vor.u32 %v1149, %v1145
      %v1151 = vrot.slane %v1150, 4
      %v1153 = vshll.u32 %v838, 16
      %v1155 = vrot.slane %v1153, 5
      %v1156 = vsel %vm844, %v1151, %v1155
      %v1158 = vshrl.u32 %v819, 16
      %v1160 = vrot.slane %v1158, 4
      %v1161 = vshll.u32 %v819, 16
      %v1163 = vrot.slane %v1161, 5
      %v1164 = vor.u32 %v1160, %v1163
      %v1165 = vrot.slane %v1164, 4
      %v1167 = vshll.u32 %v820, 16
      %v1169 = vrot.slane %v1167, 5
      %v1170 = vsel %vm844, %v1165, %v1169
      %v1171 = vshrl.u32 %v820, 16
      %v1173 = vrot.slane %v1171, 4
      %v1174 = vor.u32 %v1173, %v1169
      %v1175 = vrot.slane %v1174, 4
      %v1177 = vshll.u32 %v839, 16
      %v1179 = vrot.slane %v1177, 5
      %v1180 = vsel %vm844, %v1175, %v1179
      %v1182 = vshrl.u32 %v821, 16
      %v1184 = vrot.slane %v1182, 4
      %v1185 = vshll.u32 %v821, 16
      %v1187 = vrot.slane %v1185, 5
      %v1188 = vor.u32 %v1184, %v1187
      %v1189 = vrot.slane %v1188, 4
      %v1191 = vshll.u32 %v822, 16
      %v1193 = vrot.slane %v1191, 5
      %v1194 = vsel %vm844, %v1189, %v1193
      %v1195 = vshrl.u32 %v822, 16
      %v1197 = vrot.slane %v1195, 4
      %v1198 = vor.u32 %v1197, %v1193
      %v1199 = vrot.slane %v1198, 4
      %v1201 = vshll.u32 %v840, 16
      %v1203 = vrot.slane %v1201, 5
      %v1204 = vsel %vm844, %v1199, %v1203
      %v1206 = vshrl.u32 %v823, 16
      %v1208 = vrot.slane %v1206, 4
      %v1209 = vshll.u32 %v823, 16
      %v1211 = vrot.slane %v1209, 5
      %v1212 = vor.u32 %v1208, %v1211
      %v1213 = vrot.slane %v1212, 4
      %v1215 = vshll.u32 %v824, 16
      %v1217 = vrot.slane %v1215, 5
      %v1218 = vsel %vm844, %v1213, %v1217
      %v1219 = vshrl.u32 %v824, 16
      %v1221 = vrot.slane %v1219, 4
      %v1222 = vor.u32 %v1221, %v1217
      %v1223 = vrot.slane %v1222, 4
      %v1225 = vshll.u32 %v841, 16
      %v1227 = vrot.slane %v1225, 5
      %v1228 = vsel %vm844, %v1223, %v1227
      %s1229 = scalar_lea.vmem %s3, 1
      %v1230 = vld [vmem:[%s1229] sm:$0x1]
      %v1231 = vunpack.c.l.b16 %v858
      %v1232 = vunpack.c.l.b16 %v868
      %v1233 = vunpack.c.l.b16 %v882
      %v1234 = vunpack.c.l.b16 %v892
      %v1235 = vunpack.c.l.b16 %v906
      %v1236 = vunpack.c.l.b16 %v916
      %v1237 = vunpack.c.l.b16 %v930
      %v1238 = vunpack.c.l.b16 %v940
      %v1239 = vunpack.c.l.b16 %v954
      %v1240 = vunpack.c.l.b16 %v964
      %v1241 = vunpack.c.l.b16 %v978
      %v1242 = vunpack.c.l.b16 %v988
      %v1243 = vunpack.c.l.b16 %v1002
      %v1244 = vunpack.c.l.b16 %v1012
      %v1245 = vunpack.c.l.b16 %v1026
      %v1246 = vunpack.c.l.b16 %v1036
      %v1247 = vunpack.c.l.b16 %v1050
      %v1248 = vunpack.c.l.b16 %v1060
      %v1249 = vunpack.c.l.b16 %v1074
      %v1250 = vunpack.c.l.b16 %v1084
      %v1251 = vunpack.c.l.b16 %v1098
      %v1252 = vunpack.c.l.b16 %v1108
      %v1253 = vunpack.c.l.b16 %v1122
      %v1254 = vunpack.c.l.b16 %v1132
      %v1255 = vunpack.c.l.b16 %v1146
      %v1256 = vunpack.c.l.b16 %v1156
      %v1257 = vunpack.c.l.b16 %v1170
      %v1258 = vunpack.c.l.b16 %v1180
      %v1259 = vunpack.c.l.b16 %v1194
      %v1260 = vunpack.c.l.b16 %v1204
      %v1261 = vunpack.c.l.b16 %v1218
      %v1262 = vunpack.c.l.b16 %v1228
      %v1263 = vpack.c.b16 %v1232, %v1231
      %v1264 = vpack.c.b16 %v1234, %v1233
      %v1265 = vpack.c.b16 %v1236, %v1235
      %v1266 = vpack.c.b16 %v1238, %v1237
      %v1267 = vpack.c.b16 %v1240, %v1239
      %v1268 = vpack.c.b16 %v1242, %v1241
      %v1269 = vpack.c.b16 %v1244, %v1243
      %v1270 = vpack.c.b16 %v1246, %v1245
      %v1271 = vpack.c.b16 %v1248, %v1247
      %v1272 = vpack.c.b16 %v1250, %v1249
      %v1273 = vpack.c.b16 %v1252, %v1251
      %v1274 = vpack.c.b16 %v1254, %v1253
      %v1275 = vpack.c.b16 %v1256, %v1255
      %v1276 = vpack.c.b16 %v1258, %v1257
      %v1277 = vpack.c.b16 %v1260, %v1259
      %v1278 = vpack.c.b16 %v1262, %v1261
      %vm1279 = vcmask 15360
      %v1281 = vsel %vm1279, %v1263, 0
      %v1284 = vsel %vm1279, %v1264, 0
      %v1287 = vsel %vm1279, %v1265, 0
      %v1290 = vsel %vm1279, %v1266, 0
      %v1293 = vsel %vm1279, %v1267, 0
      %v1296 = vsel %vm1279, %v1268, 0
      %v1299 = vsel %vm1279, %v1269, 0
      %v1302 = vsel %vm1279, %v1270, 0
      %v1305 = vsel %vm1279, %v1271, 0
      %v1308 = vsel %vm1279, %v1272, 0
      %v1311 = vsel %vm1279, %v1273, 0
      %v1314 = vsel %vm1279, %v1274, 0
      %v1317 = vsel %vm1279, %v1275, 0
      %v1320 = vsel %vm1279, %v1276, 0
      %v1323 = vsel %vm1279, %v1277, 0
      %v1326 = vsel %vm1279, %v1278, 0
      %vm1328 = vcmask 1040384
      %v1330 = vsel %vm1328, %v1230, 0
      %1332 = vmatprep.subr.bf16.mxu0 0
      %1333 = vmatpush1.bf16.msra.mxu0 0
      %1334 = vmatprep.subr.bf16.mxu0 0
      %1335 = vmatpush1.bf16.msra.mxu0 0
      %1336 = vmatprep.subr.bf16.mxu0 0
      %1337 = vmatpush1.bf16.msra.mxu0 0
      %1338 = vmatprep.subr.bf16.mxu0 0
      %1339 = vmatpush1.bf16.msra.mxu0 0
      %1340 = vmatprep.subr.bf16.mxu0 0
      %1341 = vmatpush1.bf16.msra.mxu0 0
      %1342 = vmatprep.subr.bf16.mxu0 0
      %1343 = vmatpush1.bf16.msra.mxu0 0
      %1344 = vmatprep.subr.bf16.mxu0 0
      %1345 = vmatpush1.bf16.msra.mxu0 0
      %1346 = vmatprep.subr.bf16.mxu0 0
      %1347 = vmatpush1.bf16.msra.mxu0 %v1330
      %1348 = vmatprep.subr.bf16.mxu0 0
      %1349 = vmatpush2.bf16.msra.mxu0 0
      %1350 = vmatprep.subr.bf16.mxu0 0
      %1351 = vmatpush2.bf16.msra.mxu0 0
      %1352 = vmatprep.subr.bf16.mxu0 0
      %1353 = vmatpush2.bf16.msra.mxu0 0
      %1354 = vmatprep.subr.bf16.mxu0 0
      %1355 = vmatpush2.bf16.msra.mxu0 0
      %1356 = vmatprep.subr.bf16.mxu0 0
      %1357 = vmatpush2.bf16.msra.mxu0 0
      %1358 = vmatprep.subr.bf16.mxu0 0
      %1359 = vmatpush2.bf16.msra.mxu0 0
      %1360 = vmatprep.subr.bf16.mxu0 0
      %1361 = vmatpush2.bf16.msra.mxu0 0
      %1362 = vmatprep.subr.bf16.mxu0 0
      %1363 = vmatpush2.bf16.msra.mxu0 0
      %1364 = vmatprep.mubr.bf16.mxu0 0
      %1365 = vmatmul.mubr.bf16.gmra.mxu0 %v1281
      %v1366 = vpop.f32.mrf.mxu0
      %v1367 = vadd.f32 0.0, %v1366
      %v1368 = vpop.f32.mrf.mxu0
      %v1369 = vpop.f32.mrf.mxu0
      %v1370 = vadd.f32 0.0, %v1369
      %v1371 = vpop.f32.mrf.mxu0
      %1372 = vmatprep.mubr.bf16.mxu0 0
      %1373 = vmatmul.mubr.bf16.gmra.mxu0 %v1284
      %v1374 = vpop.f32.mrf.mxu0
      %v1375 = vadd.f32 0.0, %v1374
      %v1376 = vpop.f32.mrf.mxu0
      %v1377 = vpop.f32.mrf.mxu0
      %v1378 = vadd.f32 0.0, %v1377
      %v1379 = vpop.f32.mrf.mxu0
      %1380 = vmatprep.mubr.bf16.mxu0 0
      %1381 = vmatmul.mubr.bf16.gmra.mxu0 %v1287
      %v1382 = vpop.f32.mrf.mxu0
      %v1383 = vadd.f32 0.0, %v1382
      %v1384 = vpop.f32.mrf.mxu0
      %v1385 = vpop.f32.mrf.mxu0
      %v1386 = vadd.f32 0.0, %v1385
      %v1387 = vpop.f32.mrf.mxu0
      %1388 = vmatprep.mubr.bf16.mxu0 0
      %1389 = vmatmul.mubr.bf16.gmra.mxu0 %v1290
      %v1390 = vpop.f32.mrf.mxu0
      %v1391 = vadd.f32 0.0, %v1390
      %v1392 = vpop.f32.mrf.mxu0
      %v1393 = vpop.f32.mrf.mxu0
      %v1394 = vadd.f32 0.0, %v1393
      %v1395 = vpop.f32.mrf.mxu0
      %1396 = vmatprep.mubr.bf16.mxu0 0
      %1397 = vmatmul.mubr.bf16.gmra.mxu0 %v1293
      %v1398 = vpop.f32.mrf.mxu0
      %v1399 = vadd.f32 0.0, %v1398
      %v1400 = vpop.f32.mrf.mxu0
      %v1401 = vpop.f32.mrf.mxu0
      %v1402 = vadd.f32 0.0, %v1401
      %v1403 = vpop.f32.mrf.mxu0
      %1404 = vmatprep.mubr.bf16.mxu0 0
      %1405 = vmatmul.mubr.bf16.gmra.mxu0 %v1296
      %v1406 = vpop.f32.mrf.mxu0
      %v1407 = vadd.f32 0.0, %v1406
      %v1408 = vpop.f32.mrf.mxu0
      %v1409 = vpop.f32.mrf.mxu0
      %v1410 = vadd.f32 0.0, %v1409
      %v1411 = vpop.f32.mrf.mxu0
      %1412 = vmatprep.mubr.bf16.mxu0 0
      %1413 = vmatmul.mubr.bf16.gmra.mxu0 %v1299
      %v1414 = vpop.f32.mrf.mxu0
      %v1415 = vadd.f32 0.0, %v1414
      %v1416 = vpop.f32.mrf.mxu0
      %v1417 = vpop.f32.mrf.mxu0
      %v1418 = vadd.f32 0.0, %v1417
      %v1419 = vpop.f32.mrf.mxu0
      %1420 = vmatprep.mubr.bf16.mxu0 0
      %1421 = vmatmul.mubr.bf16.gmra.mxu0 %v1302
      %v1422 = vpop.f32.mrf.mxu0
      %v1423 = vadd.f32 0.0, %v1422
      %v1424 = vpop.f32.mrf.mxu0
      %v1425 = vpop.f32.mrf.mxu0
      %v1426 = vadd.f32 0.0, %v1425
      %v1427 = vpop.f32.mrf.mxu0
      %1428 = vmatprep.mubr.bf16.mxu0 0
      %1429 = vmatmul.mubr.bf16.gmra.mxu0 %v1305
      %v1430 = vpop.f32.mrf.mxu0
      %v1431 = vadd.f32 0.0, %v1430
      %v1432 = vpop.f32.mrf.mxu0
      %v1433 = vpop.f32.mrf.mxu0
      %v1434 = vadd.f32 0.0, %v1433
      %v1435 = vpop.f32.mrf.mxu0
      %1436 = vmatprep.mubr.bf16.mxu0 0
      %1437 = vmatmul.mubr.bf16.gmra.mxu0 %v1308
      %v1438 = vpop.f32.mrf.mxu0
      %v1439 = vadd.f32 0.0, %v1438
      %v1440 = vpop.f32.mrf.mxu0
      %v1441 = vpop.f32.mrf.mxu0
      %v1442 = vadd.f32 0.0, %v1441
      %v1443 = vpop.f32.mrf.mxu0
      %1444 = vmatprep.mubr.bf16.mxu0 0
      %1445 = vmatmul.mubr.bf16.gmra.mxu0 %v1311
      %v1446 = vpop.f32.mrf.mxu0
      %v1447 = vadd.f32 0.0, %v1446
      %v1448 = vpop.f32.mrf.mxu0
      %v1449 = vpop.f32.mrf.mxu0
      %v1450 = vadd.f32 0.0, %v1449
      %v1451 = vpop.f32.mrf.mxu0
      %1452 = vmatprep.mubr.bf16.mxu0 0
      %1453 = vmatmul.mubr.bf16.gmra.mxu0 %v1314
      %v1454 = vpop.f32.mrf.mxu0
      %v1455 = vadd.f32 0.0, %v1454
      %v1456 = vpop.f32.mrf.mxu0
      %v1457 = vpop.f32.mrf.mxu0
      %v1458 = vadd.f32 0.0, %v1457
      %v1459 = vpop.f32.mrf.mxu0
      %1460 = vmatprep.mubr.bf16.mxu0 0
      %1461 = vmatmul.mubr.bf16.gmra.mxu0 %v1317
      %v1462 = vpop.f32.mrf.mxu0
      %v1463 = vadd.f32 0.0, %v1462
      %v1464 = vpop.f32.mrf.mxu0
      %v1465 = vpop.f32.mrf.mxu0
      %v1466 = vadd.f32 0.0, %v1465
      %v1467 = vpop.f32.mrf.mxu0
      %1468 = vmatprep.mubr.bf16.mxu0 0
      %1469 = vmatmul.mubr.bf16.gmra.mxu0 %v1320
      %v1470 = vpop.f32.mrf.mxu0
      %v1471 = vadd.f32 0.0, %v1470
      %v1472 = vpop.f32.mrf.mxu0
      %v1473 = vpop.f32.mrf.mxu0
      %v1474 = vadd.f32 0.0, %v1473
      %v1475 = vpop.f32.mrf.mxu0
      %1476 = vmatprep.mubr.bf16.mxu0 0
      %1477 = vmatmul.mubr.bf16.gmra.mxu0 %v1323
      %v1478 = vpop.f32.mrf.mxu0
      %v1479 = vadd.f32 0.0, %v1478
      %v1480 = vpop.f32.mrf.mxu0
      %v1481 = vpop.f32.mrf.mxu0
      %v1482 = vadd.f32 0.0, %v1481
      %v1483 = vpop.f32.mrf.mxu0
      %1484 = vmatprep.mubr.bf16.mxu0 0
      %1485 = vmatmul.mubr.bf16.gmra.mxu0 %v1326
      %v1486 = vpop.f32.mrf.mxu0
      %v1487 = vadd.f32 0.0, %v1486
      %v1488 = vpop.f32.mrf.mxu0
      %v1489 = vpop.f32.mrf.mxu0
      %v1490 = vadd.f32 0.0, %v1489
      %v1491 = vpop.f32.mrf.mxu0
      %1492 = vdwg.mxu0
      %v1525 = vunpack.c.l.b16 %v793
      %v1526 = vunpack.c.l.b16 %v794
      %v1527 = vunpack.c.l.b16 %v795
      %v1528 = vunpack.c.l.b16 %v796
      %v1529 = vunpack.c.l.b16 %v797
      %v1530 = vunpack.c.l.b16 %v798
      %v1531 = vunpack.c.l.b16 %v799
      %v1532 = vunpack.c.l.b16 %v800
      %v1533 = vunpack.c.l.b16 %v801
      %v1534 = vunpack.c.l.b16 %v802
      %v1535 = vunpack.c.l.b16 %v803
      %v1536 = vunpack.c.l.b16 %v804
      %v1537 = vunpack.c.l.b16 %v805
      %v1538 = vunpack.c.l.b16 %v806
      %v1539 = vunpack.c.l.b16 %v807
      %v1540 = vunpack.c.l.b16 %v808
      %v1541 = vunpack.c.l.b16 %v809
      %v1542 = vunpack.c.l.b16 %v810
      %v1543 = vunpack.c.l.b16 %v811
      %v1544 = vunpack.c.l.b16 %v812
      %v1545 = vunpack.c.l.b16 %v813
      %v1546 = vunpack.c.l.b16 %v814
      %v1547 = vunpack.c.l.b16 %v815
      %v1548 = vunpack.c.l.b16 %v816
      %v1549 = vunpack.c.l.b16 %v817
      %v1550 = vunpack.c.l.b16 %v818
      %v1551 = vunpack.c.l.b16 %v819
      %v1552 = vunpack.c.l.b16 %v820
      %v1553 = vunpack.c.l.b16 %v821
      %v1554 = vunpack.c.l.b16 %v822
      %v1555 = vunpack.c.l.b16 %v823
      %v1556 = vunpack.c.l.b16 %v824
      %v1557 = vpack.c.b16 %v1526, %v1525
      %v1558 = vpack.c.b16 %v1528, %v1527
      %v1559 = vpack.c.b16 %v1530, %v1529
      %v1560 = vpack.c.b16 %v1532, %v1531
      %v1561 = vpack.c.b16 %v1534, %v1533
      %v1562 = vpack.c.b16 %v1536, %v1535
      %v1563 = vpack.c.b16 %v1538, %v1537
      %v1564 = vpack.c.b16 %v1540, %v1539
      %v1565 = vpack.c.b16 %v1542, %v1541
      %v1566 = vpack.c.b16 %v1544, %v1543
      %v1567 = vpack.c.b16 %v1546, %v1545
      %v1568 = vpack.c.b16 %v1548, %v1547
      %v1569 = vpack.c.b16 %v1550, %v1549
      %v1570 = vpack.c.b16 %v1552, %v1551
      %v1571 = vpack.c.b16 %v1554, %v1553
      %v1572 = vpack.c.b16 %v1556, %v1555
      %v1574 = vsel %vm1279, %v1557, 0
      %v1577 = vsel %vm1279, %v1558, 0
      %v1580 = vsel %vm1279, %v1559, 0
      %v1583 = vsel %vm1279, %v1560, 0
      %v1586 = vsel %vm1279, %v1561, 0
      %v1589 = vsel %vm1279, %v1562, 0
      %v1592 = vsel %vm1279, %v1563, 0
      %v1595 = vsel %vm1279, %v1564, 0
      %v1598 = vsel %vm1279, %v1565, 0
      %v1601 = vsel %vm1279, %v1566, 0
      %v1604 = vsel %vm1279, %v1567, 0
      %v1607 = vsel %vm1279, %v1568, 0
      %v1610 = vsel %vm1279, %v1569, 0
      %v1613 = vsel %vm1279, %v1570, 0
      %v1616 = vsel %vm1279, %v1571, 0
      %v1619 = vsel %vm1279, %v1572, 0
      %v1622 = vsel %vm1328, %v825, 0
      %1624 = vmatprep.subr.bf16.mxu0 0
      %1625 = vmatpush1.bf16.msra.mxu0 0
      %1626 = vmatprep.subr.bf16.mxu0 0
      %1627 = vmatpush1.bf16.msra.mxu0 0
      %1628 = vmatprep.subr.bf16.mxu0 0
      %1629 = vmatpush1.bf16.msra.mxu0 0
      %1630 = vmatprep.subr.bf16.mxu0 0
      %1631 = vmatpush1.bf16.msra.mxu0 0
      %1632 = vmatprep.subr.bf16.mxu0 0
      %1633 = vmatpush1.bf16.msra.mxu0 0
      %1634 = vmatprep.subr.bf16.mxu0 0
      %1635 = vmatpush1.bf16.msra.mxu0 0
      %1636 = vmatprep.subr.bf16.mxu0 0
      %1637 = vmatpush1.bf16.msra.mxu0 0
      %1638 = vmatprep.subr.bf16.mxu0 0
      %1639 = vmatpush1.bf16.msra.mxu0 %v1622
      %1640 = vmatprep.subr.bf16.mxu0 0
      %1641 = vmatpush2.bf16.msra.mxu0 0
      %1642 = vmatprep.subr.bf16.mxu0 0
      %1643 = vmatpush2.bf16.msra.mxu0 0
      %1644 = vmatprep.subr.bf16.mxu0 0
      %1645 = vmatpush2.bf16.msra.mxu0 0
      %1646 = vmatprep.subr.bf16.mxu0 0
      %1647 = vmatpush2.bf16.msra.mxu0 0
      %1648 = vmatprep.subr.bf16.mxu0 0
      %1649 = vmatpush2.bf16.msra.mxu0 0
      %1650 = vmatprep.subr.bf16.mxu0 0
      %1651 = vmatpush2.bf16.msra.mxu0 0
      %1652 = vmatprep.subr.bf16.mxu0 0
      %1653 = vmatpush2.bf16.msra.mxu0 0
      %1654 = vmatprep.subr.bf16.mxu0 0
      %1655 = vmatpush2.bf16.msra.mxu0 0
      %1656 = vmatprep.mubr.bf16.mxu0 0
      %1657 = vmatmul.mubr.bf16.gmra.mxu0 %v1574
      %v1658 = vpop.f32.mrf.mxu0
      %v1659 = vadd.f32 %v1367, %v1658
      %v1660 = vpop.f32.mrf.mxu0
      %v1661 = vpop.f32.mrf.mxu0
      %v1662 = vadd.f32 %v1370, %v1661
      %v1663 = vpop.f32.mrf.mxu0
      %1664 = vmatprep.mubr.bf16.mxu0 0
      %1665 = vmatmul.mubr.bf16.gmra.mxu0 %v1577
      %v1666 = vpop.f32.mrf.mxu0
      %v1667 = vadd.f32 %v1375, %v1666
      %v1668 = vpop.f32.mrf.mxu0
      %v1669 = vpop.f32.mrf.mxu0
      %v1670 = vadd.f32 %v1378, %v1669
      %v1671 = vpop.f32.mrf.mxu0
      %1672 = vmatprep.mubr.bf16.mxu0 0
      %1673 = vmatmul.mubr.bf16.gmra.mxu0 %v1580
      %v1674 = vpop.f32.mrf.mxu0
      %v1675 = vadd.f32 %v1383, %v1674
      %v1676 = vpop.f32.mrf.mxu0
      %v1677 = vpop.f32.mrf.mxu0
      %v1678 = vadd.f32 %v1386, %v1677
      %v1679 = vpop.f32.mrf.mxu0
      %1680 = vmatprep.mubr.bf16.mxu0 0
      %1681 = vmatmul.mubr.bf16.gmra.mxu0 %v1583
      %v1682 = vpop.f32.mrf.mxu0
      %v1683 = vadd.f32 %v1391, %v1682
      %v1684 = vpop.f32.mrf.mxu0
      %v1685 = vpop.f32.mrf.mxu0
      %v1686 = vadd.f32 %v1394, %v1685
      %v1687 = vpop.f32.mrf.mxu0
      %1688 = vmatprep.mubr.bf16.mxu0 0
      %1689 = vmatmul.mubr.bf16.gmra.mxu0 %v1586
      %v1690 = vpop.f32.mrf.mxu0
      %v1691 = vadd.f32 %v1399, %v1690
      %v1692 = vpop.f32.mrf.mxu0
      %v1693 = vpop.f32.mrf.mxu0
      %v1694 = vadd.f32 %v1402, %v1693
      %v1695 = vpop.f32.mrf.mxu0
      %1696 = vmatprep.mubr.bf16.mxu0 0
      %1697 = vmatmul.mubr.bf16.gmra.mxu0 %v1589
      %v1698 = vpop.f32.mrf.mxu0
      %v1699 = vadd.f32 %v1407, %v1698
      %v1700 = vpop.f32.mrf.mxu0
      %v1701 = vpop.f32.mrf.mxu0
      %v1702 = vadd.f32 %v1410, %v1701
      %v1703 = vpop.f32.mrf.mxu0
      %1704 = vmatprep.mubr.bf16.mxu0 0
      %1705 = vmatmul.mubr.bf16.gmra.mxu0 %v1592
      %v1706 = vpop.f32.mrf.mxu0
      %v1707 = vadd.f32 %v1415, %v1706
      %v1708 = vpop.f32.mrf.mxu0
      %v1709 = vpop.f32.mrf.mxu0
      %v1710 = vadd.f32 %v1418, %v1709
      %v1711 = vpop.f32.mrf.mxu0
      %1712 = vmatprep.mubr.bf16.mxu0 0
      %1713 = vmatmul.mubr.bf16.gmra.mxu0 %v1595
      %v1714 = vpop.f32.mrf.mxu0
      %v1715 = vadd.f32 %v1423, %v1714
      %v1716 = vpop.f32.mrf.mxu0
      %v1717 = vpop.f32.mrf.mxu0
      %v1718 = vadd.f32 %v1426, %v1717
      %v1719 = vpop.f32.mrf.mxu0
      %1720 = vmatprep.mubr.bf16.mxu0 0
      %1721 = vmatmul.mubr.bf16.gmra.mxu0 %v1598
      %v1722 = vpop.f32.mrf.mxu0
      %v1723 = vadd.f32 %v1431, %v1722
      %v1724 = vpop.f32.mrf.mxu0
      %v1725 = vpop.f32.mrf.mxu0
      %v1726 = vadd.f32 %v1434, %v1725
      %v1727 = vpop.f32.mrf.mxu0
      %1728 = vmatprep.mubr.bf16.mxu0 0
      %1729 = vmatmul.mubr.bf16.gmra.mxu0 %v1601
      %v1730 = vpop.f32.mrf.mxu0
      %v1731 = vadd.f32 %v1439, %v1730
      %v1732 = vpop.f32.mrf.mxu0
      %v1733 = vpop.f32.mrf.mxu0
      %v1734 = vadd.f32 %v1442, %v1733
      %v1735 = vpop.f32.mrf.mxu0
      %1736 = vmatprep.mubr.bf16.mxu0 0
      %1737 = vmatmul.mubr.bf16.gmra.mxu0 %v1604
      %v1738 = vpop.f32.mrf.mxu0
      %v1739 = vadd.f32 %v1447, %v1738
      %v1740 = vpop.f32.mrf.mxu0
      %v1741 = vpop.f32.mrf.mxu0
      %v1742 = vadd.f32 %v1450, %v1741
      %v1743 = vpop.f32.mrf.mxu0
      %1744 = vmatprep.mubr.bf16.mxu0 0
      %1745 = vmatmul.mubr.bf16.gmra.mxu0 %v1607
      %v1746 = vpop.f32.mrf.mxu0
      %v1747 = vadd.f32 %v1455, %v1746
      %v1748 = vpop.f32.mrf.mxu0
      %v1749 = vpop.f32.mrf.mxu0
      %v1750 = vadd.f32 %v1458, %v1749
      %v1751 = vpop.f32.mrf.mxu0
      %1752 = vmatprep.mubr.bf16.mxu0 0
      %1753 = vmatmul.mubr.bf16.gmra.mxu0 %v1610
      %v1754 = vpop.f32.mrf.mxu0
      %v1755 = vadd.f32 %v1463, %v1754
      %v1756 = vpop.f32.mrf.mxu0
      %v1757 = vpop.f32.mrf.mxu0
      %v1758 = vadd.f32 %v1466, %v1757
      %v1759 = vpop.f32.mrf.mxu0
      %1760 = vmatprep.mubr.bf16.mxu0 0
      %1761 = vmatmul.mubr.bf16.gmra.mxu0 %v1613
      %v1762 = vpop.f32.mrf.mxu0
      %v1763 = vadd.f32 %v1471, %v1762
      %v1764 = vpop.f32.mrf.mxu0
      %v1765 = vpop.f32.mrf.mxu0
      %v1766 = vadd.f32 %v1474, %v1765
      %v1767 = vpop.f32.mrf.mxu0
      %1768 = vmatprep.mubr.bf16.mxu0 0
      %1769 = vmatmul.mubr.bf16.gmra.mxu0 %v1616
      %v1770 = vpop.f32.mrf.mxu0
      %v1771 = vadd.f32 %v1479, %v1770
      %v1772 = vpop.f32.mrf.mxu0
      %v1773 = vpop.f32.mrf.mxu0
      %v1774 = vadd.f32 %v1482, %v1773
      %v1775 = vpop.f32.mrf.mxu0
      %1776 = vmatprep.mubr.bf16.mxu0 0
      %1777 = vmatmul.mubr.bf16.gmra.mxu0 %v1619
      %v1778 = vpop.f32.mrf.mxu0
      %v1779 = vadd.f32 %v1487, %v1778
      %v1780 = vpop.f32.mrf.mxu0
      %v1781 = vpop.f32.mrf.mxu0
      %v1782 = vadd.f32 %v1490, %v1781
      %v1783 = vpop.f32.mrf.mxu0
      %1784 = vdwg.mxu0
      %v1785 = vld [vmem:[#allocation2] sm:$0xe]
      %v1786 = vld [vmem:[#allocation2 + $0xc] sm:$0xe]
      %v1787 = vld [vmem:[#allocation2 + $0x18] sm:$0xe]
      %v1788 = vld [vmem:[#allocation2 + $0x24] sm:$0xe]
      %v1789 = vld [vmem:[#allocation2 + $0x30] sm:$0xe]
      %v1790 = vld [vmem:[#allocation2 + $0x3c] sm:$0xe]
      %v1791 = vld [vmem:[#allocation2 + $0x48] sm:$0xe]
      %v1792 = vld [vmem:[#allocation2 + $0x54] sm:$0xe]
      %v1793 = vld [vmem:[#allocation2 + $0x60] sm:$0xe]
      %v1794 = vld [vmem:[#allocation2 + $0x6c] sm:$0xe]
      %v1795 = vld [vmem:[#allocation2 + $0x78] sm:$0xe]
      %v1796 = vld [vmem:[#allocation2 + $0x84] sm:$0xe]
      %v1797 = vld [vmem:[#allocation2 + $0x90] sm:$0xe]
      %v1798 = vld [vmem:[#allocation2 + $0x9c] sm:$0xe]
      %v1799 = vld [vmem:[#allocation2 + $0xa8] sm:$0xe]
      %v1800 = vld [vmem:[#allocation2 + $0xb4] sm:$0xe]
      %vm1833 = vcmask 1042432
      %vm1834 = vcmask 1046532
      %vm1835 = vmor %vm1833, %vm1834
      %v1836 = vrot.slane %v1785, 5
      %v1837 = vrot.slane %v1836, 4
      %v1838 = vrot.slane %v794, 5
      %v1839 = vsel %vm1835, %v1837, %v1838
      %v1840 = vrot.slane %v1838, 4
      %v1841 = vrot.slane %v826, 5
      %v1842 = vsel %vm1835, %v1840, %v1841
      %v1843 = vrot.slane %v1786, 5
      %v1844 = vrot.slane %v1843, 4
      %v1845 = vrot.slane %v796, 5
      %v1846 = vsel %vm1835, %v1844, %v1845
      %v1847 = vrot.slane %v1845, 4
      %v1848 = vrot.slane %v827, 5
      %v1849 = vsel %vm1835, %v1847, %v1848
      %v1850 = vrot.slane %v1787, 5
      %v1851 = vrot.slane %v1850, 4
      %v1852 = vrot.slane %v798, 5
      %v1853 = vsel %vm1835, %v1851, %v1852
      %v1854 = vrot.slane %v1852, 4
      %v1855 = vrot.slane %v828, 5
      %v1856 = vsel %vm1835, %v1854, %v1855
      %v1857 = vrot.slane %v1788, 5
      %v1858 = vrot.slane %v1857, 4
      %v1859 = vrot.slane %v800, 5
      %v1860 = vsel %vm1835, %v1858, %v1859
      %v1861 = vrot.slane %v1859, 4
      %v1862 = vrot.slane %v829, 5
      %v1863 = vsel %vm1835, %v1861, %v1862
      %v1864 = vrot.slane %v1789, 5
      %v1865 = vrot.slane %v1864, 4
      %v1866 = vrot.slane %v802, 5
      %v1867 = vsel %vm1835, %v1865, %v1866
      %v1868 = vrot.slane %v1866, 4
      %v1869 = vrot.slane %v830, 5
      %v1870 = vsel %vm1835, %v1868, %v1869
      %v1871 = vrot.slane %v1790, 5
      %v1872 = vrot.slane %v1871, 4
      %v1873 = vrot.slane %v804, 5
      %v1874 = vsel %vm1835, %v1872, %v1873
      %v1875 = vrot.slane %v1873, 4
      %v1876 = vrot.slane %v831, 5
      %v1877 = vsel %vm1835, %v1875, %v1876
      %v1878 = vrot.slane %v1791, 5
      %v1879 = vrot.slane %v1878, 4
      %v1880 = vrot.slane %v806, 5
      %v1881 = vsel %vm1835, %v1879, %v1880
      %v1882 = vrot.slane %v1880, 4
      %v1883 = vrot.slane %v832, 5
      %v1884 = vsel %vm1835, %v1882, %v1883
      %v1885 = vrot.slane %v1792, 5
      %v1886 = vrot.slane %v1885, 4
      %v1887 = vrot.slane %v808, 5
      %v1888 = vsel %vm1835, %v1886, %v1887
      %v1889 = vrot.slane %v1887, 4
      %v1890 = vrot.slane %v833, 5
      %v1891 = vsel %vm1835, %v1889, %v1890
      %v1892 = vrot.slane %v1793, 5
      %v1893 = vrot.slane %v1892, 4
      %v1894 = vrot.slane %v810, 5
      %v1895 = vsel %vm1835, %v1893, %v1894
      %v1896 = vrot.slane %v1894, 4
      %v1897 = vrot.slane %v834, 5
      %v1898 = vsel %vm1835, %v1896, %v1897
      %v1899 = vrot.slane %v1794, 5
      %v1900 = vrot.slane %v1899, 4
      %v1901 = vrot.slane %v812, 5
      %v1902 = vsel %vm1835, %v1900, %v1901
      %v1903 = vrot.slane %v1901, 4
      %v1904 = vrot.slane %v835, 5
      %v1905 = vsel %vm1835, %v1903, %v1904
      %v1906 = vrot.slane %v1795, 5
      %v1907 = vrot.slane %v1906, 4
      %v1908 = vrot.slane %v814, 5
      %v1909 = vsel %vm1835, %v1907, %v1908
      %v1910 = vrot.slane %v1908, 4
      %v1911 = vrot.slane %v836, 5
      %v1912 = vsel %vm1835, %v1910, %v1911
      %v1913 = vrot.slane %v1796, 5
      %v1914 = vrot.slane %v1913, 4
      %v1915 = vrot.slane %v816, 5
      %v1916 = vsel %vm1835, %v1914, %v1915
      %v1917 = vrot.slane %v1915, 4
      %v1918 = vrot.slane %v837, 5
      %v1919 = vsel %vm1835, %v1917, %v1918
      %v1920 = vrot.slane %v1797, 5
      %v1921 = vrot.slane %v1920, 4
      %v1922 = vrot.slane %v818, 5
      %v1923 = vsel %vm1835, %v1921, %v1922
      %v1924 = vrot.slane %v1922, 4
      %v1925 = vrot.slane %v838, 5
      %v1926 = vsel %vm1835, %v1924, %v1925
      %v1927 = vrot.slane %v1798, 5
      %v1928 = vrot.slane %v1927, 4
      %v1929 = vrot.slane %v820, 5
      %v1930 = vsel %vm1835, %v1928, %v1929
      %v1931 = vrot.slane %v1929, 4
      %v1932 = vrot.slane %v839, 5
      %v1933 = vsel %vm1835, %v1931, %v1932
      %v1934 = vrot.slane %v1799, 5
      %v1935 = vrot.slane %v1934, 4
      %v1936 = vrot.slane %v822, 5
      %v1937 = vsel %vm1835, %v1935, %v1936
      %v1938 = vrot.slane %v1936, 4
      %v1939 = vrot.slane %v840, 5
      %v1940 = vsel %vm1835, %v1938, %v1939
      %v1941 = vrot.slane %v1800, 5
      %v1942 = vrot.slane %v1941, 4
      %v1943 = vrot.slane %v824, 5
      %v1944 = vsel %vm1835, %v1942, %v1943
      %v1945 = vrot.slane %v1943, 4
      %v1946 = vrot.slane %v841, 5
      %v1947 = vsel %vm1835, %v1945, %v1946
      %s1948 = scalar_lea.vmem %s3, 2
      %v1949 = vld [vmem:[%s1948] sm:$0x1]
      %v1950 = vunpack.c.l.b16 %v1839
      %v1951 = vunpack.c.l.b16 %v1842
      %v1952 = vunpack.c.l.b16 %v1846
      %v1953 = vunpack.c.l.b16 %v1849
      %v1954 = vunpack.c.l.b16 %v1853
      %v1955 = vunpack.c.l.b16 %v1856
      %v1956 = vunpack.c.l.b16 %v1860
      %v1957 = vunpack.c.l.b16 %v1863
      %v1958 = vunpack.c.l.b16 %v1867
      %v1959 = vunpack.c.l.b16 %v1870
      %v1960 = vunpack.c.l.b16 %v1874
      %v1961 = vunpack.c.l.b16 %v1877
      %v1962 = vunpack.c.l.b16 %v1881
      %v1963 = vunpack.c.l.b16 %v1884
      %v1964 = vunpack.c.l.b16 %v1888
      %v1965 = vunpack.c.l.b16 %v1891
      %v1966 = vunpack.c.l.b16 %v1895
      %v1967 = vunpack.c.l.b16 %v1898
      %v1968 = vunpack.c.l.b16 %v1902
      %v1969 = vunpack.c.l.b16 %v1905
      %v1970 = vunpack.c.l.b16 %v1909
      %v1971 = vunpack.c.l.b16 %v1912
      %v1972 = vunpack.c.l.b16 %v1916
      %v1973 = vunpack.c.l.b16 %v1919
      %v1974 = vunpack.c.l.b16 %v1923
      %v1975 = vunpack.c.l.b16 %v1926
      %v1976 = vunpack.c.l.b16 %v1930
      %v1977 = vunpack.c.l.b16 %v1933
      %v1978 = vunpack.c.l.b16 %v1937
      %v1979 = vunpack.c.l.b16 %v1940
      %v1980 = vunpack.c.l.b16 %v1944
      %v1981 = vunpack.c.l.b16 %v1947
      %v1982 = vpack.c.b16 %v1951, %v1950
      %v1983 = vpack.c.b16 %v1953, %v1952
      %v1984 = vpack.c.b16 %v1955, %v1954
      %v1985 = vpack.c.b16 %v1957, %v1956
      %v1986 = vpack.c.b16 %v1959, %v1958
      %v1987 = vpack.c.b16 %v1961, %v1960
      %v1988 = vpack.c.b16 %v1963, %v1962
      %v1989 = vpack.c.b16 %v1965, %v1964
      %v1990 = vpack.c.b16 %v1967, %v1966
      %v1991 = vpack.c.b16 %v1969, %v1968
      %v1992 = vpack.c.b16 %v1971, %v1970
      %v1993 = vpack.c.b16 %v1973, %v1972
      %v1994 = vpack.c.b16 %v1975, %v1974
      %v1995 = vpack.c.b16 %v1977, %v1976
      %v1996 = vpack.c.b16 %v1979, %v1978
      %v1997 = vpack.c.b16 %v1981, %v1980
      %v1999 = vsel %vm1279, %v1982, 0
      %v2002 = vsel %vm1279, %v1983, 0
      %v2005 = vsel %vm1279, %v1984, 0
      %v2008 = vsel %vm1279, %v1985, 0
      %v2011 = vsel %vm1279, %v1986, 0
      %v2014 = vsel %vm1279, %v1987, 0
      %v2017 = vsel %vm1279, %v1988, 0
      %v2020 = vsel %vm1279, %v1989, 0
      %v2023 = vsel %vm1279, %v1990, 0
      %v2026 = vsel %vm1279, %v1991, 0
      %v2029 = vsel %vm1279, %v1992, 0
      %v2032 = vsel %vm1279, %v1993, 0
      %v2035 = vsel %vm1279, %v1994, 0
      %v2038 = vsel %vm1279, %v1995, 0
      %v2041 = vsel %vm1279, %v1996, 0
      %v2044 = vsel %vm1279, %v1997, 0
      %v2047 = vsel %vm1328, %v1949, 0
      %2049 = vmatprep.subr.bf16.mxu0 0
      %2050 = vmatpush1.bf16.msra.mxu0 0
      %2051 = vmatprep.subr.bf16.mxu0 0
      %2052 = vmatpush1.bf16.msra.mxu0 0
      %2053 = vmatprep.subr.bf16.mxu0 0
      %2054 = vmatpush1.bf16.msra.mxu0 0
      %2055 = vmatprep.subr.bf16.mxu0 0
      %2056 = vmatpush1.bf16.msra.mxu0 0
      %2057 = vmatprep.subr.bf16.mxu0 0
      %2058 = vmatpush1.bf16.msra.mxu0 0
      %2059 = vmatprep.subr.bf16.mxu0 0
      %2060 = vmatpush1.bf16.msra.mxu0 0
      %2061 = vmatprep.subr.bf16.mxu0 0
      %2062 = vmatpush1.bf16.msra.mxu0 0
      %2063 = vmatprep.subr.bf16.mxu0 0
      %2064 = vmatpush1.bf16.msra.mxu0 %v2047
      %2065 = vmatprep.subr.bf16.mxu0 0
      %2066 = vmatpush2.bf16.msra.mxu0 0
      %2067 = vmatprep.subr.bf16.mxu0 0
      %2068 = vmatpush2.bf16.msra.mxu0 0
      %2069 = vmatprep.subr.bf16.mxu0 0
      %2070 = vmatpush2.bf16.msra.mxu0 0
      %2071 = vmatprep.subr.bf16.mxu0 0
      %2072 = vmatpush2.bf16.msra.mxu0 0
      %2073 = vmatprep.subr.bf16.mxu0 0
      %2074 = vmatpush2.bf16.msra.mxu0 0
      %2075 = vmatprep.subr.bf16.mxu0 0
      %2076 = vmatpush2.bf16.msra.mxu0 0
      %2077 = vmatprep.subr.bf16.mxu0 0
      %2078 = vmatpush2.bf16.msra.mxu0 0
      %2079 = vmatprep.subr.bf16.mxu0 0
      %2080 = vmatpush2.bf16.msra.mxu0 0
      %2081 = vmatprep.mubr.bf16.mxu0 0
      %2082 = vmatmul.mubr.bf16.gmra.mxu0 %v1999
      %v2083 = vpop.f32.mrf.mxu0
      %v2084 = vadd.f32 0.0, %v2083
      %v2085 = vpop.f32.mrf.mxu0
      %v2086 = vpop.f32.mrf.mxu0
      %v2087 = vadd.f32 0.0, %v2086
      %v2088 = vpop.f32.mrf.mxu0
      %2089 = vmatprep.mubr.bf16.mxu0 0
      %2090 = vmatmul.mubr.bf16.gmra.mxu0 %v2002
      %v2091 = vpop.f32.mrf.mxu0
      %v2092 = vadd.f32 0.0, %v2091
      %v2093 = vpop.f32.mrf.mxu0
      %v2094 = vpop.f32.mrf.mxu0
      %v2095 = vadd.f32 0.0, %v2094
      %v2096 = vpop.f32.mrf.mxu0
      %2097 = vmatprep.mubr.bf16.mxu0 0
      %2098 = vmatmul.mubr.bf16.gmra.mxu0 %v2005
      %v2099 = vpop.f32.mrf.mxu0
      %v2100 = vadd.f32 0.0, %v2099
      %v2101 = vpop.f32.mrf.mxu0
      %v2102 = vpop.f32.mrf.mxu0
      %v2103 = vadd.f32 0.0, %v2102
      %v2104 = vpop.f32.mrf.mxu0
      %2105 = vmatprep.mubr.bf16.mxu0 0
      %2106 = vmatmul.mubr.bf16.gmra.mxu0 %v2008
      %v2107 = vpop.f32.mrf.mxu0
      %v2108 = vadd.f32 0.0, %v2107
      %v2109 = vpop.f32.mrf.mxu0
      %v2110 = vpop.f32.mrf.mxu0
      %v2111 = vadd.f32 0.0, %v2110
      %v2112 = vpop.f32.mrf.mxu0
      %2113 = vmatprep.mubr.bf16.mxu0 0
      %2114 = vmatmul.mubr.bf16.gmra.mxu0 %v2011
      %v2115 = vpop.f32.mrf.mxu0
      %v2116 = vadd.f32 0.0, %v2115
      %v2117 = vpop.f32.mrf.mxu0
      %v2118 = vpop.f32.mrf.mxu0
      %v2119 = vadd.f32 0.0, %v2118
      %v2120 = vpop.f32.mrf.mxu0
      %2121 = vmatprep.mubr.bf16.mxu0 0
      %2122 = vmatmul.mubr.bf16.gmra.mxu0 %v2014
      %v2123 = vpop.f32.mrf.mxu0
      %v2124 = vadd.f32 0.0, %v2123
      %v2125 = vpop.f32.mrf.mxu0
      %v2126 = vpop.f32.mrf.mxu0
      %v2127 = vadd.f32 0.0, %v2126
      %v2128 = vpop.f32.mrf.mxu0
      %2129 = vmatprep.mubr.bf16.mxu0 0
      %2130 = vmatmul.mubr.bf16.gmra.mxu0 %v2017
      %v2131 = vpop.f32.mrf.mxu0
      %v2132 = vadd.f32 0.0, %v2131
      %v2133 = vpop.f32.mrf.mxu0
      %v2134 = vpop.f32.mrf.mxu0
      %v2135 = vadd.f32 0.0, %v2134
      %v2136 = vpop.f32.mrf.mxu0
      %2137 = vmatprep.mubr.bf16.mxu0 0
      %2138 = vmatmul.mubr.bf16.gmra.mxu0 %v2020
      %v2139 = vpop.f32.mrf.mxu0
      %v2140 = vadd.f32 0.0, %v2139
      %v2141 = vpop.f32.mrf.mxu0
      %v2142 = vpop.f32.mrf.mxu0
      %v2143 = vadd.f32 0.0, %v2142
      %v2144 = vpop.f32.mrf.mxu0
      %2145 = vmatprep.mubr.bf16.mxu0 0
      %2146 = vmatmul.mubr.bf16.gmra.mxu0 %v2023
      %v2147 = vpop.f32.mrf.mxu0
      %v2148 = vadd.f32 0.0, %v2147
      %v2149 = vpop.f32.mrf.mxu0
      %v2150 = vpop.f32.mrf.mxu0
      %v2151 = vadd.f32 0.0, %v2150
      %v2152 = vpop.f32.mrf.mxu0
      %2153 = vmatprep.mubr.bf16.mxu0 0
      %2154 = vmatmul.mubr.bf16.gmra.mxu0 %v2026
      %v2155 = vpop.f32.mrf.mxu0
      %v2156 = vadd.f32 0.0, %v2155
      %v2157 = vpop.f32.mrf.mxu0
      %v2158 = vpop.f32.mrf.mxu0
      %v2159 = vadd.f32 0.0, %v2158
      %v2160 = vpop.f32.mrf.mxu0
      %2161 = vmatprep.mubr.bf16.mxu0 0
      %2162 = vmatmul.mubr.bf16.gmra.mxu0 %v2029
      %v2163 = vpop.f32.mrf.mxu0
      %v2164 = vadd.f32 0.0, %v2163
      %v2165 = vpop.f32.mrf.mxu0
      %v2166 = vpop.f32.mrf.mxu0
      %v2167 = vadd.f32 0.0, %v2166
      %v2168 = vpop.f32.mrf.mxu0
      %2169 = vmatprep.mubr.bf16.mxu0 0
      %2170 = vmatmul.mubr.bf16.gmra.mxu0 %v2032
      %v2171 = vpop.f32.mrf.mxu0
      %v2172 = vadd.f32 0.0, %v2171
      %v2173 = vpop.f32.mrf.mxu0
      %v2174 = vpop.f32.mrf.mxu0
      %v2175 = vadd.f32 0.0, %v2174
      %v2176 = vpop.f32.mrf.mxu0
      %2177 = vmatprep.mubr.bf16.mxu0 0
      %2178 = vmatmul.mubr.bf16.gmra.mxu0 %v2035
      %v2179 = vpop.f32.mrf.mxu0
      %v2180 = vadd.f32 0.0, %v2179
      %v2181 = vpop.f32.mrf.mxu0
      %v2182 = vpop.f32.mrf.mxu0
      %v2183 = vadd.f32 0.0, %v2182
      %v2184 = vpop.f32.mrf.mxu0
      %2185 = vmatprep.mubr.bf16.mxu0 0
      %2186 = vmatmul.mubr.bf16.gmra.mxu0 %v2038
      %v2187 = vpop.f32.mrf.mxu0
      %v2188 = vadd.f32 0.0, %v2187
      %v2189 = vpop.f32.mrf.mxu0
      %v2190 = vpop.f32.mrf.mxu0
      %v2191 = vadd.f32 0.0, %v2190
      %v2192 = vpop.f32.mrf.mxu0
      %2193 = vmatprep.mubr.bf16.mxu0 0
      %2194 = vmatmul.mubr.bf16.gmra.mxu0 %v2041
      %v2195 = vpop.f32.mrf.mxu0
      %v2196 = vadd.f32 0.0, %v2195
      %v2197 = vpop.f32.mrf.mxu0
      %v2198 = vpop.f32.mrf.mxu0
      %v2199 = vadd.f32 0.0, %v2198
      %v2200 = vpop.f32.mrf.mxu0
      %2201 = vmatprep.mubr.bf16.mxu0 0
      %2202 = vmatmul.mubr.bf16.gmra.mxu0 %v2044
      %v2203 = vpop.f32.mrf.mxu0
      %v2204 = vadd.f32 0.0, %v2203
      %v2205 = vpop.f32.mrf.mxu0
      %v2206 = vpop.f32.mrf.mxu0
      %v2207 = vadd.f32 0.0, %v2206
      %v2208 = vpop.f32.mrf.mxu0
      %2209 = vdwg.mxu0
      %v2210 = vadd.f32 %v1659, %v2084
      %v2211 = vadd.f32 %v1662, %v2087
      %v2212 = vadd.f32 %v1667, %v2092
      %v2213 = vadd.f32 %v1670, %v2095
      %v2214 = vadd.f32 %v1675, %v2100
      %v2215 = vadd.f32 %v1678, %v2103
      %v2216 = vadd.f32 %v1683, %v2108
      %v2217 = vadd.f32 %v1686, %v2111
      %v2218 = vadd.f32 %v1691, %v2116
      %v2219 = vadd.f32 %v1694, %v2119
      %v2220 = vadd.f32 %v1699, %v2124
      %v2221 = vadd.f32 %v1702, %v2127
      %v2222 = vadd.f32 %v1707, %v2132
      %v2223 = vadd.f32 %v1710, %v2135
      %v2224 = vadd.f32 %v1715, %v2140
      %v2225 = vadd.f32 %v1718, %v2143
      %v2226 = vadd.f32 %v1723, %v2148
      %v2227 = vadd.f32 %v1726, %v2151
      %v2228 = vadd.f32 %v1731, %v2156
      %v2229 = vadd.f32 %v1734, %v2159
      %v2230 = vadd.f32 %v1739, %v2164
      %v2231 = vadd.f32 %v1742, %v2167
      %v2232 = vadd.f32 %v1747, %v2172
      %v2233 = vadd.f32 %v1750, %v2175
      %v2234 = vadd.f32 %v1755, %v2180
      %v2235 = vadd.f32 %v1758, %v2183
      %v2236 = vadd.f32 %v1763, %v2188
      %v2237 = vadd.f32 %v1766, %v2191
      %v2238 = vadd.f32 %v1771, %v2196
      %v2239 = vadd.f32 %v1774, %v2199
      %v2240 = vadd.f32 %v1779, %v2204
      %v2241 = vadd.f32 %v1782, %v2207
      %s2242 = scalar_lea.vmem [#allocation2], 12
      %v2243 = vld [vmem:[%s2242] sm:$0xf]
      %v2244 = vld [vmem:[%s2242 + $0x4] sm:$0xf]
      %v2245 = vld [vmem:[%s2242 + $0xc] sm:$0xf]
      %v2246 = vld [vmem:[%s2242 + $0x10] sm:$0xf]
      %v2247 = vld [vmem:[%s2242 + $0x18] sm:$0xf]
      %v2248 = vld [vmem:[%s2242 + $0x1c] sm:$0xf]
      %v2249 = vld [vmem:[%s2242 + $0x24] sm:$0xf]
      %v2250 = vld [vmem:[%s2242 + $0x28] sm:$0xf]
      %v2251 = vld [vmem:[%s2242 + $0x30] sm:$0xf]
      %v2252 = vld [vmem:[%s2242 + $0x34] sm:$0xf]
      %v2253 = vld [vmem:[%s2242 + $0x3c] sm:$0xf]
      %v2254 = vld [vmem:[%s2242 + $0x40] sm:$0xf]
      %v2255 = vld [vmem:[%s2242 + $0x48] sm:$0xf]
      %v2256 = vld [vmem:[%s2242 + $0x4c] sm:$0xf]
      %v2257 = vld [vmem:[%s2242 + $0x54] sm:$0xf]
      %v2258 = vld [vmem:[%s2242 + $0x58] sm:$0xf]
      %v2259 = vld [vmem:[%s2242 + $0x60] sm:$0xf]
      %v2260 = vld [vmem:[%s2242 + $0x64] sm:$0xf]
      %v2261 = vld [vmem:[%s2242 + $0x6c] sm:$0xf]
      %v2262 = vld [vmem:[%s2242 + $0x70] sm:$0xf]
      %v2263 = vld [vmem:[%s2242 + $0x78] sm:$0xf]
      %v2264 = vld [vmem:[%s2242 + $0x7c] sm:$0xf]
      %v2265 = vld [vmem:[%s2242 + $0x84] sm:$0xf]
      %v2266 = vld [vmem:[%s2242 + $0x88] sm:$0xf]
      %v2267 = vld [vmem:[%s2242 + $0x90] sm:$0xf]
      %v2268 = vld [vmem:[%s2242 + $0x94] sm:$0xf]
      %v2269 = vld [vmem:[%s2242 + $0x9c] sm:$0xf]
      %v2270 = vld [vmem:[%s2242 + $0xa0] sm:$0xf]
      %v2271 = vld [vmem:[%s2242 + $0xa8] sm:$0xf]
      %v2272 = vld [vmem:[%s2242 + $0xac] sm:$0xf]
      %v2273 = vld [vmem:[%s2242 + $0xb4] sm:$0xf]
      %v2274 = vld [vmem:[%s2242 + $0xb8] sm:$0xf]
      %s2275 = scalar_lea.vmem %s3, 3
      %v2276 = vld [vmem:[%s2275] sm:$0x1]
      %v2309 = vunpack.c.l.b16 %v2243
      %v2310 = vunpack.c.l.b16 %v2244
      %v2311 = vunpack.c.l.b16 %v2245
      %v2312 = vunpack.c.l.b16 %v2246
      %v2313 = vunpack.c.l.b16 %v2247
      %v2314 = vunpack.c.l.b16 %v2248
      %v2315 = vunpack.c.l.b16 %v2249
      %v2316 = vunpack.c.l.b16 %v2250
      %v2317 = vunpack.c.l.b16 %v2251
      %v2318 = vunpack.c.l.b16 %v2252
      %v2319 = vunpack.c.l.b16 %v2253
      %v2320 = vunpack.c.l.b16 %v2254
      %v2321 = vunpack.c.l.b16 %v2255
      %v2322 = vunpack.c.l.b16 %v2256
      %v2323 = vunpack.c.l.b16 %v2257
      %v2324 = vunpack.c.l.b16 %v2258
      %v2325 = vunpack.c.l.b16 %v2259
      %v2326 = vunpack.c.l.b16 %v2260
      %v2327 = vunpack.c.l.b16 %v2261
      %v2328 = vunpack.c.l.b16 %v2262
      %v2329 = vunpack.c.l.b16 %v2263
      %v2330 = vunpack.c.l.b16 %v2264
      %v2331 = vunpack.c.l.b16 %v2265
      %v2332 = vunpack.c.l.b16 %v2266
      %v2333 = vunpack.c.l.b16 %v2267
      %v2334 = vunpack.c.l.b16 %v2268
      %v2335 = vunpack.c.l.b16 %v2269
      %v2336 = vunpack.c.l.b16 %v2270
      %v2337 = vunpack.c.l.b16 %v2271
      %v2338 = vunpack.c.l.b16 %v2272
      %v2339 = vunpack.c.l.b16 %v2273
      %v2340 = vunpack.c.l.b16 %v2274
      %v2341 = vpack.c.b16 %v2310, %v2309
      %v2342 = vpack.c.b16 %v2312, %v2311
      %v2343 = vpack.c.b16 %v2314, %v2313
      %v2344 = vpack.c.b16 %v2316, %v2315
      %v2345 = vpack.c.b16 %v2318, %v2317
      %v2346 = vpack.c.b16 %v2320, %v2319
      %v2347 = vpack.c.b16 %v2322, %v2321
      %v2348 = vpack.c.b16 %v2324, %v2323
      %v2349 = vpack.c.b16 %v2326, %v2325
      %v2350 = vpack.c.b16 %v2328, %v2327
      %v2351 = vpack.c.b16 %v2330, %v2329
      %v2352 = vpack.c.b16 %v2332, %v2331
      %v2353 = vpack.c.b16 %v2334, %v2333
      %v2354 = vpack.c.b16 %v2336, %v2335
      %v2355 = vpack.c.b16 %v2338, %v2337
      %v2356 = vpack.c.b16 %v2340, %v2339
      %v2358 = vsel %vm1279, %v2341, 0
      %v2361 = vsel %vm1279, %v2342, 0
      %v2364 = vsel %vm1279, %v2343, 0
      %v2367 = vsel %vm1279, %v2344, 0
      %v2370 = vsel %vm1279, %v2345, 0
      %v2373 = vsel %vm1279, %v2346, 0
      %v2376 = vsel %vm1279, %v2347, 0
      %v2379 = vsel %vm1279, %v2348, 0
      %v2382 = vsel %vm1279, %v2349, 0
      %v2385 = vsel %vm1279, %v2350, 0
      %v2388 = vsel %vm1279, %v2351, 0
      %v2391 = vsel %vm1279, %v2352, 0
      %v2394 = vsel %vm1279, %v2353, 0
      %v2397 = vsel %vm1279, %v2354, 0
      %v2400 = vsel %vm1279, %v2355, 0
      %v2403 = vsel %vm1279, %v2356, 0
      %v2406 = vsel %vm1328, %v2276, 0
      %2408 = vmatprep.subr.bf16.mxu0 0
      %2409 = vmatpush1.bf16.msra.mxu0 0
      %2410 = vmatprep.subr.bf16.mxu0 0
      %2411 = vmatpush1.bf16.msra.mxu0 0
      %2412 = vmatprep.subr.bf16.mxu0 0
      %2413 = vmatpush1.bf16.msra.mxu0 0
      %2414 = vmatprep.subr.bf16.mxu0 0
      %2415 = vmatpush1.bf16.msra.mxu0 0
      %2416 = vmatprep.subr.bf16.mxu0 0
      %2417 = vmatpush1.bf16.msra.mxu0 0
      %2418 = vmatprep.subr.bf16.mxu0 0
      %2419 = vmatpush1.bf16.msra.mxu0 0
      %2420 = vmatprep.subr.bf16.mxu0 0
      %2421 = vmatpush1.bf16.msra.mxu0 0
      %2422 = vmatprep.subr.bf16.mxu0 0
      %2423 = vmatpush1.bf16.msra.mxu0 %v2406
      %2424 = vmatprep.subr.bf16.mxu0 0
      %2425 = vmatpush2.bf16.msra.mxu0 0
      %2426 = vmatprep.subr.bf16.mxu0 0
      %2427 = vmatpush2.bf16.msra.mxu0 0
      %2428 = vmatprep.subr.bf16.mxu0 0
      %2429 = vmatpush2.bf16.msra.mxu0 0
      %2430 = vmatprep.subr.bf16.mxu0 0
      %2431 = vmatpush2.bf16.msra.mxu0 0
      %2432 = vmatprep.subr.bf16.mxu0 0
      %2433 = vmatpush2.bf16.msra.mxu0 0
      %2434 = vmatprep.subr.bf16.mxu0 0
      %2435 = vmatpush2.bf16.msra.mxu0 0
      %2436 = vmatprep.subr.bf16.mxu0 0
      %2437 = vmatpush2.bf16.msra.mxu0 0
      %2438 = vmatprep.subr.bf16.mxu0 0
      %2439 = vmatpush2.bf16.msra.mxu0 0
      %2440 = vmatprep.mubr.bf16.mxu0 0
      %2441 = vmatmul.mubr.bf16.gmra.mxu0 %v2358
      %v2442 = vpop.f32.mrf.mxu0
      %v2443 = vadd.f32 0.0, %v2442
      %v2444 = vpop.f32.mrf.mxu0
      %v2445 = vpop.f32.mrf.mxu0
      %v2446 = vadd.f32 0.0, %v2445
      %v2447 = vpop.f32.mrf.mxu0
      %2448 = vmatprep.mubr.bf16.mxu0 0
      %2449 = vmatmul.mubr.bf16.gmra.mxu0 %v2361
      %v2450 = vpop.f32.mrf.mxu0
      %v2451 = vadd.f32 0.0, %v2450
      %v2452 = vpop.f32.mrf.mxu0
      %v2453 = vpop.f32.mrf.mxu0
      %v2454 = vadd.f32 0.0, %v2453
      %v2455 = vpop.f32.mrf.mxu0
      %2456 = vmatprep.mubr.bf16.mxu0 0
      %2457 = vmatmul.mubr.bf16.gmra.mxu0 %v2364
      %v2458 = vpop.f32.mrf.mxu0
      %v2459 = vadd.f32 0.0, %v2458
      %v2460 = vpop.f32.mrf.mxu0
      %v2461 = vpop.f32.mrf.mxu0
      %v2462 = vadd.f32 0.0, %v2461
      %v2463 = vpop.f32.mrf.mxu0
      %2464 = vmatprep.mubr.bf16.mxu0 0
      %2465 = vmatmul.mubr.bf16.gmra.mxu0 %v2367
      %v2466 = vpop.f32.mrf.mxu0
      %v2467 = vadd.f32 0.0, %v2466
      %v2468 = vpop.f32.mrf.mxu0
      %v2469 = vpop.f32.mrf.mxu0
      %v2470 = vadd.f32 0.0, %v2469
      %v2471 = vpop.f32.mrf.mxu0
      %2472 = vmatprep.mubr.bf16.mxu0 0
      %2473 = vmatmul.mubr.bf16.gmra.mxu0 %v2370
      %v2474 = vpop.f32.mrf.mxu0
      %v2475 = vadd.f32 0.0, %v2474
      %v2476 = vpop.f32.mrf.mxu0
      %v2477 = vpop.f32.mrf.mxu0
      %v2478 = vadd.f32 0.0, %v2477
      %v2479 = vpop.f32.mrf.mxu0
      %2480 = vmatprep.mubr.bf16.mxu0 0
      %2481 = vmatmul.mubr.bf16.gmra.mxu0 %v2373
      %v2482 = vpop.f32.mrf.mxu0
      %v2483 = vadd.f32 0.0, %v2482
      %v2484 = vpop.f32.mrf.mxu0
      %v2485 = vpop.f32.mrf.mxu0
      %v2486 = vadd.f32 0.0, %v2485
      %v2487 = vpop.f32.mrf.mxu0
      %2488 = vmatprep.mubr.bf16.mxu0 0
      %2489 = vmatmul.mubr.bf16.gmra.mxu0 %v2376
      %v2490 = vpop.f32.mrf.mxu0
      %v2491 = vadd.f32 0.0, %v2490
      %v2492 = vpop.f32.mrf.mxu0
      %v2493 = vpop.f32.mrf.mxu0
      %v2494 = vadd.f32 0.0, %v2493
      %v2495 = vpop.f32.mrf.mxu0
      %2496 = vmatprep.mubr.bf16.mxu0 0
      %2497 = vmatmul.mubr.bf16.gmra.mxu0 %v2379
      %v2498 = vpop.f32.mrf.mxu0
      %v2499 = vadd.f32 0.0, %v2498
      %v2500 = vpop.f32.mrf.mxu0
      %v2501 = vpop.f32.mrf.mxu0
      %v2502 = vadd.f32 0.0, %v2501
      %v2503 = vpop.f32.mrf.mxu0
      %2504 = vmatprep.mubr.bf16.mxu0 0
      %2505 = vmatmul.mubr.bf16.gmra.mxu0 %v2382
      %v2506 = vpop.f32.mrf.mxu0
      %v2507 = vadd.f32 0.0, %v2506
      %v2508 = vpop.f32.mrf.mxu0
      %v2509 = vpop.f32.mrf.mxu0
      %v2510 = vadd.f32 0.0, %v2509
      %v2511 = vpop.f32.mrf.mxu0
      %2512 = vmatprep.mubr.bf16.mxu0 0
      %2513 = vmatmul.mubr.bf16.gmra.mxu0 %v2385
      %v2514 = vpop.f32.mrf.mxu0
      %v2515 = vadd.f32 0.0, %v2514
      %v2516 = vpop.f32.mrf.mxu0
      %v2517 = vpop.f32.mrf.mxu0
      %v2518 = vadd.f32 0.0, %v2517
      %v2519 = vpop.f32.mrf.mxu0
      %2520 = vmatprep.mubr.bf16.mxu0 0
      %2521 = vmatmul.mubr.bf16.gmra.mxu0 %v2388
      %v2522 = vpop.f32.mrf.mxu0
      %v2523 = vadd.f32 0.0, %v2522
      %v2524 = vpop.f32.mrf.mxu0
      %v2525 = vpop.f32.mrf.mxu0
      %v2526 = vadd.f32 0.0, %v2525
      %v2527 = vpop.f32.mrf.mxu0
      %2528 = vmatprep.mubr.bf16.mxu0 0
      %2529 = vmatmul.mubr.bf16.gmra.mxu0 %v2391
      %v2530 = vpop.f32.mrf.mxu0
      %v2531 = vadd.f32 0.0, %v2530
      %v2532 = vpop.f32.mrf.mxu0
      %v2533 = vpop.f32.mrf.mxu0
      %v2534 = vadd.f32 0.0, %v2533
      %v2535 = vpop.f32.mrf.mxu0
      %2536 = vmatprep.mubr.bf16.mxu0 0
      %2537 = vmatmul.mubr.bf16.gmra.mxu0 %v2394
      %v2538 = vpop.f32.mrf.mxu0
      %v2539 = vadd.f32 0.0, %v2538
      %v2540 = vpop.f32.mrf.mxu0
      %v2541 = vpop.f32.mrf.mxu0
      %v2542 = vadd.f32 0.0, %v2541
      %v2543 = vpop.f32.mrf.mxu0
      %2544 = vmatprep.mubr.bf16.mxu0 0
      %2545 = vmatmul.mubr.bf16.gmra.mxu0 %v2397
      %v2546 = vpop.f32.mrf.mxu0
      %v2547 = vadd.f32 0.0, %v2546
      %v2548 = vpop.f32.mrf.mxu0
      %v2549 = vpop.f32.mrf.mxu0
      %v2550 = vadd.f32 0.0, %v2549
      %v2551 = vpop.f32.mrf.mxu0
      %2552 = vmatprep.mubr.bf16.mxu0 0
      %2553 = vmatmul.mubr.bf16.gmra.mxu0 %v2400
      %v2554 = vpop.f32.mrf.mxu0
      %v2555 = vadd.f32 0.0, %v2554
      %v2556 = vpop.f32.mrf.mxu0
      %v2557 = vpop.f32.mrf.mxu0
      %v2558 = vadd.f32 0.0, %v2557
      %v2559 = vpop.f32.mrf.mxu0
      %2560 = vmatprep.mubr.bf16.mxu0 0
      %2561 = vmatmul.mubr.bf16.gmra.mxu0 %v2403
      %v2562 = vpop.f32.mrf.mxu0
      %v2563 = vadd.f32 0.0, %v2562
      %v2564 = vpop.f32.mrf.mxu0
      %v2565 = vpop.f32.mrf.mxu0
      %v2566 = vadd.f32 0.0, %v2565
      %v2567 = vpop.f32.mrf.mxu0
      %2568 = vdwg.mxu0
      %v2569 = vadd.f32 %v2210, %v2443
      %v2570 = vadd.f32 %v2211, %v2446
      %v2571 = vadd.f32 %v2212, %v2451
      %v2572 = vadd.f32 %v2213, %v2454
      %v2573 = vadd.f32 %v2214, %v2459
      %v2574 = vadd.f32 %v2215, %v2462
      %v2575 = vadd.f32 %v2216, %v2467
      %v2576 = vadd.f32 %v2217, %v2470
      %v2577 = vadd.f32 %v2218, %v2475
      %v2578 = vadd.f32 %v2219, %v2478
      %v2579 = vadd.f32 %v2220, %v2483
      %v2580 = vadd.f32 %v2221, %v2486
      %v2581 = vadd.f32 %v2222, %v2491
      %v2582 = vadd.f32 %v2223, %v2494
      %v2583 = vadd.f32 %v2224, %v2499
      %v2584 = vadd.f32 %v2225, %v2502
      %v2585 = vadd.f32 %v2226, %v2507
      %v2586 = vadd.f32 %v2227, %v2510
      %v2587 = vadd.f32 %v2228, %v2515
      %v2588 = vadd.f32 %v2229, %v2518
      %v2589 = vadd.f32 %v2230, %v2523
      %v2590 = vadd.f32 %v2231, %v2526
      %v2591 = vadd.f32 %v2232, %v2531
      %v2592 = vadd.f32 %v2233, %v2534
      %v2593 = vadd.f32 %v2234, %v2539
      %v2594 = vadd.f32 %v2235, %v2542
      %v2595 = vadd.f32 %v2236, %v2547
      %v2596 = vadd.f32 %v2237, %v2550
      %v2597 = vadd.f32 %v2238, %v2555
      %v2598 = vadd.f32 %v2239, %v2558
      %v2599 = vadd.f32 %v2240, %v2563
      %v2600 = vadd.f32 %v2241, %v2566
      %v2601 = vld [vmem:[%s2242] sm:$0xf]
      %v2602 = vld [vmem:[%s2242 + $0x4] sm:$0xf]
      %v2603 = vld [vmem:[%s2242 + $0x8] sm:$0x1]
      %v2604 = vld [vmem:[%s2242 + $0xc] sm:$0xf]
      %v2605 = vld [vmem:[%s2242 + $0x10] sm:$0xf]
      %v2606 = vld [vmem:[%s2242 + $0x14] sm:$0x1]
      %v2607 = vld [vmem:[%s2242 + $0x18] sm:$0xf]
      %v2608 = vld [vmem:[%s2242 + $0x1c] sm:$0xf]
      %v2609 = vld [vmem:[%s2242 + $0x20] sm:$0x1]
      %v2610 = vld [vmem:[%s2242 + $0x24] sm:$0xf]
      %v2611 = vld [vmem:[%s2242 + $0x28] sm:$0xf]
      %v2612 = vld [vmem:[%s2242 + $0x2c] sm:$0x1]
      %v2613 = vld [vmem:[%s2242 + $0x30] sm:$0xf]
      %v2614 = vld [vmem:[%s2242 + $0x34] sm:$0xf]
      %v2615 = vld [vmem:[%s2242 + $0x38] sm:$0x1]
      %v2616 = vld [vmem:[%s2242 + $0x3c] sm:$0xf]
      %v2617 = vld [vmem:[%s2242 + $0x40] sm:$0xf]
      %v2618 = vld [vmem:[%s2242 + $0x44] sm:$0x1]
      %v2619 = vld [vmem:[%s2242 + $0x48] sm:$0xf]
      %v2620 = vld [vmem:[%s2242 + $0x4c] sm:$0xf]
      %v2621 = vld [vmem:[%s2242 + $0x50] sm:$0x1]
      %v2622 = vld [vmem:[%s2242 + $0x54] sm:$0xf]
      %v2623 = vld [vmem:[%s2242 + $0x58] sm:$0xf]
      %v2624 = vld [vmem:[%s2242 + $0x5c] sm:$0x1]
      %v2625 = vld [vmem:[%s2242 + $0x60] sm:$0xf]
      %v2626 = vld [vmem:[%s2242 + $0x64] sm:$0xf]
      %v2627 = vld [vmem:[%s2242 + $0x68] sm:$0x1]
      %v2628 = vld [vmem:[%s2242 + $0x6c] sm:$0xf]
      %v2629 = vld [vmem:[%s2242 + $0x70] sm:$0xf]
      %v2630 = vld [vmem:[%s2242 + $0x74] sm:$0x1]
      %v2631 = vld [vmem:[%s2242 + $0x78] sm:$0xf]
      %v2632 = vld [vmem:[%s2242 + $0x7c] sm:$0xf]
      %v2633 = vld [vmem:[%s2242 + $0x80] sm:$0x1]
      %v2634 = vld [vmem:[%s2242 + $0x84] sm:$0xf]
      %v2635 = vld [vmem:[%s2242 + $0x88] sm:$0xf]
      %v2636 = vld [vmem:[%s2242 + $0x8c] sm:$0x1]
      %v2637 = vld [vmem:[%s2242 + $0x90] sm:$0xf]
      %v2638 = vld [vmem:[%s2242 + $0x94] sm:$0xf]
      %v2639 = vld [vmem:[%s2242 + $0x98] sm:$0x1]
      %v2640 = vld [vmem:[%s2242 + $0x9c] sm:$0xf]
      %v2641 = vld [vmem:[%s2242 + $0xa0] sm:$0xf]
      %v2642 = vld [vmem:[%s2242 + $0xa4] sm:$0x1]
      %v2643 = vld [vmem:[%s2242 + $0xa8] sm:$0xf]
      %v2644 = vld [vmem:[%s2242 + $0xac] sm:$0xf]
      %v2645 = vld [vmem:[%s2242 + $0xb0] sm:$0x1]
      %v2646 = vld [vmem:[%s2242 + $0xb4] sm:$0xf]
      %v2647 = vld [vmem:[%s2242 + $0xb8] sm:$0xf]
      %v2648 = vld [vmem:[%s2242 + $0xbc] sm:$0x1]
      %v2650 = vshrl.u32 %v2601, 16
      %v2652 = vrot.slane %v2650, 4
      %v2653 = vshll.u32 %v2601, 16
      %v2655 = vrot.slane %v2653, 5
      %v2656 = vor.u32 %v2652, %v2655
      %v2657 = vrot.slane %v2656, 4
      %v2659 = vshll.u32 %v2602, 16
      %v2661 = vrot.slane %v2659, 5
      %v2662 = vsel %vm844, %v2657, %v2661
      %v2663 = vshrl.u32 %v2602, 16
      %v2665 = vrot.slane %v2663, 4
      %v2666 = vor.u32 %v2665, %v2661
      %v2667 = vrot.slane %v2666, 4
      %v2669 = vshll.u32 %v2603, 16
      %v2671 = vrot.slane %v2669, 5
      %v2672 = vsel %vm844, %v2667, %v2671
      %v2674 = vshrl.u32 %v2604, 16
      %v2676 = vrot.slane %v2674, 4
      %v2677 = vshll.u32 %v2604, 16
      %v2679 = vrot.slane %v2677, 5
      %v2680 = vor.u32 %v2676, %v2679
      %v2681 = vrot.slane %v2680, 4
      %v2683 = vshll.u32 %v2605, 16
      %v2685 = vrot.slane %v2683, 5
      %v2686 = vsel %vm844, %v2681, %v2685
      %v2687 = vshrl.u32 %v2605, 16
      %v2689 = vrot.slane %v2687, 4
      %v2690 = vor.u32 %v2689, %v2685
      %v2691 = vrot.slane %v2690, 4
      %v2693 = vshll.u32 %v2606, 16
      %v2695 = vrot.slane %v2693, 5
      %v2696 = vsel %vm844, %v2691, %v2695
      %v2698 = vshrl.u32 %v2607, 16
      %v2700 = vrot.slane %v2698, 4
      %v2701 = vshll.u32 %v2607, 16
      %v2703 = vrot.slane %v2701, 5
      %v2704 = vor.u32 %v2700, %v2703
      %v2705 = vrot.slane %v2704, 4
      %v2707 = vshll.u32 %v2608, 16
      %v2709 = vrot.slane %v2707, 5
      %v2710 = vsel %vm844, %v2705, %v2709
      %v2711 = vshrl.u32 %v2608, 16
      %v2713 = vrot.slane %v2711, 4
      %v2714 = vor.u32 %v2713, %v2709
      %v2715 = vrot.slane %v2714, 4
      %v2717 = vshll.u32 %v2609, 16
      %v2719 = vrot.slane %v2717, 5
      %v2720 = vsel %vm844, %v2715, %v2719
      %v2722 = vshrl.u32 %v2610, 16
      %v2724 = vrot.slane %v2722, 4
      %v2725 = vshll.u32 %v2610, 16
      %v2727 = vrot.slane %v2725, 5
      %v2728 = vor.u32 %v2724, %v2727
      %v2729 = vrot.slane %v2728, 4
      %v2731 = vshll.u32 %v2611, 16
      %v2733 = vrot.slane %v2731, 5
      %v2734 = vsel %vm844, %v2729, %v2733
      %v2735 = vshrl.u32 %v2611, 16
      %v2737 = vrot.slane %v2735, 4
      %v2738 = vor.u32 %v2737, %v2733
      %v2739 = vrot.slane %v2738, 4
      %v2741 = vshll.u32 %v2612, 16
      %v2743 = vrot.slane %v2741, 5
      %v2744 = vsel %vm844, %v2739, %v2743
      %v2746 = vshrl.u32 %v2613, 16
      %v2748 = vrot.slane %v2746, 4
      %v2749 = vshll.u32 %v2613, 16
      %v2751 = vrot.slane %v2749, 5
      %v2752 = vor.u32 %v2748, %v2751
      %v2753 = vrot.slane %v2752, 4
      %v2755 = vshll.u32 %v2614, 16
      %v2757 = vrot.slane %v2755, 5
      %v2758 = vsel %vm844, %v2753, %v2757
      %v2759 = vshrl.u32 %v2614, 16
      %v2761 = vrot.slane %v2759, 4
      %v2762 = vor.u32 %v2761, %v2757
      %v2763 = vrot.slane %v2762, 4
      %v2765 = vshll.u32 %v2615, 16
      %v2767 = vrot.slane %v2765, 5
      %v2768 = vsel %vm844, %v2763, %v2767
      %v2770 = vshrl.u32 %v2616, 16
      %v2772 = vrot.slane %v2770, 4
      %v2773 = vshll.u32 %v2616, 16
      %v2775 = vrot.slane %v2773, 5
      %v2776 = vor.u32 %v2772, %v2775
      %v2777 = vrot.slane %v2776, 4
      %v2779 = vshll.u32 %v2617, 16
      %v2781 = vrot.slane %v2779, 5
      %v2782 = vsel %vm844, %v2777, %v2781
      %v2783 = vshrl.u32 %v2617, 16
      %v2785 = vrot.slane %v2783, 4
      %v2786 = vor.u32 %v2785, %v2781
      %v2787 = vrot.slane %v2786, 4
      %v2789 = vshll.u32 %v2618, 16
      %v2791 = vrot.slane %v2789, 5
      %v2792 = vsel %vm844, %v2787, %v2791
      %v2794 = vshrl.u32 %v2619, 16
      %v2796 = vrot.slane %v2794, 4
      %v2797 = vshll.u32 %v2619, 16
      %v2799 = vrot.slane %v2797, 5
      %v2800 = vor.u32 %v2796, %v2799
      %v2801 = vrot.slane %v2800, 4
      %v2803 = vshll.u32 %v2620, 16
      %v2805 = vrot.slane %v2803, 5
      %v2806 = vsel %vm844, %v2801, %v2805
      %v2807 = vshrl.u32 %v2620, 16
      %v2809 = vrot.slane %v2807, 4
      %v2810 = vor.u32 %v2809, %v2805
      %v2811 = vrot.slane %v2810, 4
      %v2813 = vshll.u32 %v2621, 16
      %v2815 = vrot.slane %v2813, 5
      %v2816 = vsel %vm844, %v2811, %v2815
      %v2818 = vshrl.u32 %v2622, 16
      %v2820 = vrot.slane %v2818, 4
      %v2821 = vshll.u32 %v2622, 16
      %v2823 = vrot.slane %v2821, 5
      %v2824 = vor.u32 %v2820, %v2823
      %v2825 = vrot.slane %v2824, 4
      %v2827 = vshll.u32 %v2623, 16
      %v2829 = vrot.slane %v2827, 5
      %v2830 = vsel %vm844, %v2825, %v2829
      %v2831 = vshrl.u32 %v2623, 16
      %v2833 = vrot.slane %v2831, 4
      %v2834 = vor.u32 %v2833, %v2829
      %v2835 = vrot.slane %v2834, 4
      %v2837 = vshll.u32 %v2624, 16
      %v2839 = vrot.slane %v2837, 5
      %v2840 = vsel %vm844, %v2835, %v2839
      %v2842 = vshrl.u32 %v2625, 16
      %v2844 = vrot.slane %v2842, 4
      %v2845 = vshll.u32 %v2625, 16
      %v2847 = vrot.slane %v2845, 5
      %v2848 = vor.u32 %v2844, %v2847
      %v2849 = vrot.slane %v2848, 4
      %v2851 = vshll.u32 %v2626, 16
      %v2853 = vrot.slane %v2851, 5
      %v2854 = vsel %vm844, %v2849, %v2853
      %v2855 = vshrl.u32 %v2626, 16
      %v2857 = vrot.slane %v2855, 4
      %v2858 = vor.u32 %v2857, %v2853
      %v2859 = vrot.slane %v2858, 4
      %v2861 = vshll.u32 %v2627, 16
      %v2863 = vrot.slane %v2861, 5
      %v2864 = vsel %vm844, %v2859, %v2863
      %v2866 = vshrl.u32 %v2628, 16
      %v2868 = vrot.slane %v2866, 4
      %v2869 = vshll.u32 %v2628, 16
      %v2871 = vrot.slane %v2869, 5
      %v2872 = vor.u32 %v2868, %v2871
      %v2873 = vrot.slane %v2872, 4
      %v2875 = vshll.u32 %v2629, 16
      %v2877 = vrot.slane %v2875, 5
      %v2878 = vsel %vm844, %v2873, %v2877
      %v2879 = vshrl.u32 %v2629, 16
      %v2881 = vrot.slane %v2879, 4
      %v2882 = vor.u32 %v2881, %v2877
      %v2883 = vrot.slane %v2882, 4
      %v2885 = vshll.u32 %v2630, 16
      %v2887 = vrot.slane %v2885, 5
      %v2888 = vsel %vm844, %v2883, %v2887
      %v2890 = vshrl.u32 %v2631, 16
      %v2892 = vrot.slane %v2890, 4
      %v2893 = vshll.u32 %v2631, 16
      %v2895 = vrot.slane %v2893, 5
      %v2896 = vor.u32 %v2892, %v2895
      %v2897 = vrot.slane %v2896, 4
      %v2899 = vshll.u32 %v2632, 16
      %v2901 = vrot.slane %v2899, 5
      %v2902 = vsel %vm844, %v2897, %v2901
      %v2903 = vshrl.u32 %v2632, 16
      %v2905 = vrot.slane %v2903, 4
      %v2906 = vor.u32 %v2905, %v2901
      %v2907 = vrot.slane %v2906, 4
      %v2909 = vshll.u32 %v2633, 16
      %v2911 = vrot.slane %v2909, 5
      %v2912 = vsel %vm844, %v2907, %v2911
      %v2914 = vshrl.u32 %v2634, 16
      %v2916 = vrot.slane %v2914, 4
      %v2917 = vshll.u32 %v2634, 16
      %v2919 = vrot.slane %v2917, 5
      %v2920 = vor.u32 %v2916, %v2919
      %v2921 = vrot.slane %v2920, 4
      %v2923 = vshll.u32 %v2635, 16
      %v2925 = vrot.slane %v2923, 5
      %v2926 = vsel %vm844, %v2921, %v2925
      %v2927 = vshrl.u32 %v2635, 16
      %v2929 = vrot.slane %v2927, 4
      %v2930 = vor.u32 %v2929, %v2925
      %v2931 = vrot.slane %v2930, 4
      %v2933 = vshll.u32 %v2636, 16
      %v2935 = vrot.slane %v2933, 5
      %v2936 = vsel %vm844, %v2931, %v2935
      %v2938 = vshrl.u32 %v2637, 16
      %v2940 = vrot.slane %v2938, 4
      %v2941 = vshll.u32 %v2637, 16
      %v2943 = vrot.slane %v2941, 5
      %v2944 = vor.u32 %v2940, %v2943
      %v2945 = vrot.slane %v2944, 4
      %v2947 = vshll.u32 %v2638, 16
      %v2949 = vrot.slane %v2947, 5
      %v2950 = vsel %vm844, %v2945, %v2949
      %v2951 = vshrl.u32 %v2638, 16
      %v2953 = vrot.slane %v2951, 4
      %v2954 = vor.u32 %v2953, %v2949
      %v2955 = vrot.slane %v2954, 4
      %v2957 = vshll.u32 %v2639, 16
      %v2959 = vrot.slane %v2957, 5
      %v2960 = vsel %vm844, %v2955, %v2959
      %v2962 = vshrl.u32 %v2640, 16
      %v2964 = vrot.slane %v2962, 4
      %v2965 = vshll.u32 %v2640, 16
      %v2967 = vrot.slane %v2965, 5
      %v2968 = vor.u32 %v2964, %v2967
      %v2969 = vrot.slane %v2968, 4
      %v2971 = vshll.u32 %v2641, 16
      %v2973 = vrot.slane %v2971, 5
      %v2974 = vsel %vm844, %v2969, %v2973
      %v2975 = vshrl.u32 %v2641, 16
      %v2977 = vrot.slane %v2975, 4
      %v2978 = vor.u32 %v2977, %v2973
      %v2979 = vrot.slane %v2978, 4
      %v2981 = vshll.u32 %v2642, 16
      %v2983 = vrot.slane %v2981, 5
      %v2984 = vsel %vm844, %v2979, %v2983
      %v2986 = vshrl.u32 %v2643, 16
      %v2988 = vrot.slane %v2986, 4
      %v2989 = vshll.u32 %v2643, 16
      %v2991 = vrot.slane %v2989, 5
      %v2992 = vor.u32 %v2988, %v2991
      %v2993 = vrot.slane %v2992, 4
      %v2995 = vshll.u32 %v2644, 16
      %v2997 = vrot.slane %v2995, 5
      %v2998 = vsel %vm844, %v2993, %v2997
      %v2999 = vshrl.u32 %v2644, 16
      %v3001 = vrot.slane %v2999, 4
      %v3002 = vor.u32 %v3001, %v2997
      %v3003 = vrot.slane %v3002, 4
      %v3005 = vshll.u32 %v2645, 16
      %v3007 = vrot.slane %v3005, 5
      %v3008 = vsel %vm844, %v3003, %v3007
      %v3010 = vshrl.u32 %v2646, 16
      %v3012 = vrot.slane %v3010, 4
      %v3013 = vshll.u32 %v2646, 16
      %v3015 = vrot.slane %v3013, 5
      %v3016 = vor.u32 %v3012, %v3015
      %v3017 = vrot.slane %v3016, 4
      %v3019 = vshll.u32 %v2647, 16
      %v3021 = vrot.slane %v3019, 5
      %v3022 = vsel %vm844, %v3017, %v3021
      %v3023 = vshrl.u32 %v2647, 16
      %v3025 = vrot.slane %v3023, 4
      %v3026 = vor.u32 %v3025, %v3021
      %v3027 = vrot.slane %v3026, 4
      %v3029 = vshll.u32 %v2648, 16
      %v3031 = vrot.slane %v3029, 5
      %v3032 = vsel %vm844, %v3027, %v3031
      %s3033 = scalar_lea.vmem %s3, 4
      %v3034 = vld [vmem:[%s3033] sm:$0x1]
      %v3035 = vunpack.c.l.b16 %v2662
      %v3036 = vunpack.c.l.b16 %v2672
      %v3037 = vunpack.c.l.b16 %v2686
      %v3038 = vunpack.c.l.b16 %v2696
      %v3039 = vunpack.c.l.b16 %v2710
      %v3040 = vunpack.c.l.b16 %v2720
      %v3041 = vunpack.c.l.b16 %v2734
      %v3042 = vunpack.c.l.b16 %v2744
      %v3043 = vunpack.c.l.b16 %v2758
      %v3044 = vunpack.c.l.b16 %v2768
      %v3045 = vunpack.c.l.b16 %v2782
      %v3046 = vunpack.c.l.b16 %v2792
      %v3047 = vunpack.c.l.b16 %v2806
      %v3048 = vunpack.c.l.b16 %v2816
      %v3049 = vunpack.c.l.b16 %v2830
      %v3050 = vunpack.c.l.b16 %v2840
      %v3051 = vunpack.c.l.b16 %v2854
      %v3052 = vunpack.c.l.b16 %v2864
      %v3053 = vunpack.c.l.b16 %v2878
      %v3054 = vunpack.c.l.b16 %v2888
      %v3055 = vunpack.c.l.b16 %v2902
      %v3056 = vunpack.c.l.b16 %v2912
      %v3057 = vunpack.c.l.b16 %v2926
      %v3058 = vunpack.c.l.b16 %v2936
      %v3059 = vunpack.c.l.b16 %v2950
      %v3060 = vunpack.c.l.b16 %v2960
      %v3061 = vunpack.c.l.b16 %v2974
      %v3062 = vunpack.c.l.b16 %v2984
      %v3063 = vunpack.c.l.b16 %v2998
      %v3064 = vunpack.c.l.b16 %v3008
      %v3065 = vunpack.c.l.b16 %v3022
      %v3066 = vunpack.c.l.b16 %v3032
      %v3067 = vpack.c.b16 %v3036, %v3035
      %v3068 = vpack.c.b16 %v3038, %v3037
      %v3069 = vpack.c.b16 %v3040, %v3039
      %v3070 = vpack.c.b16 %v3042, %v3041
      %v3071 = vpack.c.b16 %v3044, %v3043
      %v3072 = vpack.c.b16 %v3046, %v3045
      %v3073 = vpack.c.b16 %v3048, %v3047
      %v3074 = vpack.c.b16 %v3050, %v3049
      %v3075 = vpack.c.b16 %v3052, %v3051
      %v3076 = vpack.c.b16 %v3054, %v3053
      %v3077 = vpack.c.b16 %v3056, %v3055
      %v3078 = vpack.c.b16 %v3058, %v3057
      %v3079 = vpack.c.b16 %v3060, %v3059
      %v3080 = vpack.c.b16 %v3062, %v3061
      %v3081 = vpack.c.b16 %v3064, %v3063
      %v3082 = vpack.c.b16 %v3066, %v3065
      %v3084 = vsel %vm1279, %v3067, 0
      %v3087 = vsel %vm1279, %v3068, 0
      %v3090 = vsel %vm1279, %v3069, 0
      %v3093 = vsel %vm1279, %v3070, 0
      %v3096 = vsel %vm1279, %v3071, 0
      %v3099 = vsel %vm1279, %v3072, 0
      %v3102 = vsel %vm1279, %v3073, 0
      %v3105 = vsel %vm1279, %v3074, 0
      %v3108 = vsel %vm1279, %v3075, 0
      %v3111 = vsel %vm1279, %v3076, 0
      %v3114 = vsel %vm1279, %v3077, 0
      %v3117 = vsel %vm1279, %v3078, 0
      %v3120 = vsel %vm1279, %v3079, 0
      %v3123 = vsel %vm1279, %v3080, 0
      %v3126 = vsel %vm1279, %v3081, 0
      %v3129 = vsel %vm1279, %v3082, 0
      %v3132 = vsel %vm1328, %v3034, 0
      %3134 = vmatprep.subr.bf16.mxu0 0
      %3135 = vmatpush1.bf16.msra.mxu0 0
      %3136 = vmatprep.subr.bf16.mxu0 0
      %3137 = vmatpush1.bf16.msra.mxu0 0
      %3138 = vmatprep.subr.bf16.mxu0 0
      %3139 = vmatpush1.bf16.msra.mxu0 0
      %3140 = vmatprep.subr.bf16.mxu0 0
      %3141 = vmatpush1.bf16.msra.mxu0 0
      %3142 = vmatprep.subr.bf16.mxu0 0
      %3143 = vmatpush1.bf16.msra.mxu0 0
      %3144 = vmatprep.subr.bf16.mxu0 0
      %3145 = vmatpush1.bf16.msra.mxu0 0
      %3146 = vmatprep.subr.bf16.mxu0 0
      %3147 = vmatpush1.bf16.msra.mxu0 0
      %3148 = vmatprep.subr.bf16.mxu0 0
      %3149 = vmatpush1.bf16.msra.mxu0 %v3132
      %3150 = vmatprep.subr.bf16.mxu0 0
      %3151 = vmatpush2.bf16.msra.mxu0 0
      %3152 = vmatprep.subr.bf16.mxu0 0
      %3153 = vmatpush2.bf16.msra.mxu0 0
      %3154 = vmatprep.subr.bf16.mxu0 0
      %3155 = vmatpush2.bf16.msra.mxu0 0
      %3156 = vmatprep.subr.bf16.mxu0 0
      %3157 = vmatpush2.bf16.msra.mxu0 0
      %3158 = vmatprep.subr.bf16.mxu0 0
      %3159 = vmatpush2.bf16.msra.mxu0 0
      %3160 = vmatprep.subr.bf16.mxu0 0
      %3161 = vmatpush2.bf16.msra.mxu0 0
      %3162 = vmatprep.subr.bf16.mxu0 0
      %3163 = vmatpush2.bf16.msra.mxu0 0
      %3164 = vmatprep.subr.bf16.mxu0 0
      %3165 = vmatpush2.bf16.msra.mxu0 0
      %3166 = vmatprep.mubr.bf16.mxu0 0
      %3167 = vmatmul.mubr.bf16.gmra.mxu0 %v3084
      %v3168 = vpop.f32.mrf.mxu0
      %v3169 = vadd.f32 0.0, %v3168
      %v3170 = vpop.f32.mrf.mxu0
      %v3171 = vpop.f32.mrf.mxu0
      %v3172 = vadd.f32 0.0, %v3171
      %v3173 = vpop.f32.mrf.mxu0
      %3174 = vmatprep.mubr.bf16.mxu0 0
      %3175 = vmatmul.mubr.bf16.gmra.mxu0 %v3087
      %v3176 = vpop.f32.mrf.mxu0
      %v3177 = vadd.f32 0.0, %v3176
      %v3178 = vpop.f32.mrf.mxu0
      %v3179 = vpop.f32.mrf.mxu0
      %v3180 = vadd.f32 0.0, %v3179
      %v3181 = vpop.f32.mrf.mxu0
      %3182 = vmatprep.mubr.bf16.mxu0 0
      %3183 = vmatmul.mubr.bf16.gmra.mxu0 %v3090
      %v3184 = vpop.f32.mrf.mxu0
      %v3185 = vadd.f32 0.0, %v3184
      %v3186 = vpop.f32.mrf.mxu0
      %v3187 = vpop.f32.mrf.mxu0
      %v3188 = vadd.f32 0.0, %v3187
      %v3189 = vpop.f32.mrf.mxu0
      %3190 = vmatprep.mubr.bf16.mxu0 0
      %3191 = vmatmul.mubr.bf16.gmra.mxu0 %v3093
      %v3192 = vpop.f32.mrf.mxu0
      %v3193 = vadd.f32 0.0, %v3192
      %v3194 = vpop.f32.mrf.mxu0
      %v3195 = vpop.f32.mrf.mxu0
      %v3196 = vadd.f32 0.0, %v3195
      %v3197 = vpop.f32.mrf.mxu0
      %3198 = vmatprep.mubr.bf16.mxu0 0
      %3199 = vmatmul.mubr.bf16.gmra.mxu0 %v3096
      %v3200 = vpop.f32.mrf.mxu0
      %v3201 = vadd.f32 0.0, %v3200
      %v3202 = vpop.f32.mrf.mxu0
      %v3203 = vpop.f32.mrf.mxu0
      %v3204 = vadd.f32 0.0, %v3203
      %v3205 = vpop.f32.mrf.mxu0
      %3206 = vmatprep.mubr.bf16.mxu0 0
      %3207 = vmatmul.mubr.bf16.gmra.mxu0 %v3099
      %v3208 = vpop.f32.mrf.mxu0
      %v3209 = vadd.f32 0.0, %v3208
      %v3210 = vpop.f32.mrf.mxu0
      %v3211 = vpop.f32.mrf.mxu0
      %v3212 = vadd.f32 0.0, %v3211
      %v3213 = vpop.f32.mrf.mxu0
      %3214 = vmatprep.mubr.bf16.mxu0 0
      %3215 = vmatmul.mubr.bf16.gmra.mxu0 %v3102
      %v3216 = vpop.f32.mrf.mxu0
      %v3217 = vadd.f32 0.0, %v3216
      %v3218 = vpop.f32.mrf.mxu0
      %v3219 = vpop.f32.mrf.mxu0
      %v3220 = vadd.f32 0.0, %v3219
      %v3221 = vpop.f32.mrf.mxu0
      %3222 = vmatprep.mubr.bf16.mxu0 0
      %3223 = vmatmul.mubr.bf16.gmra.mxu0 %v3105
      %v3224 = vpop.f32.mrf.mxu0
      %v3225 = vadd.f32 0.0, %v3224
      %v3226 = vpop.f32.mrf.mxu0
      %v3227 = vpop.f32.mrf.mxu0
      %v3228 = vadd.f32 0.0, %v3227
      %v3229 = vpop.f32.mrf.mxu0
      %3230 = vmatprep.mubr.bf16.mxu0 0
      %3231 = vmatmul.mubr.bf16.gmra.mxu0 %v3108
      %v3232 = vpop.f32.mrf.mxu0
      %v3233 = vadd.f32 0.0, %v3232
      %v3234 = vpop.f32.mrf.mxu0
      %v3235 = vpop.f32.mrf.mxu0
      %v3236 = vadd.f32 0.0, %v3235
      %v3237 = vpop.f32.mrf.mxu0
      %3238 = vmatprep.mubr.bf16.mxu0 0
      %3239 = vmatmul.mubr.bf16.gmra.mxu0 %v3111
      %v3240 = vpop.f32.mrf.mxu0
      %v3241 = vadd.f32 0.0, %v3240
      %v3242 = vpop.f32.mrf.mxu0
      %v3243 = vpop.f32.mrf.mxu0
      %v3244 = vadd.f32 0.0, %v3243
      %v3245 = vpop.f32.mrf.mxu0
      %3246 = vmatprep.mubr.bf16.mxu0 0
      %3247 = vmatmul.mubr.bf16.gmra.mxu0 %v3114
      %v3248 = vpop.f32.mrf.mxu0
      %v3249 = vadd.f32 0.0, %v3248
      %v3250 = vpop.f32.mrf.mxu0
      %v3251 = vpop.f32.mrf.mxu0
      %v3252 = vadd.f32 0.0, %v3251
      %v3253 = vpop.f32.mrf.mxu0
      %3254 = vmatprep.mubr.bf16.mxu0 0
      %3255 = vmatmul.mubr.bf16.gmra.mxu0 %v3117
      %v3256 = vpop.f32.mrf.mxu0
      %v3257 = vadd.f32 0.0, %v3256
      %v3258 = vpop.f32.mrf.mxu0
      %v3259 = vpop.f32.mrf.mxu0
      %v3260 = vadd.f32 0.0, %v3259
      %v3261 = vpop.f32.mrf.mxu0
      %3262 = vmatprep.mubr.bf16.mxu0 0
      %3263 = vmatmul.mubr.bf16.gmra.mxu0 %v3120
      %v3264 = vpop.f32.mrf.mxu0
      %v3265 = vadd.f32 0.0, %v3264
      %v3266 = vpop.f32.mrf.mxu0
      %v3267 = vpop.f32.mrf.mxu0
      %v3268 = vadd.f32 0.0, %v3267
      %v3269 = vpop.f32.mrf.mxu0
      %3270 = vmatprep.mubr.bf16.mxu0 0
      %3271 = vmatmul.mubr.bf16.gmra.mxu0 %v3123
      %v3272 = vpop.f32.mrf.mxu0
      %v3273 = vadd.f32 0.0, %v3272
      %v3274 = vpop.f32.mrf.mxu0
      %v3275 = vpop.f32.mrf.mxu0
      %v3276 = vadd.f32 0.0, %v3275
      %v3277 = vpop.f32.mrf.mxu0
      %3278 = vmatprep.mubr.bf16.mxu0 0
      %3279 = vmatmul.mubr.bf16.gmra.mxu0 %v3126
      %v3280 = vpop.f32.mrf.mxu0
      %v3281 = vadd.f32 0.0, %v3280
      %v3282 = vpop.f32.mrf.mxu0
      %v3283 = vpop.f32.mrf.mxu0
      %v3284 = vadd.f32 0.0, %v3283
      %v3285 = vpop.f32.mrf.mxu0
      %3286 = vmatprep.mubr.bf16.mxu0 0
      %3287 = vmatmul.mubr.bf16.gmra.mxu0 %v3129
      %v3288 = vpop.f32.mrf.mxu0
      %v3289 = vadd.f32 0.0, %v3288
      %v3290 = vpop.f32.mrf.mxu0
      %v3291 = vpop.f32.mrf.mxu0
      %v3292 = vadd.f32 0.0, %v3291
      %v3293 = vpop.f32.mrf.mxu0
      %3294 = vdwg.mxu0
      %v3295 = vadd.f32 %v2569, %v3169
      %v3296 = vadd.f32 %v2570, %v3172
      %v3297 = vadd.f32 %v2571, %v3177
      %v3298 = vadd.f32 %v2572, %v3180
      %v3299 = vadd.f32 %v2573, %v3185
      %v3300 = vadd.f32 %v2574, %v3188
      %v3301 = vadd.f32 %v2575, %v3193
      %v3302 = vadd.f32 %v2576, %v3196
      %v3303 = vadd.f32 %v2577, %v3201
      %v3304 = vadd.f32 %v2578, %v3204
      %v3305 = vadd.f32 %v2579, %v3209
      %v3306 = vadd.f32 %v2580, %v3212
      %v3307 = vadd.f32 %v2581, %v3217
      %v3308 = vadd.f32 %v2582, %v3220
      %v3309 = vadd.f32 %v2583, %v3225
      %v3310 = vadd.f32 %v2584, %v3228
      %v3311 = vadd.f32 %v2585, %v3233
      %v3312 = vadd.f32 %v2586, %v3236
      %v3313 = vadd.f32 %v2587, %v3241
      %v3314 = vadd.f32 %v2588, %v3244
      %v3315 = vadd.f32 %v2589, %v3249
      %v3316 = vadd.f32 %v2590, %v3252
      %v3317 = vadd.f32 %v2591, %v3257
      %v3318 = vadd.f32 %v2592, %v3260
      %v3319 = vadd.f32 %v2593, %v3265
      %v3320 = vadd.f32 %v2594, %v3268
      %v3321 = vadd.f32 %v2595, %v3273
      %v3322 = vadd.f32 %v2596, %v3276
      %v3323 = vadd.f32 %v2597, %v3281
      %v3324 = vadd.f32 %v2598, %v3284
      %v3325 = vadd.f32 %v2599, %v3289
      %v3326 = vadd.f32 %v2600, %v3292
      %v3327 = vld [vmem:[%s2242] sm:$0xe]
      %v3328 = vld [vmem:[%s2242 + $0xc] sm:$0xe]
      %v3329 = vld [vmem:[%s2242 + $0x18] sm:$0xe]
      %v3330 = vld [vmem:[%s2242 + $0x24] sm:$0xe]
      %v3331 = vld [vmem:[%s2242 + $0x30] sm:$0xe]
      %v3332 = vld [vmem:[%s2242 + $0x3c] sm:$0xe]
      %v3333 = vld [vmem:[%s2242 + $0x48] sm:$0xe]
      %v3334 = vld [vmem:[%s2242 + $0x54] sm:$0xe]
      %v3335 = vld [vmem:[%s2242 + $0x60] sm:$0xe]
      %v3336 = vld [vmem:[%s2242 + $0x6c] sm:$0xe]
      %v3337 = vld [vmem:[%s2242 + $0x78] sm:$0xe]
      %v3338 = vld [vmem:[%s2242 + $0x84] sm:$0xe]
      %v3339 = vld [vmem:[%s2242 + $0x90] sm:$0xe]
      %v3340 = vld [vmem:[%s2242 + $0x9c] sm:$0xe]
      %v3341 = vld [vmem:[%s2242 + $0xa8] sm:$0xe]
      %v3342 = vld [vmem:[%s2242 + $0xb4] sm:$0xe]
      %v3391 = vrot.slane %v3327, 5
      %v3392 = vrot.slane %v3391, 4
      %v3393 = vrot.slane %v2602, 5
      %v3394 = vsel %vm1835, %v3392, %v3393
      %v3395 = vrot.slane %v3393, 4
      %v3396 = vrot.slane %v2603, 5
      %v3397 = vsel %vm1835, %v3395, %v3396
      %v3398 = vrot.slane %v3328, 5
      %v3399 = vrot.slane %v3398, 4
      %v3400 = vrot.slane %v2605, 5
      %v3401 = vsel %vm1835, %v3399, %v3400
      %v3402 = vrot.slane %v3400, 4
      %v3403 = vrot.slane %v2606, 5
      %v3404 = vsel %vm1835, %v3402, %v3403
      %v3405 = vrot.slane %v3329, 5
      %v3406 = vrot.slane %v3405, 4
      %v3407 = vrot.slane %v2608, 5
      %v3408 = vsel %vm1835, %v3406, %v3407
      %v3409 = vrot.slane %v3407, 4
      %v3410 = vrot.slane %v2609, 5
      %v3411 = vsel %vm1835, %v3409, %v3410
      %v3412 = vrot.slane %v3330, 5
      %v3413 = vrot.slane %v3412, 4
      %v3414 = vrot.slane %v2611, 5
      %v3415 = vsel %vm1835, %v3413, %v3414
      %v3416 = vrot.slane %v3414, 4
      %v3417 = vrot.slane %v2612, 5
      %v3418 = vsel %vm1835, %v3416, %v3417
      %v3419 = vrot.slane %v3331, 5
      %v3420 = vrot.slane %v3419, 4
      %v3421 = vrot.slane %v2614, 5
      %v3422 = vsel %vm1835, %v3420, %v3421
      %v3423 = vrot.slane %v3421, 4
      %v3424 = vrot.slane %v2615, 5
      %v3425 = vsel %vm1835, %v3423, %v3424
      %v3426 = vrot.slane %v3332, 5
      %v3427 = vrot.slane %v3426, 4
      %v3428 = vrot.slane %v2617, 5
      %v3429 = vsel %vm1835, %v3427, %v3428
      %v3430 = vrot.slane %v3428, 4
      %v3431 = vrot.slane %v2618, 5
      %v3432 = vsel %vm1835, %v3430, %v3431
      %v3433 = vrot.slane %v3333, 5
      %v3434 = vrot.slane %v3433, 4
      %v3435 = vrot.slane %v2620, 5
      %v3436 = vsel %vm1835, %v3434, %v3435
      %v3437 = vrot.slane %v3435, 4
      %v3438 = vrot.slane %v2621, 5
      %v3439 = vsel %vm1835, %v3437, %v3438
      %v3440 = vrot.slane %v3334, 5
      %v3441 = vrot.slane %v3440, 4
      %v3442 = vrot.slane %v2623, 5
      %v3443 = vsel %vm1835, %v3441, %v3442
      %v3444 = vrot.slane %v3442, 4
      %v3445 = vrot.slane %v2624, 5
      %v3446 = vsel %vm1835, %v3444, %v3445
      %v3447 = vrot.slane %v3335, 5
      %v3448 = vrot.slane %v3447, 4
      %v3449 = vrot.slane %v2626, 5
      %v3450 = vsel %vm1835, %v3448, %v3449
      %v3451 = vrot.slane %v3449, 4
      %v3452 = vrot.slane %v2627, 5
      %v3453 = vsel %vm1835, %v3451, %v3452
      %v3454 = vrot.slane %v3336, 5
      %v3455 = vrot.slane %v3454, 4
      %v3456 = vrot.slane %v2629, 5
      %v3457 = vsel %vm1835, %v3455, %v3456
      %v3458 = vrot.slane %v3456, 4
      %v3459 = vrot.slane %v2630, 5
      %v3460 = vsel %vm1835, %v3458, %v3459
      %v3461 = vrot.slane %v3337, 5
      %v3462 = vrot.slane %v3461, 4
      %v3463 = vrot.slane %v2632, 5
      %v3464 = vsel %vm1835, %v3462, %v3463
      %v3465 = vrot.slane %v3463, 4
      %v3466 = vrot.slane %v2633, 5
      %v3467 = vsel %vm1835, %v3465, %v3466
      %v3468 = vrot.slane %v3338, 5
      %v3469 = vrot.slane %v3468, 4
      %v3470 = vrot.slane %v2635, 5
      %v3471 = vsel %vm1835, %v3469, %v3470
      %v3472 = vrot.slane %v3470, 4
      %v3473 = vrot.slane %v2636, 5
      %v3474 = vsel %vm1835, %v3472, %v3473
      %v3475 = vrot.slane %v3339, 5
      %v3476 = vrot.slane %v3475, 4
      %v3477 = vrot.slane %v2638, 5
      %v3478 = vsel %vm1835, %v3476, %v3477
      %v3479 = vrot.slane %v3477, 4
      %v3480 = vrot.slane %v2639, 5
      %v3481 = vsel %vm1835, %v3479, %v3480
      %v3482 = vrot.slane %v3340, 5
      %v3483 = vrot.slane %v3482, 4
      %v3484 = vrot.slane %v2641, 5
      %v3485 = vsel %vm1835, %v3483, %v3484
      %v3486 = vrot.slane %v3484, 4
      %v3487 = vrot.slane %v2642, 5
      %v3488 = vsel %vm1835, %v3486, %v3487
      %v3489 = vrot.slane %v3341, 5
      %v3490 = vrot.slane %v3489, 4
      %v3491 = vrot.slane %v2644, 5
      %v3492 = vsel %vm1835, %v3490, %v3491
      %v3493 = vrot.slane %v3491, 4
      %v3494 = vrot.slane %v2645, 5
      %v3495 = vsel %vm1835, %v3493, %v3494
      %v3496 = vrot.slane %v3342, 5
      %v3497 = vrot.slane %v3496, 4
      %v3498 = vrot.slane %v2647, 5
      %v3499 = vsel %vm1835, %v3497, %v3498
      %v3500 = vrot.slane %v3498, 4
      %v3501 = vrot.slane %v2648, 5
      %v3502 = vsel %vm1835, %v3500, %v3501
      %s3503 = scalar_lea.vmem %s3, 5
      %v3504 = vld [vmem:[%s3503] sm:$0x1]
      %v3505 = vunpack.c.l.b16 %v3394
      %v3506 = vunpack.c.l.b16 %v3397
      %v3507 = vunpack.c.l.b16 %v3401
      %v3508 = vunpack.c.l.b16 %v3404
      %v3509 = vunpack.c.l.b16 %v3408
      %v3510 = vunpack.c.l.b16 %v3411
      %v3511 = vunpack.c.l.b16 %v3415
      %v3512 = vunpack.c.l.b16 %v3418
      %v3513 = vunpack.c.l.b16 %v3422
      %v3514 = vunpack.c.l.b16 %v3425
      %v3515 = vunpack.c.l.b16 %v3429
      %v3516 = vunpack.c.l.b16 %v3432
      %v3517 = vunpack.c.l.b16 %v3436
      %v3518 = vunpack.c.l.b16 %v3439
      %v3519 = vunpack.c.l.b16 %v3443
      %v3520 = vunpack.c.l.b16 %v3446
      %v3521 = vunpack.c.l.b16 %v3450
      %v3522 = vunpack.c.l.b16 %v3453
      %v3523 = vunpack.c.l.b16 %v3457
      %v3524 = vunpack.c.l.b16 %v3460
      %v3525 = vunpack.c.l.b16 %v3464
      %v3526 = vunpack.c.l.b16 %v3467
      %v3527 = vunpack.c.l.b16 %v3471
      %v3528 = vunpack.c.l.b16 %v3474
      %v3529 = vunpack.c.l.b16 %v3478
      %v3530 = vunpack.c.l.b16 %v3481
      %v3531 = vunpack.c.l.b16 %v3485
      %v3532 = vunpack.c.l.b16 %v3488
      %v3533 = vunpack.c.l.b16 %v3492
      %v3534 = vunpack.c.l.b16 %v3495
      %v3535 = vunpack.c.l.b16 %v3499
      %v3536 = vunpack.c.l.b16 %v3502
      %v3537 = vpack.c.b16 %v3506, %v3505
      %v3538 = vpack.c.b16 %v3508, %v3507
      %v3539 = vpack.c.b16 %v3510, %v3509
      %v3540 = vpack.c.b16 %v3512, %v3511
      %v3541 = vpack.c.b16 %v3514, %v3513
      %v3542 = vpack.c.b16 %v3516, %v3515
      %v3543 = vpack.c.b16 %v3518, %v3517
      %v3544 = vpack.c.b16 %v3520, %v3519
      %v3545 = vpack.c.b16 %v3522, %v3521
      %v3546 = vpack.c.b16 %v3524, %v3523
      %v3547 = vpack.c.b16 %v3526, %v3525
      %v3548 = vpack.c.b16 %v3528, %v3527
      %v3549 = vpack.c.b16 %v3530, %v3529
      %v3550 = vpack.c.b16 %v3532, %v3531
      %v3551 = vpack.c.b16 %v3534, %v3533
      %v3552 = vpack.c.b16 %v3536, %v3535
      %v3554 = vsel %vm1279, %v3537, 0
      %v3557 = vsel %vm1279, %v3538, 0
      %v3560 = vsel %vm1279, %v3539, 0
      %v3563 = vsel %vm1279, %v3540, 0
      %v3566 = vsel %vm1279, %v3541, 0
      %v3569 = vsel %vm1279, %v3542, 0
      %v3572 = vsel %vm1279, %v3543, 0
      %v3575 = vsel %vm1279, %v3544, 0
      %v3578 = vsel %vm1279, %v3545, 0
      %v3581 = vsel %vm1279, %v3546, 0
      %v3584 = vsel %vm1279, %v3547, 0
      %v3587 = vsel %vm1279, %v3548, 0
      %v3590 = vsel %vm1279, %v3549, 0
      %v3593 = vsel %vm1279, %v3550, 0
      %v3596 = vsel %vm1279, %v3551, 0
      %v3599 = vsel %vm1279, %v3552, 0
      %v3602 = vsel %vm1328, %v3504, 0
      %3604 = vmatprep.subr.bf16.mxu0 0
      %3605 = vmatpush1.bf16.msra.mxu0 0
      %3606 = vmatprep.subr.bf16.mxu0 0
      %3607 = vmatpush1.bf16.msra.mxu0 0
      %3608 = vmatprep.subr.bf16.mxu0 0
      %3609 = vmatpush1.bf16.msra.mxu0 0
      %3610 = vmatprep.subr.bf16.mxu0 0
      %3611 = vmatpush1.bf16.msra.mxu0 0
      %3612 = vmatprep.subr.bf16.mxu0 0
      %3613 = vmatpush1.bf16.msra.mxu0 0
      %3614 = vmatprep.subr.bf16.mxu0 0
      %3615 = vmatpush1.bf16.msra.mxu0 0
      %3616 = vmatprep.subr.bf16.mxu0 0
      %3617 = vmatpush1.bf16.msra.mxu0 0
      %3618 = vmatprep.subr.bf16.mxu0 0
      %3619 = vmatpush1.bf16.msra.mxu0 %v3602
      %3620 = vmatprep.subr.bf16.mxu0 0
      %3621 = vmatpush2.bf16.msra.mxu0 0
      %3622 = vmatprep.subr.bf16.mxu0 0
      %3623 = vmatpush2.bf16.msra.mxu0 0
      %3624 = vmatprep.subr.bf16.mxu0 0
      %3625 = vmatpush2.bf16.msra.mxu0 0
      %3626 = vmatprep.subr.bf16.mxu0 0
      %3627 = vmatpush2.bf16.msra.mxu0 0
      %3628 = vmatprep.subr.bf16.mxu0 0
      %3629 = vmatpush2.bf16.msra.mxu0 0
      %3630 = vmatprep.subr.bf16.mxu0 0
      %3631 = vmatpush2.bf16.msra.mxu0 0
      %3632 = vmatprep.subr.bf16.mxu0 0
      %3633 = vmatpush2.bf16.msra.mxu0 0
      %3634 = vmatprep.subr.bf16.mxu0 0
      %3635 = vmatpush2.bf16.msra.mxu0 0
      %3636 = vmatprep.mubr.bf16.mxu0 0
      %3637 = vmatmul.mubr.bf16.gmra.mxu0 %v3554
      %v3638 = vpop.f32.mrf.mxu0
      %v3639 = vadd.f32 0.0, %v3638
      %v3640 = vpop.f32.mrf.mxu0
      %v3641 = vpop.f32.mrf.mxu0
      %v3642 = vadd.f32 0.0, %v3641
      %v3643 = vpop.f32.mrf.mxu0
      %3644 = vmatprep.mubr.bf16.mxu0 0
      %3645 = vmatmul.mubr.bf16.gmra.mxu0 %v3557
      %v3646 = vpop.f32.mrf.mxu0
      %v3647 = vadd.f32 0.0, %v3646
      %v3648 = vpop.f32.mrf.mxu0
      %v3649 = vpop.f32.mrf.mxu0
      %v3650 = vadd.f32 0.0, %v3649
      %v3651 = vpop.f32.mrf.mxu0
      %3652 = vmatprep.mubr.bf16.mxu0 0
      %3653 = vmatmul.mubr.bf16.gmra.mxu0 %v3560
      %v3654 = vpop.f32.mrf.mxu0
      %v3655 = vadd.f32 0.0, %v3654
      %v3656 = vpop.f32.mrf.mxu0
      %v3657 = vpop.f32.mrf.mxu0
      %v3658 = vadd.f32 0.0, %v3657
      %v3659 = vpop.f32.mrf.mxu0
      %3660 = vmatprep.mubr.bf16.mxu0 0
      %3661 = vmatmul.mubr.bf16.gmra.mxu0 %v3563
      %v3662 = vpop.f32.mrf.mxu0
      %v3663 = vadd.f32 0.0, %v3662
      %v3664 = vpop.f32.mrf.mxu0
      %v3665 = vpop.f32.mrf.mxu0
      %v3666 = vadd.f32 0.0, %v3665
      %v3667 = vpop.f32.mrf.mxu0
      %3668 = vmatprep.mubr.bf16.mxu0 0
      %3669 = vmatmul.mubr.bf16.gmra.mxu0 %v3566
      %v3670 = vpop.f32.mrf.mxu0
      %v3671 = vadd.f32 0.0, %v3670
      %v3672 = vpop.f32.mrf.mxu0
      %v3673 = vpop.f32.mrf.mxu0
      %v3674 = vadd.f32 0.0, %v3673
      %v3675 = vpop.f32.mrf.mxu0
      %3676 = vmatprep.mubr.bf16.mxu0 0
      %3677 = vmatmul.mubr.bf16.gmra.mxu0 %v3569
      %v3678 = vpop.f32.mrf.mxu0
      %v3679 = vadd.f32 0.0, %v3678
      %v3680 = vpop.f32.mrf.mxu0
      %v3681 = vpop.f32.mrf.mxu0
      %v3682 = vadd.f32 0.0, %v3681
      %v3683 = vpop.f32.mrf.mxu0
      %3684 = vmatprep.mubr.bf16.mxu0 0
      %3685 = vmatmul.mubr.bf16.gmra.mxu0 %v3572
      %v3686 = vpop.f32.mrf.mxu0
      %v3687 = vadd.f32 0.0, %v3686
      %v3688 = vpop.f32.mrf.mxu0
      %v3689 = vpop.f32.mrf.mxu0
      %v3690 = vadd.f32 0.0, %v3689
      %v3691 = vpop.f32.mrf.mxu0
      %3692 = vmatprep.mubr.bf16.mxu0 0
      %3693 = vmatmul.mubr.bf16.gmra.mxu0 %v3575
      %v3694 = vpop.f32.mrf.mxu0
      %v3695 = vadd.f32 0.0, %v3694
      %v3696 = vpop.f32.mrf.mxu0
      %v3697 = vpop.f32.mrf.mxu0
      %v3698 = vadd.f32 0.0, %v3697
      %v3699 = vpop.f32.mrf.mxu0
      %3700 = vmatprep.mubr.bf16.mxu0 0
      %3701 = vmatmul.mubr.bf16.gmra.mxu0 %v3578
      %v3702 = vpop.f32.mrf.mxu0
      %v3703 = vadd.f32 0.0, %v3702
      %v3704 = vpop.f32.mrf.mxu0
      %v3705 = vpop.f32.mrf.mxu0
      %v3706 = vadd.f32 0.0, %v3705
      %v3707 = vpop.f32.mrf.mxu0
      %3708 = vmatprep.mubr.bf16.mxu0 0
      %3709 = vmatmul.mubr.bf16.gmra.mxu0 %v3581
      %v3710 = vpop.f32.mrf.mxu0
      %v3711 = vadd.f32 0.0, %v3710
      %v3712 = vpop.f32.mrf.mxu0
      %v3713 = vpop.f32.mrf.mxu0
      %v3714 = vadd.f32 0.0, %v3713
      %v3715 = vpop.f32.mrf.mxu0
      %3716 = vmatprep.mubr.bf16.mxu0 0
      %3717 = vmatmul.mubr.bf16.gmra.mxu0 %v3584
      %v3718 = vpop.f32.mrf.mxu0
      %v3719 = vadd.f32 0.0, %v3718
      %v3720 = vpop.f32.mrf.mxu0
      %v3721 = vpop.f32.mrf.mxu0
      %v3722 = vadd.f32 0.0, %v3721
      %v3723 = vpop.f32.mrf.mxu0
      %3724 = vmatprep.mubr.bf16.mxu0 0
      %3725 = vmatmul.mubr.bf16.gmra.mxu0 %v3587
      %v3726 = vpop.f32.mrf.mxu0
      %v3727 = vadd.f32 0.0, %v3726
      %v3728 = vpop.f32.mrf.mxu0
      %v3729 = vpop.f32.mrf.mxu0
      %v3730 = vadd.f32 0.0, %v3729
      %v3731 = vpop.f32.mrf.mxu0
      %3732 = vmatprep.mubr.bf16.mxu0 0
      %3733 = vmatmul.mubr.bf16.gmra.mxu0 %v3590
      %v3734 = vpop.f32.mrf.mxu0
      %v3735 = vadd.f32 0.0, %v3734
      %v3736 = vpop.f32.mrf.mxu0
      %v3737 = vpop.f32.mrf.mxu0
      %v3738 = vadd.f32 0.0, %v3737
      %v3739 = vpop.f32.mrf.mxu0
      %3740 = vmatprep.mubr.bf16.mxu0 0
      %3741 = vmatmul.mubr.bf16.gmra.mxu0 %v3593
      %v3742 = vpop.f32.mrf.mxu0
      %v3743 = vadd.f32 0.0, %v3742
      %v3744 = vpop.f32.mrf.mxu0
      %v3745 = vpop.f32.mrf.mxu0
      %v3746 = vadd.f32 0.0, %v3745
      %v3747 = vpop.f32.mrf.mxu0
      %3748 = vmatprep.mubr.bf16.mxu0 0
      %3749 = vmatmul.mubr.bf16.gmra.mxu0 %v3596
      %v3750 = vpop.f32.mrf.mxu0
      %v3751 = vadd.f32 0.0, %v3750
      %v3752 = vpop.f32.mrf.mxu0
      %v3753 = vpop.f32.mrf.mxu0
      %v3754 = vadd.f32 0.0, %v3753
      %v3755 = vpop.f32.mrf.mxu0
      %3756 = vmatprep.mubr.bf16.mxu0 0
      %3757 = vmatmul.mubr.bf16.gmra.mxu0 %v3599
      %v3758 = vpop.f32.mrf.mxu0
      %v3759 = vadd.f32 0.0, %v3758
      %v3760 = vpop.f32.mrf.mxu0
      %v3761 = vpop.f32.mrf.mxu0
      %v3762 = vadd.f32 0.0, %v3761
      %v3763 = vpop.f32.mrf.mxu0
      %3764 = vdwg.mxu0
      %v3765 = vadd.f32 %v3295, %v3639
      %v3766 = vadd.f32 %v3296, %v3642
      %v3767 = vadd.f32 %v3297, %v3647
      %v3768 = vadd.f32 %v3298, %v3650
      %v3769 = vadd.f32 %v3299, %v3655
      %v3770 = vadd.f32 %v3300, %v3658
      %v3771 = vadd.f32 %v3301, %v3663
      %v3772 = vadd.f32 %v3302, %v3666
      %v3773 = vadd.f32 %v3303, %v3671
      %v3774 = vadd.f32 %v3304, %v3674
      %v3775 = vadd.f32 %v3305, %v3679
      %v3776 = vadd.f32 %v3306, %v3682
      %v3777 = vadd.f32 %v3307, %v3687
      %v3778 = vadd.f32 %v3308, %v3690
      %v3779 = vadd.f32 %v3309, %v3695
      %v3780 = vadd.f32 %v3310, %v3698
      %v3781 = vadd.f32 %v3311, %v3703
      %v3782 = vadd.f32 %v3312, %v3706
      %v3783 = vadd.f32 %v3313, %v3711
      %v3784 = vadd.f32 %v3314, %v3714
      %v3785 = vadd.f32 %v3315, %v3719
      %v3786 = vadd.f32 %v3316, %v3722
      %v3787 = vadd.f32 %v3317, %v3727
      %v3788 = vadd.f32 %v3318, %v3730
      %v3789 = vadd.f32 %v3319, %v3735
      %v3790 = vadd.f32 %v3320, %v3738
      %v3791 = vadd.f32 %v3321, %v3743
      %v3792 = vadd.f32 %v3322, %v3746
      %v3793 = vadd.f32 %v3323, %v3751
      %v3794 = vadd.f32 %v3324, %v3754
      %v3795 = vadd.f32 %v3325, %v3759
      %v3796 = vadd.f32 %v3326, %v3762
      %s3797 = scalar_lea.vmem [#allocation2], 24
      %v3798 = vld [vmem:[%s3797] sm:$0xf]
      %v3799 = vld [vmem:[%s3797 + $0x4] sm:$0xf]
      %v3800 = vld [vmem:[%s3797 + $0xc] sm:$0xf]
      %v3801 = vld [vmem:[%s3797 + $0x10] sm:$0xf]
      %v3802 = vld [vmem:[%s3797 + $0x18] sm:$0xf]
      %v3803 = vld [vmem:[%s3797 + $0x1c] sm:$0xf]
      %v3804 = vld [vmem:[%s3797 + $0x24] sm:$0xf]
      %v3805 = vld [vmem:[%s3797 + $0x28] sm:$0xf]
      %v3806 = vld [vmem:[%s3797 + $0x30] sm:$0xf]
      %v3807 = vld [vmem:[%s3797 + $0x34] sm:$0xf]
      %v3808 = vld [vmem:[%s3797 + $0x3c] sm:$0xf]
      %v3809 = vld [vmem:[%s3797 + $0x40] sm:$0xf]
      %v3810 = vld [vmem:[%s3797 + $0x48] sm:$0xf]
      %v3811 = vld [vmem:[%s3797 + $0x4c] sm:$0xf]
      %v3812 = vld [vmem:[%s3797 + $0x54] sm:$0xf]
      %v3813 = vld [vmem:[%s3797 + $0x58] sm:$0xf]
      %v3814 = vld [vmem:[%s3797 + $0x60] sm:$0xf]
      %v3815 = vld [vmem:[%s3797 + $0x64] sm:$0xf]
      %v3816 = vld [vmem:[%s3797 + $0x6c] sm:$0xf]
      %v3817 = vld [vmem:[%s3797 + $0x70] sm:$0xf]
      %v3818 = vld [vmem:[%s3797 + $0x78] sm:$0xf]
      %v3819 = vld [vmem:[%s3797 + $0x7c] sm:$0xf]
      %v3820 = vld [vmem:[%s3797 + $0x84] sm:$0xf]
      %v3821 = vld [vmem:[%s3797 + $0x88] sm:$0xf]
      %v3822 = vld [vmem:[%s3797 + $0x90] sm:$0xf]
      %v3823 = vld [vmem:[%s3797 + $0x94] sm:$0xf]
      %v3824 = vld [vmem:[%s3797 + $0x9c] sm:$0xf]
      %v3825 = vld [vmem:[%s3797 + $0xa0] sm:$0xf]
      %v3826 = vld [vmem:[%s3797 + $0xa8] sm:$0xf]
      %v3827 = vld [vmem:[%s3797 + $0xac] sm:$0xf]
      %v3828 = vld [vmem:[%s3797 + $0xb4] sm:$0xf]
      %v3829 = vld [vmem:[%s3797 + $0xb8] sm:$0xf]
      %s3830 = scalar_lea.vmem %s3, 6
      %v3831 = vld [vmem:[%s3830] sm:$0x1]
      %v3864 = vunpack.c.l.b16 %v3798
      %v3865 = vunpack.c.l.b16 %v3799
      %v3866 = vunpack.c.l.b16 %v3800
      %v3867 = vunpack.c.l.b16 %v3801
      %v3868 = vunpack.c.l.b16 %v3802
      %v3869 = vunpack.c.l.b16 %v3803
      %v3870 = vunpack.c.l.b16 %v3804
      %v3871 = vunpack.c.l.b16 %v3805
      %v3872 = vunpack.c.l.b16 %v3806
      %v3873 = vunpack.c.l.b16 %v3807
      %v3874 = vunpack.c.l.b16 %v3808
      %v3875 = vunpack.c.l.b16 %v3809
      %v3876 = vunpack.c.l.b16 %v3810
      %v3877 = vunpack.c.l.b16 %v3811
      %v3878 = vunpack.c.l.b16 %v3812
      %v3879 = vunpack.c.l.b16 %v3813
      %v3880 = vunpack.c.l.b16 %v3814
      %v3881 = vunpack.c.l.b16 %v3815
      %v3882 = vunpack.c.l.b16 %v3816
      %v3883 = vunpack.c.l.b16 %v3817
      %v3884 = vunpack.c.l.b16 %v3818
      %v3885 = vunpack.c.l.b16 %v3819
      %v3886 = vunpack.c.l.b16 %v3820
      %v3887 = vunpack.c.l.b16 %v3821
      %v3888 = vunpack.c.l.b16 %v3822
      %v3889 = vunpack.c.l.b16 %v3823
      %v3890 = vunpack.c.l.b16 %v3824
      %v3891 = vunpack.c.l.b16 %v3825
      %v3892 = vunpack.c.l.b16 %v3826
      %v3893 = vunpack.c.l.b16 %v3827
      %v3894 = vunpack.c.l.b16 %v3828
      %v3895 = vunpack.c.l.b16 %v3829
      %v3896 = vpack.c.b16 %v3865, %v3864
      %v3897 = vpack.c.b16 %v3867, %v3866
      %v3898 = vpack.c.b16 %v3869, %v3868
      %v3899 = vpack.c.b16 %v3871, %v3870
      %v3900 = vpack.c.b16 %v3873, %v3872
      %v3901 = vpack.c.b16 %v3875, %v3874
      %v3902 = vpack.c.b16 %v3877, %v3876
      %v3903 = vpack.c.b16 %v3879, %v3878
      %v3904 = vpack.c.b16 %v3881, %v3880
      %v3905 = vpack.c.b16 %v3883, %v3882
      %v3906 = vpack.c.b16 %v3885, %v3884
      %v3907 = vpack.c.b16 %v3887, %v3886
      %v3908 = vpack.c.b16 %v3889, %v3888
      %v3909 = vpack.c.b16 %v3891, %v3890
      %v3910 = vpack.c.b16 %v3893, %v3892
      %v3911 = vpack.c.b16 %v3895, %v3894
      %v3913 = vsel %vm1279, %v3896, 0
      %v3916 = vsel %vm1279, %v3897, 0
      %v3919 = vsel %vm1279, %v3898, 0
      %v3922 = vsel %vm1279, %v3899, 0
      %v3925 = vsel %vm1279, %v3900, 0
      %v3928 = vsel %vm1279, %v3901, 0
      %v3931 = vsel %vm1279, %v3902, 0
      %v3934 = vsel %vm1279, %v3903, 0
      %v3937 = vsel %vm1279, %v3904, 0
      %v3940 = vsel %vm1279, %v3905, 0
      %v3943 = vsel %vm1279, %v3906, 0
      %v3946 = vsel %vm1279, %v3907, 0
      %v3949 = vsel %vm1279, %v3908, 0
      %v3952 = vsel %vm1279, %v3909, 0
      %v3955 = vsel %vm1279, %v3910, 0
      %v3958 = vsel %vm1279, %v3911, 0
      %v3961 = vsel %vm1328, %v3831, 0
      %3963 = vmatprep.subr.bf16.mxu0 0
      %3964 = vmatpush1.bf16.msra.mxu0 0
      %3965 = vmatprep.subr.bf16.mxu0 0
      %3966 = vmatpush1.bf16.msra.mxu0 0
      %3967 = vmatprep.subr.bf16.mxu0 0
      %3968 = vmatpush1.bf16.msra.mxu0 0
      %3969 = vmatprep.subr.bf16.mxu0 0
      %3970 = vmatpush1.bf16.msra.mxu0 0
      %3971 = vmatprep.subr.bf16.mxu0 0
      %3972 = vmatpush1.bf16.msra.mxu0 0
      %3973 = vmatprep.subr.bf16.mxu0 0
      %3974 = vmatpush1.bf16.msra.mxu0 0
      %3975 = vmatprep.subr.bf16.mxu0 0
      %3976 = vmatpush1.bf16.msra.mxu0 0
      %3977 = vmatprep.subr.bf16.mxu0 0
      %3978 = vmatpush1.bf16.msra.mxu0 %v3961
      %3979 = vmatprep.subr.bf16.mxu0 0
      %3980 = vmatpush2.bf16.msra.mxu0 0
      %3981 = vmatprep.subr.bf16.mxu0 0
      %3982 = vmatpush2.bf16.msra.mxu0 0
      %3983 = vmatprep.subr.bf16.mxu0 0
      %3984 = vmatpush2.bf16.msra.mxu0 0
      %3985 = vmatprep.subr.bf16.mxu0 0
      %3986 = vmatpush2.bf16.msra.mxu0 0
      %3987 = vmatprep.subr.bf16.mxu0 0
      %3988 = vmatpush2.bf16.msra.mxu0 0
      %3989 = vmatprep.subr.bf16.mxu0 0
      %3990 = vmatpush2.bf16.msra.mxu0 0
      %3991 = vmatprep.subr.bf16.mxu0 0
      %3992 = vmatpush2.bf16.msra.mxu0 0
      %3993 = vmatprep.subr.bf16.mxu0 0
      %3994 = vmatpush2.bf16.msra.mxu0 0
      %3995 = vmatprep.mubr.bf16.mxu0 0
      %3996 = vmatmul.mubr.bf16.gmra.mxu0 %v3913
      %v3997 = vpop.f32.mrf.mxu0
      %v3998 = vadd.f32 0.0, %v3997
      %v3999 = vpop.f32.mrf.mxu0
      %v4000 = vpop.f32.mrf.mxu0
      %v4001 = vadd.f32 0.0, %v4000
      %v4002 = vpop.f32.mrf.mxu0
      %4003 = vmatprep.mubr.bf16.mxu0 0
      %4004 = vmatmul.mubr.bf16.gmra.mxu0 %v3916
      %v4005 = vpop.f32.mrf.mxu0
      %v4006 = vadd.f32 0.0, %v4005
      %v4007 = vpop.f32.mrf.mxu0
      %v4008 = vpop.f32.mrf.mxu0
      %v4009 = vadd.f32 0.0, %v4008
      %v4010 = vpop.f32.mrf.mxu0
      %4011 = vmatprep.mubr.bf16.mxu0 0
      %4012 = vmatmul.mubr.bf16.gmra.mxu0 %v3919
      %v4013 = vpop.f32.mrf.mxu0
      %v4014 = vadd.f32 0.0, %v4013
      %v4015 = vpop.f32.mrf.mxu0
      %v4016 = vpop.f32.mrf.mxu0
      %v4017 = vadd.f32 0.0, %v4016
      %v4018 = vpop.f32.mrf.mxu0
      %4019 = vmatprep.mubr.bf16.mxu0 0
      %4020 = vmatmul.mubr.bf16.gmra.mxu0 %v3922
      %v4021 = vpop.f32.mrf.mxu0
      %v4022 = vadd.f32 0.0, %v4021
      %v4023 = vpop.f32.mrf.mxu0
      %v4024 = vpop.f32.mrf.mxu0
      %v4025 = vadd.f32 0.0, %v4024
      %v4026 = vpop.f32.mrf.mxu0
      %4027 = vmatprep.mubr.bf16.mxu0 0
      %4028 = vmatmul.mubr.bf16.gmra.mxu0 %v3925
      %v4029 = vpop.f32.mrf.mxu0
      %v4030 = vadd.f32 0.0, %v4029
      %v4031 = vpop.f32.mrf.mxu0
      %v4032 = vpop.f32.mrf.mxu0
      %v4033 = vadd.f32 0.0, %v4032
      %v4034 = vpop.f32.mrf.mxu0
      %4035 = vmatprep.mubr.bf16.mxu0 0
      %4036 = vmatmul.mubr.bf16.gmra.mxu0 %v3928
      %v4037 = vpop.f32.mrf.mxu0
      %v4038 = vadd.f32 0.0, %v4037
      %v4039 = vpop.f32.mrf.mxu0
      %v4040 = vpop.f32.mrf.mxu0
      %v4041 = vadd.f32 0.0, %v4040
      %v4042 = vpop.f32.mrf.mxu0
      %4043 = vmatprep.mubr.bf16.mxu0 0
      %4044 = vmatmul.mubr.bf16.gmra.mxu0 %v3931
      %v4045 = vpop.f32.mrf.mxu0
      %v4046 = vadd.f32 0.0, %v4045
      %v4047 = vpop.f32.mrf.mxu0
      %v4048 = vpop.f32.mrf.mxu0
      %v4049 = vadd.f32 0.0, %v4048
      %v4050 = vpop.f32.mrf.mxu0
      %4051 = vmatprep.mubr.bf16.mxu0 0
      %4052 = vmatmul.mubr.bf16.gmra.mxu0 %v3934
      %v4053 = vpop.f32.mrf.mxu0
      %v4054 = vadd.f32 0.0, %v4053
      %v4055 = vpop.f32.mrf.mxu0
      %v4056 = vpop.f32.mrf.mxu0
      %v4057 = vadd.f32 0.0, %v4056
      %v4058 = vpop.f32.mrf.mxu0
      %4059 = vmatprep.mubr.bf16.mxu0 0
      %4060 = vmatmul.mubr.bf16.gmra.mxu0 %v3937
      %v4061 = vpop.f32.mrf.mxu0
      %v4062 = vadd.f32 0.0, %v4061
      %v4063 = vpop.f32.mrf.mxu0
      %v4064 = vpop.f32.mrf.mxu0
      %v4065 = vadd.f32 0.0, %v4064
      %v4066 = vpop.f32.mrf.mxu0
      %4067 = vmatprep.mubr.bf16.mxu0 0
      %4068 = vmatmul.mubr.bf16.gmra.mxu0 %v3940
      %v4069 = vpop.f32.mrf.mxu0
      %v4070 = vadd.f32 0.0, %v4069
      %v4071 = vpop.f32.mrf.mxu0
      %v4072 = vpop.f32.mrf.mxu0
      %v4073 = vadd.f32 0.0, %v4072
      %v4074 = vpop.f32.mrf.mxu0
      %4075 = vmatprep.mubr.bf16.mxu0 0
      %4076 = vmatmul.mubr.bf16.gmra.mxu0 %v3943
      %v4077 = vpop.f32.mrf.mxu0
      %v4078 = vadd.f32 0.0, %v4077
      %v4079 = vpop.f32.mrf.mxu0
      %v4080 = vpop.f32.mrf.mxu0
      %v4081 = vadd.f32 0.0, %v4080
      %v4082 = vpop.f32.mrf.mxu0
      %4083 = vmatprep.mubr.bf16.mxu0 0
      %4084 = vmatmul.mubr.bf16.gmra.mxu0 %v3946
      %v4085 = vpop.f32.mrf.mxu0
      %v4086 = vadd.f32 0.0, %v4085
      %v4087 = vpop.f32.mrf.mxu0
      %v4088 = vpop.f32.mrf.mxu0
      %v4089 = vadd.f32 0.0, %v4088
      %v4090 = vpop.f32.mrf.mxu0
      %4091 = vmatprep.mubr.bf16.mxu0 0
      %4092 = vmatmul.mubr.bf16.gmra.mxu0 %v3949
      %v4093 = vpop.f32.mrf.mxu0
      %v4094 = vadd.f32 0.0, %v4093
      %v4095 = vpop.f32.mrf.mxu0
      %v4096 = vpop.f32.mrf.mxu0
      %v4097 = vadd.f32 0.0, %v4096
      %v4098 = vpop.f32.mrf.mxu0
      %4099 = vmatprep.mubr.bf16.mxu0 0
      %4100 = vmatmul.mubr.bf16.gmra.mxu0 %v3952
      %v4101 = vpop.f32.mrf.mxu0
      %v4102 = vadd.f32 0.0, %v4101
      %v4103 = vpop.f32.mrf.mxu0
      %v4104 = vpop.f32.mrf.mxu0
      %v4105 = vadd.f32 0.0, %v4104
      %v4106 = vpop.f32.mrf.mxu0
      %4107 = vmatprep.mubr.bf16.mxu0 0
      %4108 = vmatmul.mubr.bf16.gmra.mxu0 %v3955
      %v4109 = vpop.f32.mrf.mxu0
      %v4110 = vadd.f32 0.0, %v4109
      %v4111 = vpop.f32.mrf.mxu0
      %v4112 = vpop.f32.mrf.mxu0
      %v4113 = vadd.f32 0.0, %v4112
      %v4114 = vpop.f32.mrf.mxu0
      %4115 = vmatprep.mubr.bf16.mxu0 0
      %4116 = vmatmul.mubr.bf16.gmra.mxu0 %v3958
      %v4117 = vpop.f32.mrf.mxu0
      %v4118 = vadd.f32 0.0, %v4117
      %v4119 = vpop.f32.mrf.mxu0
      %v4120 = vpop.f32.mrf.mxu0
      %v4121 = vadd.f32 0.0, %v4120
      %v4122 = vpop.f32.mrf.mxu0
      %4123 = vdwg.mxu0
      %v4124 = vadd.f32 %v3765, %v3998
      %v4125 = vadd.f32 %v3766, %v4001
      %v4126 = vadd.f32 %v3767, %v4006
      %v4127 = vadd.f32 %v3768, %v4009
      %v4128 = vadd.f32 %v3769, %v4014
      %v4129 = vadd.f32 %v3770, %v4017
      %v4130 = vadd.f32 %v3771, %v4022
      %v4131 = vadd.f32 %v3772, %v4025
      %v4132 = vadd.f32 %v3773, %v4030
      %v4133 = vadd.f32 %v3774, %v4033
      %v4134 = vadd.f32 %v3775, %v4038
      %v4135 = vadd.f32 %v3776, %v4041
      %v4136 = vadd.f32 %v3777, %v4046
      %v4137 = vadd.f32 %v3778, %v4049
      %v4138 = vadd.f32 %v3779, %v4054
      %v4139 = vadd.f32 %v3780, %v4057
      %v4140 = vadd.f32 %v3781, %v4062
      %v4141 = vadd.f32 %v3782, %v4065
      %v4142 = vadd.f32 %v3783, %v4070
      %v4143 = vadd.f32 %v3784, %v4073
      %v4144 = vadd.f32 %v3785, %v4078
      %v4145 = vadd.f32 %v3786, %v4081
      %v4146 = vadd.f32 %v3787, %v4086
      %v4147 = vadd.f32 %v3788, %v4089
      %v4148 = vadd.f32 %v3789, %v4094
      %v4149 = vadd.f32 %v3790, %v4097
      %v4150 = vadd.f32 %v3791, %v4102
      %v4151 = vadd.f32 %v3792, %v4105
      %v4152 = vadd.f32 %v3793, %v4110
      %v4153 = vadd.f32 %v3794, %v4113
      %v4154 = vadd.f32 %v3795, %v4118
      %v4155 = vadd.f32 %v3796, %v4121
      %v4156 = vld [vmem:[%s3797] sm:$0xf]
      %v4157 = vld [vmem:[%s3797 + $0x4] sm:$0xf]
      %v4158 = vld [vmem:[%s3797 + $0x8] sm:$0x1]
      %v4159 = vld [vmem:[%s3797 + $0xc] sm:$0xf]
      %v4160 = vld [vmem:[%s3797 + $0x10] sm:$0xf]
      %v4161 = vld [vmem:[%s3797 + $0x14] sm:$0x1]
      %v4162 = vld [vmem:[%s3797 + $0x18] sm:$0xf]
      %v4163 = vld [vmem:[%s3797 + $0x1c] sm:$0xf]
      %v4164 = vld [vmem:[%s3797 + $0x20] sm:$0x1]
      %v4165 = vld [vmem:[%s3797 + $0x24] sm:$0xf]
      %v4166 = vld [vmem:[%s3797 + $0x28] sm:$0xf]
      %v4167 = vld [vmem:[%s3797 + $0x2c] sm:$0x1]
      %v4168 = vld [vmem:[%s3797 + $0x30] sm:$0xf]
      %v4169 = vld [vmem:[%s3797 + $0x34] sm:$0xf]
      %v4170 = vld [vmem:[%s3797 + $0x38] sm:$0x1]
      %v4171 = vld [vmem:[%s3797 + $0x3c] sm:$0xf]
      %v4172 = vld [vmem:[%s3797 + $0x40] sm:$0xf]
      %v4173 = vld [vmem:[%s3797 + $0x44] sm:$0x1]
      %v4174 = vld [vmem:[%s3797 + $0x48] sm:$0xf]
      %v4175 = vld [vmem:[%s3797 + $0x4c] sm:$0xf]
      %v4176 = vld [vmem:[%s3797 + $0x50] sm:$0x1]
      %v4177 = vld [vmem:[%s3797 + $0x54] sm:$0xf]
      %v4178 = vld [vmem:[%s3797 + $0x58] sm:$0xf]
      %v4179 = vld [vmem:[%s3797 + $0x5c] sm:$0x1]
      %v4180 = vld [vmem:[%s3797 + $0x60] sm:$0xf]
      %v4181 = vld [vmem:[%s3797 + $0x64] sm:$0xf]
      %v4182 = vld [vmem:[%s3797 + $0x68] sm:$0x1]
      %v4183 = vld [vmem:[%s3797 + $0x6c] sm:$0xf]
      %v4184 = vld [vmem:[%s3797 + $0x70] sm:$0xf]
      %v4185 = vld [vmem:[%s3797 + $0x74] sm:$0x1]
      %v4186 = vld [vmem:[%s3797 + $0x78] sm:$0xf]
      %v4187 = vld [vmem:[%s3797 + $0x7c] sm:$0xf]
      %v4188 = vld [vmem:[%s3797 + $0x80] sm:$0x1]
      %v4189 = vld [vmem:[%s3797 + $0x84] sm:$0xf]
      %v4190 = vld [vmem:[%s3797 + $0x88] sm:$0xf]
      %v4191 = vld [vmem:[%s3797 + $0x8c] sm:$0x1]
      %v4192 = vld [vmem:[%s3797 + $0x90] sm:$0xf]
      %v4193 = vld [vmem:[%s3797 + $0x94] sm:$0xf]
      %v4194 = vld [vmem:[%s3797 + $0x98] sm:$0x1]
      %v4195 = vld [vmem:[%s3797 + $0x9c] sm:$0xf]
      %v4196 = vld [vmem:[%s3797 + $0xa0] sm:$0xf]
      %v4197 = vld [vmem:[%s3797 + $0xa4] sm:$0x1]
      %v4198 = vld [vmem:[%s3797 + $0xa8] sm:$0xf]
      %v4199 = vld [vmem:[%s3797 + $0xac] sm:$0xf]
      %v4200 = vld [vmem:[%s3797 + $0xb0] sm:$0x1]
      %v4201 = vld [vmem:[%s3797 + $0xb4] sm:$0xf]
      %v4202 = vld [vmem:[%s3797 + $0xb8] sm:$0xf]
      %v4203 = vld [vmem:[%s3797 + $0xbc] sm:$0x1]
      %v4205 = vshrl.u32 %v4156, 16
      %v4207 = vrot.slane %v4205, 4
      %v4208 = vshll.u32 %v4156, 16
      %v4210 = vrot.slane %v4208, 5
      %v4211 = vor.u32 %v4207, %v4210
      %v4212 = vrot.slane %v4211, 4
      %v4214 = vshll.u32 %v4157, 16
      %v4216 = vrot.slane %v4214, 5
      %v4217 = vsel %vm844, %v4212, %v4216
      %v4218 = vshrl.u32 %v4157, 16
      %v4220 = vrot.slane %v4218, 4
      %v4221 = vor.u32 %v4220, %v4216
      %v4222 = vrot.slane %v4221, 4
      %v4224 = vshll.u32 %v4158, 16
      %v4226 = vrot.slane %v4224, 5
      %v4227 = vsel %vm844, %v4222, %v4226
      %v4229 = vshrl.u32 %v4159, 16
      %v4231 = vrot.slane %v4229, 4
      %v4232 = vshll.u32 %v4159, 16
      %v4234 = vrot.slane %v4232, 5
      %v4235 = vor.u32 %v4231, %v4234
      %v4236 = vrot.slane %v4235, 4
      %v4238 = vshll.u32 %v4160, 16
      %v4240 = vrot.slane %v4238, 5
      %v4241 = vsel %vm844, %v4236, %v4240
      %v4242 = vshrl.u32 %v4160, 16
      %v4244 = vrot.slane %v4242, 4
      %v4245 = vor.u32 %v4244, %v4240
      %v4246 = vrot.slane %v4245, 4
      %v4248 = vshll.u32 %v4161, 16
      %v4250 = vrot.slane %v4248, 5
      %v4251 = vsel %vm844, %v4246, %v4250
      %v4253 = vshrl.u32 %v4162, 16
      %v4255 = vrot.slane %v4253, 4
      %v4256 = vshll.u32 %v4162, 16
      %v4258 = vrot.slane %v4256, 5
      %v4259 = vor.u32 %v4255, %v4258
      %v4260 = vrot.slane %v4259, 4
      %v4262 = vshll.u32 %v4163, 16
      %v4264 = vrot.slane %v4262, 5
      %v4265 = vsel %vm844, %v4260, %v4264
      %v4266 = vshrl.u32 %v4163, 16
      %v4268 = vrot.slane %v4266, 4
      %v4269 = vor.u32 %v4268, %v4264
      %v4270 = vrot.slane %v4269, 4
      %v4272 = vshll.u32 %v4164, 16
      %v4274 = vrot.slane %v4272, 5
      %v4275 = vsel %vm844, %v4270, %v4274
      %v4277 = vshrl.u32 %v4165, 16
      %v4279 = vrot.slane %v4277, 4
      %v4280 = vshll.u32 %v4165, 16
      %v4282 = vrot.slane %v4280, 5
      %v4283 = vor.u32 %v4279, %v4282
      %v4284 = vrot.slane %v4283, 4
      %v4286 = vshll.u32 %v4166, 16
      %v4288 = vrot.slane %v4286, 5
      %v4289 = vsel %vm844, %v4284, %v4288
      %v4290 = vshrl.u32 %v4166, 16
      %v4292 = vrot.slane %v4290, 4
      %v4293 = vor.u32 %v4292, %v4288
      %v4294 = vrot.slane %v4293, 4
      %v4296 = vshll.u32 %v4167, 16
      %v4298 = vrot.slane %v4296, 5
      %v4299 = vsel %vm844, %v4294, %v4298
      %v4301 = vshrl.u32 %v4168, 16
      %v4303 = vrot.slane %v4301, 4
      %v4304 = vshll.u32 %v4168, 16
      %v4306 = vrot.slane %v4304, 5
      %v4307 = vor.u32 %v4303, %v4306
      %v4308 = vrot.slane %v4307, 4
      %v4310 = vshll.u32 %v4169, 16
      %v4312 = vrot.slane %v4310, 5
      %v4313 = vsel %vm844, %v4308, %v4312
      %v4314 = vshrl.u32 %v4169, 16
      %v4316 = vrot.slane %v4314, 4
      %v4317 = vor.u32 %v4316, %v4312
      %v4318 = vrot.slane %v4317, 4
      %v4320 = vshll.u32 %v4170, 16
      %v4322 = vrot.slane %v4320, 5
      %v4323 = vsel %vm844, %v4318, %v4322
      %v4325 = vshrl.u32 %v4171, 16
      %v4327 = vrot.slane %v4325, 4
      %v4328 = vshll.u32 %v4171, 16
      %v4330 = vrot.slane %v4328, 5
      %v4331 = vor.u32 %v4327, %v4330
      %v4332 = vrot.slane %v4331, 4
      %v4334 = vshll.u32 %v4172, 16
      %v4336 = vrot.slane %v4334, 5
      %v4337 = vsel %vm844, %v4332, %v4336
      %v4338 = vshrl.u32 %v4172, 16
      %v4340 = vrot.slane %v4338, 4
      %v4341 = vor.u32 %v4340, %v4336
      %v4342 = vrot.slane %v4341, 4
      %v4344 = vshll.u32 %v4173, 16
      %v4346 = vrot.slane %v4344, 5
      %v4347 = vsel %vm844, %v4342, %v4346
      %v4349 = vshrl.u32 %v4174, 16
      %v4351 = vrot.slane %v4349, 4
      %v4352 = vshll.u32 %v4174, 16
      %v4354 = vrot.slane %v4352, 5
      %v4355 = vor.u32 %v4351, %v4354
      %v4356 = vrot.slane %v4355, 4
      %v4358 = vshll.u32 %v4175, 16
      %v4360 = vrot.slane %v4358, 5
      %v4361 = vsel %vm844, %v4356, %v4360
      %v4362 = vshrl.u32 %v4175, 16
      %v4364 = vrot.slane %v4362, 4
      %v4365 = vor.u32 %v4364, %v4360
      %v4366 = vrot.slane %v4365, 4
      %v4368 = vshll.u32 %v4176, 16
      %v4370 = vrot.slane %v4368, 5
      %v4371 = vsel %vm844, %v4366, %v4370
      %v4373 = vshrl.u32 %v4177, 16
      %v4375 = vrot.slane %v4373, 4
      %v4376 = vshll.u32 %v4177, 16
      %v4378 = vrot.slane %v4376, 5
      %v4379 = vor.u32 %v4375, %v4378
      %v4380 = vrot.slane %v4379, 4
      %v4382 = vshll.u32 %v4178, 16
      %v4384 = vrot.slane %v4382, 5
      %v4385 = vsel %vm844, %v4380, %v4384
      %v4386 = vshrl.u32 %v4178, 16
      %v4388 = vrot.slane %v4386, 4
      %v4389 = vor.u32 %v4388, %v4384
      %v4390 = vrot.slane %v4389, 4
      %v4392 = vshll.u32 %v4179, 16
      %v4394 = vrot.slane %v4392, 5
      %v4395 = vsel %vm844, %v4390, %v4394
      %v4397 = vshrl.u32 %v4180, 16
      %v4399 = vrot.slane %v4397, 4
      %v4400 = vshll.u32 %v4180, 16
      %v4402 = vrot.slane %v4400, 5
      %v4403 = vor.u32 %v4399, %v4402
      %v4404 = vrot.slane %v4403, 4
      %v4406 = vshll.u32 %v4181, 16
      %v4408 = vrot.slane %v4406, 5
      %v4409 = vsel %vm844, %v4404, %v4408
      %v4410 = vshrl.u32 %v4181, 16
      %v4412 = vrot.slane %v4410, 4
      %v4413 = vor.u32 %v4412, %v4408
      %v4414 = vrot.slane %v4413, 4
      %v4416 = vshll.u32 %v4182, 16
      %v4418 = vrot.slane %v4416, 5
      %v4419 = vsel %vm844, %v4414, %v4418
      %v4421 = vshrl.u32 %v4183, 16
      %v4423 = vrot.slane %v4421, 4
      %v4424 = vshll.u32 %v4183, 16
      %v4426 = vrot.slane %v4424, 5
      %v4427 = vor.u32 %v4423, %v4426
      %v4428 = vrot.slane %v4427, 4
      %v4430 = vshll.u32 %v4184, 16
      %v4432 = vrot.slane %v4430, 5
      %v4433 = vsel %vm844, %v4428, %v4432
      %v4434 = vshrl.u32 %v4184, 16
      %v4436 = vrot.slane %v4434, 4
      %v4437 = vor.u32 %v4436, %v4432
      %v4438 = vrot.slane %v4437, 4
      %v4440 = vshll.u32 %v4185, 16
      %v4442 = vrot.slane %v4440, 5
      %v4443 = vsel %vm844, %v4438, %v4442
      %v4445 = vshrl.u32 %v4186, 16
      %v4447 = vrot.slane %v4445, 4
      %v4448 = vshll.u32 %v4186, 16
      %v4450 = vrot.slane %v4448, 5
      %v4451 = vor.u32 %v4447, %v4450
      %v4452 = vrot.slane %v4451, 4
      %v4454 = vshll.u32 %v4187, 16
      %v4456 = vrot.slane %v4454, 5
      %v4457 = vsel %vm844, %v4452, %v4456
      %v4458 = vshrl.u32 %v4187, 16
      %v4460 = vrot.slane %v4458, 4
      %v4461 = vor.u32 %v4460, %v4456
      %v4462 = vrot.slane %v4461, 4
      %v4464 = vshll.u32 %v4188, 16
      %v4466 = vrot.slane %v4464, 5
      %v4467 = vsel %vm844, %v4462, %v4466
      %v4469 = vshrl.u32 %v4189, 16
      %v4471 = vrot.slane %v4469, 4
      %v4472 = vshll.u32 %v4189, 16
      %v4474 = vrot.slane %v4472, 5
      %v4475 = vor.u32 %v4471, %v4474
      %v4476 = vrot.slane %v4475, 4
      %v4478 = vshll.u32 %v4190, 16
      %v4480 = vrot.slane %v4478, 5
      %v4481 = vsel %vm844, %v4476, %v4480
      %v4482 = vshrl.u32 %v4190, 16
      %v4484 = vrot.slane %v4482, 4
      %v4485 = vor.u32 %v4484, %v4480
      %v4486 = vrot.slane %v4485, 4
      %v4488 = vshll.u32 %v4191, 16
      %v4490 = vrot.slane %v4488, 5
      %v4491 = vsel %vm844, %v4486, %v4490
      %v4493 = vshrl.u32 %v4192, 16
      %v4495 = vrot.slane %v4493, 4
      %v4496 = vshll.u32 %v4192, 16
      %v4498 = vrot.slane %v4496, 5
      %v4499 = vor.u32 %v4495, %v4498
      %v4500 = vrot.slane %v4499, 4
      %v4502 = vshll.u32 %v4193, 16
      %v4504 = vrot.slane %v4502, 5
      %v4505 = vsel %vm844, %v4500, %v4504
      %v4506 = vshrl.u32 %v4193, 16
      %v4508 = vrot.slane %v4506, 4
      %v4509 = vor.u32 %v4508, %v4504
      %v4510 = vrot.slane %v4509, 4
      %v4512 = vshll.u32 %v4194, 16
      %v4514 = vrot.slane %v4512, 5
      %v4515 = vsel %vm844, %v4510, %v4514
      %v4517 = vshrl.u32 %v4195, 16
      %v4519 = vrot.slane %v4517, 4
      %v4520 = vshll.u32 %v4195, 16
      %v4522 = vrot.slane %v4520, 5
      %v4523 = vor.u32 %v4519, %v4522
      %v4524 = vrot.slane %v4523, 4
      %v4526 = vshll.u32 %v4196, 16
      %v4528 = vrot.slane %v4526, 5
      %v4529 = vsel %vm844, %v4524, %v4528
      %v4530 = vshrl.u32 %v4196, 16
      %v4532 = vrot.slane %v4530, 4
      %v4533 = vor.u32 %v4532, %v4528
      %v4534 = vrot.slane %v4533, 4
      %v4536 = vshll.u32 %v4197, 16
      %v4538 = vrot.slane %v4536, 5
      %v4539 = vsel %vm844, %v4534, %v4538
      %v4541 = vshrl.u32 %v4198, 16
      %v4543 = vrot.slane %v4541, 4
      %v4544 = vshll.u32 %v4198, 16
      %v4546 = vrot.slane %v4544, 5
      %v4547 = vor.u32 %v4543, %v4546
      %v4548 = vrot.slane %v4547, 4
      %v4550 = vshll.u32 %v4199, 16
      %v4552 = vrot.slane %v4550, 5
      %v4553 = vsel %vm844, %v4548, %v4552
      %v4554 = vshrl.u32 %v4199, 16
      %v4556 = vrot.slane %v4554, 4
      %v4557 = vor.u32 %v4556, %v4552
      %v4558 = vrot.slane %v4557, 4
      %v4560 = vshll.u32 %v4200, 16
      %v4562 = vrot.slane %v4560, 5
      %v4563 = vsel %vm844, %v4558, %v4562
      %v4565 = vshrl.u32 %v4201, 16
      %v4567 = vrot.slane %v4565, 4
      %v4568 = vshll.u32 %v4201, 16
      %v4570 = vrot.slane %v4568, 5
      %v4571 = vor.u32 %v4567, %v4570
      %v4572 = vrot.slane %v4571, 4
      %v4574 = vshll.u32 %v4202, 16
      %v4576 = vrot.slane %v4574, 5
      %v4577 = vsel %vm844, %v4572, %v4576
      %v4578 = vshrl.u32 %v4202, 16
      %v4580 = vrot.slane %v4578, 4
      %v4581 = vor.u32 %v4580, %v4576
      %v4582 = vrot.slane %v4581, 4
      %v4584 = vshll.u32 %v4203, 16
      %v4586 = vrot.slane %v4584, 5
      %v4587 = vsel %vm844, %v4582, %v4586
      %s4588 = scalar_lea.vmem %s3, 7
      %v4589 = vld [vmem:[%s4588] sm:$0x1]
      %v4590 = vunpack.c.l.b16 %v4217
      %v4591 = vunpack.c.l.b16 %v4227
      %v4592 = vunpack.c.l.b16 %v4241
      %v4593 = vunpack.c.l.b16 %v4251
      %v4594 = vunpack.c.l.b16 %v4265
      %v4595 = vunpack.c.l.b16 %v4275
      %v4596 = vunpack.c.l.b16 %v4289
      %v4597 = vunpack.c.l.b16 %v4299
      %v4598 = vunpack.c.l.b16 %v4313
      %v4599 = vunpack.c.l.b16 %v4323
      %v4600 = vunpack.c.l.b16 %v4337
      %v4601 = vunpack.c.l.b16 %v4347
      %v4602 = vunpack.c.l.b16 %v4361
      %v4603 = vunpack.c.l.b16 %v4371
      %v4604 = vunpack.c.l.b16 %v4385
      %v4605 = vunpack.c.l.b16 %v4395
      %v4606 = vunpack.c.l.b16 %v4409
      %v4607 = vunpack.c.l.b16 %v4419
      %v4608 = vunpack.c.l.b16 %v4433
      %v4609 = vunpack.c.l.b16 %v4443
      %v4610 = vunpack.c.l.b16 %v4457
      %v4611 = vunpack.c.l.b16 %v4467
      %v4612 = vunpack.c.l.b16 %v4481
      %v4613 = vunpack.c.l.b16 %v4491
      %v4614 = vunpack.c.l.b16 %v4505
      %v4615 = vunpack.c.l.b16 %v4515
      %v4616 = vunpack.c.l.b16 %v4529
      %v4617 = vunpack.c.l.b16 %v4539
      %v4618 = vunpack.c.l.b16 %v4553
      %v4619 = vunpack.c.l.b16 %v4563
      %v4620 = vunpack.c.l.b16 %v4577
      %v4621 = vunpack.c.l.b16 %v4587
      %v4622 = vpack.c.b16 %v4591, %v4590
      %v4623 = vpack.c.b16 %v4593, %v4592
      %v4624 = vpack.c.b16 %v4595, %v4594
      %v4625 = vpack.c.b16 %v4597, %v4596
      %v4626 = vpack.c.b16 %v4599, %v4598
      %v4627 = vpack.c.b16 %v4601, %v4600
      %v4628 = vpack.c.b16 %v4603, %v4602
      %v4629 = vpack.c.b16 %v4605, %v4604
      %v4630 = vpack.c.b16 %v4607, %v4606
      %v4631 = vpack.c.b16 %v4609, %v4608
      %v4632 = vpack.c.b16 %v4611, %v4610
      %v4633 = vpack.c.b16 %v4613, %v4612
      %v4634 = vpack.c.b16 %v4615, %v4614
      %v4635 = vpack.c.b16 %v4617, %v4616
      %v4636 = vpack.c.b16 %v4619, %v4618
      %v4637 = vpack.c.b16 %v4621, %v4620
      %v4639 = vsel %vm1279, %v4622, 0
      %v4642 = vsel %vm1279, %v4623, 0
      %v4645 = vsel %vm1279, %v4624, 0
      %v4648 = vsel %vm1279, %v4625, 0
      %v4651 = vsel %vm1279, %v4626, 0
      %v4654 = vsel %vm1279, %v4627, 0
      %v4657 = vsel %vm1279, %v4628, 0
      %v4660 = vsel %vm1279, %v4629, 0
      %v4663 = vsel %vm1279, %v4630, 0
      %v4666 = vsel %vm1279, %v4631, 0
      %v4669 = vsel %vm1279, %v4632, 0
      %v4672 = vsel %vm1279, %v4633, 0
      %v4675 = vsel %vm1279, %v4634, 0
      %v4678 = vsel %vm1279, %v4635, 0
      %v4681 = vsel %vm1279, %v4636, 0
      %v4684 = vsel %vm1279, %v4637, 0
      %v4687 = vsel %vm1328, %v4589, 0
      %4689 = vmatprep.subr.bf16.mxu0 0
      %4690 = vmatpush1.bf16.msra.mxu0 0
      %4691 = vmatprep.subr.bf16.mxu0 0
      %4692 = vmatpush1.bf16.msra.mxu0 0
      %4693 = vmatprep.subr.bf16.mxu0 0
      %4694 = vmatpush1.bf16.msra.mxu0 0
      %4695 = vmatprep.subr.bf16.mxu0 0
      %4696 = vmatpush1.bf16.msra.mxu0 0
      %4697 = vmatprep.subr.bf16.mxu0 0
      %4698 = vmatpush1.bf16.msra.mxu0 0
      %4699 = vmatprep.subr.bf16.mxu0 0
      %4700 = vmatpush1.bf16.msra.mxu0 0
      %4701 = vmatprep.subr.bf16.mxu0 0
      %4702 = vmatpush1.bf16.msra.mxu0 0
      %4703 = vmatprep.subr.bf16.mxu0 0
      %4704 = vmatpush1.bf16.msra.mxu0 %v4687
      %4705 = vmatprep.subr.bf16.mxu0 0
      %4706 = vmatpush2.bf16.msra.mxu0 0
      %4707 = vmatprep.subr.bf16.mxu0 0
      %4708 = vmatpush2.bf16.msra.mxu0 0
      %4709 = vmatprep.subr.bf16.mxu0 0
      %4710 = vmatpush2.bf16.msra.mxu0 0
      %4711 = vmatprep.subr.bf16.mxu0 0
      %4712 = vmatpush2.bf16.msra.mxu0 0
      %4713 = vmatprep.subr.bf16.mxu0 0
      %4714 = vmatpush2.bf16.msra.mxu0 0
      %4715 = vmatprep.subr.bf16.mxu0 0
      %4716 = vmatpush2.bf16.msra.mxu0 0
      %4717 = vmatprep.subr.bf16.mxu0 0
      %4718 = vmatpush2.bf16.msra.mxu0 0
      %4719 = vmatprep.subr.bf16.mxu0 0
      %4720 = vmatpush2.bf16.msra.mxu0 0
      %4721 = vmatprep.mubr.bf16.mxu0 0
      %4722 = vmatmul.mubr.bf16.gmra.mxu0 %v4639
      %v4723 = vpop.f32.mrf.mxu0
      %v4724 = vadd.f32 0.0, %v4723
      %v4725 = vpop.f32.mrf.mxu0
      %v4726 = vpop.f32.mrf.mxu0
      %v4727 = vadd.f32 0.0, %v4726
      %v4728 = vpop.f32.mrf.mxu0
      %4729 = vmatprep.mubr.bf16.mxu0 0
      %4730 = vmatmul.mubr.bf16.gmra.mxu0 %v4642
      %v4731 = vpop.f32.mrf.mxu0
      %v4732 = vadd.f32 0.0, %v4731
      %v4733 = vpop.f32.mrf.mxu0
      %v4734 = vpop.f32.mrf.mxu0
      %v4735 = vadd.f32 0.0, %v4734
      %v4736 = vpop.f32.mrf.mxu0
      %4737 = vmatprep.mubr.bf16.mxu0 0
      %4738 = vmatmul.mubr.bf16.gmra.mxu0 %v4645
      %v4739 = vpop.f32.mrf.mxu0
      %v4740 = vadd.f32 0.0, %v4739
      %v4741 = vpop.f32.mrf.mxu0
      %v4742 = vpop.f32.mrf.mxu0
      %v4743 = vadd.f32 0.0, %v4742
      %v4744 = vpop.f32.mrf.mxu0
      %4745 = vmatprep.mubr.bf16.mxu0 0
      %4746 = vmatmul.mubr.bf16.gmra.mxu0 %v4648
      %v4747 = vpop.f32.mrf.mxu0
      %v4748 = vadd.f32 0.0, %v4747
      %v4749 = vpop.f32.mrf.mxu0
      %v4750 = vpop.f32.mrf.mxu0
      %v4751 = vadd.f32 0.0, %v4750
      %v4752 = vpop.f32.mrf.mxu0
      %4753 = vmatprep.mubr.bf16.mxu0 0
      %4754 = vmatmul.mubr.bf16.gmra.mxu0 %v4651
      %v4755 = vpop.f32.mrf.mxu0
      %v4756 = vadd.f32 0.0, %v4755
      %v4757 = vpop.f32.mrf.mxu0
      %v4758 = vpop.f32.mrf.mxu0
      %v4759 = vadd.f32 0.0, %v4758
      %v4760 = vpop.f32.mrf.mxu0
      %4761 = vmatprep.mubr.bf16.mxu0 0
      %4762 = vmatmul.mubr.bf16.gmra.mxu0 %v4654
      %v4763 = vpop.f32.mrf.mxu0
      %v4764 = vadd.f32 0.0, %v4763
      %v4765 = vpop.f32.mrf.mxu0
      %v4766 = vpop.f32.mrf.mxu0
      %v4767 = vadd.f32 0.0, %v4766
      %v4768 = vpop.f32.mrf.mxu0
      %4769 = vmatprep.mubr.bf16.mxu0 0
      %4770 = vmatmul.mubr.bf16.gmra.mxu0 %v4657
      %v4771 = vpop.f32.mrf.mxu0
      %v4772 = vadd.f32 0.0, %v4771
      %v4773 = vpop.f32.mrf.mxu0
      %v4774 = vpop.f32.mrf.mxu0
      %v4775 = vadd.f32 0.0, %v4774
      %v4776 = vpop.f32.mrf.mxu0
      %4777 = vmatprep.mubr.bf16.mxu0 0
      %4778 = vmatmul.mubr.bf16.gmra.mxu0 %v4660
      %v4779 = vpop.f32.mrf.mxu0
      %v4780 = vadd.f32 0.0, %v4779
      %v4781 = vpop.f32.mrf.mxu0
      %v4782 = vpop.f32.mrf.mxu0
      %v4783 = vadd.f32 0.0, %v4782
      %v4784 = vpop.f32.mrf.mxu0
      %4785 = vmatprep.mubr.bf16.mxu0 0
      %4786 = vmatmul.mubr.bf16.gmra.mxu0 %v4663
      %v4787 = vpop.f32.mrf.mxu0
      %v4788 = vadd.f32 0.0, %v4787
      %v4789 = vpop.f32.mrf.mxu0
      %v4790 = vpop.f32.mrf.mxu0
      %v4791 = vadd.f32 0.0, %v4790
      %v4792 = vpop.f32.mrf.mxu0
      %4793 = vmatprep.mubr.bf16.mxu0 0
      %4794 = vmatmul.mubr.bf16.gmra.mxu0 %v4666
      %v4795 = vpop.f32.mrf.mxu0
      %v4796 = vadd.f32 0.0, %v4795
      %v4797 = vpop.f32.mrf.mxu0
      %v4798 = vpop.f32.mrf.mxu0
      %v4799 = vadd.f32 0.0, %v4798
      %v4800 = vpop.f32.mrf.mxu0
      %4801 = vmatprep.mubr.bf16.mxu0 0
      %4802 = vmatmul.mubr.bf16.gmra.mxu0 %v4669
      %v4803 = vpop.f32.mrf.mxu0
      %v4804 = vadd.f32 0.0, %v4803
      %v4805 = vpop.f32.mrf.mxu0
      %v4806 = vpop.f32.mrf.mxu0
      %v4807 = vadd.f32 0.0, %v4806
      %v4808 = vpop.f32.mrf.mxu0
      %4809 = vmatprep.mubr.bf16.mxu0 0
      %4810 = vmatmul.mubr.bf16.gmra.mxu0 %v4672
      %v4811 = vpop.f32.mrf.mxu0
      %v4812 = vadd.f32 0.0, %v4811
      %v4813 = vpop.f32.mrf.mxu0
      %v4814 = vpop.f32.mrf.mxu0
      %v4815 = vadd.f32 0.0, %v4814
      %v4816 = vpop.f32.mrf.mxu0
      %4817 = vmatprep.mubr.bf16.mxu0 0
      %4818 = vmatmul.mubr.bf16.gmra.mxu0 %v4675
      %v4819 = vpop.f32.mrf.mxu0
      %v4820 = vadd.f32 0.0, %v4819
      %v4821 = vpop.f32.mrf.mxu0
      %v4822 = vpop.f32.mrf.mxu0
      %v4823 = vadd.f32 0.0, %v4822
      %v4824 = vpop.f32.mrf.mxu0
      %4825 = vmatprep.mubr.bf16.mxu0 0
      %4826 = vmatmul.mubr.bf16.gmra.mxu0 %v4678
      %v4827 = vpop.f32.mrf.mxu0
      %v4828 = vadd.f32 0.0, %v4827
      %v4829 = vpop.f32.mrf.mxu0
      %v4830 = vpop.f32.mrf.mxu0
      %v4831 = vadd.f32 0.0, %v4830
      %v4832 = vpop.f32.mrf.mxu0
      %4833 = vmatprep.mubr.bf16.mxu0 0
      %4834 = vmatmul.mubr.bf16.gmra.mxu0 %v4681
      %v4835 = vpop.f32.mrf.mxu0
      %v4836 = vadd.f32 0.0, %v4835
      %v4837 = vpop.f32.mrf.mxu0
      %v4838 = vpop.f32.mrf.mxu0
      %v4839 = vadd.f32 0.0, %v4838
      %v4840 = vpop.f32.mrf.mxu0
      %4841 = vmatprep.mubr.bf16.mxu0 0
      %4842 = vmatmul.mubr.bf16.gmra.mxu0 %v4684
      %v4843 = vpop.f32.mrf.mxu0
      %v4844 = vadd.f32 0.0, %v4843
      %v4845 = vpop.f32.mrf.mxu0
      %v4846 = vpop.f32.mrf.mxu0
      %v4847 = vadd.f32 0.0, %v4846
      %v4848 = vpop.f32.mrf.mxu0
      %4849 = vdwg.mxu0
      %v4850 = vadd.f32 %v4124, %v4724
      %v4851 = vadd.f32 %v4125, %v4727
      %v4852 = vadd.f32 %v4126, %v4732
      %v4853 = vadd.f32 %v4127, %v4735
      %v4854 = vadd.f32 %v4128, %v4740
      %v4855 = vadd.f32 %v4129, %v4743
      %v4856 = vadd.f32 %v4130, %v4748
      %v4857 = vadd.f32 %v4131, %v4751
      %v4858 = vadd.f32 %v4132, %v4756
      %v4859 = vadd.f32 %v4133, %v4759
      %v4860 = vadd.f32 %v4134, %v4764
      %v4861 = vadd.f32 %v4135, %v4767
      %v4862 = vadd.f32 %v4136, %v4772
      %v4863 = vadd.f32 %v4137, %v4775
      %v4864 = vadd.f32 %v4138, %v4780
      %v4865 = vadd.f32 %v4139, %v4783
      %v4866 = vadd.f32 %v4140, %v4788
      %v4867 = vadd.f32 %v4141, %v4791
      %v4868 = vadd.f32 %v4142, %v4796
      %v4869 = vadd.f32 %v4143, %v4799
      %v4870 = vadd.f32 %v4144, %v4804
      %v4871 = vadd.f32 %v4145, %v4807
      %v4872 = vadd.f32 %v4146, %v4812
      %v4873 = vadd.f32 %v4147, %v4815
      %v4874 = vadd.f32 %v4148, %v4820
      %v4875 = vadd.f32 %v4149, %v4823
      %v4876 = vadd.f32 %v4150, %v4828
      %v4877 = vadd.f32 %v4151, %v4831
      %v4878 = vadd.f32 %v4152, %v4836
      %v4879 = vadd.f32 %v4153, %v4839
      %v4880 = vadd.f32 %v4154, %v4844
      %v4881 = vadd.f32 %v4155, %v4847
      %v4882 = vld [vmem:[%s3797] sm:$0xe]
      %v4883 = vld [vmem:[%s3797 + $0xc] sm:$0xe]
      %v4884 = vld [vmem:[%s3797 + $0x18] sm:$0xe]
      %v4885 = vld [vmem:[%s3797 + $0x24] sm:$0xe]
      %v4886 = vld [vmem:[%s3797 + $0x30] sm:$0xe]
      %v4887 = vld [vmem:[%s3797 + $0x3c] sm:$0xe]
      %v4888 = vld [vmem:[%s3797 + $0x48] sm:$0xe]
      %v4889 = vld [vmem:[%s3797 + $0x54] sm:$0xe]
      %v4890 = vld [vmem:[%s3797 + $0x60] sm:$0xe]
      %v4891 = vld [vmem:[%s3797 + $0x6c] sm:$0xe]
      %v4892 = vld [vmem:[%s3797 + $0x78] sm:$0xe]
      %v4893 = vld [vmem:[%s3797 + $0x84] sm:$0xe]
      %v4894 = vld [vmem:[%s3797 + $0x90] sm:$0xe]
      %v4895 = vld [vmem:[%s3797 + $0x9c] sm:$0xe]
      %v4896 = vld [vmem:[%s3797 + $0xa8] sm:$0xe]
      %v4897 = vld [vmem:[%s3797 + $0xb4] sm:$0xe]
      %v4946 = vrot.slane %v4882, 5
      %v4947 = vrot.slane %v4946, 4
      %v4948 = vrot.slane %v4157, 5
      %v4949 = vsel %vm1835, %v4947, %v4948
      %v4950 = vrot.slane %v4948, 4
      %v4951 = vrot.slane %v4158, 5
      %v4952 = vsel %vm1835, %v4950, %v4951
      %v4953 = vrot.slane %v4883, 5
      %v4954 = vrot.slane %v4953, 4
      %v4955 = vrot.slane %v4160, 5
      %v4956 = vsel %vm1835, %v4954, %v4955
      %v4957 = vrot.slane %v4955, 4
      %v4958 = vrot.slane %v4161, 5
      %v4959 = vsel %vm1835, %v4957, %v4958
      %v4960 = vrot.slane %v4884, 5
      %v4961 = vrot.slane %v4960, 4
      %v4962 = vrot.slane %v4163, 5
      %v4963 = vsel %vm1835, %v4961, %v4962
      %v4964 = vrot.slane %v4962, 4
      %v4965 = vrot.slane %v4164, 5
      %v4966 = vsel %vm1835, %v4964, %v4965
      %v4967 = vrot.slane %v4885, 5
      %v4968 = vrot.slane %v4967, 4
      %v4969 = vrot.slane %v4166, 5
      %v4970 = vsel %vm1835, %v4968, %v4969
      %v4971 = vrot.slane %v4969, 4
      %v4972 = vrot.slane %v4167, 5
      %v4973 = vsel %vm1835, %v4971, %v4972
      %v4974 = vrot.slane %v4886, 5
      %v4975 = vrot.slane %v4974, 4
      %v4976 = vrot.slane %v4169, 5
      %v4977 = vsel %vm1835, %v4975, %v4976
      %v4978 = vrot.slane %v4976, 4
      %v4979 = vrot.slane %v4170, 5
      %v4980 = vsel %vm1835, %v4978, %v4979
      %v4981 = vrot.slane %v4887, 5
      %v4982 = vrot.slane %v4981, 4
      %v4983 = vrot.slane %v4172, 5
      %v4984 = vsel %vm1835, %v4982, %v4983
      %v4985 = vrot.slane %v4983, 4
      %v4986 = vrot.slane %v4173, 5
      %v4987 = vsel %vm1835, %v4985, %v4986
      %v4988 = vrot.slane %v4888, 5
      %v4989 = vrot.slane %v4988, 4
      %v4990 = vrot.slane %v4175, 5
      %v4991 = vsel %vm1835, %v4989, %v4990
      %v4992 = vrot.slane %v4990, 4
      %v4993 = vrot.slane %v4176, 5
      %v4994 = vsel %vm1835, %v4992, %v4993
      %v4995 = vrot.slane %v4889, 5
      %v4996 = vrot.slane %v4995, 4
      %v4997 = vrot.slane %v4178, 5
      %v4998 = vsel %vm1835, %v4996, %v4997
      %v4999 = vrot.slane %v4997, 4
      %v5000 = vrot.slane %v4179, 5
      %v5001 = vsel %vm1835, %v4999, %v5000
      %v5002 = vrot.slane %v4890, 5
      %v5003 = vrot.slane %v5002, 4
      %v5004 = vrot.slane %v4181, 5
      %v5005 = vsel %vm1835, %v5003, %v5004
      %v5006 = vrot.slane %v5004, 4
      %v5007 = vrot.slane %v4182, 5
      %v5008 = vsel %vm1835, %v5006, %v5007
      %v5009 = vrot.slane %v4891, 5
      %v5010 = vrot.slane %v5009, 4
      %v5011 = vrot.slane %v4184, 5
      %v5012 = vsel %vm1835, %v5010, %v5011
      %v5013 = vrot.slane %v5011, 4
      %v5014 = vrot.slane %v4185, 5
      %v5015 = vsel %vm1835, %v5013, %v5014
      %v5016 = vrot.slane %v4892, 5
      %v5017 = vrot.slane %v5016, 4
      %v5018 = vrot.slane %v4187, 5
      %v5019 = vsel %vm1835, %v5017, %v5018
      %v5020 = vrot.slane %v5018, 4
      %v5021 = vrot.slane %v4188, 5
      %v5022 = vsel %vm1835, %v5020, %v5021
      %v5023 = vrot.slane %v4893, 5
      %v5024 = vrot.slane %v5023, 4
      %v5025 = vrot.slane %v4190, 5
      %v5026 = vsel %vm1835, %v5024, %v5025
      %v5027 = vrot.slane %v5025, 4
      %v5028 = vrot.slane %v4191, 5
      %v5029 = vsel %vm1835, %v5027, %v5028
      %v5030 = vrot.slane %v4894, 5
      %v5031 = vrot.slane %v5030, 4
      %v5032 = vrot.slane %v4193, 5
      %v5033 = vsel %vm1835, %v5031, %v5032
      %v5034 = vrot.slane %v5032, 4
      %v5035 = vrot.slane %v4194, 5
      %v5036 = vsel %vm1835, %v5034, %v5035
      %v5037 = vrot.slane %v4895, 5
      %v5038 = vrot.slane %v5037, 4
      %v5039 = vrot.slane %v4196, 5
      %v5040 = vsel %vm1835, %v5038, %v5039
      %v5041 = vrot.slane %v5039, 4
      %v5042 = vrot.slane %v4197, 5
      %v5043 = vsel %vm1835, %v5041, %v5042
      %v5044 = vrot.slane %v4896, 5
      %v5045 = vrot.slane %v5044, 4
      %v5046 = vrot.slane %v4199, 5
      %v5047 = vsel %vm1835, %v5045, %v5046
      %v5048 = vrot.slane %v5046, 4
      %v5049 = vrot.slane %v4200, 5
      %v5050 = vsel %vm1835, %v5048, %v5049
      %v5051 = vrot.slane %v4897, 5
      %v5052 = vrot.slane %v5051, 4
      %v5053 = vrot.slane %v4202, 5
      %v5054 = vsel %vm1835, %v5052, %v5053
      %v5055 = vrot.slane %v5053, 4
      %v5056 = vrot.slane %v4203, 5
      %v5057 = vsel %vm1835, %v5055, %v5056
      %s5058 = scalar_lea.vmem %s3, 8
      %v5059 = vld [vmem:[%s5058] sm:$0x1]
      %v5060 = vunpack.c.l.b16 %v4949
      %v5061 = vunpack.c.l.b16 %v4952
      %v5062 = vunpack.c.l.b16 %v4956
      %v5063 = vunpack.c.l.b16 %v4959
      %v5064 = vunpack.c.l.b16 %v4963
      %v5065 = vunpack.c.l.b16 %v4966
      %v5066 = vunpack.c.l.b16 %v4970
      %v5067 = vunpack.c.l.b16 %v4973
      %v5068 = vunpack.c.l.b16 %v4977
      %v5069 = vunpack.c.l.b16 %v4980
      %v5070 = vunpack.c.l.b16 %v4984
      %v5071 = vunpack.c.l.b16 %v4987
      %v5072 = vunpack.c.l.b16 %v4991
      %v5073 = vunpack.c.l.b16 %v4994
      %v5074 = vunpack.c.l.b16 %v4998
      %v5075 = vunpack.c.l.b16 %v5001
      %v5076 = vunpack.c.l.b16 %v5005
      %v5077 = vunpack.c.l.b16 %v5008
      %v5078 = vunpack.c.l.b16 %v5012
      %v5079 = vunpack.c.l.b16 %v5015
      %v5080 = vunpack.c.l.b16 %v5019
      %v5081 = vunpack.c.l.b16 %v5022
      %v5082 = vunpack.c.l.b16 %v5026
      %v5083 = vunpack.c.l.b16 %v5029
      %v5084 = vunpack.c.l.b16 %v5033
      %v5085 = vunpack.c.l.b16 %v5036
      %v5086 = vunpack.c.l.b16 %v5040
      %v5087 = vunpack.c.l.b16 %v5043
      %v5088 = vunpack.c.l.b16 %v5047
      %v5089 = vunpack.c.l.b16 %v5050
      %v5090 = vunpack.c.l.b16 %v5054
      %v5091 = vunpack.c.l.b16 %v5057
      %v5092 = vpack.c.b16 %v5061, %v5060
      %v5093 = vpack.c.b16 %v5063, %v5062
      %v5094 = vpack.c.b16 %v5065, %v5064
      %v5095 = vpack.c.b16 %v5067, %v5066
      %v5096 = vpack.c.b16 %v5069, %v5068
      %v5097 = vpack.c.b16 %v5071, %v5070
      %v5098 = vpack.c.b16 %v5073, %v5072
      %v5099 = vpack.c.b16 %v5075, %v5074
      %v5100 = vpack.c.b16 %v5077, %v5076
      %v5101 = vpack.c.b16 %v5079, %v5078
      %v5102 = vpack.c.b16 %v5081, %v5080
      %v5103 = vpack.c.b16 %v5083, %v5082
      %v5104 = vpack.c.b16 %v5085, %v5084
      %v5105 = vpack.c.b16 %v5087, %v5086
      %v5106 = vpack.c.b16 %v5089, %v5088
      %v5107 = vpack.c.b16 %v5091, %v5090
      %v5109 = vsel %vm1279, %v5092, 0
      %v5112 = vsel %vm1279, %v5093, 0
      %v5115 = vsel %vm1279, %v5094, 0
      %v5118 = vsel %vm1279, %v5095, 0
      %v5121 = vsel %vm1279, %v5096, 0
      %v5124 = vsel %vm1279, %v5097, 0
      %v5127 = vsel %vm1279, %v5098, 0
      %v5130 = vsel %vm1279, %v5099, 0
      %v5133 = vsel %vm1279, %v5100, 0
      %v5136 = vsel %vm1279, %v5101, 0
      %v5139 = vsel %vm1279, %v5102, 0
      %v5142 = vsel %vm1279, %v5103, 0
      %v5145 = vsel %vm1279, %v5104, 0
      %v5148 = vsel %vm1279, %v5105, 0
      %v5151 = vsel %vm1279, %v5106, 0
      %v5154 = vsel %vm1279, %v5107, 0
      %v5157 = vsel %vm1328, %v5059, 0
      %5159 = vmatprep.subr.bf16.mxu0 0
      %5160 = vmatpush1.bf16.msra.mxu0 0
      %5161 = vmatprep.subr.bf16.mxu0 0
      %5162 = vmatpush1.bf16.msra.mxu0 0
      %5163 = vmatprep.subr.bf16.mxu0 0
      %5164 = vmatpush1.bf16.msra.mxu0 0
      %5165 = vmatprep.subr.bf16.mxu0 0
      %5166 = vmatpush1.bf16.msra.mxu0 0
      %5167 = vmatprep.subr.bf16.mxu0 0
      %5168 = vmatpush1.bf16.msra.mxu0 0
      %5169 = vmatprep.subr.bf16.mxu0 0
      %5170 = vmatpush1.bf16.msra.mxu0 0
      %5171 = vmatprep.subr.bf16.mxu0 0
      %5172 = vmatpush1.bf16.msra.mxu0 0
      %5173 = vmatprep.subr.bf16.mxu0 0
      %5174 = vmatpush1.bf16.msra.mxu0 %v5157
      %5175 = vmatprep.subr.bf16.mxu0 0
      %5176 = vmatpush2.bf16.msra.mxu0 0
      %5177 = vmatprep.subr.bf16.mxu0 0
      %5178 = vmatpush2.bf16.msra.mxu0 0
      %5179 = vmatprep.subr.bf16.mxu0 0
      %5180 = vmatpush2.bf16.msra.mxu0 0
      %5181 = vmatprep.subr.bf16.mxu0 0
      %5182 = vmatpush2.bf16.msra.mxu0 0
      %5183 = vmatprep.subr.bf16.mxu0 0
      %5184 = vmatpush2.bf16.msra.mxu0 0
      %5185 = vmatprep.subr.bf16.mxu0 0
      %5186 = vmatpush2.bf16.msra.mxu0 0
      %5187 = vmatprep.subr.bf16.mxu0 0
      %5188 = vmatpush2.bf16.msra.mxu0 0
      %5189 = vmatprep.subr.bf16.mxu0 0
      %5190 = vmatpush2.bf16.msra.mxu0 0
      %5191 = vmatprep.mubr.bf16.mxu0 0
      %5192 = vmatmul.mubr.bf16.gmra.mxu0 %v5109
      %v5193 = vpop.f32.mrf.mxu0
      %v5194 = vadd.f32 0.0, %v5193
      %v5195 = vpop.f32.mrf.mxu0
      %v5196 = vpop.f32.mrf.mxu0
      %v5197 = vadd.f32 0.0, %v5196
      %v5198 = vpop.f32.mrf.mxu0
      %5199 = vmatprep.mubr.bf16.mxu0 0
      %5200 = vmatmul.mubr.bf16.gmra.mxu0 %v5112
      %v5201 = vpop.f32.mrf.mxu0
      %v5202 = vadd.f32 0.0, %v5201
      %v5203 = vpop.f32.mrf.mxu0
      %v5204 = vpop.f32.mrf.mxu0
      %v5205 = vadd.f32 0.0, %v5204
      %v5206 = vpop.f32.mrf.mxu0
      %5207 = vmatprep.mubr.bf16.mxu0 0
      %5208 = vmatmul.mubr.bf16.gmra.mxu0 %v5115
      %v5209 = vpop.f32.mrf.mxu0
      %v5210 = vadd.f32 0.0, %v5209
      %v5211 = vpop.f32.mrf.mxu0
      %v5212 = vpop.f32.mrf.mxu0
      %v5213 = vadd.f32 0.0, %v5212
      %v5214 = vpop.f32.mrf.mxu0
      %5215 = vmatprep.mubr.bf16.mxu0 0
      %5216 = vmatmul.mubr.bf16.gmra.mxu0 %v5118
      %v5217 = vpop.f32.mrf.mxu0
      %v5218 = vadd.f32 0.0, %v5217
      %v5219 = vpop.f32.mrf.mxu0
      %v5220 = vpop.f32.mrf.mxu0
      %v5221 = vadd.f32 0.0, %v5220
      %v5222 = vpop.f32.mrf.mxu0
      %5223 = vmatprep.mubr.bf16.mxu0 0
      %5224 = vmatmul.mubr.bf16.gmra.mxu0 %v5121
      %v5225 = vpop.f32.mrf.mxu0
      %v5226 = vadd.f32 0.0, %v5225
      %v5227 = vpop.f32.mrf.mxu0
      %v5228 = vpop.f32.mrf.mxu0
      %v5229 = vadd.f32 0.0, %v5228
      %v5230 = vpop.f32.mrf.mxu0
      %5231 = vmatprep.mubr.bf16.mxu0 0
      %5232 = vmatmul.mubr.bf16.gmra.mxu0 %v5124
      %v5233 = vpop.f32.mrf.mxu0
      %v5234 = vadd.f32 0.0, %v5233
      %v5235 = vpop.f32.mrf.mxu0
      %v5236 = vpop.f32.mrf.mxu0
      %v5237 = vadd.f32 0.0, %v5236
      %v5238 = vpop.f32.mrf.mxu0
      %5239 = vmatprep.mubr.bf16.mxu0 0
      %5240 = vmatmul.mubr.bf16.gmra.mxu0 %v5127
      %v5241 = vpop.f32.mrf.mxu0
      %v5242 = vadd.f32 0.0, %v5241
      %v5243 = vpop.f32.mrf.mxu0
      %v5244 = vpop.f32.mrf.mxu0
      %v5245 = vadd.f32 0.0, %v5244
      %v5246 = vpop.f32.mrf.mxu0
      %5247 = vmatprep.mubr.bf16.mxu0 0
      %5248 = vmatmul.mubr.bf16.gmra.mxu0 %v5130
      %v5249 = vpop.f32.mrf.mxu0
      %v5250 = vadd.f32 0.0, %v5249
      %v5251 = vpop.f32.mrf.mxu0
      %v5252 = vpop.f32.mrf.mxu0
      %v5253 = vadd.f32 0.0, %v5252
      %v5254 = vpop.f32.mrf.mxu0
      %5255 = vmatprep.mubr.bf16.mxu0 0
      %5256 = vmatmul.mubr.bf16.gmra.mxu0 %v5133
      %v5257 = vpop.f32.mrf.mxu0
      %v5258 = vadd.f32 0.0, %v5257
      %v5259 = vpop.f32.mrf.mxu0
      %v5260 = vpop.f32.mrf.mxu0
      %v5261 = vadd.f32 0.0, %v5260
      %v5262 = vpop.f32.mrf.mxu0
      %5263 = vmatprep.mubr.bf16.mxu0 0
      %5264 = vmatmul.mubr.bf16.gmra.mxu0 %v5136
      %v5265 = vpop.f32.mrf.mxu0
      %v5266 = vadd.f32 0.0, %v5265
      %v5267 = vpop.f32.mrf.mxu0
      %v5268 = vpop.f32.mrf.mxu0
      %v5269 = vadd.f32 0.0, %v5268
      %v5270 = vpop.f32.mrf.mxu0
      %5271 = vmatprep.mubr.bf16.mxu0 0
      %5272 = vmatmul.mubr.bf16.gmra.mxu0 %v5139
      %v5273 = vpop.f32.mrf.mxu0
      %v5274 = vadd.f32 0.0, %v5273
      %v5275 = vpop.f32.mrf.mxu0
      %v5276 = vpop.f32.mrf.mxu0
      %v5277 = vadd.f32 0.0, %v5276
      %v5278 = vpop.f32.mrf.mxu0
      %5279 = vmatprep.mubr.bf16.mxu0 0
      %5280 = vmatmul.mubr.bf16.gmra.mxu0 %v5142
      %v5281 = vpop.f32.mrf.mxu0
      %v5282 = vadd.f32 0.0, %v5281
      %v5283 = vpop.f32.mrf.mxu0
      %v5284 = vpop.f32.mrf.mxu0
      %v5285 = vadd.f32 0.0, %v5284
      %v5286 = vpop.f32.mrf.mxu0
      %5287 = vmatprep.mubr.bf16.mxu0 0
      %5288 = vmatmul.mubr.bf16.gmra.mxu0 %v5145
      %v5289 = vpop.f32.mrf.mxu0
      %v5290 = vadd.f32 0.0, %v5289
      %v5291 = vpop.f32.mrf.mxu0
      %v5292 = vpop.f32.mrf.mxu0
      %v5293 = vadd.f32 0.0, %v5292
      %v5294 = vpop.f32.mrf.mxu0
      %5295 = vmatprep.mubr.bf16.mxu0 0
      %5296 = vmatmul.mubr.bf16.gmra.mxu0 %v5148
      %v5297 = vpop.f32.mrf.mxu0
      %v5298 = vadd.f32 0.0, %v5297
      %v5299 = vpop.f32.mrf.mxu0
      %v5300 = vpop.f32.mrf.mxu0
      %v5301 = vadd.f32 0.0, %v5300
      %v5302 = vpop.f32.mrf.mxu0
      %5303 = vmatprep.mubr.bf16.mxu0 0
      %5304 = vmatmul.mubr.bf16.gmra.mxu0 %v5151
      %v5305 = vpop.f32.mrf.mxu0
      %v5306 = vadd.f32 0.0, %v5305
      %v5307 = vpop.f32.mrf.mxu0
      %v5308 = vpop.f32.mrf.mxu0
      %v5309 = vadd.f32 0.0, %v5308
      %v5310 = vpop.f32.mrf.mxu0
      %5311 = vmatprep.mubr.bf16.mxu0 0
      %5312 = vmatmul.mubr.bf16.gmra.mxu0 %v5154
      %v5313 = vpop.f32.mrf.mxu0
      %v5314 = vadd.f32 0.0, %v5313
      %v5315 = vpop.f32.mrf.mxu0
      %v5316 = vpop.f32.mrf.mxu0
      %v5317 = vadd.f32 0.0, %v5316
      %v5318 = vpop.f32.mrf.mxu0
      %5319 = vdwg.mxu0
      %v5320 = vadd.f32 %v4850, %v5194
      %v5321 = vadd.f32 %v4851, %v5197
      %v5322 = vadd.f32 %v4852, %v5202
      %v5323 = vadd.f32 %v4853, %v5205
      %v5324 = vadd.f32 %v4854, %v5210
      %v5325 = vadd.f32 %v4855, %v5213
      %v5326 = vadd.f32 %v4856, %v5218
      %v5327 = vadd.f32 %v4857, %v5221
      %v5328 = vadd.f32 %v4858, %v5226
      %v5329 = vadd.f32 %v4859, %v5229
      %v5330 = vadd.f32 %v4860, %v5234
      %v5331 = vadd.f32 %v4861, %v5237
      %v5332 = vadd.f32 %v4862, %v5242
      %v5333 = vadd.f32 %v4863, %v5245
      %v5334 = vadd.f32 %v4864, %v5250
      %v5335 = vadd.f32 %v4865, %v5253
      %v5336 = vadd.f32 %v4866, %v5258
      %v5337 = vadd.f32 %v4867, %v5261
      %v5338 = vadd.f32 %v4868, %v5266
      %v5339 = vadd.f32 %v4869, %v5269
      %v5340 = vadd.f32 %v4870, %v5274
      %v5341 = vadd.f32 %v4871, %v5277
      %v5342 = vadd.f32 %v4872, %v5282
      %v5343 = vadd.f32 %v4873, %v5285
      %v5344 = vadd.f32 %v4874, %v5290
      %v5345 = vadd.f32 %v4875, %v5293
      %v5346 = vadd.f32 %v4876, %v5298
      %v5347 = vadd.f32 %v4877, %v5301
      %v5348 = vadd.f32 %v4878, %v5306
      %v5349 = vadd.f32 %v4879, %v5309
      %v5350 = vadd.f32 %v4880, %v5314
      %v5351 = vadd.f32 %v4881, %v5317
      %v5352 = vld [vmem:[%s266] sm:$0xff]
      %v5353 = vld [vmem:[%s266 + $0x8] sm:$0xff]
      %v5354 = vld [vmem:[%s266 + $0x10] sm:$0xff]
      %v5355 = vld [vmem:[%s266 + $0x18] sm:$0xff]
      %v5356 = vld [vmem:[%s266 + $0x20] sm:$0xff]
      %v5357 = vld [vmem:[%s266 + $0x28] sm:$0xff]
      %v5358 = vld [vmem:[%s266 + $0x30] sm:$0xff]
      %v5359 = vld [vmem:[%s266 + $0x38] sm:$0xff]
      %v5360 = vld [vmem:[%s266 + $0x40] sm:$0xff]
      %v5361 = vld [vmem:[%s266 + $0x48] sm:$0xff]
      %v5362 = vld [vmem:[%s266 + $0x50] sm:$0xff]
      %v5363 = vld [vmem:[%s266 + $0x58] sm:$0xff]
      %v5364 = vld [vmem:[%s266 + $0x60] sm:$0xff]
      %v5365 = vld [vmem:[%s266 + $0x68] sm:$0xff]
      %v5366 = vld [vmem:[%s266 + $0x70] sm:$0xff]
      %v5367 = vld [vmem:[%s266 + $0x78] sm:$0xff]
      %v5368 = vld [vmem:[%s266 + $0x80] sm:$0xff]
      %v5369 = vld [vmem:[%s266 + $0x88] sm:$0xff]
      %v5370 = vld [vmem:[%s266 + $0x90] sm:$0xff]
      %v5371 = vld [vmem:[%s266 + $0x98] sm:$0xff]
      %v5372 = vld [vmem:[%s266 + $0xa0] sm:$0xff]
      %v5373 = vld [vmem:[%s266 + $0xa8] sm:$0xff]
      %v5374 = vld [vmem:[%s266 + $0xb0] sm:$0xff]
      %v5375 = vld [vmem:[%s266 + $0xb8] sm:$0xff]
      %v5376 = vld [vmem:[%s266 + $0xc0] sm:$0xff]
      %v5377 = vld [vmem:[%s266 + $0xc8] sm:$0xff]
      %v5378 = vld [vmem:[%s266 + $0xd0] sm:$0xff]
      %v5379 = vld [vmem:[%s266 + $0xd8] sm:$0xff]
      %v5380 = vld [vmem:[%s266 + $0xe0] sm:$0xff]
      %v5381 = vld [vmem:[%s266 + $0xe8] sm:$0xff]
      %v5382 = vld [vmem:[%s266 + $0xf0] sm:$0xff]
      %v5383 = vld [vmem:[%s266 + $0xf8] sm:$0xff]
      %v5384 = vld [vmem:[%s4] sm:$0x1]
      %v5386 = vlaneseq
      %v5387 = vshrl.u32 %v5386, 7
      %v5388 = vsub.s32 0, %v5387
      %v5389 = vrot.slane %v5384, %v5388
      %v5391 = vadd.f32 %v5352, %v5389
      %v5392 = vadd.f32 %v5353, %v5389
      %v5393 = vadd.f32 %v5354, %v5389
      %v5394 = vadd.f32 %v5355, %v5389
      %v5395 = vadd.f32 %v5356, %v5389
      %v5396 = vadd.f32 %v5357, %v5389
      %v5397 = vadd.f32 %v5358, %v5389
      %v5398 = vadd.f32 %v5359, %v5389
      %v5399 = vadd.f32 %v5360, %v5389
      %v5400 = vadd.f32 %v5361, %v5389
      %v5401 = vadd.f32 %v5362, %v5389
      %v5402 = vadd.f32 %v5363, %v5389
      %v5403 = vadd.f32 %v5364, %v5389
      %v5404 = vadd.f32 %v5365, %v5389
      %v5405 = vadd.f32 %v5366, %v5389
      %v5406 = vadd.f32 %v5367, %v5389
      %v5407 = vadd.f32 %v5368, %v5389
      %v5408 = vadd.f32 %v5369, %v5389
      %v5409 = vadd.f32 %v5370, %v5389
      %v5410 = vadd.f32 %v5371, %v5389
      %v5411 = vadd.f32 %v5372, %v5389
      %v5412 = vadd.f32 %v5373, %v5389
      %v5413 = vadd.f32 %v5374, %v5389
      %v5414 = vadd.f32 %v5375, %v5389
      %v5415 = vadd.f32 %v5376, %v5389
      %v5416 = vadd.f32 %v5377, %v5389
      %v5417 = vadd.f32 %v5378, %v5389
      %v5418 = vadd.f32 %v5379, %v5389
      %v5419 = vadd.f32 %v5380, %v5389
      %v5420 = vadd.f32 %v5381, %v5389
      %v5421 = vadd.f32 %v5382, %v5389
      %v5422 = vadd.f32 %v5383, %v5389
      %v5423 = vmul.f32 %v5320, 0.25
      %v5424 = vmul.f32 %v5321, 0.25
      %v5425 = vmul.f32 %v5322, 0.25
      %v5426 = vmul.f32 %v5323, 0.25
      %v5427 = vmul.f32 %v5324, 0.25
      %v5428 = vmul.f32 %v5325, 0.25
      %v5429 = vmul.f32 %v5326, 0.25
      %v5430 = vmul.f32 %v5327, 0.25
      %v5431 = vmul.f32 %v5328, 0.25
      %v5432 = vmul.f32 %v5329, 0.25
      %v5433 = vmul.f32 %v5330, 0.25
      %v5434 = vmul.f32 %v5331, 0.25
      %v5435 = vmul.f32 %v5332, 0.25
      %v5436 = vmul.f32 %v5333, 0.25
      %v5437 = vmul.f32 %v5334, 0.25
      %v5438 = vmul.f32 %v5335, 0.25
      %v5439 = vmul.f32 %v5336, 0.25
      %v5440 = vmul.f32 %v5337, 0.25
      %v5441 = vmul.f32 %v5338, 0.25
      %v5442 = vmul.f32 %v5339, 0.25
      %v5443 = vmul.f32 %v5340, 0.25
      %v5444 = vmul.f32 %v5341, 0.25
      %v5445 = vmul.f32 %v5342, 0.25
      %v5446 = vmul.f32 %v5343, 0.25
      %v5447 = vmul.f32 %v5344, 0.25
      %v5448 = vmul.f32 %v5345, 0.25
      %v5449 = vmul.f32 %v5346, 0.25
      %v5450 = vmul.f32 %v5347, 0.25
      %v5451 = vmul.f32 %v5348, 0.25
      %v5452 = vmul.f32 %v5349, 0.25
      %v5453 = vmul.f32 %v5350, 0.25
      %v5454 = vmul.f32 %v5351, 0.25
      %v5455 = vadd.f32 %v5423, %v5391
      %v5456 = vadd.f32 %v5424, %v5392
      %v5457 = vadd.f32 %v5425, %v5393
      %v5458 = vadd.f32 %v5426, %v5394
      %v5459 = vadd.f32 %v5427, %v5395
      %v5460 = vadd.f32 %v5428, %v5396
      %v5461 = vadd.f32 %v5429, %v5397
      %v5462 = vadd.f32 %v5430, %v5398
      %v5463 = vadd.f32 %v5431, %v5399
      %v5464 = vadd.f32 %v5432, %v5400
      %v5465 = vadd.f32 %v5433, %v5401
      %v5466 = vadd.f32 %v5434, %v5402
      %v5467 = vadd.f32 %v5435, %v5403
      %v5468 = vadd.f32 %v5436, %v5404
      %v5469 = vadd.f32 %v5437, %v5405
      %v5470 = vadd.f32 %v5438, %v5406
      %v5471 = vadd.f32 %v5439, %v5407
      %v5472 = vadd.f32 %v5440, %v5408
      %v5473 = vadd.f32 %v5441, %v5409
      %v5474 = vadd.f32 %v5442, %v5410
      %v5475 = vadd.f32 %v5443, %v5411
      %v5476 = vadd.f32 %v5444, %v5412
      %v5477 = vadd.f32 %v5445, %v5413
      %v5478 = vadd.f32 %v5446, %v5414
      %v5479 = vadd.f32 %v5447, %v5415
      %v5480 = vadd.f32 %v5448, %v5416
      %v5481 = vadd.f32 %v5449, %v5417
      %v5482 = vadd.f32 %v5450, %v5418
      %v5483 = vadd.f32 %v5451, %v5419
      %v5484 = vadd.f32 %v5452, %v5420
      %v5485 = vadd.f32 %v5453, %v5421
      %v5486 = vadd.f32 %v5454, %v5422
      %vm5487 = vcmask 31744
      %5488 = vst.msk [vmem:[%s271] sm:$0xff] %vm5487, %v5455
      %5489 = vst.msk [vmem:[%s271 + $0x8] sm:$0xff] %vm5487, %v5456
      %5490 = vst.msk [vmem:[%s271 + $0x10] sm:$0xff] %vm5487, %v5457
      %5491 = vst.msk [vmem:[%s271 + $0x18] sm:$0xff] %vm5487, %v5458
      %5492 = vst.msk [vmem:[%s271 + $0x20] sm:$0xff] %vm5487, %v5459
      %5493 = vst.msk [vmem:[%s271 + $0x28] sm:$0xff] %vm5487, %v5460
      %5494 = vst.msk [vmem:[%s271 + $0x30] sm:$0xff] %vm5487, %v5461
      %5495 = vst.msk [vmem:[%s271 + $0x38] sm:$0xff] %vm5487, %v5462
      %5496 = vst.msk [vmem:[%s271 + $0x40] sm:$0xff] %vm5487, %v5463
      %5497 = vst.msk [vmem:[%s271 + $0x48] sm:$0xff] %vm5487, %v5464
      %5498 = vst.msk [vmem:[%s271 + $0x50] sm:$0xff] %vm5487, %v5465
      %5499 = vst.msk [vmem:[%s271 + $0x58] sm:$0xff] %vm5487, %v5466
      %5500 = vst.msk [vmem:[%s271 + $0x60] sm:$0xff] %vm5487, %v5467
      %5501 = vst.msk [vmem:[%s271 + $0x68] sm:$0xff] %vm5487, %v5468
      %5502 = vst.msk [vmem:[%s271 + $0x70] sm:$0xff] %vm5487, %v5469
      %5503 = vst.msk [vmem:[%s271 + $0x78] sm:$0xff] %vm5487, %v5470
      %5504 = vst.msk [vmem:[%s271 + $0x80] sm:$0xff] %vm5487, %v5471
      %5505 = vst.msk [vmem:[%s271 + $0x88] sm:$0xff] %vm5487, %v5472
      %5506 = vst.msk [vmem:[%s271 + $0x90] sm:$0xff] %vm5487, %v5473
      %5507 = vst.msk [vmem:[%s271 + $0x98] sm:$0xff] %vm5487, %v5474
      %5508 = vst.msk [vmem:[%s271 + $0xa0] sm:$0xff] %vm5487, %v5475
      %5509 = vst.msk [vmem:[%s271 + $0xa8] sm:$0xff] %vm5487, %v5476
      %5510 = vst.msk [vmem:[%s271 + $0xb0] sm:$0xff] %vm5487, %v5477
      %5511 = vst.msk [vmem:[%s271 + $0xb8] sm:$0xff] %vm5487, %v5478
      %5512 = vst.msk [vmem:[%s271 + $0xc0] sm:$0xff] %vm5487, %v5479
      %5513 = vst.msk [vmem:[%s271 + $0xc8] sm:$0xff] %vm5487, %v5480
      %5514 = vst.msk [vmem:[%s271 + $0xd0] sm:$0xff] %vm5487, %v5481
      %5515 = vst.msk [vmem:[%s271 + $0xd8] sm:$0xff] %vm5487, %v5482
      %5516 = vst.msk [vmem:[%s271 + $0xe0] sm:$0xff] %vm5487, %v5483
      %5517 = vst.msk [vmem:[%s271 + $0xe8] sm:$0xff] %vm5487, %v5484
      %5518 = vst.msk [vmem:[%s271 + $0xf0] sm:$0xff] %vm5487, %v5485
      %5519 = vst.msk [vmem:[%s271 + $0xf8] sm:$0xff] %vm5487, %v5486
      %p5520 = scmp.lt.s32.totalorder %s17, 1
      %s5521 = scalar_select %p5520, %s17, 1
      %s5522 = smul.addr %s5521, 32
      %s5523 = smul.addr %s5522, 8
      %s5524 = scalar_lea.vmem %s6, %s5523
      // Predicated region
      $region45: #{_lambda_.3} parent=43 // pred_check
        %p5525 = pneg %p171
      $region46: #{_lambda_.3} parent=43 // pred_check_branch
        %5527 = sbr.rel (%p5525) target = $region48
      $region47: #{_lambda_.3} parent=43 // pred_region
        _
      $region48: #{_lambda_.3} parent=43 // pred_fallthru
        _
    $region44: #{_lambda_.3} parent=5 // pred_fallthru
      _
    %p5528 = scmp.le.s32.totalorder 2, %s12
    // Predicated region
    $region49: #{_lambda_.3} parent=5 // pred_check
      %p5529 = pneg %p5528
    $region50: #{_lambda_.3} parent=5 // pred_check_branch
      %5531 = sbr.rel (%p5529) target = $region52
    $region51: #{_lambda_.3} parent=5 // pred_region
      %s5532 = ssub.s32 %s12, 2
      // Predicated region
      $region53: #{_lambda_.3} parent=51 // pred_check
        %p5533 = pneg %p177
      $region54: #{_lambda_.3} parent=51 // pred_check_branch
        %5535 = sbr.rel (%p5533) target = $region56
      $region55: #{_lambda_.3} parent=51 // pred_region
        %p5536 = scmp.lt.s32.totalorder %s18, 1
        %s5537 = scalar_select %p5536, %s18, 1
        %s5538 = smul.addr %s5537, 32
        %s5539 = smul.addr %s5538, 8
        %s5540 = scalar_lea.vmem %s6, %s5539
      $region56: #{_lambda_.3} parent=51 // pred_fallthru
        _
    $region52: #{_lambda_.3} parent=5 // pred_fallthru
      _
  $region6: #{_lambda_.3} parent=0 // loop_footer
    %s16 = sadd.s32 1, %s12
  $region7: #{_lambda_.3} parent=0 // loop_footer_branch
    %11 = sbr.rel target = $region3
  $region8: #{_lambda_.3} parent=0 // loop_exit
    _

// kernel: _lambda_.2
$region0: #{_lambda_.2}
  #allocation0 [shape = 'u32[]', space=smem, size = 0x4, offset = 0x4, fixed_abs, tag = 'smem constant byte address 0x4 - core index']
  #allocation1 [shape = 'u32[144,128]{1,0:T(1,128)}', space=vmem, size = 0x12000, scoped, tag = 'internal scratch']
  #allocation2 [shape = 'bf16[18,18,4]{2,1,0:T(8,128)(2,1)}', space=vmem, size = 0x1b000, scoped, tag = 'scratch operand']
  %s0 = inlined_call_operand.vmem [shape: f32[1,4], index: 0, kind: input, shape index: {}]
  %s1 = inlined_call_operand.vmem [shape: f32[1,4], index: 1, kind: input, shape index: {}]
  %s2 = inlined_call_operand.vmem [shape: f32[2,18,18,4], index: 2, kind: input, shape index: {}]
  %s3 = inlined_call_operand.vmem [shape: bf16[9,4,2], index: 3, kind: input, shape index: {}]
  %s4 = inlined_call_operand.vmem [shape: f32[2,16,16,2], index: 4, kind: output, shape index: {}]
  %s5 = sld [smem:[#allocation0]]
  $region49: #{_lambda_.2} parent=0
    _
  %s7 = ssub.s32 1, %s5
  %s8 = scalar_select 0, %s7, %s5
  loop: start=0, step=1, limit=4
  $region2: #{_lambda_.2} parent=0 // loop_pre_header
    _
  $region3: #{_lambda_.2} parent=0 // loop_header
    %s10 = sphi 0, %s14
    %p11 = scmp.ge.s32.totalorder %s10, 4
    %s18 = sphi 0, %s18
    %s20 = sphi 0, %s18
    %s21 = sphi 0, %s20
    %s35 = sphi 0, %s21
    %s39 = sphi 0, %s39
    %s41 = sphi 0, %s39
    %s42 = sphi 0, %s41
    %s56 = sphi 0, %s42
    %s62 = sphi 0, %s64
    %s65 = sphi 0, %s62
    %s66 = sphi 0, %s65
    %s82 = sphi 0, %s66
    %s86 = sphi 0, %s86
    %s88 = sphi 0, %s86
    %s89 = sphi 0, %s88
    %s103 = sphi 0, %s89
    %s109 = sphi 0, %s111
    %s112 = sphi 0, %s109
    %s113 = sphi 0, %s112
    %s129 = sphi 0, %s113
  $region4: #{_lambda_.2} parent=0 // loop_header_branch
    %13 = sbr.rel (%p11) target = $region8
  $region5: #{_lambda_.2} parent=0 // loop_body
    %s15 = ssub.s32 %s10, 1
    %s16 = ssub.s32 %s10, 2
    %s17 = sadd.s32 %s10, 1
    %s19 = sadd.s32 %s18, 1
    %p22 = scmp.eq.s32.totalorder %s10, 1
    %p23 = scmp.ne.s32.totalorder %s18, %s20
    %p24 = scmp.eq.s32.totalorder %s10, 0
    %p25 = por %p23, %p24
    %p26 = scmp.ne.s32.totalorder %s18, %s20
    %p27 = scmp.eq.s32.totalorder %s15, 1
    %p28 = por %p26, %p27
    %p29 = scmp.ne.s32.totalorder %s20, %s21
    %p30 = scmp.eq.s32.totalorder %s15, 0
    %p31 = por %p29, %p30
    %p32 = scmp.ne.s32.totalorder %s20, %s21
    %p33 = scmp.eq.s32.totalorder %s16, 1
    %p34 = por %p32, %p33
    %p36 = scmp.ne.s32.totalorder %s21, %s35
    %p37 = scmp.eq.s32.totalorder %s16, 0
    %p38 = por %p36, %p37
    %s40 = sadd.s32 %s39, 1
    %p43 = scmp.eq.s32.totalorder %s10, 1
    %p44 = scmp.ne.s32.totalorder %s39, %s41
    %p45 = scmp.eq.s32.totalorder %s10, 0
    %p46 = por %p44, %p45
    %p47 = scmp.ne.s32.totalorder %s39, %s41
    %p48 = scmp.eq.s32.totalorder %s15, 1
    %p49 = por %p47, %p48
    %p50 = scmp.ne.s32.totalorder %s41, %s42
    %p51 = scmp.eq.s32.totalorder %s15, 0
    %p52 = por %p50, %p51
    %p53 = scmp.ne.s32.totalorder %s41, %s42
    %p54 = scmp.eq.s32.totalorder %s16, 1
    %p55 = por %p53, %p54
    %p57 = scmp.ne.s32.totalorder %s42, %s56
    %p58 = scmp.eq.s32.totalorder %s16, 0
    %p59 = por %p57, %p58
    %s60 = ssub.s32 %s10, %s17
    %p61 = scmp.eq.s32.totalorder %s60, 0
    %s63 = sadd.s32 %s62, 1
    %s64 = scalar_select %p61, %s62, %s63
    %p67 = pneg %p61
    %p68 = scmp.eq.s32.totalorder %s10, 1
    %p69 = por %p67, %p68
    %p70 = scmp.ne.s32.totalorder %s62, %s65
    %p71 = scmp.eq.s32.totalorder %s10, 0
    %p72 = por %p70, %p71
    %p73 = scmp.ne.s32.totalorder %s62, %s65
    %p74 = scmp.eq.s32.totalorder %s15, 1
    %p75 = por %p73, %p74
    %p76 = scmp.ne.s32.totalorder %s65, %s66
    %p77 = scmp.eq.s32.totalorder %s15, 0
    %p78 = por %p76, %p77
    %p79 = scmp.ne.s32.totalorder %s65, %s66
    %p80 = scmp.eq.s32.totalorder %s16, 1
    %p81 = por %p79, %p80
    %p83 = scmp.ne.s32.totalorder %s66, %s82
    %p84 = scmp.eq.s32.totalorder %s16, 0
    %p85 = por %p83, %p84
    %s87 = sadd.s32 %s86, 1
    %p90 = scmp.eq.s32.totalorder %s10, 1
    %p91 = scmp.ne.s32.totalorder %s86, %s88
    %p92 = scmp.eq.s32.totalorder %s10, 0
    %p93 = por %p91, %p92
    %p94 = scmp.ne.s32.totalorder %s86, %s88
    %p95 = scmp.eq.s32.totalorder %s15, 1
    %p96 = por %p94, %p95
    %p97 = scmp.ne.s32.totalorder %s88, %s89
    %p98 = scmp.eq.s32.totalorder %s15, 0
    %p99 = por %p97, %p98
    %p100 = scmp.ne.s32.totalorder %s88, %s89
    %p101 = scmp.eq.s32.totalorder %s16, 1
    %p102 = por %p100, %p101
    %p104 = scmp.ne.s32.totalorder %s89, %s103
    %p105 = scmp.eq.s32.totalorder %s16, 0
    %p106 = por %p104, %p105
    %s107 = ssub.s32 %s10, %s17
    %p108 = scmp.eq.s32.totalorder %s107, 0
    %s110 = sadd.s32 %s109, 1
    %s111 = scalar_select %p108, %s109, %s110
    %p114 = pneg %p108
    %p115 = scmp.eq.s32.totalorder %s10, 1
    %p116 = por %p114, %p115
    %p117 = scmp.ne.s32.totalorder %s109, %s112
    %p118 = scmp.eq.s32.totalorder %s10, 0
    %p119 = por %p117, %p118
    %p120 = scmp.ne.s32.totalorder %s109, %s112
    %p121 = scmp.eq.s32.totalorder %s15, 1
    %p122 = por %p120, %p121
    %p123 = scmp.ne.s32.totalorder %s112, %s113
    %p124 = scmp.eq.s32.totalorder %s15, 0
    %p125 = por %p123, %p124
    %p126 = scmp.ne.s32.totalorder %s112, %s113
    %p127 = scmp.eq.s32.totalorder %s16, 1
    %p128 = por %p126, %p127
    %p130 = scmp.ne.s32.totalorder %s113, %s129
    %p131 = scmp.eq.s32.totalorder %s16, 0
    %p132 = por %p130, %p131
    %p133 = scmp.le.s32.totalorder 1, %s10
    %p134 = scmp.lt.s32.totalorder %s10, 3
    %p135 = pnand %p133, %p134
    %p136 = pneg %p135
    // Predicated region
    $region9: #{_lambda_.2} parent=5 // pred_check
      _
    $region10: #{_lambda_.2} parent=5 // pred_check_branch
      %138 = sbr.rel (%p135) target = $region12
    $region11: #{_lambda_.2} parent=5 // pred_region
      %s139 = ssub.s32 %s10, 1
      // Predicated region
      $region13: #{_lambda_.2} parent=11 // pred_check
        %p140 = pneg %p31
      $region14: #{_lambda_.2} parent=11 // pred_check_branch
        %142 = sbr.rel (%p140) target = $region16
      $region15: #{_lambda_.2} parent=11 // pred_region
        _
      $region16: #{_lambda_.2} parent=11 // pred_fallthru
        _
      // Predicated region
      $region17: #{_lambda_.2} parent=11 // pred_check
        %p143 = pneg %p52
      $region18: #{_lambda_.2} parent=11 // pred_check_branch
        %145 = sbr.rel (%p143) target = $region20
      $region19: #{_lambda_.2} parent=11 // pred_region
        _
      $region20: #{_lambda_.2} parent=11 // pred_fallthru
        _
      // Predicated region
      $region21: #{_lambda_.2} parent=11 // pred_check
        %p146 = pneg %p99
      $region22: #{_lambda_.2} parent=11 // pred_check_branch
        %148 = sbr.rel (%p146) target = $region24
      $region23: #{_lambda_.2} parent=11 // pred_region
        _
      $region24: #{_lambda_.2} parent=11 // pred_fallthru
        _
    $region12: #{_lambda_.2} parent=5 // pred_fallthru
      _
    %p149 = scmp.lt.s32.totalorder %s10, 2
    // Predicated region
    $region25: #{_lambda_.2} parent=5 // pred_check
      %p150 = pneg %p149
    $region26: #{_lambda_.2} parent=5 // pred_check_branch
      %152 = sbr.rel (%p150) target = $region28
    $region27: #{_lambda_.2} parent=5 // pred_region
      // Predicated region
      $region29: #{_lambda_.2} parent=27 // pred_check
        %p153 = pneg %p72
      $region30: #{_lambda_.2} parent=27 // pred_check_branch
        %155 = sbr.rel (%p153) target = $region32
      $region31: #{_lambda_.2} parent=27 // pred_region
        %p156 = scmp.lt.s32.totalorder %s10, 1
        %s157 = scalar_select %p156, %s10, 1
        %s158 = smul.addr %s157, 54
        %s159 = smul.addr %s158, 8
        %s160 = scalar_lea.vmem %s2, %s159
      $region32: #{_lambda_.2} parent=27 // pred_fallthru
        _
    $region28: #{_lambda_.2} parent=5 // pred_fallthru
      _
    %p161 = scmp.le.s32.totalorder 1, %s10
    %p162 = scmp.lt.s32.totalorder %s10, 3
    %p163 = pnand %p161, %p162
    %p164 = pneg %p163
    // Predicated region
    $region33: #{_lambda_.2} parent=5 // pred_check
      _
    $region34: #{_lambda_.2} parent=5 // pred_check_branch
      %166 = sbr.rel (%p163) target = $region36
    $region35: #{_lambda_.2} parent=5 // pred_region
      %s167 = ssub.s32 %s10, 1
      %p168 = pneg %p31
      %p169 = pneg %p28
      %p170 = pneg %p52
      %p171 = pneg %p49
      %p172 = scmp.lt.s32.totalorder %s15, 1
      %s173 = scalar_select %p172, %s15, 1
      %s174 = smul.addr %s173, 54
      %s175 = smul.addr %s174, 8
      %s176 = scalar_lea.vmem %s2, %s175
      %p177 = pneg %p78
      %p178 = pneg %p75
      %p179 = pneg %p99
      %p180 = pneg %p96
      %p181 = pneg %p125
      %p182 = pneg %p122
      %p183 = scmp.lt.s32.totalorder %s15, 1
      %s184 = scalar_select %p183, %s15, 1
      %s185 = smul.addr %s184, 32
      %s186 = smul.addr %s185, 8
      %s187 = scalar_lea.vmem %s4, %s186
      %p188 = scmp.lt.s32.totalorder %s15, 1
      %s189 = scalar_select %p188, %s15, 1
      %s190 = smul.addr %s189, 54
      %s191 = smul.addr %s190, 8
      %s192 = scalar_lea.vmem %s2, %s191
      %p193 = scmp.lt.s32.totalorder %s15, 1
      %s194 = scalar_select %p193, %s15, 1
      %s195 = smul.addr %s194, 32
      %s196 = smul.addr %s195, 8
      %s197 = scalar_lea.vmem %s4, %s196
      %v199 = vld [vmem:[%s192] sm:$0xff]
      %v200 = vld [vmem:[%s192 + $0x8] sm:$0xff]
      %v201 = vld [vmem:[%s192 + $0x10] sm:$0x3]
      %v202 = vld [vmem:[%s192 + $0x18] sm:$0xff]
      %v203 = vld [vmem:[%s192 + $0x20] sm:$0xff]
      %v204 = vld [vmem:[%s192 + $0x28] sm:$0x3]
      %v205 = vld [vmem:[%s192 + $0x30] sm:$0xff]
      %v206 = vld [vmem:[%s192 + $0x38] sm:$0xff]
      %v207 = vld [vmem:[%s192 + $0x40] sm:$0x3]
      %v208 = vld [vmem:[%s192 + $0x48] sm:$0xff]
      %v209 = vld [vmem:[%s192 + $0x50] sm:$0xff]
      %v210 = vld [vmem:[%s192 + $0x58] sm:$0x3]
      %v211 = vld [vmem:[%s192 + $0x60] sm:$0xff]
      %v212 = vld [vmem:[%s192 + $0x68] sm:$0xff]
      %v213 = vld [vmem:[%s192 + $0x70] sm:$0x3]
      %v214 = vld [vmem:[%s192 + $0x78] sm:$0xff]
      %v215 = vld [vmem:[%s192 + $0x80] sm:$0xff]
      %v216 = vld [vmem:[%s192 + $0x88] sm:$0x3]
      %v217 = vld [vmem:[%s192 + $0x90] sm:$0xff]
      %v218 = vld [vmem:[%s192 + $0x98] sm:$0xff]
      %v219 = vld [vmem:[%s192 + $0xa0] sm:$0x3]
      %v220 = vld [vmem:[%s192 + $0xa8] sm:$0xff]
      %v221 = vld [vmem:[%s192 + $0xb0] sm:$0xff]
      %v222 = vld [vmem:[%s192 + $0xb8] sm:$0x3]
      %v223 = vld [vmem:[%s192 + $0xc0] sm:$0xff]
      %v224 = vld [vmem:[%s192 + $0xc8] sm:$0xff]
      %v225 = vld [vmem:[%s192 + $0xd0] sm:$0x3]
      %v226 = vld [vmem:[%s192 + $0xd8] sm:$0xff]
      %v227 = vld [vmem:[%s192 + $0xe0] sm:$0xff]
      %v228 = vld [vmem:[%s192 + $0xe8] sm:$0x3]
      %v229 = vld [vmem:[%s192 + $0xf0] sm:$0xff]
      %v230 = vld [vmem:[%s192 + $0xf8] sm:$0xff]
      %v231 = vld [vmem:[%s192 + $0x100] sm:$0x3]
      %v232 = vld [vmem:[%s192 + $0x108] sm:$0xff]
      %v233 = vld [vmem:[%s192 + $0x110] sm:$0xff]
      %v234 = vld [vmem:[%s192 + $0x118] sm:$0x3]
      %v235 = vld [vmem:[%s192 + $0x120] sm:$0xff]
      %v236 = vld [vmem:[%s192 + $0x128] sm:$0xff]
      %v237 = vld [vmem:[%s192 + $0x130] sm:$0x3]
      %v238 = vld [vmem:[%s192 + $0x138] sm:$0xff]
      %v239 = vld [vmem:[%s192 + $0x140] sm:$0xff]
      %v240 = vld [vmem:[%s192 + $0x148] sm:$0x3]
      %v241 = vld [vmem:[%s192 + $0x150] sm:$0xff]
      %v242 = vld [vmem:[%s192 + $0x158] sm:$0xff]
      %v243 = vld [vmem:[%s192 + $0x160] sm:$0x3]
      %v244 = vld [vmem:[%s192 + $0x168] sm:$0xff]
      %v245 = vld [vmem:[%s192 + $0x170] sm:$0xff]
      %v246 = vld [vmem:[%s192 + $0x178] sm:$0x3]
      %v247 = vld [vmem:[%s192 + $0x180] sm:$0xff]
      %v248 = vld [vmem:[%s192 + $0x188] sm:$0xff]
      %v249 = vld [vmem:[%s192 + $0x190] sm:$0x3]
      %v250 = vld [vmem:[%s192 + $0x198] sm:$0xff]
      %v251 = vld [vmem:[%s192 + $0x1a0] sm:$0xff]
      %v252 = vld [vmem:[%s192 + $0x1a8] sm:$0x3]
      %v253 = vld [vmem:[%s0] sm:$0x1]
      %v254 = vld [vmem:[%s1] sm:$0x1]
      %v256 = vlaneseq
      %v257 = vshrl.u32 %v256, 7
      %v258 = vsub.s32 0, %v257
      %v259 = vrot.slane %v253, %v258
      %v261 = vmul.f32 %v199, %v259
      %v262 = vmul.f32 %v200, %v259
      %v263 = vmul.f32 %v201, %v259
      %v264 = vmul.f32 %v202, %v259
      %v265 = vmul.f32 %v203, %v259
      %v266 = vmul.f32 %v204, %v259
      %v267 = vmul.f32 %v205, %v259
      %v268 = vmul.f32 %v206, %v259
      %v269 = vmul.f32 %v207, %v259
      %v270 = vmul.f32 %v208, %v259
      %v271 = vmul.f32 %v209, %v259
      %v272 = vmul.f32 %v210, %v259
      %v273 = vmul.f32 %v211, %v259
      %v274 = vmul.f32 %v212, %v259
      %v275 = vmul.f32 %v213, %v259
      %v276 = vmul.f32 %v214, %v259
      %v277 = vmul.f32 %v215, %v259
      %v278 = vmul.f32 %v216, %v259
      %v279 = vmul.f32 %v217, %v259
      %v280 = vmul.f32 %v218, %v259
      %v281 = vmul.f32 %v219, %v259
      %v282 = vmul.f32 %v220, %v259
      %v283 = vmul.f32 %v221, %v259
      %v284 = vmul.f32 %v222, %v259
      %v285 = vmul.f32 %v223, %v259
      %v286 = vmul.f32 %v224, %v259
      %v287 = vmul.f32 %v225, %v259
      %v288 = vmul.f32 %v226, %v259
      %v289 = vmul.f32 %v227, %v259
      %v290 = vmul.f32 %v228, %v259
      %v291 = vmul.f32 %v229, %v259
      %v292 = vmul.f32 %v230, %v259
      %v293 = vmul.f32 %v231, %v259
      %v294 = vmul.f32 %v232, %v259
      %v295 = vmul.f32 %v233, %v259
      %v296 = vmul.f32 %v234, %v259
      %v297 = vmul.f32 %v235, %v259
      %v298 = vmul.f32 %v236, %v259
      %v299 = vmul.f32 %v237, %v259
      %v300 = vmul.f32 %v238, %v259
      %v301 = vmul.f32 %v239, %v259
      %v302 = vmul.f32 %v240, %v259
      %v303 = vmul.f32 %v241, %v259
      %v304 = vmul.f32 %v242, %v259
      %v305 = vmul.f32 %v243, %v259
      %v306 = vmul.f32 %v244, %v259
      %v307 = vmul.f32 %v245, %v259
      %v308 = vmul.f32 %v246, %v259
      %v309 = vmul.f32 %v247, %v259
      %v310 = vmul.f32 %v248, %v259
      %v311 = vmul.f32 %v249, %v259
      %v312 = vmul.f32 %v250, %v259
      %v313 = vmul.f32 %v251, %v259
      %v314 = vmul.f32 %v252, %v259
      %v316 = vlaneseq
      %v317 = vshrl.u32 %v316, 7
      %v318 = vsub.s32 0, %v317
      %v319 = vrot.slane %v254, %v318
      %v321 = vadd.f32 %v261, %v319
      %v322 = vadd.f32 %v262, %v319
      %v323 = vadd.f32 %v263, %v319
      %v324 = vadd.f32 %v264, %v319
      %v325 = vadd.f32 %v265, %v319
      %v326 = vadd.f32 %v266, %v319
      %v327 = vadd.f32 %v267, %v319
      %v328 = vadd.f32 %v268, %v319
      %v329 = vadd.f32 %v269, %v319
      %v330 = vadd.f32 %v270, %v319
      %v331 = vadd.f32 %v271, %v319
      %v332 = vadd.f32 %v272, %v319
      %v333 = vadd.f32 %v273, %v319
      %v334 = vadd.f32 %v274, %v319
      %v335 = vadd.f32 %v275, %v319
      %v336 = vadd.f32 %v276, %v319
      %v337 = vadd.f32 %v277, %v319
      %v338 = vadd.f32 %v278, %v319
      %v339 = vadd.f32 %v279, %v319
      %v340 = vadd.f32 %v280, %v319
      %v341 = vadd.f32 %v281, %v319
      %v342 = vadd.f32 %v282, %v319
      %v343 = vadd.f32 %v283, %v319
      %v344 = vadd.f32 %v284, %v319
      %v345 = vadd.f32 %v285, %v319
      %v346 = vadd.f32 %v286, %v319
      %v347 = vadd.f32 %v287, %v319
      %v348 = vadd.f32 %v288, %v319
      %v349 = vadd.f32 %v289, %v319
      %v350 = vadd.f32 %v290, %v319
      %v351 = vadd.f32 %v291, %v319
      %v352 = vadd.f32 %v292, %v319
      %v353 = vadd.f32 %v293, %v319
      %v354 = vadd.f32 %v294, %v319
      %v355 = vadd.f32 %v295, %v319
      %v356 = vadd.f32 %v296, %v319
      %v357 = vadd.f32 %v297, %v319
      %v358 = vadd.f32 %v298, %v319
      %v359 = vadd.f32 %v299, %v319
      %v360 = vadd.f32 %v300, %v319
      %v361 = vadd.f32 %v301, %v319
      %v362 = vadd.f32 %v302, %v319
      %v363 = vadd.f32 %v303, %v319
      %v364 = vadd.f32 %v304, %v319
      %v365 = vadd.f32 %v305, %v319
      %v366 = vadd.f32 %v306, %v319
      %v367 = vadd.f32 %v307, %v319
      %v368 = vadd.f32 %v308, %v319
      %v369 = vadd.f32 %v309, %v319
      %v370 = vadd.f32 %v310, %v319
      %v371 = vadd.f32 %v311, %v319
      %v372 = vadd.f32 %v312, %v319
      %v373 = vadd.f32 %v313, %v319
      %v374 = vadd.f32 %v314, %v319
      %v375 = vmax.f32 %v321, 0.0
      %v376 = vmax.f32 %v322, 0.0
      %v377 = vmax.f32 %v323, 0.0
      %v378 = vmax.f32 %v324, 0.0
      %v379 = vmax.f32 %v325, 0.0
      %v380 = vmax.f32 %v326, 0.0
      %v381 = vmax.f32 %v327, 0.0
      %v382 = vmax.f32 %v328, 0.0
      %v383 = vmax.f32 %v329, 0.0
      %v384 = vmax.f32 %v330, 0.0
      %v385 = vmax.f32 %v331, 0.0
      %v386 = vmax.f32 %v332, 0.0
      %v387 = vmax.f32 %v333, 0.0
      %v388 = vmax.f32 %v334, 0.0
      %v389 = vmax.f32 %v335, 0.0
      %v390 = vmax.f32 %v336, 0.0
      %v391 = vmax.f32 %v337, 0.0
      %v392 = vmax.f32 %v338, 0.0
      %v393 = vmax.f32 %v339, 0.0
      %v394 = vmax.f32 %v340, 0.0
      %v395 = vmax.f32 %v341, 0.0
      %v396 = vmax.f32 %v342, 0.0
      %v397 = vmax.f32 %v343, 0.0
      %v398 = vmax.f32 %v344, 0.0
      %v399 = vmax.f32 %v345, 0.0
      %v400 = vmax.f32 %v346, 0.0
      %v401 = vmax.f32 %v347, 0.0
      %v402 = vmax.f32 %v348, 0.0
      %v403 = vmax.f32 %v349, 0.0
      %v404 = vmax.f32 %v350, 0.0
      %v405 = vmax.f32 %v351, 0.0
      %v406 = vmax.f32 %v352, 0.0
      %v407 = vmax.f32 %v353, 0.0
      %v408 = vmax.f32 %v354, 0.0
      %v409 = vmax.f32 %v355, 0.0
      %v410 = vmax.f32 %v356, 0.0
      %v411 = vmax.f32 %v357, 0.0
      %v412 = vmax.f32 %v358, 0.0
      %v413 = vmax.f32 %v359, 0.0
      %v414 = vmax.f32 %v360, 0.0
      %v415 = vmax.f32 %v361, 0.0
      %v416 = vmax.f32 %v362, 0.0
      %v417 = vmax.f32 %v363, 0.0
      %v418 = vmax.f32 %v364, 0.0
      %v419 = vmax.f32 %v365, 0.0
      %v420 = vmax.f32 %v366, 0.0
      %v421 = vmax.f32 %v367, 0.0
      %v422 = vmax.f32 %v368, 0.0
      %v423 = vmax.f32 %v369, 0.0
      %v424 = vmax.f32 %v370, 0.0
      %v425 = vmax.f32 %v371, 0.0
      %v426 = vmax.f32 %v372, 0.0
      %v427 = vmax.f32 %v373, 0.0
      %v428 = vmax.f32 %v374, 0.0
      %v429 = vpack.c.bf16 %v376, %v375
      %v430 = vpack.c.bf16 %v377, %v377
      %v431 = vpack.c.bf16 %v379, %v378
      %v432 = vpack.c.bf16 %v380, %v380
      %v433 = vpack.c.bf16 %v382, %v381
      %v434 = vpack.c.bf16 %v383, %v383
      %v435 = vpack.c.bf16 %v385, %v384
      %v436 = vpack.c.bf16 %v386, %v386
      %v437 = vpack.c.bf16 %v388, %v387
      %v438 = vpack.c.bf16 %v389, %v389
      %v439 = vpack.c.bf16 %v391, %v390
      %v440 = vpack.c.bf16 %v392, %v392
      %v441 = vpack.c.bf16 %v394, %v393
      %v442 = vpack.c.bf16 %v395, %v395
      %v443 = vpack.c.bf16 %v397, %v396
      %v444 = vpack.c.bf16 %v398, %v398
      %v445 = vpack.c.bf16 %v400, %v399
      %v446 = vpack.c.bf16 %v401, %v401
      %v447 = vpack.c.bf16 %v403, %v402
      %v448 = vpack.c.bf16 %v404, %v404
      %v449 = vpack.c.bf16 %v406, %v405
      %v450 = vpack.c.bf16 %v407, %v407
      %v451 = vpack.c.bf16 %v409, %v408
      %v452 = vpack.c.bf16 %v410, %v410
      %v453 = vpack.c.bf16 %v412, %v411
      %v454 = vpack.c.bf16 %v413, %v413
      %v455 = vpack.c.bf16 %v415, %v414
      %v456 = vpack.c.bf16 %v416, %v416
      %v457 = vpack.c.bf16 %v418, %v417
      %v458 = vpack.c.bf16 %v419, %v419
      %v459 = vpack.c.bf16 %v421, %v420
      %v460 = vpack.c.bf16 %v422, %v422
      %v461 = vpack.c.bf16 %v424, %v423
      %v462 = vpack.c.bf16 %v425, %v425
      %v463 = vpack.c.bf16 %v427, %v426
      %v464 = vpack.c.bf16 %v428, %v428
      %v501 = vunpack.c.l.b16 %v429
      %v502 = vunpack.c.h.b16 %v429
      %v503 = vunpack.c.l.b16 %v430
      %v504 = vunpack.c.l.b16 %v431
      %v505 = vunpack.c.h.b16 %v431
      %v506 = vunpack.c.l.b16 %v432
      %v507 = vunpack.c.l.b16 %v433
      %v508 = vunpack.c.h.b16 %v433
      %v509 = vunpack.c.l.b16 %v434
      %v510 = vunpack.c.l.b16 %v435
      %v511 = vunpack.c.h.b16 %v435
      %v512 = vunpack.c.l.b16 %v436
      %v513 = vunpack.c.l.b16 %v437
      %v514 = vunpack.c.h.b16 %v437
      %v515 = vunpack.c.l.b16 %v438
      %v516 = vunpack.c.l.b16 %v439
      %v517 = vunpack.c.h.b16 %v439
      %v518 = vunpack.c.l.b16 %v440
      %v519 = vunpack.c.l.b16 %v441
      %v520 = vunpack.c.h.b16 %v441
      %v521 = vunpack.c.l.b16 %v442
      %v522 = vunpack.c.l.b16 %v443
      %v523 = vunpack.c.h.b16 %v443
      %v524 = vunpack.c.l.b16 %v444
      %v525 = vunpack.c.l.b16 %v445
      %v526 = vunpack.c.h.b16 %v445
      %v527 = vunpack.c.l.b16 %v446
      %v528 = vunpack.c.l.b16 %v447
      %v529 = vunpack.c.h.b16 %v447
      %v530 = vunpack.c.l.b16 %v448
      %v531 = vunpack.c.l.b16 %v449
      %v532 = vunpack.c.h.b16 %v449
      %v533 = vunpack.c.l.b16 %v450
      %v534 = vunpack.c.l.b16 %v451
      %v535 = vunpack.c.h.b16 %v451
      %v536 = vunpack.c.l.b16 %v452
      %v537 = vunpack.c.l.b16 %v453
      %v538 = vunpack.c.h.b16 %v453
      %v539 = vunpack.c.l.b16 %v454
      %v540 = vunpack.c.l.b16 %v455
      %v541 = vunpack.c.h.b16 %v455
      %v542 = vunpack.c.l.b16 %v456
      %v543 = vunpack.c.l.b16 %v457
      %v544 = vunpack.c.h.b16 %v457
      %v545 = vunpack.c.l.b16 %v458
      %v546 = vunpack.c.l.b16 %v459
      %v547 = vunpack.c.h.b16 %v459
      %v548 = vunpack.c.l.b16 %v460
      %v549 = vunpack.c.l.b16 %v461
      %v550 = vunpack.c.h.b16 %v461
      %v551 = vunpack.c.l.b16 %v462
      %v552 = vunpack.c.l.b16 %v463
      %v553 = vunpack.c.h.b16 %v463
      %v554 = vunpack.c.l.b16 %v464
      %v555 = vpack.c.b16 %v501, %v501
      %v556 = vpack.c.b16 %v502, %v502
      %v557 = vpack.c.b16 %v503, %v503
      %v558 = vpack.c.b16 %v504, %v504
      %v559 = vpack.c.b16 %v505, %v505
      %v560 = vpack.c.b16 %v506, %v506
      %v561 = vpack.c.b16 %v507, %v507
      %v562 = vpack.c.b16 %v508, %v508
      %v563 = vpack.c.b16 %v509, %v509
      %v564 = vpack.c.b16 %v510, %v510
      %v565 = vpack.c.b16 %v511, %v511
      %v566 = vpack.c.b16 %v512, %v512
      %v567 = vpack.c.b16 %v513, %v513
      %v568 = vpack.c.b16 %v514, %v514
      %v569 = vpack.c.b16 %v515, %v515
      %v570 = vpack.c.b16 %v516, %v516
      %v571 = vpack.c.b16 %v517, %v517
      %v572 = vpack.c.b16 %v518, %v518
      %v573 = vpack.c.b16 %v519, %v519
      %v574 = vpack.c.b16 %v520, %v520
      %v575 = vpack.c.b16 %v521, %v521
      %v576 = vpack.c.b16 %v522, %v522
      %v577 = vpack.c.b16 %v523, %v523
      %v578 = vpack.c.b16 %v524, %v524
      %v579 = vpack.c.b16 %v525, %v525
      %v580 = vpack.c.b16 %v526, %v526
      %v581 = vpack.c.b16 %v527, %v527
      %v582 = vpack.c.b16 %v528, %v528
      %v583 = vpack.c.b16 %v529, %v529
      %v584 = vpack.c.b16 %v530, %v530
      %v585 = vpack.c.b16 %v531, %v531
      %v586 = vpack.c.b16 %v532, %v532
      %v587 = vpack.c.b16 %v533, %v533
      %v588 = vpack.c.b16 %v534, %v534
      %v589 = vpack.c.b16 %v535, %v535
      %v590 = vpack.c.b16 %v536, %v536
      %v591 = vpack.c.b16 %v537, %v537
      %v592 = vpack.c.b16 %v538, %v538
      %v593 = vpack.c.b16 %v539, %v539
      %v594 = vpack.c.b16 %v540, %v540
      %v595 = vpack.c.b16 %v541, %v541
      %v596 = vpack.c.b16 %v542, %v542
      %v597 = vpack.c.b16 %v543, %v543
      %v598 = vpack.c.b16 %v544, %v544
      %v599 = vpack.c.b16 %v545, %v545
      %v600 = vpack.c.b16 %v546, %v546
      %v601 = vpack.c.b16 %v547, %v547
      %v602 = vpack.c.b16 %v548, %v548
      %v603 = vpack.c.b16 %v549, %v549
      %v604 = vpack.c.b16 %v550, %v550
      %v605 = vpack.c.b16 %v551, %v551
      %v606 = vpack.c.b16 %v552, %v552
      %v607 = vpack.c.b16 %v553, %v553
      %v608 = vpack.c.b16 %v554, %v554
      %vm663 = vcmask 27648
      %664 = vst.msk [vmem:[#allocation2] sm:$0xf] %vm663, %v555
      %665 = vst.msk [vmem:[#allocation2 + $0x4] sm:$0xf] %vm663, %v556
      %vm666 = vcmask 24576
      %667 = vst.msk [vmem:[#allocation2 + $0x8] sm:$0x1] %vm666, %v557
      %668 = vst.msk [vmem:[#allocation2 + $0xc] sm:$0xf] %vm663, %v558
      %669 = vst.msk [vmem:[#allocation2 + $0x10] sm:$0xf] %vm663, %v559
      %670 = vst.msk [vmem:[#allocation2 + $0x14] sm:$0x1] %vm666, %v560
      %671 = vst.msk [vmem:[#allocation2 + $0x18] sm:$0xf] %vm663, %v561
      %672 = vst.msk [vmem:[#allocation2 + $0x1c] sm:$0xf] %vm663, %v562
      %673 = vst.msk [vmem:[#allocation2 + $0x20] sm:$0x1] %vm666, %v563
      %674 = vst.msk [vmem:[#allocation2 + $0x24] sm:$0xf] %vm663, %v564
      %675 = vst.msk [vmem:[#allocation2 + $0x28] sm:$0xf] %vm663, %v565
      %676 = vst.msk [vmem:[#allocation2 + $0x2c] sm:$0x1] %vm666, %v566
      %677 = vst.msk [vmem:[#allocation2 + $0x30] sm:$0xf] %vm663, %v567
      %678 = vst.msk [vmem:[#allocation2 + $0x34] sm:$0xf] %vm663, %v568
      %679 = vst.msk [vmem:[#allocation2 + $0x38] sm:$0x1] %vm666, %v569
      %680 = vst.msk [vmem:[#allocation2 + $0x3c] sm:$0xf] %vm663, %v570
      %681 = vst.msk [vmem:[#allocation2 + $0x40] sm:$0xf] %vm663, %v571
      %682 = vst.msk [vmem:[#allocation2 + $0x44] sm:$0x1] %vm666, %v572
      %683 = vst.msk [vmem:[#allocation2 + $0x48] sm:$0xf] %vm663, %v573
      %684 = vst.msk [vmem:[#allocation2 + $0x4c] sm:$0xf] %vm663, %v574
      %685 = vst.msk [vmem:[#allocation2 + $0x50] sm:$0x1] %vm666, %v575
      %686 = vst.msk [vmem:[#allocation2 + $0x54] sm:$0xf] %vm663, %v576
      %687 = vst.msk [vmem:[#allocation2 + $0x58] sm:$0xf] %vm663, %v577
      %688 = vst.msk [vmem:[#allocation2 + $0x5c] sm:$0x1] %vm666, %v578
      %689 = vst.msk [vmem:[#allocation2 + $0x60] sm:$0xf] %vm663, %v579
      %690 = vst.msk [vmem:[#allocation2 + $0x64] sm:$0xf] %vm663, %v580
      %691 = vst.msk [vmem:[#allocation2 + $0x68] sm:$0x1] %vm666, %v581
      %692 = vst.msk [vmem:[#allocation2 + $0x6c] sm:$0xf] %vm663, %v582
      %693 = vst.msk [vmem:[#allocation2 + $0x70] sm:$0xf] %vm663, %v583
      %694 = vst.msk [vmem:[#allocation2 + $0x74] sm:$0x1] %vm666, %v584
      %695 = vst.msk [vmem:[#allocation2 + $0x78] sm:$0xf] %vm663, %v585
      %696 = vst.msk [vmem:[#allocation2 + $0x7c] sm:$0xf] %vm663, %v586
      %697 = vst.msk [vmem:[#allocation2 + $0x80] sm:$0x1] %vm666, %v587
      %698 = vst.msk [vmem:[#allocation2 + $0x84] sm:$0xf] %vm663, %v588
      %699 = vst.msk [vmem:[#allocation2 + $0x88] sm:$0xf] %vm663, %v589
      %700 = vst.msk [vmem:[#allocation2 + $0x8c] sm:$0x1] %vm666, %v590
      %701 = vst.msk [vmem:[#allocation2 + $0x90] sm:$0xf] %vm663, %v591
      %702 = vst.msk [vmem:[#allocation2 + $0x94] sm:$0xf] %vm663, %v592
      %703 = vst.msk [vmem:[#allocation2 + $0x98] sm:$0x1] %vm666, %v593
      %704 = vst.msk [vmem:[#allocation2 + $0x9c] sm:$0xf] %vm663, %v594
      %705 = vst.msk [vmem:[#allocation2 + $0xa0] sm:$0xf] %vm663, %v595
      %706 = vst.msk [vmem:[#allocation2 + $0xa4] sm:$0x1] %vm666, %v596
      %707 = vst.msk [vmem:[#allocation2 + $0xa8] sm:$0xf] %vm663, %v597
      %708 = vst.msk [vmem:[#allocation2 + $0xac] sm:$0xf] %vm663, %v598
      %709 = vst.msk [vmem:[#allocation2 + $0xb0] sm:$0x1] %vm666, %v599
      %710 = vst.msk [vmem:[#allocation2 + $0xb4] sm:$0xf] %vm663, %v600
      %711 = vst.msk [vmem:[#allocation2 + $0xb8] sm:$0xf] %vm663, %v601
      %712 = vst.msk [vmem:[#allocation2 + $0xbc] sm:$0x1] %vm666, %v602
      %713 = vst.msk [vmem:[#allocation2 + $0xc0] sm:$0xf] %vm663, %v603
      %714 = vst.msk [vmem:[#allocation2 + $0xc4] sm:$0xf] %vm663, %v604
      %715 = vst.msk [vmem:[#allocation2 + $0xc8] sm:$0x1] %vm666, %v605
      %716 = vst.msk [vmem:[#allocation2 + $0xcc] sm:$0xf] %vm663, %v606
      %717 = vst.msk [vmem:[#allocation2 + $0xd0] sm:$0xf] %vm663, %v607
      %718 = vst.msk [vmem:[#allocation2 + $0xd4] sm:$0x1] %vm666, %v608
      %v719 = vld [vmem:[#allocation2] sm:$0xf]
      %v720 = vld [vmem:[#allocation2 + $0x4] sm:$0xf]
      %v721 = vld [vmem:[#allocation2 + $0xc] sm:$0xf]
      %v722 = vld [vmem:[#allocation2 + $0x10] sm:$0xf]
      %v723 = vld [vmem:[#allocation2 + $0x18] sm:$0xf]
      %v724 = vld [vmem:[#allocation2 + $0x1c] sm:$0xf]
      %v725 = vld [vmem:[#allocation2 + $0x24] sm:$0xf]
      %v726 = vld [vmem:[#allocation2 + $0x28] sm:$0xf]
      %v727 = vld [vmem:[#allocation2 + $0x30] sm:$0xf]
      %v728 = vld [vmem:[#allocation2 + $0x34] sm:$0xf]
      %v729 = vld [vmem:[#allocation2 + $0x3c] sm:$0xf]
      %v730 = vld [vmem:[#allocation2 + $0x40] sm:$0xf]
      %v731 = vld [vmem:[#allocation2 + $0x48] sm:$0xf]
      %v732 = vld [vmem:[#allocation2 + $0x4c] sm:$0xf]
      %v733 = vld [vmem:[#allocation2 + $0x54] sm:$0xf]
      %v734 = vld [vmem:[#allocation2 + $0x58] sm:$0xf]
      %v735 = vld [vmem:[#allocation2 + $0x60] sm:$0xf]
      %v736 = vld [vmem:[#allocation2 + $0x64] sm:$0xf]
      %v737 = vld [vmem:[#allocation2 + $0x6c] sm:$0xf]
      %v738 = vld [vmem:[#allocation2 + $0x70] sm:$0xf]
      %v739 = vld [vmem:[#allocation2 + $0x78] sm:$0xf]
      %v740 = vld [vmem:[#allocation2 + $0x7c] sm:$0xf]
      %v741 = vld [vmem:[#allocation2 + $0x84] sm:$0xf]
      %v742 = vld [vmem:[#allocation2 + $0x88] sm:$0xf]
      %v743 = vld [vmem:[#allocation2 + $0x90] sm:$0xf]
      %v744 = vld [vmem:[#allocation2 + $0x94] sm:$0xf]
      %v745 = vld [vmem:[#allocation2 + $0x9c] sm:$0xf]
      %v746 = vld [vmem:[#allocation2 + $0xa0] sm:$0xf]
      %v747 = vld [vmem:[#allocation2 + $0xa8] sm:$0xf]
      %v748 = vld [vmem:[#allocation2 + $0xac] sm:$0xf]
      %v749 = vld [vmem:[#allocation2 + $0xb4] sm:$0xf]
      %v750 = vld [vmem:[#allocation2 + $0xb8] sm:$0xf]
      %v751 = vld [vmem:[%s3] sm:$0x3]
      %v752 = vld [vmem:[#allocation2 + $0x8] sm:$0x1]
      %v753 = vld [vmem:[#allocation2 + $0x14] sm:$0x1]
      %v754 = vld [vmem:[#allocation2 + $0x20] sm:$0x1]
      %v755 = vld [vmem:[#allocation2 + $0x2c] sm:$0x1]
      %v756 = vld [vmem:[#allocation2 + $0x38] sm:$0x1]
      %v757 = vld [vmem:[#allocation2 + $0x44] sm:$0x1]
      %v758 = vld [vmem:[#allocation2 + $0x50] sm:$0x1]
      %v759 = vld [vmem:[#allocation2 + $0x5c] sm:$0x1]
      %v760 = vld [vmem:[#allocation2 + $0x68] sm:$0x1]
      %v761 = vld [vmem:[#allocation2 + $0x74] sm:$0x1]
      %v762 = vld [vmem:[#allocation2 + $0x80] sm:$0x1]
      %v763 = vld [vmem:[#allocation2 + $0x8c] sm:$0x1]
      %v764 = vld [vmem:[#allocation2 + $0x98] sm:$0x1]
      %v765 = vld [vmem:[#allocation2 + $0xa4] sm:$0x1]
      %v766 = vld [vmem:[#allocation2 + $0xb0] sm:$0x1]
      %v767 = vld [vmem:[#allocation2 + $0xbc] sm:$0x1]
      %vm768 = vsmask.f32 3328
      %vm769 = vsmask.f32 7440
      %vm770 = vmor %vm768, %vm769
      %v772 = vshrl.u32 %v719, 16
      %v774 = vrot.slane %v772, 4
      %v775 = vshll.u32 %v719, 16
      %v777 = vrot.slane %v775, 5
      %v778 = vor.u32 %v774, %v777
      %v779 = vrot.slane %v778, 4
      %v781 = vshll.u32 %v720, 16
      %v783 = vrot.slane %v781, 5
      %v784 = vsel %vm770, %v779, %v783
      %v785 = vshrl.u32 %v720, 16
      %v787 = vrot.slane %v785, 4
      %v788 = vor.u32 %v787, %v783
      %v789 = vrot.slane %v788, 4
      %v791 = vshll.u32 %v752, 16
      %v793 = vrot.slane %v791, 5
      %v794 = vsel %vm770, %v789, %v793
      %v796 = vshrl.u32 %v721, 16
      %v798 = vrot.slane %v796, 4
      %v799 = vshll.u32 %v721, 16
      %v801 = vrot.slane %v799, 5
      %v802 = vor.u32 %v798, %v801
      %v803 = vrot.slane %v802, 4
      %v805 = vshll.u32 %v722, 16
      %v807 = vrot.slane %v805, 5
      %v808 = vsel %vm770, %v803, %v807
      %v809 = vshrl.u32 %v722, 16
      %v811 = vrot.slane %v809, 4
      %v812 = vor.u32 %v811, %v807
      %v813 = vrot.slane %v812, 4
      %v815 = vshll.u32 %v753, 16
      %v817 = vrot.slane %v815, 5
      %v818 = vsel %vm770, %v813, %v817
      %v820 = vshrl.u32 %v723, 16
      %v822 = vrot.slane %v820, 4
      %v823 = vshll.u32 %v723, 16
      %v825 = vrot.slane %v823, 5
      %v826 = vor.u32 %v822, %v825
      %v827 = vrot.slane %v826, 4
      %v829 = vshll.u32 %v724, 16
      %v831 = vrot.slane %v829, 5
      %v832 = vsel %vm770, %v827, %v831
      %v833 = vshrl.u32 %v724, 16
      %v835 = vrot.slane %v833, 4
      %v836 = vor.u32 %v835, %v831
      %v837 = vrot.slane %v836, 4
      %v839 = vshll.u32 %v754, 16
      %v841 = vrot.slane %v839, 5
      %v842 = vsel %vm770, %v837, %v841
      %v844 = vshrl.u32 %v725, 16
      %v846 = vrot.slane %v844, 4
      %v847 = vshll.u32 %v725, 16
      %v849 = vrot.slane %v847, 5
      %v850 = vor.u32 %v846, %v849
      %v851 = vrot.slane %v850, 4
      %v853 = vshll.u32 %v726, 16
      %v855 = vrot.slane %v853, 5
      %v856 = vsel %vm770, %v851, %v855
      %v857 = vshrl.u32 %v726, 16
      %v859 = vrot.slane %v857, 4
      %v860 = vor.u32 %v859, %v855
      %v861 = vrot.slane %v860, 4
      %v863 = vshll.u32 %v755, 16
      %v865 = vrot.slane %v863, 5
      %v866 = vsel %vm770, %v861, %v865
      %v868 = vshrl.u32 %v727, 16
      %v870 = vrot.slane %v868, 4
      %v871 = vshll.u32 %v727, 16
      %v873 = vrot.slane %v871, 5
      %v874 = vor.u32 %v870, %v873
      %v875 = vrot.slane %v874, 4
      %v877 = vshll.u32 %v728, 16
      %v879 = vrot.slane %v877, 5
      %v880 = vsel %vm770, %v875, %v879
      %v881 = vshrl.u32 %v728, 16
      %v883 = vrot.slane %v881, 4
      %v884 = vor.u32 %v883, %v879
      %v885 = vrot.slane %v884, 4
      %v887 = vshll.u32 %v756, 16
      %v889 = vrot.slane %v887, 5
      %v890 = vsel %vm770, %v885, %v889
      %v892 = vshrl.u32 %v729, 16
      %v894 = vrot.slane %v892, 4
      %v895 = vshll.u32 %v729, 16
      %v897 = vrot.slane %v895, 5
      %v898 = vor.u32 %v894, %v897
      %v899 = vrot.slane %v898, 4
      %v901 = vshll.u32 %v730, 16
      %v903 = vrot.slane %v901, 5
      %v904 = vsel %vm770, %v899, %v903
      %v905 = vshrl.u32 %v730, 16
      %v907 = vrot.slane %v905, 4
      %v908 = vor.u32 %v907, %v903
      %v909 = vrot.slane %v908, 4
      %v911 = vshll.u32 %v757, 16
      %v913 = vrot.slane %v911, 5
      %v914 = vsel %vm770, %v909, %v913
      %v916 = vshrl.u32 %v731, 16
      %v918 = vrot.slane %v916, 4
      %v919 = vshll.u32 %v731, 16
      %v921 = vrot.slane %v919, 5
      %v922 = vor.u32 %v918, %v921
      %v923 = vrot.slane %v922, 4
      %v925 = vshll.u32 %v732, 16
      %v927 = vrot.slane %v925, 5
      %v928 = vsel %vm770, %v923, %v927
      %v929 = vshrl.u32 %v732, 16
      %v931 = vrot.slane %v929, 4
      %v932 = vor.u32 %v931, %v927
      %v933 = vrot.slane %v932, 4
      %v935 = vshll.u32 %v758, 16
      %v937 = vrot.slane %v935, 5
      %v938 = vsel %vm770, %v933, %v937
      %v940 = vshrl.u32 %v733, 16
      %v942 = vrot.slane %v940, 4
      %v943 = vshll.u32 %v733, 16
      %v945 = vrot.slane %v943, 5
      %v946 = vor.u32 %v942, %v945
      %v947 = vrot.slane %v946, 4
      %v949 = vshll.u32 %v734, 16
      %v951 = vrot.slane %v949, 5
      %v952 = vsel %vm770, %v947, %v951
      %v953 = vshrl.u32 %v734, 16
      %v955 = vrot.slane %v953, 4
      %v956 = vor.u32 %v955, %v951
      %v957 = vrot.slane %v956, 4
      %v959 = vshll.u32 %v759, 16
      %v961 = vrot.slane %v959, 5
      %v962 = vsel %vm770, %v957, %v961
      %v964 = vshrl.u32 %v735, 16
      %v966 = vrot.slane %v964, 4
      %v967 = vshll.u32 %v735, 16
      %v969 = vrot.slane %v967, 5
      %v970 = vor.u32 %v966, %v969
      %v971 = vrot.slane %v970, 4
      %v973 = vshll.u32 %v736, 16
      %v975 = vrot.slane %v973, 5
      %v976 = vsel %vm770, %v971, %v975
      %v977 = vshrl.u32 %v736, 16
      %v979 = vrot.slane %v977, 4
      %v980 = vor.u32 %v979, %v975
      %v981 = vrot.slane %v980, 4
      %v983 = vshll.u32 %v760, 16
      %v985 = vrot.slane %v983, 5
      %v986 = vsel %vm770, %v981, %v985
      %v988 = vshrl.u32 %v737, 16
      %v990 = vrot.slane %v988, 4
      %v991 = vshll.u32 %v737, 16
      %v993 = vrot.slane %v991, 5
      %v994 = vor.u32 %v990, %v993
      %v995 = vrot.slane %v994, 4
      %v997 = vshll.u32 %v738, 16
      %v999 = vrot.slane %v997, 5
      %v1000 = vsel %vm770, %v995, %v999
      %v1001 = vshrl.u32 %v738, 16
      %v1003 = vrot.slane %v1001, 4
      %v1004 = vor.u32 %v1003, %v999
      %v1005 = vrot.slane %v1004, 4
      %v1007 = vshll.u32 %v761, 16
      %v1009 = vrot.slane %v1007, 5
      %v1010 = vsel %vm770, %v1005, %v1009
      %v1012 = vshrl.u32 %v739, 16
      %v1014 = vrot.slane %v1012, 4
      %v1015 = vshll.u32 %v739, 16
      %v1017 = vrot.slane %v1015, 5
      %v1018 = vor.u32 %v1014, %v1017
      %v1019 = vrot.slane %v1018, 4
      %v1021 = vshll.u32 %v740, 16
      %v1023 = vrot.slane %v1021, 5
      %v1024 = vsel %vm770, %v1019, %v1023
      %v1025 = vshrl.u32 %v740, 16
      %v1027 = vrot.slane %v1025, 4
      %v1028 = vor.u32 %v1027, %v1023
      %v1029 = vrot.slane %v1028, 4
      %v1031 = vshll.u32 %v762, 16
      %v1033 = vrot.slane %v1031, 5
      %v1034 = vsel %vm770, %v1029, %v1033
      %v1036 = vshrl.u32 %v741, 16
      %v1038 = vrot.slane %v1036, 4
      %v1039 = vshll.u32 %v741, 16
      %v1041 = vrot.slane %v1039, 5
      %v1042 = vor.u32 %v1038, %v1041
      %v1043 = vrot.slane %v1042, 4
      %v1045 = vshll.u32 %v742, 16
      %v1047 = vrot.slane %v1045, 5
      %v1048 = vsel %vm770, %v1043, %v1047
      %v1049 = vshrl.u32 %v742, 16
      %v1051 = vrot.slane %v1049, 4
      %v1052 = vor.u32 %v1051, %v1047
      %v1053 = vrot.slane %v1052, 4
      %v1055 = vshll.u32 %v763, 16
      %v1057 = vrot.slane %v1055, 5
      %v1058 = vsel %vm770, %v1053, %v1057
      %v1060 = vshrl.u32 %v743, 16
      %v1062 = vrot.slane %v1060, 4
      %v1063 = vshll.u32 %v743, 16
      %v1065 = vrot.slane %v1063, 5
      %v1066 = vor.u32 %v1062, %v1065
      %v1067 = vrot.slane %v1066, 4
      %v1069 = vshll.u32 %v744, 16
      %v1071 = vrot.slane %v1069, 5
      %v1072 = vsel %vm770, %v1067, %v1071
      %v1073 = vshrl.u32 %v744, 16
      %v1075 = vrot.slane %v1073, 4
      %v1076 = vor.u32 %v1075, %v1071
      %v1077 = vrot.slane %v1076, 4
      %v1079 = vshll.u32 %v764, 16
      %v1081 = vrot.slane %v1079, 5
      %v1082 = vsel %vm770, %v1077, %v1081
      %v1084 = vshrl.u32 %v745, 16
      %v1086 = vrot.slane %v1084, 4
      %v1087 = vshll.u32 %v745, 16
      %v1089 = vrot.slane %v1087, 5
      %v1090 = vor.u32 %v1086, %v1089
      %v1091 = vrot.slane %v1090, 4
      %v1093 = vshll.u32 %v746, 16
      %v1095 = vrot.slane %v1093, 5
      %v1096 = vsel %vm770, %v1091, %v1095
      %v1097 = vshrl.u32 %v746, 16
      %v1099 = vrot.slane %v1097, 4
      %v1100 = vor.u32 %v1099, %v1095
      %v1101 = vrot.slane %v1100, 4
      %v1103 = vshll.u32 %v765, 16
      %v1105 = vrot.slane %v1103, 5
      %v1106 = vsel %vm770, %v1101, %v1105
      %v1108 = vshrl.u32 %v747, 16
      %v1110 = vrot.slane %v1108, 4
      %v1111 = vshll.u32 %v747, 16
      %v1113 = vrot.slane %v1111, 5
      %v1114 = vor.u32 %v1110, %v1113
      %v1115 = vrot.slane %v1114, 4
      %v1117 = vshll.u32 %v748, 16
      %v1119 = vrot.slane %v1117, 5
      %v1120 = vsel %vm770, %v1115, %v1119
      %v1121 = vshrl.u32 %v748, 16
      %v1123 = vrot.slane %v1121, 4
      %v1124 = vor.u32 %v1123, %v1119
      %v1125 = vrot.slane %v1124, 4
      %v1127 = vshll.u32 %v766, 16
      %v1129 = vrot.slane %v1127, 5
      %v1130 = vsel %vm770, %v1125, %v1129
      %v1132 = vshrl.u32 %v749, 16
      %v1134 = vrot.slane %v1132, 4
      %v1135 = vshll.u32 %v749, 16
      %v1137 = vrot.slane %v1135, 5
      %v1138 = vor.u32 %v1134, %v1137
      %v1139 = vrot.slane %v1138, 4
      %v1141 = vshll.u32 %v750, 16
      %v1143 = vrot.slane %v1141, 5
      %v1144 = vsel %vm770, %v1139, %v1143
      %v1145 = vshrl.u32 %v750, 16
      %v1147 = vrot.slane %v1145, 4
      %v1148 = vor.u32 %v1147, %v1143
      %v1149 = vrot.slane %v1148, 4
      %v1151 = vshll.u32 %v767, 16
      %v1153 = vrot.slane %v1151, 5
      %v1154 = vsel %vm770, %v1149, %v1153
      %s1155 = scalar_lea.vmem %s3, 2
      %v1156 = vld [vmem:[%s1155] sm:$0x3]
      %v1157 = vunpack.c.l.b16 %v784
      %v1158 = vunpack.c.l.b16 %v794
      %v1159 = vunpack.c.l.b16 %v808
      %v1160 = vunpack.c.l.b16 %v818
      %v1161 = vunpack.c.l.b16 %v832
      %v1162 = vunpack.c.l.b16 %v842
      %v1163 = vunpack.c.l.b16 %v856
      %v1164 = vunpack.c.l.b16 %v866
      %v1165 = vunpack.c.l.b16 %v880
      %v1166 = vunpack.c.l.b16 %v890
      %v1167 = vunpack.c.l.b16 %v904
      %v1168 = vunpack.c.l.b16 %v914
      %v1169 = vunpack.c.l.b16 %v928
      %v1170 = vunpack.c.l.b16 %v938
      %v1171 = vunpack.c.l.b16 %v952
      %v1172 = vunpack.c.l.b16 %v962
      %v1173 = vunpack.c.l.b16 %v976
      %v1174 = vunpack.c.l.b16 %v986
      %v1175 = vunpack.c.l.b16 %v1000
      %v1176 = vunpack.c.l.b16 %v1010
      %v1177 = vunpack.c.l.b16 %v1024
      %v1178 = vunpack.c.l.b16 %v1034
      %v1179 = vunpack.c.l.b16 %v1048
      %v1180 = vunpack.c.l.b16 %v1058
      %v1181 = vunpack.c.l.b16 %v1072
      %v1182 = vunpack.c.l.b16 %v1082
      %v1183 = vunpack.c.l.b16 %v1096
      %v1184 = vunpack.c.l.b16 %v1106
      %v1185 = vunpack.c.l.b16 %v1120
      %v1186 = vunpack.c.l.b16 %v1130
      %v1187 = vunpack.c.l.b16 %v1144
      %v1188 = vunpack.c.l.b16 %v1154
      %v1189 = vpack.c.b16 %v1158, %v1157
      %v1190 = vpack.c.b16 %v1160, %v1159
      %v1191 = vpack.c.b16 %v1162, %v1161
      %v1192 = vpack.c.b16 %v1164, %v1163
      %v1193 = vpack.c.b16 %v1166, %v1165
      %v1194 = vpack.c.b16 %v1168, %v1167
      %v1195 = vpack.c.b16 %v1170, %v1169
      %v1196 = vpack.c.b16 %v1172, %v1171
      %v1197 = vpack.c.b16 %v1174, %v1173
      %v1198 = vpack.c.b16 %v1176, %v1175
      %v1199 = vpack.c.b16 %v1178, %v1177
      %v1200 = vpack.c.b16 %v1180, %v1179
      %v1201 = vpack.c.b16 %v1182, %v1181
      %v1202 = vpack.c.b16 %v1184, %v1183
      %v1203 = vpack.c.b16 %v1186, %v1185
      %v1204 = vpack.c.b16 %v1188, %v1187
      %vm1205 = vcmask 31744
      %v1207 = vsel %vm1205, %v1189, 0
      %v1210 = vsel %vm1205, %v1190, 0
      %v1213 = vsel %vm1205, %v1191, 0
      %v1216 = vsel %vm1205, %v1192, 0
      %v1219 = vsel %vm1205, %v1193, 0
      %v1222 = vsel %vm1205, %v1194, 0
      %v1225 = vsel %vm1205, %v1195, 0
      %v1228 = vsel %vm1205, %v1196, 0
      %v1231 = vsel %vm1205, %v1197, 0
      %v1234 = vsel %vm1205, %v1198, 0
      %v1237 = vsel %vm1205, %v1199, 0
      %v1240 = vsel %vm1205, %v1200, 0
      %v1243 = vsel %vm1205, %v1201, 0
      %v1246 = vsel %vm1205, %v1202, 0
      %v1249 = vsel %vm1205, %v1203, 0
      %v1252 = vsel %vm1205, %v1204, 0
      %vm1254 = vcmask 1041408
      %v1256 = vsel %vm1254, %v1156, 0
      %1258 = vmatprep.subr.bf16.mxu0 0
      %1259 = vmatpush1.bf16.msra.mxu0 0
      %1260 = vmatprep.subr.bf16.mxu0 0
      %1261 = vmatpush1.bf16.msra.mxu0 0
      %1262 = vmatprep.subr.bf16.mxu0 0
      %1263 = vmatpush1.bf16.msra.mxu0 0
      %1264 = vmatprep.subr.bf16.mxu0 0
      %1265 = vmatpush1.bf16.msra.mxu0 0
      %1266 = vmatprep.subr.bf16.mxu0 0
      %1267 = vmatpush1.bf16.msra.mxu0 0
      %1268 = vmatprep.subr.bf16.mxu0 0
      %1269 = vmatpush1.bf16.msra.mxu0 0
      %1270 = vmatprep.subr.bf16.mxu0 0
      %1271 = vmatpush1.bf16.msra.mxu0 0
      %1272 = vmatprep.subr.bf16.mxu0 0
      %1273 = vmatpush1.bf16.msra.mxu0 %v1256
      %1274 = vmatprep.subr.bf16.mxu0 0
      %1275 = vmatpush2.bf16.msra.mxu0 0
      %1276 = vmatprep.subr.bf16.mxu0 0
      %1277 = vmatpush2.bf16.msra.mxu0 0
      %1278 = vmatprep.subr.bf16.mxu0 0
      %1279 = vmatpush2.bf16.msra.mxu0 0
      %1280 = vmatprep.subr.bf16.mxu0 0
      %1281 = vmatpush2.bf16.msra.mxu0 0
      %1282 = vmatprep.subr.bf16.mxu0 0
      %1283 = vmatpush2.bf16.msra.mxu0 0
      %1284 = vmatprep.subr.bf16.mxu0 0
      %1285 = vmatpush2.bf16.msra.mxu0 0
      %1286 = vmatprep.subr.bf16.mxu0 0
      %1287 = vmatpush2.bf16.msra.mxu0 0
      %1288 = vmatprep.subr.bf16.mxu0 0
      %1289 = vmatpush2.bf16.msra.mxu0 0
      %1290 = vmatprep.mubr.bf16.mxu0 0
      %1291 = vmatmul.mubr.bf16.gmra.mxu0 %v1207
      %v1292 = vpop.f32.mrf.mxu0
      %v1293 = vadd.f32 0.0, %v1292
      %v1294 = vpop.f32.mrf.mxu0
      %v1295 = vpop.f32.mrf.mxu0
      %v1296 = vadd.f32 0.0, %v1295
      %v1297 = vpop.f32.mrf.mxu0
      %1298 = vmatprep.mubr.bf16.mxu0 0
      %1299 = vmatmul.mubr.bf16.gmra.mxu0 %v1210
      %v1300 = vpop.f32.mrf.mxu0
      %v1301 = vadd.f32 0.0, %v1300
      %v1302 = vpop.f32.mrf.mxu0
      %v1303 = vpop.f32.mrf.mxu0
      %v1304 = vadd.f32 0.0, %v1303
      %v1305 = vpop.f32.mrf.mxu0
      %1306 = vmatprep.mubr.bf16.mxu0 0
      %1307 = vmatmul.mubr.bf16.gmra.mxu0 %v1213
      %v1308 = vpop.f32.mrf.mxu0
      %v1309 = vadd.f32 0.0, %v1308
      %v1310 = vpop.f32.mrf.mxu0
      %v1311 = vpop.f32.mrf.mxu0
      %v1312 = vadd.f32 0.0, %v1311
      %v1313 = vpop.f32.mrf.mxu0
      %1314 = vmatprep.mubr.bf16.mxu0 0
      %1315 = vmatmul.mubr.bf16.gmra.mxu0 %v1216
      %v1316 = vpop.f32.mrf.mxu0
      %v1317 = vadd.f32 0.0, %v1316
      %v1318 = vpop.f32.mrf.mxu0
      %v1319 = vpop.f32.mrf.mxu0
      %v1320 = vadd.f32 0.0, %v1319
      %v1321 = vpop.f32.mrf.mxu0
      %1322 = vmatprep.mubr.bf16.mxu0 0
      %1323 = vmatmul.mubr.bf16.gmra.mxu0 %v1219
      %v1324 = vpop.f32.mrf.mxu0
      %v1325 = vadd.f32 0.0, %v1324
      %v1326 = vpop.f32.mrf.mxu0
      %v1327 = vpop.f32.mrf.mxu0
      %v1328 = vadd.f32 0.0, %v1327
      %v1329 = vpop.f32.mrf.mxu0
      %1330 = vmatprep.mubr.bf16.mxu0 0
      %1331 = vmatmul.mubr.bf16.gmra.mxu0 %v1222
      %v1332 = vpop.f32.mrf.mxu0
      %v1333 = vadd.f32 0.0, %v1332
      %v1334 = vpop.f32.mrf.mxu0
      %v1335 = vpop.f32.mrf.mxu0
      %v1336 = vadd.f32 0.0, %v1335
      %v1337 = vpop.f32.mrf.mxu0
      %1338 = vmatprep.mubr.bf16.mxu0 0
      %1339 = vmatmul.mubr.bf16.gmra.mxu0 %v1225
      %v1340 = vpop.f32.mrf.mxu0
      %v1341 = vadd.f32 0.0, %v1340
      %v1342 = vpop.f32.mrf.mxu0
      %v1343 = vpop.f32.mrf.mxu0
      %v1344 = vadd.f32 0.0, %v1343
      %v1345 = vpop.f32.mrf.mxu0
      %1346 = vmatprep.mubr.bf16.mxu0 0
      %1347 = vmatmul.mubr.bf16.gmra.mxu0 %v1228
      %v1348 = vpop.f32.mrf.mxu0
      %v1349 = vadd.f32 0.0, %v1348
      %v1350 = vpop.f32.mrf.mxu0
      %v1351 = vpop.f32.mrf.mxu0
      %v1352 = vadd.f32 0.0, %v1351
      %v1353 = vpop.f32.mrf.mxu0
      %1354 = vmatprep.mubr.bf16.mxu0 0
      %1355 = vmatmul.mubr.bf16.gmra.mxu0 %v1231
      %v1356 = vpop.f32.mrf.mxu0
      %v1357 = vadd.f32 0.0, %v1356
      %v1358 = vpop.f32.mrf.mxu0
      %v1359 = vpop.f32.mrf.mxu0
      %v1360 = vadd.f32 0.0, %v1359
      %v1361 = vpop.f32.mrf.mxu0
      %1362 = vmatprep.mubr.bf16.mxu0 0
      %1363 = vmatmul.mubr.bf16.gmra.mxu0 %v1234
      %v1364 = vpop.f32.mrf.mxu0
      %v1365 = vadd.f32 0.0, %v1364
      %v1366 = vpop.f32.mrf.mxu0
      %v1367 = vpop.f32.mrf.mxu0
      %v1368 = vadd.f32 0.0, %v1367
      %v1369 = vpop.f32.mrf.mxu0
      %1370 = vmatprep.mubr.bf16.mxu0 0
      %1371 = vmatmul.mubr.bf16.gmra.mxu0 %v1237
      %v1372 = vpop.f32.mrf.mxu0
      %v1373 = vadd.f32 0.0, %v1372
      %v1374 = vpop.f32.mrf.mxu0
      %v1375 = vpop.f32.mrf.mxu0
      %v1376 = vadd.f32 0.0, %v1375
      %v1377 = vpop.f32.mrf.mxu0
      %1378 = vmatprep.mubr.bf16.mxu0 0
      %1379 = vmatmul.mubr.bf16.gmra.mxu0 %v1240
      %v1380 = vpop.f32.mrf.mxu0
      %v1381 = vadd.f32 0.0, %v1380
      %v1382 = vpop.f32.mrf.mxu0
      %v1383 = vpop.f32.mrf.mxu0
      %v1384 = vadd.f32 0.0, %v1383
      %v1385 = vpop.f32.mrf.mxu0
      %1386 = vmatprep.mubr.bf16.mxu0 0
      %1387 = vmatmul.mubr.bf16.gmra.mxu0 %v1243
      %v1388 = vpop.f32.mrf.mxu0
      %v1389 = vadd.f32 0.0, %v1388
      %v1390 = vpop.f32.mrf.mxu0
      %v1391 = vpop.f32.mrf.mxu0
      %v1392 = vadd.f32 0.0, %v1391
      %v1393 = vpop.f32.mrf.mxu0
      %1394 = vmatprep.mubr.bf16.mxu0 0
      %1395 = vmatmul.mubr.bf16.gmra.mxu0 %v1246
      %v1396 = vpop.f32.mrf.mxu0
      %v1397 = vadd.f32 0.0, %v1396
      %v1398 = vpop.f32.mrf.mxu0
      %v1399 = vpop.f32.mrf.mxu0
      %v1400 = vadd.f32 0.0, %v1399
      %v1401 = vpop.f32.mrf.mxu0
      %1402 = vmatprep.mubr.bf16.mxu0 0
      %1403 = vmatmul.mubr.bf16.gmra.mxu0 %v1249
      %v1404 = vpop.f32.mrf.mxu0
      %v1405 = vadd.f32 0.0, %v1404
      %v1406 = vpop.f32.mrf.mxu0
      %v1407 = vpop.f32.mrf.mxu0
      %v1408 = vadd.f32 0.0, %v1407
      %v1409 = vpop.f32.mrf.mxu0
      %1410 = vmatprep.mubr.bf16.mxu0 0
      %1411 = vmatmul.mubr.bf16.gmra.mxu0 %v1252
      %v1412 = vpop.f32.mrf.mxu0
      %v1413 = vadd.f32 0.0, %v1412
      %v1414 = vpop.f32.mrf.mxu0
      %v1415 = vpop.f32.mrf.mxu0
      %v1416 = vadd.f32 0.0, %v1415
      %v1417 = vpop.f32.mrf.mxu0
      %1418 = vdwg.mxu0
      %v1451 = vunpack.c.l.b16 %v719
      %v1452 = vunpack.c.l.b16 %v720
      %v1453 = vunpack.c.l.b16 %v721
      %v1454 = vunpack.c.l.b16 %v722
      %v1455 = vunpack.c.l.b16 %v723
      %v1456 = vunpack.c.l.b16 %v724
      %v1457 = vunpack.c.l.b16 %v725
      %v1458 = vunpack.c.l.b16 %v726
      %v1459 = vunpack.c.l.b16 %v727
      %v1460 = vunpack.c.l.b16 %v728
      %v1461 = vunpack.c.l.b16 %v729
      %v1462 = vunpack.c.l.b16 %v730
      %v1463 = vunpack.c.l.b16 %v731
      %v1464 = vunpack.c.l.b16 %v732
      %v1465 = vunpack.c.l.b16 %v733
      %v1466 = vunpack.c.l.b16 %v734
      %v1467 = vunpack.c.l.b16 %v735
      %v1468 = vunpack.c.l.b16 %v736
      %v1469 = vunpack.c.l.b16 %v737
      %v1470 = vunpack.c.l.b16 %v738
      %v1471 = vunpack.c.l.b16 %v739
      %v1472 = vunpack.c.l.b16 %v740
      %v1473 = vunpack.c.l.b16 %v741
      %v1474 = vunpack.c.l.b16 %v742
      %v1475 = vunpack.c.l.b16 %v743
      %v1476 = vunpack.c.l.b16 %v744
      %v1477 = vunpack.c.l.b16 %v745
      %v1478 = vunpack.c.l.b16 %v746
      %v1479 = vunpack.c.l.b16 %v747
      %v1480 = vunpack.c.l.b16 %v748
      %v1481 = vunpack.c.l.b16 %v749
      %v1482 = vunpack.c.l.b16 %v750
      %v1483 = vpack.c.b16 %v1452, %v1451
      %v1484 = vpack.c.b16 %v1454, %v1453
      %v1485 = vpack.c.b16 %v1456, %v1455
      %v1486 = vpack.c.b16 %v1458, %v1457
      %v1487 = vpack.c.b16 %v1460, %v1459
      %v1488 = vpack.c.b16 %v1462, %v1461
      %v1489 = vpack.c.b16 %v1464, %v1463
      %v1490 = vpack.c.b16 %v1466, %v1465
      %v1491 = vpack.c.b16 %v1468, %v1467
      %v1492 = vpack.c.b16 %v1470, %v1469
      %v1493 = vpack.c.b16 %v1472, %v1471
      %v1494 = vpack.c.b16 %v1474, %v1473
      %v1495 = vpack.c.b16 %v1476, %v1475
      %v1496 = vpack.c.b16 %v1478, %v1477
      %v1497 = vpack.c.b16 %v1480, %v1479
      %v1498 = vpack.c.b16 %v1482, %v1481
      %v1500 = vsel %vm1205, %v1483, 0
      %v1503 = vsel %vm1205, %v1484, 0
      %v1506 = vsel %vm1205, %v1485, 0
      %v1509 = vsel %vm1205, %v1486, 0
      %v1512 = vsel %vm1205, %v1487, 0
      %v1515 = vsel %vm1205, %v1488, 0
      %v1518 = vsel %vm1205, %v1489, 0
      %v1521 = vsel %vm1205, %v1490, 0
      %v1524 = vsel %vm1205, %v1491, 0
      %v1527 = vsel %vm1205, %v1492, 0
      %v1530 = vsel %vm1205, %v1493, 0
      %v1533 = vsel %vm1205, %v1494, 0
      %v1536 = vsel %vm1205, %v1495, 0
      %v1539 = vsel %vm1205, %v1496, 0
      %v1542 = vsel %vm1205, %v1497, 0
      %v1545 = vsel %vm1205, %v1498, 0
      %v1548 = vsel %vm1254, %v751, 0
      %1550 = vmatprep.subr.bf16.mxu0 0
      %1551 = vmatpush1.bf16.msra.mxu0 0
      %1552 = vmatprep.subr.bf16.mxu0 0
      %1553 = vmatpush1.bf16.msra.mxu0 0
      %1554 = vmatprep.subr.bf16.mxu0 0
      %1555 = vmatpush1.bf16.msra.mxu0 0
      %1556 = vmatprep.subr.bf16.mxu0 0
      %1557 = vmatpush1.bf16.msra.mxu0 0
      %1558 = vmatprep.subr.bf16.mxu0 0
      %1559 = vmatpush1.bf16.msra.mxu0 0
      %1560 = vmatprep.subr.bf16.mxu0 0
      %1561 = vmatpush1.bf16.msra.mxu0 0
      %1562 = vmatprep.subr.bf16.mxu0 0
      %1563 = vmatpush1.bf16.msra.mxu0 0
      %1564 = vmatprep.subr.bf16.mxu0 0
      %1565 = vmatpush1.bf16.msra.mxu0 %v1548
      %1566 = vmatprep.subr.bf16.mxu0 0
      %1567 = vmatpush2.bf16.msra.mxu0 0
      %1568 = vmatprep.subr.bf16.mxu0 0
      %1569 = vmatpush2.bf16.msra.mxu0 0
      %1570 = vmatprep.subr.bf16.mxu0 0
      %1571 = vmatpush2.bf16.msra.mxu0 0
      %1572 = vmatprep.subr.bf16.mxu0 0
      %1573 = vmatpush2.bf16.msra.mxu0 0
      %1574 = vmatprep.subr.bf16.mxu0 0
      %1575 = vmatpush2.bf16.msra.mxu0 0
      %1576 = vmatprep.subr.bf16.mxu0 0
      %1577 = vmatpush2.bf16.msra.mxu0 0
      %1578 = vmatprep.subr.bf16.mxu0 0
      %1579 = vmatpush2.bf16.msra.mxu0 0
      %1580 = vmatprep.subr.bf16.mxu0 0
      %1581 = vmatpush2.bf16.msra.mxu0 0
      %1582 = vmatprep.mubr.bf16.mxu0 0
      %1583 = vmatmul.mubr.bf16.gmra.mxu0 %v1500
      %v1584 = vpop.f32.mrf.mxu0
      %v1585 = vadd.f32 %v1293, %v1584
      %v1586 = vpop.f32.mrf.mxu0
      %v1587 = vpop.f32.mrf.mxu0
      %v1588 = vadd.f32 %v1296, %v1587
      %v1589 = vpop.f32.mrf.mxu0
      %1590 = vmatprep.mubr.bf16.mxu0 0
      %1591 = vmatmul.mubr.bf16.gmra.mxu0 %v1503
      %v1592 = vpop.f32.mrf.mxu0
      %v1593 = vadd.f32 %v1301, %v1592
      %v1594 = vpop.f32.mrf.mxu0
      %v1595 = vpop.f32.mrf.mxu0
      %v1596 = vadd.f32 %v1304, %v1595
      %v1597 = vpop.f32.mrf.mxu0
      %1598 = vmatprep.mubr.bf16.mxu0 0
      %1599 = vmatmul.mubr.bf16.gmra.mxu0 %v1506
      %v1600 = vpop.f32.mrf.mxu0
      %v1601 = vadd.f32 %v1309, %v1600
      %v1602 = vpop.f32.mrf.mxu0
      %v1603 = vpop.f32.mrf.mxu0
      %v1604 = vadd.f32 %v1312, %v1603
      %v1605 = vpop.f32.mrf.mxu0
      %1606 = vmatprep.mubr.bf16.mxu0 0
      %1607 = vmatmul.mubr.bf16.gmra.mxu0 %v1509
      %v1608 = vpop.f32.mrf.mxu0
      %v1609 = vadd.f32 %v1317, %v1608
      %v1610 = vpop.f32.mrf.mxu0
      %v1611 = vpop.f32.mrf.mxu0
      %v1612 = vadd.f32 %v1320, %v1611
      %v1613 = vpop.f32.mrf.mxu0
      %1614 = vmatprep.mubr.bf16.mxu0 0
      %1615 = vmatmul.mubr.bf16.gmra.mxu0 %v1512
      %v1616 = vpop.f32.mrf.mxu0
      %v1617 = vadd.f32 %v1325, %v1616
      %v1618 = vpop.f32.mrf.mxu0
      %v1619 = vpop.f32.mrf.mxu0
      %v1620 = vadd.f32 %v1328, %v1619
      %v1621 = vpop.f32.mrf.mxu0
      %1622 = vmatprep.mubr.bf16.mxu0 0
      %1623 = vmatmul.mubr.bf16.gmra.mxu0 %v1515
      %v1624 = vpop.f32.mrf.mxu0
      %v1625 = vadd.f32 %v1333, %v1624
      %v1626 = vpop.f32.mrf.mxu0
      %v1627 = vpop.f32.mrf.mxu0
      %v1628 = vadd.f32 %v1336, %v1627
      %v1629 = vpop.f32.mrf.mxu0
      %1630 = vmatprep.mubr.bf16.mxu0 0
      %1631 = vmatmul.mubr.bf16.gmra.mxu0 %v1518
      %v1632 = vpop.f32.mrf.mxu0
      %v1633 = vadd.f32 %v1341, %v1632
      %v1634 = vpop.f32.mrf.mxu0
      %v1635 = vpop.f32.mrf.mxu0
      %v1636 = vadd.f32 %v1344, %v1635
      %v1637 = vpop.f32.mrf.mxu0
      %1638 = vmatprep.mubr.bf16.mxu0 0
      %1639 = vmatmul.mubr.bf16.gmra.mxu0 %v1521
      %v1640 = vpop.f32.mrf.mxu0
      %v1641 = vadd.f32 %v1349, %v1640
      %v1642 = vpop.f32.mrf.mxu0
      %v1643 = vpop.f32.mrf.mxu0
      %v1644 = vadd.f32 %v1352, %v1643
      %v1645 = vpop.f32.mrf.mxu0
      %1646 = vmatprep.mubr.bf16.mxu0 0
      %1647 = vmatmul.mubr.bf16.gmra.mxu0 %v1524
      %v1648 = vpop.f32.mrf.mxu0
      %v1649 = vadd.f32 %v1357, %v1648
      %v1650 = vpop.f32.mrf.mxu0
      %v1651 = vpop.f32.mrf.mxu0
      %v1652 = vadd.f32 %v1360, %v1651
      %v1653 = vpop.f32.mrf.mxu0
      %1654 = vmatprep.mubr.bf16.mxu0 0
      %1655 = vmatmul.mubr.bf16.gmra.mxu0 %v1527
      %v1656 = vpop.f32.mrf.mxu0
      %v1657 = vadd.f32 %v1365, %v1656
      %v1658 = vpop.f32.mrf.mxu0
      %v1659 = vpop.f32.mrf.mxu0
      %v1660 = vadd.f32 %v1368, %v1659
      %v1661 = vpop.f32.mrf.mxu0
      %1662 = vmatprep.mubr.bf16.mxu0 0
      %1663 = vmatmul.mubr.bf16.gmra.mxu0 %v1530
      %v1664 = vpop.f32.mrf.mxu0
      %v1665 = vadd.f32 %v1373, %v1664
      %v1666 = vpop.f32.mrf.mxu0
      %v1667 = vpop.f32.mrf.mxu0
      %v1668 = vadd.f32 %v1376, %v1667
      %v1669 = vpop.f32.mrf.mxu0
      %1670 = vmatprep.mubr.bf16.mxu0 0
      %1671 = vmatmul.mubr.bf16.gmra.mxu0 %v1533
      %v1672 = vpop.f32.mrf.mxu0
      %v1673 = vadd.f32 %v1381, %v1672
      %v1674 = vpop.f32.mrf.mxu0
      %v1675 = vpop.f32.mrf.mxu0
      %v1676 = vadd.f32 %v1384, %v1675
      %v1677 = vpop.f32.mrf.mxu0
      %1678 = vmatprep.mubr.bf16.mxu0 0
      %1679 = vmatmul.mubr.bf16.gmra.mxu0 %v1536
      %v1680 = vpop.f32.mrf.mxu0
      %v1681 = vadd.f32 %v1389, %v1680
      %v1682 = vpop.f32.mrf.mxu0
      %v1683 = vpop.f32.mrf.mxu0
      %v1684 = vadd.f32 %v1392, %v1683
      %v1685 = vpop.f32.mrf.mxu0
      %1686 = vmatprep.mubr.bf16.mxu0 0
      %1687 = vmatmul.mubr.bf16.gmra.mxu0 %v1539
      %v1688 = vpop.f32.mrf.mxu0
      %v1689 = vadd.f32 %v1397, %v1688
      %v1690 = vpop.f32.mrf.mxu0
      %v1691 = vpop.f32.mrf.mxu0
      %v1692 = vadd.f32 %v1400, %v1691
      %v1693 = vpop.f32.mrf.mxu0
      %1694 = vmatprep.mubr.bf16.mxu0 0
      %1695 = vmatmul.mubr.bf16.gmra.mxu0 %v1542
      %v1696 = vpop.f32.mrf.mxu0
      %v1697 = vadd.f32 %v1405, %v1696
      %v1698 = vpop.f32.mrf.mxu0
      %v1699 = vpop.f32.mrf.mxu0
      %v1700 = vadd.f32 %v1408, %v1699
      %v1701 = vpop.f32.mrf.mxu0
      %1702 = vmatprep.mubr.bf16.mxu0 0
      %1703 = vmatmul.mubr.bf16.gmra.mxu0 %v1545
      %v1704 = vpop.f32.mrf.mxu0
      %v1705 = vadd.f32 %v1413, %v1704
      %v1706 = vpop.f32.mrf.mxu0
      %v1707 = vpop.f32.mrf.mxu0
      %v1708 = vadd.f32 %v1416, %v1707
      %v1709 = vpop.f32.mrf.mxu0
      %1710 = vdwg.mxu0
      %v1711 = vld [vmem:[#allocation2] sm:$0xe]
      %v1712 = vld [vmem:[#allocation2 + $0xc] sm:$0xe]
      %v1713 = vld [vmem:[#allocation2 + $0x18] sm:$0xe]
      %v1714 = vld [vmem:[#allocation2 + $0x24] sm:$0xe]
      %v1715 = vld [vmem:[#allocation2 + $0x30] sm:$0xe]
      %v1716 = vld [vmem:[#allocation2 + $0x3c] sm:$0xe]
      %v1717 = vld [vmem:[#allocation2 + $0x48] sm:$0xe]
      %v1718 = vld [vmem:[#allocation2 + $0x54] sm:$0xe]
      %v1719 = vld [vmem:[#allocation2 + $0x60] sm:$0xe]
      %v1720 = vld [vmem:[#allocation2 + $0x6c] sm:$0xe]
      %v1721 = vld [vmem:[#allocation2 + $0x78] sm:$0xe]
      %v1722 = vld [vmem:[#allocation2 + $0x84] sm:$0xe]
      %v1723 = vld [vmem:[#allocation2 + $0x90] sm:$0xe]
      %v1724 = vld [vmem:[#allocation2 + $0x9c] sm:$0xe]
      %v1725 = vld [vmem:[#allocation2 + $0xa8] sm:$0xe]
      %v1726 = vld [vmem:[#allocation2 + $0xb4] sm:$0xe]
      %vm1759 = vcmask 1042432
      %vm1760 = vcmask 1046532
      %vm1761 = vmor %vm1759, %vm1760
      %v1762 = vrot.slane %v1711, 5
      %v1763 = vrot.slane %v1762, 4
      %v1764 = vrot.slane %v720, 5
      %v1765 = vsel %vm1761, %v1763, %v1764
      %v1766 = vrot.slane %v1764, 4
      %v1767 = vrot.slane %v752, 5
      %v1768 = vsel %vm1761, %v1766, %v1767
      %v1769 = vrot.slane %v1712, 5
      %v1770 = vrot.slane %v1769, 4
      %v1771 = vrot.slane %v722, 5
      %v1772 = vsel %vm1761, %v1770, %v1771
      %v1773 = vrot.slane %v1771, 4
      %v1774 = vrot.slane %v753, 5
      %v1775 = vsel %vm1761, %v1773, %v1774
      %v1776 = vrot.slane %v1713, 5
      %v1777 = vrot.slane %v1776, 4
      %v1778 = vrot.slane %v724, 5
      %v1779 = vsel %vm1761, %v1777, %v1778
      %v1780 = vrot.slane %v1778, 4
      %v1781 = vrot.slane %v754, 5
      %v1782 = vsel %vm1761, %v1780, %v1781
      %v1783 = vrot.slane %v1714, 5
      %v1784 = vrot.slane %v1783, 4
      %v1785 = vrot.slane %v726, 5
      %v1786 = vsel %vm1761, %v1784, %v1785
      %v1787 = vrot.slane %v1785, 4
      %v1788 = vrot.slane %v755, 5
      %v1789 = vsel %vm1761, %v1787, %v1788
      %v1790 = vrot.slane %v1715, 5
      %v1791 = vrot.slane %v1790, 4
      %v1792 = vrot.slane %v728, 5
      %v1793 = vsel %vm1761, %v1791, %v1792
      %v1794 = vrot.slane %v1792, 4
      %v1795 = vrot.slane %v756, 5
      %v1796 = vsel %vm1761, %v1794, %v1795
      %v1797 = vrot.slane %v1716, 5
      %v1798 = vrot.slane %v1797, 4
      %v1799 = vrot.slane %v730, 5
      %v1800 = vsel %vm1761, %v1798, %v1799
      %v1801 = vrot.slane %v1799, 4
      %v1802 = vrot.slane %v757, 5
      %v1803 = vsel %vm1761, %v1801, %v1802
      %v1804 = vrot.slane %v1717, 5
      %v1805 = vrot.slane %v1804, 4
      %v1806 = vrot.slane %v732, 5
      %v1807 = vsel %vm1761, %v1805, %v1806
      %v1808 = vrot.slane %v1806, 4
      %v1809 = vrot.slane %v758, 5
      %v1810 = vsel %vm1761, %v1808, %v1809
      %v1811 = vrot.slane %v1718, 5
      %v1812 = vrot.slane %v1811, 4
      %v1813 = vrot.slane %v734, 5
      %v1814 = vsel %vm1761, %v1812, %v1813
      %v1815 = vrot.slane %v1813, 4
      %v1816 = vrot.slane %v759, 5
      %v1817 = vsel %vm1761, %v1815, %v1816
      %v1818 = vrot.slane %v1719, 5
      %v1819 = vrot.slane %v1818, 4
      %v1820 = vrot.slane %v736, 5
      %v1821 = vsel %vm1761, %v1819, %v1820
      %v1822 = vrot.slane %v1820, 4
      %v1823 = vrot.slane %v760, 5
      %v1824 = vsel %vm1761, %v1822, %v1823
      %v1825 = vrot.slane %v1720, 5
      %v1826 = vrot.slane %v1825, 4
      %v1827 = vrot.slane %v738, 5
      %v1828 = vsel %vm1761, %v1826, %v1827
      %v1829 = vrot.slane %v1827, 4
      %v1830 = vrot.slane %v761, 5
      %v1831 = vsel %vm1761, %v1829, %v1830
      %v1832 = vrot.slane %v1721, 5
      %v1833 = vrot.slane %v1832, 4
      %v1834 = vrot.slane %v740, 5
      %v1835 = vsel %vm1761, %v1833, %v1834
      %v1836 = vrot.slane %v1834, 4
      %v1837 = vrot.slane %v762, 5
      %v1838 = vsel %vm1761, %v1836, %v1837
      %v1839 = vrot.slane %v1722, 5
      %v1840 = vrot.slane %v1839, 4
      %v1841 = vrot.slane %v742, 5
      %v1842 = vsel %vm1761, %v1840, %v1841
      %v1843 = vrot.slane %v1841, 4
      %v1844 = vrot.slane %v763, 5
      %v1845 = vsel %vm1761, %v1843, %v1844
      %v1846 = vrot.slane %v1723, 5
      %v1847 = vrot.slane %v1846, 4
      %v1848 = vrot.slane %v744, 5
      %v1849 = vsel %vm1761, %v1847, %v1848
      %v1850 = vrot.slane %v1848, 4
      %v1851 = vrot.slane %v764, 5
      %v1852 = vsel %vm1761, %v1850, %v1851
      %v1853 = vrot.slane %v1724, 5
      %v1854 = vrot.slane %v1853, 4
      %v1855 = vrot.slane %v746, 5
      %v1856 = vsel %vm1761, %v1854, %v1855
      %v1857 = vrot.slane %v1855, 4
      %v1858 = vrot.slane %v765, 5
      %v1859 = vsel %vm1761, %v1857, %v1858
      %v1860 = vrot.slane %v1725, 5
      %v1861 = vrot.slane %v1860, 4
      %v1862 = vrot.slane %v748, 5
      %v1863 = vsel %vm1761, %v1861, %v1862
      %v1864 = vrot.slane %v1862, 4
      %v1865 = vrot.slane %v766, 5
      %v1866 = vsel %vm1761, %v1864, %v1865
      %v1867 = vrot.slane %v1726, 5
      %v1868 = vrot.slane %v1867, 4
      %v1869 = vrot.slane %v750, 5
      %v1870 = vsel %vm1761, %v1868, %v1869
      %v1871 = vrot.slane %v1869, 4
      %v1872 = vrot.slane %v767, 5
      %v1873 = vsel %vm1761, %v1871, %v1872
      %s1874 = scalar_lea.vmem %s3, 4
      %v1875 = vld [vmem:[%s1874] sm:$0x3]
      %v1876 = vunpack.c.l.b16 %v1765
      %v1877 = vunpack.c.l.b16 %v1768
      %v1878 = vunpack.c.l.b16 %v1772
      %v1879 = vunpack.c.l.b16 %v1775
      %v1880 = vunpack.c.l.b16 %v1779
      %v1881 = vunpack.c.l.b16 %v1782
      %v1882 = vunpack.c.l.b16 %v1786
      %v1883 = vunpack.c.l.b16 %v1789
      %v1884 = vunpack.c.l.b16 %v1793
      %v1885 = vunpack.c.l.b16 %v1796
      %v1886 = vunpack.c.l.b16 %v1800
      %v1887 = vunpack.c.l.b16 %v1803
      %v1888 = vunpack.c.l.b16 %v1807
      %v1889 = vunpack.c.l.b16 %v1810
      %v1890 = vunpack.c.l.b16 %v1814
      %v1891 = vunpack.c.l.b16 %v1817
      %v1892 = vunpack.c.l.b16 %v1821
      %v1893 = vunpack.c.l.b16 %v1824
      %v1894 = vunpack.c.l.b16 %v1828
      %v1895 = vunpack.c.l.b16 %v1831
      %v1896 = vunpack.c.l.b16 %v1835
      %v1897 = vunpack.c.l.b16 %v1838
      %v1898 = vunpack.c.l.b16 %v1842
      %v1899 = vunpack.c.l.b16 %v1845
      %v1900 = vunpack.c.l.b16 %v1849
      %v1901 = vunpack.c.l.b16 %v1852
      %v1902 = vunpack.c.l.b16 %v1856
      %v1903 = vunpack.c.l.b16 %v1859
      %v1904 = vunpack.c.l.b16 %v1863
      %v1905 = vunpack.c.l.b16 %v1866
      %v1906 = vunpack.c.l.b16 %v1870
      %v1907 = vunpack.c.l.b16 %v1873
      %v1908 = vpack.c.b16 %v1877, %v1876
      %v1909 = vpack.c.b16 %v1879, %v1878
      %v1910 = vpack.c.b16 %v1881, %v1880
      %v1911 = vpack.c.b16 %v1883, %v1882
      %v1912 = vpack.c.b16 %v1885, %v1884
      %v1913 = vpack.c.b16 %v1887, %v1886
      %v1914 = vpack.c.b16 %v1889, %v1888
      %v1915 = vpack.c.b16 %v1891, %v1890
      %v1916 = vpack.c.b16 %v1893, %v1892
      %v1917 = vpack.c.b16 %v1895, %v1894
      %v1918 = vpack.c.b16 %v1897, %v1896
      %v1919 = vpack.c.b16 %v1899, %v1898
      %v1920 = vpack.c.b16 %v1901, %v1900
      %v1921 = vpack.c.b16 %v1903, %v1902
      %v1922 = vpack.c.b16 %v1905, %v1904
      %v1923 = vpack.c.b16 %v1907, %v1906
      %v1925 = vsel %vm1205, %v1908, 0
      %v1928 = vsel %vm1205, %v1909, 0
      %v1931 = vsel %vm1205, %v1910, 0
      %v1934 = vsel %vm1205, %v1911, 0
      %v1937 = vsel %vm1205, %v1912, 0
      %v1940 = vsel %vm1205, %v1913, 0
      %v1943 = vsel %vm1205, %v1914, 0
      %v1946 = vsel %vm1205, %v1915, 0
      %v1949 = vsel %vm1205, %v1916, 0
      %v1952 = vsel %vm1205, %v1917, 0
      %v1955 = vsel %vm1205, %v1918, 0
      %v1958 = vsel %vm1205, %v1919, 0
      %v1961 = vsel %vm1205, %v1920, 0
      %v1964 = vsel %vm1205, %v1921, 0
      %v1967 = vsel %vm1205, %v1922, 0
      %v1970 = vsel %vm1205, %v1923, 0
      %v1973 = vsel %vm1254, %v1875, 0
      %1975 = vmatprep.subr.bf16.mxu0 0
      %1976 = vmatpush1.bf16.msra.mxu0 0
      %1977 = vmatprep.subr.bf16.mxu0 0
      %1978 = vmatpush1.bf16.msra.mxu0 0
      %1979 = vmatprep.subr.bf16.mxu0 0
      %1980 = vmatpush1.bf16.msra.mxu0 0
      %1981 = vmatprep.subr.bf16.mxu0 0
      %1982 = vmatpush1.bf16.msra.mxu0 0
      %1983 = vmatprep.subr.bf16.mxu0 0
      %1984 = vmatpush1.bf16.msra.mxu0 0
      %1985 = vmatprep.subr.bf16.mxu0 0
      %1986 = vmatpush1.bf16.msra.mxu0 0
      %1987 = vmatprep.subr.bf16.mxu0 0
      %1988 = vmatpush1.bf16.msra.mxu0 0
      %1989 = vmatprep.subr.bf16.mxu0 0
      %1990 = vmatpush1.bf16.msra.mxu0 %v1973
      %1991 = vmatprep.subr.bf16.mxu0 0
      %1992 = vmatpush2.bf16.msra.mxu0 0
      %1993 = vmatprep.subr.bf16.mxu0 0
      %1994 = vmatpush2.bf16.msra.mxu0 0
      %1995 = vmatprep.subr.bf16.mxu0 0
      %1996 = vmatpush2.bf16.msra.mxu0 0
      %1997 = vmatprep.subr.bf16.mxu0 0
      %1998 = vmatpush2.bf16.msra.mxu0 0
      %1999 = vmatprep.subr.bf16.mxu0 0
      %2000 = vmatpush2.bf16.msra.mxu0 0
      %2001 = vmatprep.subr.bf16.mxu0 0
      %2002 = vmatpush2.bf16.msra.mxu0 0
      %2003 = vmatprep.subr.bf16.mxu0 0
      %2004 = vmatpush2.bf16.msra.mxu0 0
      %2005 = vmatprep.subr.bf16.mxu0 0
      %2006 = vmatpush2.bf16.msra.mxu0 0
      %2007 = vmatprep.mubr.bf16.mxu0 0
      %2008 = vmatmul.mubr.bf16.gmra.mxu0 %v1925
      %v2009 = vpop.f32.mrf.mxu0
      %v2010 = vadd.f32 0.0, %v2009
      %v2011 = vpop.f32.mrf.mxu0
      %v2012 = vpop.f32.mrf.mxu0
      %v2013 = vadd.f32 0.0, %v2012
      %v2014 = vpop.f32.mrf.mxu0
      %2015 = vmatprep.mubr.bf16.mxu0 0
      %2016 = vmatmul.mubr.bf16.gmra.mxu0 %v1928
      %v2017 = vpop.f32.mrf.mxu0
      %v2018 = vadd.f32 0.0, %v2017
      %v2019 = vpop.f32.mrf.mxu0
      %v2020 = vpop.f32.mrf.mxu0
      %v2021 = vadd.f32 0.0, %v2020
      %v2022 = vpop.f32.mrf.mxu0
      %2023 = vmatprep.mubr.bf16.mxu0 0
      %2024 = vmatmul.mubr.bf16.gmra.mxu0 %v1931
      %v2025 = vpop.f32.mrf.mxu0
      %v2026 = vadd.f32 0.0, %v2025
      %v2027 = vpop.f32.mrf.mxu0
      %v2028 = vpop.f32.mrf.mxu0
      %v2029 = vadd.f32 0.0, %v2028
      %v2030 = vpop.f32.mrf.mxu0
      %2031 = vmatprep.mubr.bf16.mxu0 0
      %2032 = vmatmul.mubr.bf16.gmra.mxu0 %v1934
      %v2033 = vpop.f32.mrf.mxu0
      %v2034 = vadd.f32 0.0, %v2033
      %v2035 = vpop.f32.mrf.mxu0
      %v2036 = vpop.f32.mrf.mxu0
      %v2037 = vadd.f32 0.0, %v2036
      %v2038 = vpop.f32.mrf.mxu0
      %2039 = vmatprep.mubr.bf16.mxu0 0
      %2040 = vmatmul.mubr.bf16.gmra.mxu0 %v1937
      %v2041 = vpop.f32.mrf.mxu0
      %v2042 = vadd.f32 0.0, %v2041
      %v2043 = vpop.f32.mrf.mxu0
      %v2044 = vpop.f32.mrf.mxu0
      %v2045 = vadd.f32 0.0, %v2044
      %v2046 = vpop.f32.mrf.mxu0
      %2047 = vmatprep.mubr.bf16.mxu0 0
      %2048 = vmatmul.mubr.bf16.gmra.mxu0 %v1940
      %v2049 = vpop.f32.mrf.mxu0
      %v2050 = vadd.f32 0.0, %v2049
      %v2051 = vpop.f32.mrf.mxu0
      %v2052 = vpop.f32.mrf.mxu0
      %v2053 = vadd.f32 0.0, %v2052
      %v2054 = vpop.f32.mrf.mxu0
      %2055 = vmatprep.mubr.bf16.mxu0 0
      %2056 = vmatmul.mubr.bf16.gmra.mxu0 %v1943
      %v2057 = vpop.f32.mrf.mxu0
      %v2058 = vadd.f32 0.0, %v2057
      %v2059 = vpop.f32.mrf.mxu0
      %v2060 = vpop.f32.mrf.mxu0
      %v2061 = vadd.f32 0.0, %v2060
      %v2062 = vpop.f32.mrf.mxu0
      %2063 = vmatprep.mubr.bf16.mxu0 0
      %2064 = vmatmul.mubr.bf16.gmra.mxu0 %v1946
      %v2065 = vpop.f32.mrf.mxu0
      %v2066 = vadd.f32 0.0, %v2065
      %v2067 = vpop.f32.mrf.mxu0
      %v2068 = vpop.f32.mrf.mxu0
      %v2069 = vadd.f32 0.0, %v2068
      %v2070 = vpop.f32.mrf.mxu0
      %2071 = vmatprep.mubr.bf16.mxu0 0
      %2072 = vmatmul.mubr.bf16.gmra.mxu0 %v1949
      %v2073 = vpop.f32.mrf.mxu0
      %v2074 = vadd.f32 0.0, %v2073
      %v2075 = vpop.f32.mrf.mxu0
      %v2076 = vpop.f32.mrf.mxu0
      %v2077 = vadd.f32 0.0, %v2076
      %v2078 = vpop.f32.mrf.mxu0
      %2079 = vmatprep.mubr.bf16.mxu0 0
      %2080 = vmatmul.mubr.bf16.gmra.mxu0 %v1952
      %v2081 = vpop.f32.mrf.mxu0
      %v2082 = vadd.f32 0.0, %v2081
      %v2083 = vpop.f32.mrf.mxu0
      %v2084 = vpop.f32.mrf.mxu0
      %v2085 = vadd.f32 0.0, %v2084
      %v2086 = vpop.f32.mrf.mxu0
      %2087 = vmatprep.mubr.bf16.mxu0 0
      %2088 = vmatmul.mubr.bf16.gmra.mxu0 %v1955
      %v2089 = vpop.f32.mrf.mxu0
      %v2090 = vadd.f32 0.0, %v2089
      %v2091 = vpop.f32.mrf.mxu0
      %v2092 = vpop.f32.mrf.mxu0
      %v2093 = vadd.f32 0.0, %v2092
      %v2094 = vpop.f32.mrf.mxu0
      %2095 = vmatprep.mubr.bf16.mxu0 0
      %2096 = vmatmul.mubr.bf16.gmra.mxu0 %v1958
      %v2097 = vpop.f32.mrf.mxu0
      %v2098 = vadd.f32 0.0, %v2097
      %v2099 = vpop.f32.mrf.mxu0
      %v2100 = vpop.f32.mrf.mxu0
      %v2101 = vadd.f32 0.0, %v2100
      %v2102 = vpop.f32.mrf.mxu0
      %2103 = vmatprep.mubr.bf16.mxu0 0
      %2104 = vmatmul.mubr.bf16.gmra.mxu0 %v1961
      %v2105 = vpop.f32.mrf.mxu0
      %v2106 = vadd.f32 0.0, %v2105
      %v2107 = vpop.f32.mrf.mxu0
      %v2108 = vpop.f32.mrf.mxu0
      %v2109 = vadd.f32 0.0, %v2108
      %v2110 = vpop.f32.mrf.mxu0
      %2111 = vmatprep.mubr.bf16.mxu0 0
      %2112 = vmatmul.mubr.bf16.gmra.mxu0 %v1964
      %v2113 = vpop.f32.mrf.mxu0
      %v2114 = vadd.f32 0.0, %v2113
      %v2115 = vpop.f32.mrf.mxu0
      %v2116 = vpop.f32.mrf.mxu0
      %v2117 = vadd.f32 0.0, %v2116
      %v2118 = vpop.f32.mrf.mxu0
      %2119 = vmatprep.mubr.bf16.mxu0 0
      %2120 = vmatmul.mubr.bf16.gmra.mxu0 %v1967
      %v2121 = vpop.f32.mrf.mxu0
      %v2122 = vadd.f32 0.0, %v2121
      %v2123 = vpop.f32.mrf.mxu0
      %v2124 = vpop.f32.mrf.mxu0
      %v2125 = vadd.f32 0.0, %v2124
      %v2126 = vpop.f32.mrf.mxu0
      %2127 = vmatprep.mubr.bf16.mxu0 0
      %2128 = vmatmul.mubr.bf16.gmra.mxu0 %v1970
      %v2129 = vpop.f32.mrf.mxu0
      %v2130 = vadd.f32 0.0, %v2129
      %v2131 = vpop.f32.mrf.mxu0
      %v2132 = vpop.f32.mrf.mxu0
      %v2133 = vadd.f32 0.0, %v2132
      %v2134 = vpop.f32.mrf.mxu0
      %2135 = vdwg.mxu0
      %v2136 = vadd.f32 %v1585, %v2010
      %v2137 = vadd.f32 %v1588, %v2013
      %v2138 = vadd.f32 %v1593, %v2018
      %v2139 = vadd.f32 %v1596, %v2021
      %v2140 = vadd.f32 %v1601, %v2026
      %v2141 = vadd.f32 %v1604, %v2029
      %v2142 = vadd.f32 %v1609, %v2034
      %v2143 = vadd.f32 %v1612, %v2037
      %v2144 = vadd.f32 %v1617, %v2042
      %v2145 = vadd.f32 %v1620, %v2045
      %v2146 = vadd.f32 %v1625, %v2050
      %v2147 = vadd.f32 %v1628, %v2053
      %v2148 = vadd.f32 %v1633, %v2058
      %v2149 = vadd.f32 %v1636, %v2061
      %v2150 = vadd.f32 %v1641, %v2066
      %v2151 = vadd.f32 %v1644, %v2069
      %v2152 = vadd.f32 %v1649, %v2074
      %v2153 = vadd.f32 %v1652, %v2077
      %v2154 = vadd.f32 %v1657, %v2082
      %v2155 = vadd.f32 %v1660, %v2085
      %v2156 = vadd.f32 %v1665, %v2090
      %v2157 = vadd.f32 %v1668, %v2093
      %v2158 = vadd.f32 %v1673, %v2098
      %v2159 = vadd.f32 %v1676, %v2101
      %v2160 = vadd.f32 %v1681, %v2106
      %v2161 = vadd.f32 %v1684, %v2109
      %v2162 = vadd.f32 %v1689, %v2114
      %v2163 = vadd.f32 %v1692, %v2117
      %v2164 = vadd.f32 %v1697, %v2122
      %v2165 = vadd.f32 %v1700, %v2125
      %v2166 = vadd.f32 %v1705, %v2130
      %v2167 = vadd.f32 %v1708, %v2133
      %s2168 = scalar_lea.vmem [#allocation2], 12
      %v2169 = vld [vmem:[%s2168] sm:$0xf]
      %v2170 = vld [vmem:[%s2168 + $0x4] sm:$0xf]
      %v2171 = vld [vmem:[%s2168 + $0xc] sm:$0xf]
      %v2172 = vld [vmem:[%s2168 + $0x10] sm:$0xf]
      %v2173 = vld [vmem:[%s2168 + $0x18] sm:$0xf]
      %v2174 = vld [vmem:[%s2168 + $0x1c] sm:$0xf]
      %v2175 = vld [vmem:[%s2168 + $0x24] sm:$0xf]
      %v2176 = vld [vmem:[%s2168 + $0x28] sm:$0xf]
      %v2177 = vld [vmem:[%s2168 + $0x30] sm:$0xf]
      %v2178 = vld [vmem:[%s2168 + $0x34] sm:$0xf]
      %v2179 = vld [vmem:[%s2168 + $0x3c] sm:$0xf]
      %v2180 = vld [vmem:[%s2168 + $0x40] sm:$0xf]
      %v2181 = vld [vmem:[%s2168 + $0x48] sm:$0xf]
      %v2182 = vld [vmem:[%s2168 + $0x4c] sm:$0xf]
      %v2183 = vld [vmem:[%s2168 + $0x54] sm:$0xf]
      %v2184 = vld [vmem:[%s2168 + $0x58] sm:$0xf]
      %v2185 = vld [vmem:[%s2168 + $0x60] sm:$0xf]
      %v2186 = vld [vmem:[%s2168 + $0x64] sm:$0xf]
      %v2187 = vld [vmem:[%s2168 + $0x6c] sm:$0xf]
      %v2188 = vld [vmem:[%s2168 + $0x70] sm:$0xf]
      %v2189 = vld [vmem:[%s2168 + $0x78] sm:$0xf]
      %v2190 = vld [vmem:[%s2168 + $0x7c] sm:$0xf]
      %v2191 = vld [vmem:[%s2168 + $0x84] sm:$0xf]
      %v2192 = vld [vmem:[%s2168 + $0x88] sm:$0xf]
      %v2193 = vld [vmem:[%s2168 + $0x90] sm:$0xf]
      %v2194 = vld [vmem:[%s2168 + $0x94] sm:$0xf]
      %v2195 = vld [vmem:[%s2168 + $0x9c] sm:$0xf]
      %v2196 = vld [vmem:[%s2168 + $0xa0] sm:$0xf]
      %v2197 = vld [vmem:[%s2168 + $0xa8] sm:$0xf]
      %v2198 = vld [vmem:[%s2168 + $0xac] sm:$0xf]
      %v2199 = vld [vmem:[%s2168 + $0xb4] sm:$0xf]
      %v2200 = vld [vmem:[%s2168 + $0xb8] sm:$0xf]
      %s2201 = scalar_lea.vmem %s3, 6
      %v2202 = vld [vmem:[%s2201] sm:$0x3]
      %v2235 = vunpack.c.l.b16 %v2169
      %v2236 = vunpack.c.l.b16 %v2170
      %v2237 = vunpack.c.l.b16 %v2171
      %v2238 = vunpack.c.l.b16 %v2172
      %v2239 = vunpack.c.l.b16 %v2173
      %v2240 = vunpack.c.l.b16 %v2174
      %v2241 = vunpack.c.l.b16 %v2175
      %v2242 = vunpack.c.l.b16 %v2176
      %v2243 = vunpack.c.l.b16 %v2177
      %v2244 = vunpack.c.l.b16 %v2178
      %v2245 = vunpack.c.l.b16 %v2179
      %v2246 = vunpack.c.l.b16 %v2180
      %v2247 = vunpack.c.l.b16 %v2181
      %v2248 = vunpack.c.l.b16 %v2182
      %v2249 = vunpack.c.l.b16 %v2183
      %v2250 = vunpack.c.l.b16 %v2184
      %v2251 = vunpack.c.l.b16 %v2185
      %v2252 = vunpack.c.l.b16 %v2186
      %v2253 = vunpack.c.l.b16 %v2187
      %v2254 = vunpack.c.l.b16 %v2188
      %v2255 = vunpack.c.l.b16 %v2189
      %v2256 = vunpack.c.l.b16 %v2190
      %v2257 = vunpack.c.l.b16 %v2191
      %v2258 = vunpack.c.l.b16 %v2192
      %v2259 = vunpack.c.l.b16 %v2193
      %v2260 = vunpack.c.l.b16 %v2194
      %v2261 = vunpack.c.l.b16 %v2195
      %v2262 = vunpack.c.l.b16 %v2196
      %v2263 = vunpack.c.l.b16 %v2197
      %v2264 = vunpack.c.l.b16 %v2198
      %v2265 = vunpack.c.l.b16 %v2199
      %v2266 = vunpack.c.l.b16 %v2200
      %v2267 = vpack.c.b16 %v2236, %v2235
      %v2268 = vpack.c.b16 %v2238, %v2237
      %v2269 = vpack.c.b16 %v2240, %v2239
      %v2270 = vpack.c.b16 %v2242, %v2241
      %v2271 = vpack.c.b16 %v2244, %v2243
      %v2272 = vpack.c.b16 %v2246, %v2245
      %v2273 = vpack.c.b16 %v2248, %v2247
      %v2274 = vpack.c.b16 %v2250, %v2249
      %v2275 = vpack.c.b16 %v2252, %v2251
      %v2276 = vpack.c.b16 %v2254, %v2253
      %v2277 = vpack.c.b16 %v2256, %v2255
      %v2278 = vpack.c.b16 %v2258, %v2257
      %v2279 = vpack.c.b16 %v2260, %v2259
      %v2280 = vpack.c.b16 %v2262, %v2261
      %v2281 = vpack.c.b16 %v2264, %v2263
      %v2282 = vpack.c.b16 %v2266, %v2265
      %v2284 = vsel %vm1205, %v2267, 0
      %v2287 = vsel %vm1205, %v2268, 0
      %v2290 = vsel %vm1205, %v2269, 0
      %v2293 = vsel %vm1205, %v2270, 0
      %v2296 = vsel %vm1205, %v2271, 0
      %v2299 = vsel %vm1205, %v2272, 0
      %v2302 = vsel %vm1205, %v2273, 0
      %v2305 = vsel %vm1205, %v2274, 0
      %v2308 = vsel %vm1205, %v2275, 0
      %v2311 = vsel %vm1205, %v2276, 0
      %v2314 = vsel %vm1205, %v2277, 0
      %v2317 = vsel %vm1205, %v2278, 0
      %v2320 = vsel %vm1205, %v2279, 0
      %v2323 = vsel %vm1205, %v2280, 0
      %v2326 = vsel %vm1205, %v2281, 0
      %v2329 = vsel %vm1205, %v2282, 0
      %v2332 = vsel %vm1254, %v2202, 0
      %2334 = vmatprep.subr.bf16.mxu0 0
      %2335 = vmatpush1.bf16.msra.mxu0 0
      %2336 = vmatprep.subr.bf16.mxu0 0
      %2337 = vmatpush1.bf16.msra.mxu0 0
      %2338 = vmatprep.subr.bf16.mxu0 0
      %2339 = vmatpush1.bf16.msra.mxu0 0
      %2340 = vmatprep.subr.bf16.mxu0 0
      %2341 = vmatpush1.bf16.msra.mxu0 0
      %2342 = vmatprep.subr.bf16.mxu0 0
      %2343 = vmatpush1.bf16.msra.mxu0 0
      %2344 = vmatprep.subr.bf16.mxu0 0
      %2345 = vmatpush1.bf16.msra.mxu0 0
      %2346 = vmatprep.subr.bf16.mxu0 0
      %2347 = vmatpush1.bf16.msra.mxu0 0
      %2348 = vmatprep.subr.bf16.mxu0 0
      %2349 = vmatpush1.bf16.msra.mxu0 %v2332
      %2350 = vmatprep.subr.bf16.mxu0 0
      %2351 = vmatpush2.bf16.msra.mxu0 0
      %2352 = vmatprep.subr.bf16.mxu0 0
      %2353 = vmatpush2.bf16.msra.mxu0 0
      %2354 = vmatprep.subr.bf16.mxu0 0
      %2355 = vmatpush2.bf16.msra.mxu0 0
      %2356 = vmatprep.subr.bf16.mxu0 0
      %2357 = vmatpush2.bf16.msra.mxu0 0
      %2358 = vmatprep.subr.bf16.mxu0 0
      %2359 = vmatpush2.bf16.msra.mxu0 0
      %2360 = vmatprep.subr.bf16.mxu0 0
      %2361 = vmatpush2.bf16.msra.mxu0 0
      %2362 = vmatprep.subr.bf16.mxu0 0
      %2363 = vmatpush2.bf16.msra.mxu0 0
      %2364 = vmatprep.subr.bf16.mxu0 0
      %2365 = vmatpush2.bf16.msra.mxu0 0
      %2366 = vmatprep.mubr.bf16.mxu0 0
      %2367 = vmatmul.mubr.bf16.gmra.mxu0 %v2284
      %v2368 = vpop.f32.mrf.mxu0
      %v2369 = vadd.f32 0.0, %v2368
      %v2370 = vpop.f32.mrf.mxu0
      %v2371 = vpop.f32.mrf.mxu0
      %v2372 = vadd.f32 0.0, %v2371
      %v2373 = vpop.f32.mrf.mxu0
      %2374 = vmatprep.mubr.bf16.mxu0 0
      %2375 = vmatmul.mubr.bf16.gmra.mxu0 %v2287
      %v2376 = vpop.f32.mrf.mxu0
      %v2377 = vadd.f32 0.0, %v2376
      %v2378 = vpop.f32.mrf.mxu0
      %v2379 = vpop.f32.mrf.mxu0
      %v2380 = vadd.f32 0.0, %v2379
      %v2381 = vpop.f32.mrf.mxu0
      %2382 = vmatprep.mubr.bf16.mxu0 0
      %2383 = vmatmul.mubr.bf16.gmra.mxu0 %v2290
      %v2384 = vpop.f32.mrf.mxu0
      %v2385 = vadd.f32 0.0, %v2384
      %v2386 = vpop.f32.mrf.mxu0
      %v2387 = vpop.f32.mrf.mxu0
      %v2388 = vadd.f32 0.0, %v2387
      %v2389 = vpop.f32.mrf.mxu0
      %2390 = vmatprep.mubr.bf16.mxu0 0
      %2391 = vmatmul.mubr.bf16.gmra.mxu0 %v2293
      %v2392 = vpop.f32.mrf.mxu0
      %v2393 = vadd.f32 0.0, %v2392
      %v2394 = vpop.f32.mrf.mxu0
      %v2395 = vpop.f32.mrf.mxu0
      %v2396 = vadd.f32 0.0, %v2395
      %v2397 = vpop.f32.mrf.mxu0
      %2398 = vmatprep.mubr.bf16.mxu0 0
      %2399 = vmatmul.mubr.bf16.gmra.mxu0 %v2296
      %v2400 = vpop.f32.mrf.mxu0
      %v2401 = vadd.f32 0.0, %v2400
      %v2402 = vpop.f32.mrf.mxu0
      %v2403 = vpop.f32.mrf.mxu0
      %v2404 = vadd.f32 0.0, %v2403
      %v2405 = vpop.f32.mrf.mxu0
      %2406 = vmatprep.mubr.bf16.mxu0 0
      %2407 = vmatmul.mubr.bf16.gmra.mxu0 %v2299
      %v2408 = vpop.f32.mrf.mxu0
      %v2409 = vadd.f32 0.0, %v2408
      %v2410 = vpop.f32.mrf.mxu0
      %v2411 = vpop.f32.mrf.mxu0
      %v2412 = vadd.f32 0.0, %v2411
      %v2413 = vpop.f32.mrf.mxu0
      %2414 = vmatprep.mubr.bf16.mxu0 0
      %2415 = vmatmul.mubr.bf16.gmra.mxu0 %v2302
      %v2416 = vpop.f32.mrf.mxu0
      %v2417 = vadd.f32 0.0, %v2416
      %v2418 = vpop.f32.mrf.mxu0
      %v2419 = vpop.f32.mrf.mxu0
      %v2420 = vadd.f32 0.0, %v2419
      %v2421 = vpop.f32.mrf.mxu0
      %2422 = vmatprep.mubr.bf16.mxu0 0
      %2423 = vmatmul.mubr.bf16.gmra.mxu0 %v2305
      %v2424 = vpop.f32.mrf.mxu0
      %v2425 = vadd.f32 0.0, %v2424
      %v2426 = vpop.f32.mrf.mxu0
      %v2427 = vpop.f32.mrf.mxu0
      %v2428 = vadd.f32 0.0, %v2427
      %v2429 = vpop.f32.mrf.mxu0
      %2430 = vmatprep.mubr.bf16.mxu0 0
      %2431 = vmatmul.mubr.bf16.gmra.mxu0 %v2308
      %v2432 = vpop.f32.mrf.mxu0
      %v2433 = vadd.f32 0.0, %v2432
      %v2434 = vpop.f32.mrf.mxu0
      %v2435 = vpop.f32.mrf.mxu0
      %v2436 = vadd.f32 0.0, %v2435
      %v2437 = vpop.f32.mrf.mxu0
      %2438 = vmatprep.mubr.bf16.mxu0 0
      %2439 = vmatmul.mubr.bf16.gmra.mxu0 %v2311
      %v2440 = vpop.f32.mrf.mxu0
      %v2441 = vadd.f32 0.0, %v2440
      %v2442 = vpop.f32.mrf.mxu0
      %v2443 = vpop.f32.mrf.mxu0
      %v2444 = vadd.f32 0.0, %v2443
      %v2445 = vpop.f32.mrf.mxu0
      %2446 = vmatprep.mubr.bf16.mxu0 0
      %2447 = vmatmul.mubr.bf16.gmra.mxu0 %v2314
      %v2448 = vpop.f32.mrf.mxu0
      %v2449 = vadd.f32 0.0, %v2448
      %v2450 = vpop.f32.mrf.mxu0
      %v2451 = vpop.f32.mrf.mxu0
      %v2452 = vadd.f32 0.0, %v2451
      %v2453 = vpop.f32.mrf.mxu0
      %2454 = vmatprep.mubr.bf16.mxu0 0
      %2455 = vmatmul.mubr.bf16.gmra.mxu0 %v2317
      %v2456 = vpop.f32.mrf.mxu0
      %v2457 = vadd.f32 0.0, %v2456
      %v2458 = vpop.f32.mrf.mxu0
      %v2459 = vpop.f32.mrf.mxu0
      %v2460 = vadd.f32 0.0, %v2459
      %v2461 = vpop.f32.mrf.mxu0
      %2462 = vmatprep.mubr.bf16.mxu0 0
      %2463 = vmatmul.mubr.bf16.gmra.mxu0 %v2320
      %v2464 = vpop.f32.mrf.mxu0
      %v2465 = vadd.f32 0.0, %v2464
      %v2466 = vpop.f32.mrf.mxu0
      %v2467 = vpop.f32.mrf.mxu0
      %v2468 = vadd.f32 0.0, %v2467
      %v2469 = vpop.f32.mrf.mxu0
      %2470 = vmatprep.mubr.bf16.mxu0 0
      %2471 = vmatmul.mubr.bf16.gmra.mxu0 %v2323
      %v2472 = vpop.f32.mrf.mxu0
      %v2473 = vadd.f32 0.0, %v2472
      %v2474 = vpop.f32.mrf.mxu0
      %v2475 = vpop.f32.mrf.mxu0
      %v2476 = vadd.f32 0.0, %v2475
      %v2477 = vpop.f32.mrf.mxu0
      %2478 = vmatprep.mubr.bf16.mxu0 0
      %2479 = vmatmul.mubr.bf16.gmra.mxu0 %v2326
      %v2480 = vpop.f32.mrf.mxu0
      %v2481 = vadd.f32 0.0, %v2480
      %v2482 = vpop.f32.mrf.mxu0
      %v2483 = vpop.f32.mrf.mxu0
      %v2484 = vadd.f32 0.0, %v2483
      %v2485 = vpop.f32.mrf.mxu0
      %2486 = vmatprep.mubr.bf16.mxu0 0
      %2487 = vmatmul.mubr.bf16.gmra.mxu0 %v2329
      %v2488 = vpop.f32.mrf.mxu0
      %v2489 = vadd.f32 0.0, %v2488
      %v2490 = vpop.f32.mrf.mxu0
      %v2491 = vpop.f32.mrf.mxu0
      %v2492 = vadd.f32 0.0, %v2491
      %v2493 = vpop.f32.mrf.mxu0
      %2494 = vdwg.mxu0
      %v2495 = vadd.f32 %v2136, %v2369
      %v2496 = vadd.f32 %v2137, %v2372
      %v2497 = vadd.f32 %v2138, %v2377
      %v2498 = vadd.f32 %v2139, %v2380
      %v2499 = vadd.f32 %v2140, %v2385
      %v2500 = vadd.f32 %v2141, %v2388
      %v2501 = vadd.f32 %v2142, %v2393
      %v2502 = vadd.f32 %v2143, %v2396
      %v2503 = vadd.f32 %v2144, %v2401
      %v2504 = vadd.f32 %v2145, %v2404
      %v2505 = vadd.f32 %v2146, %v2409
      %v2506 = vadd.f32 %v2147, %v2412
      %v2507 = vadd.f32 %v2148, %v2417
      %v2508 = vadd.f32 %v2149, %v2420
      %v2509 = vadd.f32 %v2150, %v2425
      %v2510 = vadd.f32 %v2151, %v2428
      %v2511 = vadd.f32 %v2152, %v2433
      %v2512 = vadd.f32 %v2153, %v2436
      %v2513 = vadd.f32 %v2154, %v2441
      %v2514 = vadd.f32 %v2155, %v2444
      %v2515 = vadd.f32 %v2156, %v2449
      %v2516 = vadd.f32 %v2157, %v2452
      %v2517 = vadd.f32 %v2158, %v2457
      %v2518 = vadd.f32 %v2159, %v2460
      %v2519 = vadd.f32 %v2160, %v2465
      %v2520 = vadd.f32 %v2161, %v2468
      %v2521 = vadd.f32 %v2162, %v2473
      %v2522 = vadd.f32 %v2163, %v2476
      %v2523 = vadd.f32 %v2164, %v2481
      %v2524 = vadd.f32 %v2165, %v2484
      %v2525 = vadd.f32 %v2166, %v2489
      %v2526 = vadd.f32 %v2167, %v2492
      %v2527 = vld [vmem:[%s2168] sm:$0xf]
      %v2528 = vld [vmem:[%s2168 + $0x4] sm:$0xf]
      %v2529 = vld [vmem:[%s2168 + $0x8] sm:$0x1]
      %v2530 = vld [vmem:[%s2168 + $0xc] sm:$0xf]
      %v2531 = vld [vmem:[%s2168 + $0x10] sm:$0xf]
      %v2532 = vld [vmem:[%s2168 + $0x14] sm:$0x1]
      %v2533 = vld [vmem:[%s2168 + $0x18] sm:$0xf]
      %v2534 = vld [vmem:[%s2168 + $0x1c] sm:$0xf]
      %v2535 = vld [vmem:[%s2168 + $0x20] sm:$0x1]
      %v2536 = vld [vmem:[%s2168 + $0x24] sm:$0xf]
      %v2537 = vld [vmem:[%s2168 + $0x28] sm:$0xf]
      %v2538 = vld [vmem:[%s2168 + $0x2c] sm:$0x1]
      %v2539 = vld [vmem:[%s2168 + $0x30] sm:$0xf]
      %v2540 = vld [vmem:[%s2168 + $0x34] sm:$0xf]
      %v2541 = vld [vmem:[%s2168 + $0x38] sm:$0x1]
      %v2542 = vld [vmem:[%s2168 + $0x3c] sm:$0xf]
      %v2543 = vld [vmem:[%s2168 + $0x40] sm:$0xf]
      %v2544 = vld [vmem:[%s2168 + $0x44] sm:$0x1]
      %v2545 = vld [vmem:[%s2168 + $0x48] sm:$0xf]
      %v2546 = vld [vmem:[%s2168 + $0x4c] sm:$0xf]
      %v2547 = vld [vmem:[%s2168 + $0x50] sm:$0x1]
      %v2548 = vld [vmem:[%s2168 + $0x54] sm:$0xf]
      %v2549 = vld [vmem:[%s2168 + $0x58] sm:$0xf]
      %v2550 = vld [vmem:[%s2168 + $0x5c] sm:$0x1]
      %v2551 = vld [vmem:[%s2168 + $0x60] sm:$0xf]
      %v2552 = vld [vmem:[%s2168 + $0x64] sm:$0xf]
      %v2553 = vld [vmem:[%s2168 + $0x68] sm:$0x1]
      %v2554 = vld [vmem:[%s2168 + $0x6c] sm:$0xf]
      %v2555 = vld [vmem:[%s2168 + $0x70] sm:$0xf]
      %v2556 = vld [vmem:[%s2168 + $0x74] sm:$0x1]
      %v2557 = vld [vmem:[%s2168 + $0x78] sm:$0xf]
      %v2558 = vld [vmem:[%s2168 + $0x7c] sm:$0xf]
      %v2559 = vld [vmem:[%s2168 + $0x80] sm:$0x1]
      %v2560 = vld [vmem:[%s2168 + $0x84] sm:$0xf]
      %v2561 = vld [vmem:[%s2168 + $0x88] sm:$0xf]
      %v2562 = vld [vmem:[%s2168 + $0x8c] sm:$0x1]
      %v2563 = vld [vmem:[%s2168 + $0x90] sm:$0xf]
      %v2564 = vld [vmem:[%s2168 + $0x94] sm:$0xf]
      %v2565 = vld [vmem:[%s2168 + $0x98] sm:$0x1]
      %v2566 = vld [vmem:[%s2168 + $0x9c] sm:$0xf]
      %v2567 = vld [vmem:[%s2168 + $0xa0] sm:$0xf]
      %v2568 = vld [vmem:[%s2168 + $0xa4] sm:$0x1]
      %v2569 = vld [vmem:[%s2168 + $0xa8] sm:$0xf]
      %v2570 = vld [vmem:[%s2168 + $0xac] sm:$0xf]
      %v2571 = vld [vmem:[%s2168 + $0xb0] sm:$0x1]
      %v2572 = vld [vmem:[%s2168 + $0xb4] sm:$0xf]
      %v2573 = vld [vmem:[%s2168 + $0xb8] sm:$0xf]
      %v2574 = vld [vmem:[%s2168 + $0xbc] sm:$0x1]
      %v2576 = vshrl.u32 %v2527, 16
      %v2578 = vrot.slane %v2576, 4
      %v2579 = vshll.u32 %v2527, 16
      %v2581 = vrot.slane %v2579, 5
      %v2582 = vor.u32 %v2578, %v2581
      %v2583 = vrot.slane %v2582, 4
      %v2585 = vshll.u32 %v2528, 16
      %v2587 = vrot.slane %v2585, 5
      %v2588 = vsel %vm770, %v2583, %v2587
      %v2589 = vshrl.u32 %v2528, 16
      %v2591 = vrot.slane %v2589, 4
      %v2592 = vor.u32 %v2591, %v2587
      %v2593 = vrot.slane %v2592, 4
      %v2595 = vshll.u32 %v2529, 16
      %v2597 = vrot.slane %v2595, 5
      %v2598 = vsel %vm770, %v2593, %v2597
      %v2600 = vshrl.u32 %v2530, 16
      %v2602 = vrot.slane %v2600, 4
      %v2603 = vshll.u32 %v2530, 16
      %v2605 = vrot.slane %v2603, 5
      %v2606 = vor.u32 %v2602, %v2605
      %v2607 = vrot.slane %v2606, 4
      %v2609 = vshll.u32 %v2531, 16
      %v2611 = vrot.slane %v2609, 5
      %v2612 = vsel %vm770, %v2607, %v2611
      %v2613 = vshrl.u32 %v2531, 16
      %v2615 = vrot.slane %v2613, 4
      %v2616 = vor.u32 %v2615, %v2611
      %v2617 = vrot.slane %v2616, 4
      %v2619 = vshll.u32 %v2532, 16
      %v2621 = vrot.slane %v2619, 5
      %v2622 = vsel %vm770, %v2617, %v2621
      %v2624 = vshrl.u32 %v2533, 16
      %v2626 = vrot.slane %v2624, 4
      %v2627 = vshll.u32 %v2533, 16
      %v2629 = vrot.slane %v2627, 5
      %v2630 = vor.u32 %v2626, %v2629
      %v2631 = vrot.slane %v2630, 4
      %v2633 = vshll.u32 %v2534, 16
      %v2635 = vrot.slane %v2633, 5
      %v2636 = vsel %vm770, %v2631, %v2635
      %v2637 = vshrl.u32 %v2534, 16
      %v2639 = vrot.slane %v2637, 4
      %v2640 = vor.u32 %v2639, %v2635
      %v2641 = vrot.slane %v2640, 4
      %v2643 = vshll.u32 %v2535, 16
      %v2645 = vrot.slane %v2643, 5
      %v2646 = vsel %vm770, %v2641, %v2645
      %v2648 = vshrl.u32 %v2536, 16
      %v2650 = vrot.slane %v2648, 4
      %v2651 = vshll.u32 %v2536, 16
      %v2653 = vrot.slane %v2651, 5
      %v2654 = vor.u32 %v2650, %v2653
      %v2655 = vrot.slane %v2654, 4
      %v2657 = vshll.u32 %v2537, 16
      %v2659 = vrot.slane %v2657, 5
      %v2660 = vsel %vm770, %v2655, %v2659
      %v2661 = vshrl.u32 %v2537, 16
      %v2663 = vrot.slane %v2661, 4
      %v2664 = vor.u32 %v2663, %v2659
      %v2665 = vrot.slane %v2664, 4
      %v2667 = vshll.u32 %v2538, 16
      %v2669 = vrot.slane %v2667, 5
      %v2670 = vsel %vm770, %v2665, %v2669
      %v2672 = vshrl.u32 %v2539, 16
      %v2674 = vrot.slane %v2672, 4
      %v2675 = vshll.u32 %v2539, 16
      %v2677 = vrot.slane %v2675, 5
      %v2678 = vor.u32 %v2674, %v2677
      %v2679 = vrot.slane %v2678, 4
      %v2681 = vshll.u32 %v2540, 16
      %v2683 = vrot.slane %v2681, 5
      %v2684 = vsel %vm770, %v2679, %v2683
      %v2685 = vshrl.u32 %v2540, 16
      %v2687 = vrot.slane %v2685, 4
      %v2688 = vor.u32 %v2687, %v2683
      %v2689 = vrot.slane %v2688, 4
      %v2691 = vshll.u32 %v2541, 16
      %v2693 = vrot.slane %v2691, 5
      %v2694 = vsel %vm770, %v2689, %v2693
      %v2696 = vshrl.u32 %v2542, 16
      %v2698 = vrot.slane %v2696, 4
      %v2699 = vshll.u32 %v2542, 16
      %v2701 = vrot.slane %v2699, 5
      %v2702 = vor.u32 %v2698, %v2701
      %v2703 = vrot.slane %v2702, 4
      %v2705 = vshll.u32 %v2543, 16
      %v2707 = vrot.slane %v2705, 5
      %v2708 = vsel %vm770, %v2703, %v2707
      %v2709 = vshrl.u32 %v2543, 16
      %v2711 = vrot.slane %v2709, 4
      %v2712 = vor.u32 %v2711, %v2707
      %v2713 = vrot.slane %v2712, 4
      %v2715 = vshll.u32 %v2544, 16
      %v2717 = vrot.slane %v2715, 5
      %v2718 = vsel %vm770, %v2713, %v2717
      %v2720 = vshrl.u32 %v2545, 16
      %v2722 = vrot.slane %v2720, 4
      %v2723 = vshll.u32 %v2545, 16
      %v2725 = vrot.slane %v2723, 5
      %v2726 = vor.u32 %v2722, %v2725
      %v2727 = vrot.slane %v2726, 4
      %v2729 = vshll.u32 %v2546, 16
      %v2731 = vrot.slane %v2729, 5
      %v2732 = vsel %vm770, %v2727, %v2731
      %v2733 = vshrl.u32 %v2546, 16
      %v2735 = vrot.slane %v2733, 4
      %v2736 = vor.u32 %v2735, %v2731
      %v2737 = vrot.slane %v2736, 4
      %v2739 = vshll.u32 %v2547, 16
      %v2741 = vrot.slane %v2739, 5
      %v2742 = vsel %vm770, %v2737, %v2741
      %v2744 = vshrl.u32 %v2548, 16
      %v2746 = vrot.slane %v2744, 4
      %v2747 = vshll.u32 %v2548, 16
      %v2749 = vrot.slane %v2747, 5
      %v2750 = vor.u32 %v2746, %v2749
      %v2751 = vrot.slane %v2750, 4
      %v2753 = vshll.u32 %v2549, 16
      %v2755 = vrot.slane %v2753, 5
      %v2756 = vsel %vm770, %v2751, %v2755
      %v2757 = vshrl.u32 %v2549, 16
      %v2759 = vrot.slane %v2757, 4
      %v2760 = vor.u32 %v2759, %v2755
      %v2761 = vrot.slane %v2760, 4
      %v2763 = vshll.u32 %v2550, 16
      %v2765 = vrot.slane %v2763, 5
      %v2766 = vsel %vm770, %v2761, %v2765
      %v2768 = vshrl.u32 %v2551, 16
      %v2770 = vrot.slane %v2768, 4
      %v2771 = vshll.u32 %v2551, 16
      %v2773 = vrot.slane %v2771, 5
      %v2774 = vor.u32 %v2770, %v2773
      %v2775 = vrot.slane %v2774, 4
      %v2777 = vshll.u32 %v2552, 16
      %v2779 = vrot.slane %v2777, 5
      %v2780 = vsel %vm770, %v2775, %v2779
      %v2781 = vshrl.u32 %v2552, 16
      %v2783 = vrot.slane %v2781, 4
      %v2784 = vor.u32 %v2783, %v2779
      %v2785 = vrot.slane %v2784, 4
      %v2787 = vshll.u32 %v2553, 16
      %v2789 = vrot.slane %v2787, 5
      %v2790 = vsel %vm770, %v2785, %v2789
      %v2792 = vshrl.u32 %v2554, 16
      %v2794 = vrot.slane %v2792, 4
      %v2795 = vshll.u32 %v2554, 16
      %v2797 = vrot.slane %v2795, 5
      %v2798 = vor.u32 %v2794, %v2797
      %v2799 = vrot.slane %v2798, 4
      %v2801 = vshll.u32 %v2555, 16
      %v2803 = vrot.slane %v2801, 5
      %v2804 = vsel %vm770, %v2799, %v2803
      %v2805 = vshrl.u32 %v2555, 16
      %v2807 = vrot.slane %v2805, 4
      %v2808 = vor.u32 %v2807, %v2803
      %v2809 = vrot.slane %v2808, 4
      %v2811 = vshll.u32 %v2556, 16
      %v2813 = vrot.slane %v2811, 5
      %v2814 = vsel %vm770, %v2809, %v2813
      %v2816 = vshrl.u32 %v2557, 16
      %v2818 = vrot.slane %v2816, 4
      %v2819 = vshll.u32 %v2557, 16
      %v2821 = vrot.slane %v2819, 5
      %v2822 = vor.u32 %v2818, %v2821
      %v2823 = vrot.slane %v2822, 4
      %v2825 = vshll.u32 %v2558, 16
      %v2827 = vrot.slane %v2825, 5
      %v2828 = vsel %vm770, %v2823, %v2827
      %v2829 = vshrl.u32 %v2558, 16
      %v2831 = vrot.slane %v2829, 4
      %v2832 = vor.u32 %v2831, %v2827
      %v2833 = vrot.slane %v2832, 4
      %v2835 = vshll.u32 %v2559, 16
      %v2837 = vrot.slane %v2835, 5
      %v2838 = vsel %vm770, %v2833, %v2837
      %v2840 = vshrl.u32 %v2560, 16
      %v2842 = vrot.slane %v2840, 4
      %v2843 = vshll.u32 %v2560, 16
      %v2845 = vrot.slane %v2843, 5
      %v2846 = vor.u32 %v2842, %v2845
      %v2847 = vrot.slane %v2846, 4
      %v2849 = vshll.u32 %v2561, 16
      %v2851 = vrot.slane %v2849, 5
      %v2852 = vsel %vm770, %v2847, %v2851
      %v2853 = vshrl.u32 %v2561, 16
      %v2855 = vrot.slane %v2853, 4
      %v2856 = vor.u32 %v2855, %v2851
      %v2857 = vrot.slane %v2856, 4
      %v2859 = vshll.u32 %v2562, 16
      %v2861 = vrot.slane %v2859, 5
      %v2862 = vsel %vm770, %v2857, %v2861
      %v2864 = vshrl.u32 %v2563, 16
      %v2866 = vrot.slane %v2864, 4
      %v2867 = vshll.u32 %v2563, 16
      %v2869 = vrot.slane %v2867, 5
      %v2870 = vor.u32 %v2866, %v2869
      %v2871 = vrot.slane %v2870, 4
      %v2873 = vshll.u32 %v2564, 16
      %v2875 = vrot.slane %v2873, 5
      %v2876 = vsel %vm770, %v2871, %v2875
      %v2877 = vshrl.u32 %v2564, 16
      %v2879 = vrot.slane %v2877, 4
      %v2880 = vor.u32 %v2879, %v2875
      %v2881 = vrot.slane %v2880, 4
      %v2883 = vshll.u32 %v2565, 16
      %v2885 = vrot.slane %v2883, 5
      %v2886 = vsel %vm770, %v2881, %v2885
      %v2888 = vshrl.u32 %v2566, 16
      %v2890 = vrot.slane %v2888, 4
      %v2891 = vshll.u32 %v2566, 16
      %v2893 = vrot.slane %v2891, 5
      %v2894 = vor.u32 %v2890, %v2893
      %v2895 = vrot.slane %v2894, 4
      %v2897 = vshll.u32 %v2567, 16
      %v2899 = vrot.slane %v2897, 5
      %v2900 = vsel %vm770, %v2895, %v2899
      %v2901 = vshrl.u32 %v2567, 16
      %v2903 = vrot.slane %v2901, 4
      %v2904 = vor.u32 %v2903, %v2899
      %v2905 = vrot.slane %v2904, 4
      %v2907 = vshll.u32 %v2568, 16
      %v2909 = vrot.slane %v2907, 5
      %v2910 = vsel %vm770, %v2905, %v2909
      %v2912 = vshrl.u32 %v2569, 16
      %v2914 = vrot.slane %v2912, 4
      %v2915 = vshll.u32 %v2569, 16
      %v2917 = vrot.slane %v2915, 5
      %v2918 = vor.u32 %v2914, %v2917
      %v2919 = vrot.slane %v2918, 4
      %v2921 = vshll.u32 %v2570, 16
      %v2923 = vrot.slane %v2921, 5
      %v2924 = vsel %vm770, %v2919, %v2923
      %v2925 = vshrl.u32 %v2570, 16
      %v2927 = vrot.slane %v2925, 4
      %v2928 = vor.u32 %v2927, %v2923
      %v2929 = vrot.slane %v2928, 4
      %v2931 = vshll.u32 %v2571, 16
      %v2933 = vrot.slane %v2931, 5
      %v2934 = vsel %vm770, %v2929, %v2933
      %v2936 = vshrl.u32 %v2572, 16
      %v2938 = vrot.slane %v2936, 4
      %v2939 = vshll.u32 %v2572, 16
      %v2941 = vrot.slane %v2939, 5
      %v2942 = vor.u32 %v2938, %v2941
      %v2943 = vrot.slane %v2942, 4
      %v2945 = vshll.u32 %v2573, 16
      %v2947 = vrot.slane %v2945, 5
      %v2948 = vsel %vm770, %v2943, %v2947
      %v2949 = vshrl.u32 %v2573, 16
      %v2951 = vrot.slane %v2949, 4
      %v2952 = vor.u32 %v2951, %v2947
      %v2953 = vrot.slane %v2952, 4
      %v2955 = vshll.u32 %v2574, 16
      %v2957 = vrot.slane %v2955, 5
      %v2958 = vsel %vm770, %v2953, %v2957
      %s2959 = scalar_lea.vmem %s3, 8
      %v2960 = vld [vmem:[%s2959] sm:$0x3]
      %v2961 = vunpack.c.l.b16 %v2588
      %v2962 = vunpack.c.l.b16 %v2598
      %v2963 = vunpack.c.l.b16 %v2612
      %v2964 = vunpack.c.l.b16 %v2622
      %v2965 = vunpack.c.l.b16 %v2636
      %v2966 = vunpack.c.l.b16 %v2646
      %v2967 = vunpack.c.l.b16 %v2660
      %v2968 = vunpack.c.l.b16 %v2670
      %v2969 = vunpack.c.l.b16 %v2684
      %v2970 = vunpack.c.l.b16 %v2694
      %v2971 = vunpack.c.l.b16 %v2708
      %v2972 = vunpack.c.l.b16 %v2718
      %v2973 = vunpack.c.l.b16 %v2732
      %v2974 = vunpack.c.l.b16 %v2742
      %v2975 = vunpack.c.l.b16 %v2756
      %v2976 = vunpack.c.l.b16 %v2766
      %v2977 = vunpack.c.l.b16 %v2780
      %v2978 = vunpack.c.l.b16 %v2790
      %v2979 = vunpack.c.l.b16 %v2804
      %v2980 = vunpack.c.l.b16 %v2814
      %v2981 = vunpack.c.l.b16 %v2828
      %v2982 = vunpack.c.l.b16 %v2838
      %v2983 = vunpack.c.l.b16 %v2852
      %v2984 = vunpack.c.l.b16 %v2862
      %v2985 = vunpack.c.l.b16 %v2876
      %v2986 = vunpack.c.l.b16 %v2886
      %v2987 = vunpack.c.l.b16 %v2900
      %v2988 = vunpack.c.l.b16 %v2910
      %v2989 = vunpack.c.l.b16 %v2924
      %v2990 = vunpack.c.l.b16 %v2934
      %v2991 = vunpack.c.l.b16 %v2948
      %v2992 = vunpack.c.l.b16 %v2958
      %v2993 = vpack.c.b16 %v2962, %v2961
      %v2994 = vpack.c.b16 %v2964, %v2963
      %v2995 = vpack.c.b16 %v2966, %v2965
      %v2996 = vpack.c.b16 %v2968, %v2967
      %v2997 = vpack.c.b16 %v2970, %v2969
      %v2998 = vpack.c.b16 %v2972, %v2971
      %v2999 = vpack.c.b16 %v2974, %v2973
      %v3000 = vpack.c.b16 %v2976, %v2975
      %v3001 = vpack.c.b16 %v2978, %v2977
      %v3002 = vpack.c.b16 %v2980, %v2979
      %v3003 = vpack.c.b16 %v2982, %v2981
      %v3004 = vpack.c.b16 %v2984, %v2983
      %v3005 = vpack.c.b16 %v2986, %v2985
      %v3006 = vpack.c.b16 %v2988, %v2987
      %v3007 = vpack.c.b16 %v2990, %v2989
      %v3008 = vpack.c.b16 %v2992, %v2991
      %v3010 = vsel %vm1205, %v2993, 0
      %v3013 = vsel %vm1205, %v2994, 0
      %v3016 = vsel %vm1205, %v2995, 0
      %v3019 = vsel %vm1205, %v2996, 0
      %v3022 = vsel %vm1205, %v2997, 0
      %v3025 = vsel %vm1205, %v2998, 0
      %v3028 = vsel %vm1205, %v2999, 0
      %v3031 = vsel %vm1205, %v3000, 0
      %v3034 = vsel %vm1205, %v3001, 0
      %v3037 = vsel %vm1205, %v3002, 0
      %v3040 = vsel %vm1205, %v3003, 0
      %v3043 = vsel %vm1205, %v3004, 0
      %v3046 = vsel %vm1205, %v3005, 0
      %v3049 = vsel %vm1205, %v3006, 0
      %v3052 = vsel %vm1205, %v3007, 0
      %v3055 = vsel %vm1205, %v3008, 0
      %v3058 = vsel %vm1254, %v2960, 0
      %3060 = vmatprep.subr.bf16.mxu0 0
      %3061 = vmatpush1.bf16.msra.mxu0 0
      %3062 = vmatprep.subr.bf16.mxu0 0
      %3063 = vmatpush1.bf16.msra.mxu0 0
      %3064 = vmatprep.subr.bf16.mxu0 0
      %3065 = vmatpush1.bf16.msra.mxu0 0
      %3066 = vmatprep.subr.bf16.mxu0 0
      %3067 = vmatpush1.bf16.msra.mxu0 0
      %3068 = vmatprep.subr.bf16.mxu0 0
      %3069 = vmatpush1.bf16.msra.mxu0 0
      %3070 = vmatprep.subr.bf16.mxu0 0
      %3071 = vmatpush1.bf16.msra.mxu0 0
      %3072 = vmatprep.subr.bf16.mxu0 0
      %3073 = vmatpush1.bf16.msra.mxu0 0
      %3074 = vmatprep.subr.bf16.mxu0 0
      %3075 = vmatpush1.bf16.msra.mxu0 %v3058
      %3076 = vmatprep.subr.bf16.mxu0 0
      %3077 = vmatpush2.bf16.msra.mxu0 0
      %3078 = vmatprep.subr.bf16.mxu0 0
      %3079 = vmatpush2.bf16.msra.mxu0 0
      %3080 = vmatprep.subr.bf16.mxu0 0
      %3081 = vmatpush2.bf16.msra.mxu0 0
      %3082 = vmatprep.subr.bf16.mxu0 0
      %3083 = vmatpush2.bf16.msra.mxu0 0
      %3084 = vmatprep.subr.bf16.mxu0 0
      %3085 = vmatpush2.bf16.msra.mxu0 0
      %3086 = vmatprep.subr.bf16.mxu0 0
      %3087 = vmatpush2.bf16.msra.mxu0 0
      %3088 = vmatprep.subr.bf16.mxu0 0
      %3089 = vmatpush2.bf16.msra.mxu0 0
      %3090 = vmatprep.subr.bf16.mxu0 0
      %3091 = vmatpush2.bf16.msra.mxu0 0
      %3092 = vmatprep.mubr.bf16.mxu0 0
      %3093 = vmatmul.mubr.bf16.gmra.mxu0 %v3010
      %v3094 = vpop.f32.mrf.mxu0
      %v3095 = vadd.f32 0.0, %v3094
      %v3096 = vpop.f32.mrf.mxu0
      %v3097 = vpop.f32.mrf.mxu0
      %v3098 = vadd.f32 0.0, %v3097
      %v3099 = vpop.f32.mrf.mxu0
      %3100 = vmatprep.mubr.bf16.mxu0 0
      %3101 = vmatmul.mubr.bf16.gmra.mxu0 %v3013
      %v3102 = vpop.f32.mrf.mxu0
      %v3103 = vadd.f32 0.0, %v3102
      %v3104 = vpop.f32.mrf.mxu0
      %v3105 = vpop.f32.mrf.mxu0
      %v3106 = vadd.f32 0.0, %v3105
      %v3107 = vpop.f32.mrf.mxu0
      %3108 = vmatprep.mubr.bf16.mxu0 0
      %3109 = vmatmul.mubr.bf16.gmra.mxu0 %v3016
      %v3110 = vpop.f32.mrf.mxu0
      %v3111 = vadd.f32 0.0, %v3110
      %v3112 = vpop.f32.mrf.mxu0
      %v3113 = vpop.f32.mrf.mxu0
      %v3114 = vadd.f32 0.0, %v3113
      %v3115 = vpop.f32.mrf.mxu0
      %3116 = vmatprep.mubr.bf16.mxu0 0
      %3117 = vmatmul.mubr.bf16.gmra.mxu0 %v3019
      %v3118 = vpop.f32.mrf.mxu0
      %v3119 = vadd.f32 0.0, %v3118
      %v3120 = vpop.f32.mrf.mxu0
      %v3121 = vpop.f32.mrf.mxu0
      %v3122 = vadd.f32 0.0, %v3121
      %v3123 = vpop.f32.mrf.mxu0
      %3124 = vmatprep.mubr.bf16.mxu0 0
      %3125 = vmatmul.mubr.bf16.gmra.mxu0 %v3022
      %v3126 = vpop.f32.mrf.mxu0
      %v3127 = vadd.f32 0.0, %v3126
      %v3128 = vpop.f32.mrf.mxu0
      %v3129 = vpop.f32.mrf.mxu0
      %v3130 = vadd.f32 0.0, %v3129
      %v3131 = vpop.f32.mrf.mxu0
      %3132 = vmatprep.mubr.bf16.mxu0 0
      %3133 = vmatmul.mubr.bf16.gmra.mxu0 %v3025
      %v3134 = vpop.f32.mrf.mxu0
      %v3135 = vadd.f32 0.0, %v3134
      %v3136 = vpop.f32.mrf.mxu0
      %v3137 = vpop.f32.mrf.mxu0
      %v3138 = vadd.f32 0.0, %v3137
      %v3139 = vpop.f32.mrf.mxu0
      %3140 = vmatprep.mubr.bf16.mxu0 0
      %3141 = vmatmul.mubr.bf16.gmra.mxu0 %v3028
      %v3142 = vpop.f32.mrf.mxu0
      %v3143 = vadd.f32 0.0, %v3142
      %v3144 = vpop.f32.mrf.mxu0
      %v3145 = vpop.f32.mrf.mxu0
      %v3146 = vadd.f32 0.0, %v3145
      %v3147 = vpop.f32.mrf.mxu0
      %3148 = vmatprep.mubr.bf16.mxu0 0
      %3149 = vmatmul.mubr.bf16.gmra.mxu0 %v3031
      %v3150 = vpop.f32.mrf.mxu0
      %v3151 = vadd.f32 0.0, %v3150
      %v3152 = vpop.f32.mrf.mxu0
      %v3153 = vpop.f32.mrf.mxu0
      %v3154 = vadd.f32 0.0, %v3153
      %v3155 = vpop.f32.mrf.mxu0
      %3156 = vmatprep.mubr.bf16.mxu0 0
      %3157 = vmatmul.mubr.bf16.gmra.mxu0 %v3034
      %v3158 = vpop.f32.mrf.mxu0
      %v3159 = vadd.f32 0.0, %v3158
      %v3160 = vpop.f32.mrf.mxu0
      %v3161 = vpop.f32.mrf.mxu0
      %v3162 = vadd.f32 0.0, %v3161
      %v3163 = vpop.f32.mrf.mxu0
      %3164 = vmatprep.mubr.bf16.mxu0 0
      %3165 = vmatmul.mubr.bf16.gmra.mxu0 %v3037
      %v3166 = vpop.f32.mrf.mxu0
      %v3167 = vadd.f32 0.0, %v3166
      %v3168 = vpop.f32.mrf.mxu0
      %v3169 = vpop.f32.mrf.mxu0
      %v3170 = vadd.f32 0.0, %v3169
      %v3171 = vpop.f32.mrf.mxu0
      %3172 = vmatprep.mubr.bf16.mxu0 0
      %3173 = vmatmul.mubr.bf16.gmra.mxu0 %v3040
      %v3174 = vpop.f32.mrf.mxu0
      %v3175 = vadd.f32 0.0, %v3174
      %v3176 = vpop.f32.mrf.mxu0
      %v3177 = vpop.f32.mrf.mxu0
      %v3178 = vadd.f32 0.0, %v3177
      %v3179 = vpop.f32.mrf.mxu0
      %3180 = vmatprep.mubr.bf16.mxu0 0
      %3181 = vmatmul.mubr.bf16.gmra.mxu0 %v3043
      %v3182 = vpop.f32.mrf.mxu0
      %v3183 = vadd.f32 0.0, %v3182
      %v3184 = vpop.f32.mrf.mxu0
      %v3185 = vpop.f32.mrf.mxu0
      %v3186 = vadd.f32 0.0, %v3185
      %v3187 = vpop.f32.mrf.mxu0
      %3188 = vmatprep.mubr.bf16.mxu0 0
      %3189 = vmatmul.mubr.bf16.gmra.mxu0 %v3046
      %v3190 = vpop.f32.mrf.mxu0
      %v3191 = vadd.f32 0.0, %v3190
      %v3192 = vpop.f32.mrf.mxu0
      %v3193 = vpop.f32.mrf.mxu0
      %v3194 = vadd.f32 0.0, %v3193
      %v3195 = vpop.f32.mrf.mxu0
      %3196 = vmatprep.mubr.bf16.mxu0 0
      %3197 = vmatmul.mubr.bf16.gmra.mxu0 %v3049
      %v3198 = vpop.f32.mrf.mxu0
      %v3199 = vadd.f32 0.0, %v3198
      %v3200 = vpop.f32.mrf.mxu0
      %v3201 = vpop.f32.mrf.mxu0
      %v3202 = vadd.f32 0.0, %v3201
      %v3203 = vpop.f32.mrf.mxu0
      %3204 = vmatprep.mubr.bf16.mxu0 0
      %3205 = vmatmul.mubr.bf16.gmra.mxu0 %v3052
      %v3206 = vpop.f32.mrf.mxu0
      %v3207 = vadd.f32 0.0, %v3206
      %v3208 = vpop.f32.mrf.mxu0
      %v3209 = vpop.f32.mrf.mxu0
      %v3210 = vadd.f32 0.0, %v3209
      %v3211 = vpop.f32.mrf.mxu0
      %3212 = vmatprep.mubr.bf16.mxu0 0
      %3213 = vmatmul.mubr.bf16.gmra.mxu0 %v3055
      %v3214 = vpop.f32.mrf.mxu0
      %v3215 = vadd.f32 0.0, %v3214
      %v3216 = vpop.f32.mrf.mxu0
      %v3217 = vpop.f32.mrf.mxu0
      %v3218 = vadd.f32 0.0, %v3217
      %v3219 = vpop.f32.mrf.mxu0
      %3220 = vdwg.mxu0
      %v3221 = vadd.f32 %v2495, %v3095
      %v3222 = vadd.f32 %v2496, %v3098
      %v3223 = vadd.f32 %v2497, %v3103
      %v3224 = vadd.f32 %v2498, %v3106
      %v3225 = vadd.f32 %v2499, %v3111
      %v3226 = vadd.f32 %v2500, %v3114
      %v3227 = vadd.f32 %v2501, %v3119
      %v3228 = vadd.f32 %v2502, %v3122
      %v3229 = vadd.f32 %v2503, %v3127
      %v3230 = vadd.f32 %v2504, %v3130
      %v3231 = vadd.f32 %v2505, %v3135
      %v3232 = vadd.f32 %v2506, %v3138
      %v3233 = vadd.f32 %v2507, %v3143
      %v3234 = vadd.f32 %v2508, %v3146
      %v3235 = vadd.f32 %v2509, %v3151
      %v3236 = vadd.f32 %v2510, %v3154
      %v3237 = vadd.f32 %v2511, %v3159
      %v3238 = vadd.f32 %v2512, %v3162
      %v3239 = vadd.f32 %v2513, %v3167
      %v3240 = vadd.f32 %v2514, %v3170
      %v3241 = vadd.f32 %v2515, %v3175
      %v3242 = vadd.f32 %v2516, %v3178
      %v3243 = vadd.f32 %v2517, %v3183
      %v3244 = vadd.f32 %v2518, %v3186
      %v3245 = vadd.f32 %v2519, %v3191
      %v3246 = vadd.f32 %v2520, %v3194
      %v3247 = vadd.f32 %v2521, %v3199
      %v3248 = vadd.f32 %v2522, %v3202
      %v3249 = vadd.f32 %v2523, %v3207
      %v3250 = vadd.f32 %v2524, %v3210
      %v3251 = vadd.f32 %v2525, %v3215
      %v3252 = vadd.f32 %v2526, %v3218
      %v3253 = vld [vmem:[%s2168] sm:$0xe]
      %v3254 = vld [vmem:[%s2168 + $0xc] sm:$0xe]
      %v3255 = vld [vmem:[%s2168 + $0x18] sm:$0xe]
      %v3256 = vld [vmem:[%s2168 + $0x24] sm:$0xe]
      %v3257 = vld [vmem:[%s2168 + $0x30] sm:$0xe]
      %v3258 = vld [vmem:[%s2168 + $0x3c] sm:$0xe]
      %v3259 = vld [vmem:[%s2168 + $0x48] sm:$0xe]
      %v3260 = vld [vmem:[%s2168 + $0x54] sm:$0xe]
      %v3261 = vld [vmem:[%s2168 + $0x60] sm:$0xe]
      %v3262 = vld [vmem:[%s2168 + $0x6c] sm:$0xe]
      %v3263 = vld [vmem:[%s2168 + $0x78] sm:$0xe]
      %v3264 = vld [vmem:[%s2168 + $0x84] sm:$0xe]
      %v3265 = vld [vmem:[%s2168 + $0x90] sm:$0xe]
      %v3266 = vld [vmem:[%s2168 + $0x9c] sm:$0xe]
      %v3267 = vld [vmem:[%s2168 + $0xa8] sm:$0xe]
      %v3268 = vld [vmem:[%s2168 + $0xb4] sm:$0xe]
      %v3317 = vrot.slane %v3253, 5
      %v3318 = vrot.slane %v3317, 4
      %v3319 = vrot.slane %v2528, 5
      %v3320 = vsel %vm1761, %v3318, %v3319
      %v3321 = vrot.slane %v3319, 4
      %v3322 = vrot.slane %v2529, 5
      %v3323 = vsel %vm1761, %v3321, %v3322
      %v3324 = vrot.slane %v3254, 5
      %v3325 = vrot.slane %v3324, 4
      %v3326 = vrot.slane %v2531, 5
      %v3327 = vsel %vm1761, %v3325, %v3326
      %v3328 = vrot.slane %v3326, 4
      %v3329 = vrot.slane %v2532, 5
      %v3330 = vsel %vm1761, %v3328, %v3329
      %v3331 = vrot.slane %v3255, 5
      %v3332 = vrot.slane %v3331, 4
      %v3333 = vrot.slane %v2534, 5
      %v3334 = vsel %vm1761, %v3332, %v3333
      %v3335 = vrot.slane %v3333, 4
      %v3336 = vrot.slane %v2535, 5
      %v3337 = vsel %vm1761, %v3335, %v3336
      %v3338 = vrot.slane %v3256, 5
      %v3339 = vrot.slane %v3338, 4
      %v3340 = vrot.slane %v2537, 5
      %v3341 = vsel %vm1761, %v3339, %v3340
      %v3342 = vrot.slane %v3340, 4
      %v3343 = vrot.slane %v2538, 5
      %v3344 = vsel %vm1761, %v3342, %v3343
      %v3345 = vrot.slane %v3257, 5
      %v3346 = vrot.slane %v3345, 4
      %v3347 = vrot.slane %v2540, 5
      %v3348 = vsel %vm1761, %v3346, %v3347
      %v3349 = vrot.slane %v3347, 4
      %v3350 = vrot.slane %v2541, 5
      %v3351 = vsel %vm1761, %v3349, %v3350
      %v3352 = vrot.slane %v3258, 5
      %v3353 = vrot.slane %v3352, 4
      %v3354 = vrot.slane %v2543, 5
      %v3355 = vsel %vm1761, %v3353, %v3354
      %v3356 = vrot.slane %v3354, 4
      %v3357 = vrot.slane %v2544, 5
      %v3358 = vsel %vm1761, %v3356, %v3357
      %v3359 = vrot.slane %v3259, 5
      %v3360 = vrot.slane %v3359, 4
      %v3361 = vrot.slane %v2546, 5
      %v3362 = vsel %vm1761, %v3360, %v3361
      %v3363 = vrot.slane %v3361, 4
      %v3364 = vrot.slane %v2547, 5
      %v3365 = vsel %vm1761, %v3363, %v3364
      %v3366 = vrot.slane %v3260, 5
      %v3367 = vrot.slane %v3366, 4
      %v3368 = vrot.slane %v2549, 5
      %v3369 = vsel %vm1761, %v3367, %v3368
      %v3370 = vrot.slane %v3368, 4
      %v3371 = vrot.slane %v2550, 5
      %v3372 = vsel %vm1761, %v3370, %v3371
      %v3373 = vrot.slane %v3261, 5
      %v3374 = vrot.slane %v3373, 4
      %v3375 = vrot.slane %v2552, 5
      %v3376 = vsel %vm1761, %v3374, %v3375
      %v3377 = vrot.slane %v3375, 4
      %v3378 = vrot.slane %v2553, 5
      %v3379 = vsel %vm1761, %v3377, %v3378
      %v3380 = vrot.slane %v3262, 5
      %v3381 = vrot.slane %v3380, 4
      %v3382 = vrot.slane %v2555, 5
      %v3383 = vsel %vm1761, %v3381, %v3382
      %v3384 = vrot.slane %v3382, 4
      %v3385 = vrot.slane %v2556, 5
      %v3386 = vsel %vm1761, %v3384, %v3385
      %v3387 = vrot.slane %v3263, 5
      %v3388 = vrot.slane %v3387, 4
      %v3389 = vrot.slane %v2558, 5
      %v3390 = vsel %vm1761, %v3388, %v3389
      %v3391 = vrot.slane %v3389, 4
      %v3392 = vrot.slane %v2559, 5
      %v3393 = vsel %vm1761, %v3391, %v3392
      %v3394 = vrot.slane %v3264, 5
      %v3395 = vrot.slane %v3394, 4
      %v3396 = vrot.slane %v2561, 5
      %v3397 = vsel %vm1761, %v3395, %v3396
      %v3398 = vrot.slane %v3396, 4
      %v3399 = vrot.slane %v2562, 5
      %v3400 = vsel %vm1761, %v3398, %v3399
      %v3401 = vrot.slane %v3265, 5
      %v3402 = vrot.slane %v3401, 4
      %v3403 = vrot.slane %v2564, 5
      %v3404 = vsel %vm1761, %v3402, %v3403
      %v3405 = vrot.slane %v3403, 4
      %v3406 = vrot.slane %v2565, 5
      %v3407 = vsel %vm1761, %v3405, %v3406
      %v3408 = vrot.slane %v3266, 5
      %v3409 = vrot.slane %v3408, 4
      %v3410 = vrot.slane %v2567, 5
      %v3411 = vsel %vm1761, %v3409, %v3410
      %v3412 = vrot.slane %v3410, 4
      %v3413 = vrot.slane %v2568, 5
      %v3414 = vsel %vm1761, %v3412, %v3413
      %v3415 = vrot.slane %v3267, 5
      %v3416 = vrot.slane %v3415, 4
      %v3417 = vrot.slane %v2570, 5
      %v3418 = vsel %vm1761, %v3416, %v3417
      %v3419 = vrot.slane %v3417, 4
      %v3420 = vrot.slane %v2571, 5
      %v3421 = vsel %vm1761, %v3419, %v3420
      %v3422 = vrot.slane %v3268, 5
      %v3423 = vrot.slane %v3422, 4
      %v3424 = vrot.slane %v2573, 5
      %v3425 = vsel %vm1761, %v3423, %v3424
      %v3426 = vrot.slane %v3424, 4
      %v3427 = vrot.slane %v2574, 5
      %v3428 = vsel %vm1761, %v3426, %v3427
      %s3429 = scalar_lea.vmem %s3, 10
      %v3430 = vld [vmem:[%s3429] sm:$0x3]
      %v3431 = vunpack.c.l.b16 %v3320
      %v3432 = vunpack.c.l.b16 %v3323
      %v3433 = vunpack.c.l.b16 %v3327
      %v3434 = vunpack.c.l.b16 %v3330
      %v3435 = vunpack.c.l.b16 %v3334
      %v3436 = vunpack.c.l.b16 %v3337
      %v3437 = vunpack.c.l.b16 %v3341
      %v3438 = vunpack.c.l.b16 %v3344
      %v3439 = vunpack.c.l.b16 %v3348
      %v3440 = vunpack.c.l.b16 %v3351
      %v3441 = vunpack.c.l.b16 %v3355
      %v3442 = vunpack.c.l.b16 %v3358
      %v3443 = vunpack.c.l.b16 %v3362
      %v3444 = vunpack.c.l.b16 %v3365
      %v3445 = vunpack.c.l.b16 %v3369
      %v3446 = vunpack.c.l.b16 %v3372
      %v3447 = vunpack.c.l.b16 %v3376
      %v3448 = vunpack.c.l.b16 %v3379
      %v3449 = vunpack.c.l.b16 %v3383
      %v3450 = vunpack.c.l.b16 %v3386
      %v3451 = vunpack.c.l.b16 %v3390
      %v3452 = vunpack.c.l.b16 %v3393
      %v3453 = vunpack.c.l.b16 %v3397
      %v3454 = vunpack.c.l.b16 %v3400
      %v3455 = vunpack.c.l.b16 %v3404
      %v3456 = vunpack.c.l.b16 %v3407
      %v3457 = vunpack.c.l.b16 %v3411
      %v3458 = vunpack.c.l.b16 %v3414
      %v3459 = vunpack.c.l.b16 %v3418
      %v3460 = vunpack.c.l.b16 %v3421
      %v3461 = vunpack.c.l.b16 %v3425
      %v3462 = vunpack.c.l.b16 %v3428
      %v3463 = vpack.c.b16 %v3432, %v3431
      %v3464 = vpack.c.b16 %v3434, %v3433
      %v3465 = vpack.c.b16 %v3436, %v3435
      %v3466 = vpack.c.b16 %v3438, %v3437
      %v3467 = vpack.c.b16 %v3440, %v3439
      %v3468 = vpack.c.b16 %v3442, %v3441
      %v3469 = vpack.c.b16 %v3444, %v3443
      %v3470 = vpack.c.b16 %v3446, %v3445
      %v3471 = vpack.c.b16 %v3448, %v3447
      %v3472 = vpack.c.b16 %v3450, %v3449
      %v3473 = vpack.c.b16 %v3452, %v3451
      %v3474 = vpack.c.b16 %v3454, %v3453
      %v3475 = vpack.c.b16 %v3456, %v3455
      %v3476 = vpack.c.b16 %v3458, %v3457
      %v3477 = vpack.c.b16 %v3460, %v3459
      %v3478 = vpack.c.b16 %v3462, %v3461
      %v3480 = vsel %vm1205, %v3463, 0
      %v3483 = vsel %vm1205, %v3464, 0
      %v3486 = vsel %vm1205, %v3465, 0
      %v3489 = vsel %vm1205, %v3466, 0
      %v3492 = vsel %vm1205, %v3467, 0
      %v3495 = vsel %vm1205, %v3468, 0
      %v3498 = vsel %vm1205, %v3469, 0
      %v3501 = vsel %vm1205, %v3470, 0
      %v3504 = vsel %vm1205, %v3471, 0
      %v3507 = vsel %vm1205, %v3472, 0
      %v3510 = vsel %vm1205, %v3473, 0
      %v3513 = vsel %vm1205, %v3474, 0
      %v3516 = vsel %vm1205, %v3475, 0
      %v3519 = vsel %vm1205, %v3476, 0
      %v3522 = vsel %vm1205, %v3477, 0
      %v3525 = vsel %vm1205, %v3478, 0
      %v3528 = vsel %vm1254, %v3430, 0
      %3530 = vmatprep.subr.bf16.mxu0 0
      %3531 = vmatpush1.bf16.msra.mxu0 0
      %3532 = vmatprep.subr.bf16.mxu0 0
      %3533 = vmatpush1.bf16.msra.mxu0 0
      %3534 = vmatprep.subr.bf16.mxu0 0
      %3535 = vmatpush1.bf16.msra.mxu0 0
      %3536 = vmatprep.subr.bf16.mxu0 0
      %3537 = vmatpush1.bf16.msra.mxu0 0
      %3538 = vmatprep.subr.bf16.mxu0 0
      %3539 = vmatpush1.bf16.msra.mxu0 0
      %3540 = vmatprep.subr.bf16.mxu0 0
      %3541 = vmatpush1.bf16.msra.mxu0 0
      %3542 = vmatprep.subr.bf16.mxu0 0
      %3543 = vmatpush1.bf16.msra.mxu0 0
      %3544 = vmatprep.subr.bf16.mxu0 0
      %3545 = vmatpush1.bf16.msra.mxu0 %v3528
      %3546 = vmatprep.subr.bf16.mxu0 0
      %3547 = vmatpush2.bf16.msra.mxu0 0
      %3548 = vmatprep.subr.bf16.mxu0 0
      %3549 = vmatpush2.bf16.msra.mxu0 0
      %3550 = vmatprep.subr.bf16.mxu0 0
      %3551 = vmatpush2.bf16.msra.mxu0 0
      %3552 = vmatprep.subr.bf16.mxu0 0
      %3553 = vmatpush2.bf16.msra.mxu0 0
      %3554 = vmatprep.subr.bf16.mxu0 0
      %3555 = vmatpush2.bf16.msra.mxu0 0
      %3556 = vmatprep.subr.bf16.mxu0 0
      %3557 = vmatpush2.bf16.msra.mxu0 0
      %3558 = vmatprep.subr.bf16.mxu0 0
      %3559 = vmatpush2.bf16.msra.mxu0 0
      %3560 = vmatprep.subr.bf16.mxu0 0
      %3561 = vmatpush2.bf16.msra.mxu0 0
      %3562 = vmatprep.mubr.bf16.mxu0 0
      %3563 = vmatmul.mubr.bf16.gmra.mxu0 %v3480
      %v3564 = vpop.f32.mrf.mxu0
      %v3565 = vadd.f32 0.0, %v3564
      %v3566 = vpop.f32.mrf.mxu0
      %v3567 = vpop.f32.mrf.mxu0
      %v3568 = vadd.f32 0.0, %v3567
      %v3569 = vpop.f32.mrf.mxu0
      %3570 = vmatprep.mubr.bf16.mxu0 0
      %3571 = vmatmul.mubr.bf16.gmra.mxu0 %v3483
      %v3572 = vpop.f32.mrf.mxu0
      %v3573 = vadd.f32 0.0, %v3572
      %v3574 = vpop.f32.mrf.mxu0
      %v3575 = vpop.f32.mrf.mxu0
      %v3576 = vadd.f32 0.0, %v3575
      %v3577 = vpop.f32.mrf.mxu0
      %3578 = vmatprep.mubr.bf16.mxu0 0
      %3579 = vmatmul.mubr.bf16.gmra.mxu0 %v3486
      %v3580 = vpop.f32.mrf.mxu0
      %v3581 = vadd.f32 0.0, %v3580
      %v3582 = vpop.f32.mrf.mxu0
      %v3583 = vpop.f32.mrf.mxu0
      %v3584 = vadd.f32 0.0, %v3583
      %v3585 = vpop.f32.mrf.mxu0
      %3586 = vmatprep.mubr.bf16.mxu0 0
      %3587 = vmatmul.mubr.bf16.gmra.mxu0 %v3489
      %v3588 = vpop.f32.mrf.mxu0
      %v3589 = vadd.f32 0.0, %v3588
      %v3590 = vpop.f32.mrf.mxu0
      %v3591 = vpop.f32.mrf.mxu0
      %v3592 = vadd.f32 0.0, %v3591
      %v3593 = vpop.f32.mrf.mxu0
      %3594 = vmatprep.mubr.bf16.mxu0 0
      %3595 = vmatmul.mubr.bf16.gmra.mxu0 %v3492
      %v3596 = vpop.f32.mrf.mxu0
      %v3597 = vadd.f32 0.0, %v3596
      %v3598 = vpop.f32.mrf.mxu0
      %v3599 = vpop.f32.mrf.mxu0
      %v3600 = vadd.f32 0.0, %v3599
      %v3601 = vpop.f32.mrf.mxu0
      %3602 = vmatprep.mubr.bf16.mxu0 0
      %3603 = vmatmul.mubr.bf16.gmra.mxu0 %v3495
      %v3604 = vpop.f32.mrf.mxu0
      %v3605 = vadd.f32 0.0, %v3604
      %v3606 = vpop.f32.mrf.mxu0
      %v3607 = vpop.f32.mrf.mxu0
      %v3608 = vadd.f32 0.0, %v3607
      %v3609 = vpop.f32.mrf.mxu0
      %3610 = vmatprep.mubr.bf16.mxu0 0
      %3611 = vmatmul.mubr.bf16.gmra.mxu0 %v3498
      %v3612 = vpop.f32.mrf.mxu0
      %v3613 = vadd.f32 0.0, %v3612
      %v3614 = vpop.f32.mrf.mxu0
      %v3615 = vpop.f32.mrf.mxu0
      %v3616 = vadd.f32 0.0, %v3615
      %v3617 = vpop.f32.mrf.mxu0
      %3618 = vmatprep.mubr.bf16.mxu0 0
      %3619 = vmatmul.mubr.bf16.gmra.mxu0 %v3501
      %v3620 = vpop.f32.mrf.mxu0
      %v3621 = vadd.f32 0.0, %v3620
      %v3622 = vpop.f32.mrf.mxu0
      %v3623 = vpop.f32.mrf.mxu0
      %v3624 = vadd.f32 0.0, %v3623
      %v3625 = vpop.f32.mrf.mxu0
      %3626 = vmatprep.mubr.bf16.mxu0 0
      %3627 = vmatmul.mubr.bf16.gmra.mxu0 %v3504
      %v3628 = vpop.f32.mrf.mxu0
      %v3629 = vadd.f32 0.0, %v3628
      %v3630 = vpop.f32.mrf.mxu0
      %v3631 = vpop.f32.mrf.mxu0
      %v3632 = vadd.f32 0.0, %v3631
      %v3633 = vpop.f32.mrf.mxu0
      %3634 = vmatprep.mubr.bf16.mxu0 0
      %3635 = vmatmul.mubr.bf16.gmra.mxu0 %v3507
      %v3636 = vpop.f32.mrf.mxu0
      %v3637 = vadd.f32 0.0, %v3636
      %v3638 = vpop.f32.mrf.mxu0
      %v3639 = vpop.f32.mrf.mxu0
      %v3640 = vadd.f32 0.0, %v3639
      %v3641 = vpop.f32.mrf.mxu0
      %3642 = vmatprep.mubr.bf16.mxu0 0
      %3643 = vmatmul.mubr.bf16.gmra.mxu0 %v3510
      %v3644 = vpop.f32.mrf.mxu0
      %v3645 = vadd.f32 0.0, %v3644
      %v3646 = vpop.f32.mrf.mxu0
      %v3647 = vpop.f32.mrf.mxu0
      %v3648 = vadd.f32 0.0, %v3647
      %v3649 = vpop.f32.mrf.mxu0
      %3650 = vmatprep.mubr.bf16.mxu0 0
      %3651 = vmatmul.mubr.bf16.gmra.mxu0 %v3513
      %v3652 = vpop.f32.mrf.mxu0
      %v3653 = vadd.f32 0.0, %v3652
      %v3654 = vpop.f32.mrf.mxu0
      %v3655 = vpop.f32.mrf.mxu0
      %v3656 = vadd.f32 0.0, %v3655
      %v3657 = vpop.f32.mrf.mxu0
      %3658 = vmatprep.mubr.bf16.mxu0 0
      %3659 = vmatmul.mubr.bf16.gmra.mxu0 %v3516
      %v3660 = vpop.f32.mrf.mxu0
      %v3661 = vadd.f32 0.0, %v3660
      %v3662 = vpop.f32.mrf.mxu0
      %v3663 = vpop.f32.mrf.mxu0
      %v3664 = vadd.f32 0.0, %v3663
      %v3665 = vpop.f32.mrf.mxu0
      %3666 = vmatprep.mubr.bf16.mxu0 0
      %3667 = vmatmul.mubr.bf16.gmra.mxu0 %v3519
      %v3668 = vpop.f32.mrf.mxu0
      %v3669 = vadd.f32 0.0, %v3668
      %v3670 = vpop.f32.mrf.mxu0
      %v3671 = vpop.f32.mrf.mxu0
      %v3672 = vadd.f32 0.0, %v3671
      %v3673 = vpop.f32.mrf.mxu0
      %3674 = vmatprep.mubr.bf16.mxu0 0
      %3675 = vmatmul.mubr.bf16.gmra.mxu0 %v3522
      %v3676 = vpop.f32.mrf.mxu0
      %v3677 = vadd.f32 0.0, %v3676
      %v3678 = vpop.f32.mrf.mxu0
      %v3679 = vpop.f32.mrf.mxu0
      %v3680 = vadd.f32 0.0, %v3679
      %v3681 = vpop.f32.mrf.mxu0
      %3682 = vmatprep.mubr.bf16.mxu0 0
      %3683 = vmatmul.mubr.bf16.gmra.mxu0 %v3525
      %v3684 = vpop.f32.mrf.mxu0
      %v3685 = vadd.f32 0.0, %v3684
      %v3686 = vpop.f32.mrf.mxu0
      %v3687 = vpop.f32.mrf.mxu0
      %v3688 = vadd.f32 0.0, %v3687
      %v3689 = vpop.f32.mrf.mxu0
      %3690 = vdwg.mxu0
      %v3691 = vadd.f32 %v3221, %v3565
      %v3692 = vadd.f32 %v3222, %v3568
      %v3693 = vadd.f32 %v3223, %v3573
      %v3694 = vadd.f32 %v3224, %v3576
      %v3695 = vadd.f32 %v3225, %v3581
      %v3696 = vadd.f32 %v3226, %v3584
      %v3697 = vadd.f32 %v3227, %v3589
      %v3698 = vadd.f32 %v3228, %v3592
      %v3699 = vadd.f32 %v3229, %v3597
      %v3700 = vadd.f32 %v3230, %v3600
      %v3701 = vadd.f32 %v3231, %v3605
      %v3702 = vadd.f32 %v3232, %v3608
      %v3703 = vadd.f32 %v3233, %v3613
      %v3704 = vadd.f32 %v3234, %v3616
      %v3705 = vadd.f32 %v3235, %v3621
      %v3706 = vadd.f32 %v3236, %v3624
      %v3707 = vadd.f32 %v3237, %v3629
      %v3708 = vadd.f32 %v3238, %v3632
      %v3709 = vadd.f32 %v3239, %v3637
      %v3710 = vadd.f32 %v3240, %v3640
      %v3711 = vadd.f32 %v3241, %v3645
      %v3712 = vadd.f32 %v3242, %v3648
      %v3713 = vadd.f32 %v3243, %v3653
      %v3714 = vadd.f32 %v3244, %v3656
      %v3715 = vadd.f32 %v3245, %v3661
      %v3716 = vadd.f32 %v3246, %v3664
      %v3717 = vadd.f32 %v3247, %v3669
      %v3718 = vadd.f32 %v3248, %v3672
      %v3719 = vadd.f32 %v3249, %v3677
      %v3720 = vadd.f32 %v3250, %v3680
      %v3721 = vadd.f32 %v3251, %v3685
      %v3722 = vadd.f32 %v3252, %v3688
      %s3723 = scalar_lea.vmem [#allocation2], 24
      %v3724 = vld [vmem:[%s3723] sm:$0xf]
      %v3725 = vld [vmem:[%s3723 + $0x4] sm:$0xf]
      %v3726 = vld [vmem:[%s3723 + $0xc] sm:$0xf]
      %v3727 = vld [vmem:[%s3723 + $0x10] sm:$0xf]
      %v3728 = vld [vmem:[%s3723 + $0x18] sm:$0xf]
      %v3729 = vld [vmem:[%s3723 + $0x1c] sm:$0xf]
      %v3730 = vld [vmem:[%s3723 + $0x24] sm:$0xf]
      %v3731 = vld [vmem:[%s3723 + $0x28] sm:$0xf]
      %v3732 = vld [vmem:[%s3723 + $0x30] sm:$0xf]
      %v3733 = vld [vmem:[%s3723 + $0x34] sm:$0xf]
      %v3734 = vld [vmem:[%s3723 + $0x3c] sm:$0xf]
      %v3735 = vld [vmem:[%s3723 + $0x40] sm:$0xf]
      %v3736 = vld [vmem:[%s3723 + $0x48] sm:$0xf]
      %v3737 = vld [vmem:[%s3723 + $0x4c] sm:$0xf]
      %v3738 = vld [vmem:[%s3723 + $0x54] sm:$0xf]
      %v3739 = vld [vmem:[%s3723 + $0x58] sm:$0xf]
      %v3740 = vld [vmem:[%s3723 + $0x60] sm:$0xf]
      %v3741 = vld [vmem:[%s3723 + $0x64] sm:$0xf]
      %v3742 = vld [vmem:[%s3723 + $0x6c] sm:$0xf]
      %v3743 = vld [vmem:[%s3723 + $0x70] sm:$0xf]
      %v3744 = vld [vmem:[%s3723 + $0x78] sm:$0xf]
      %v3745 = vld [vmem:[%s3723 + $0x7c] sm:$0xf]
      %v3746 = vld [vmem:[%s3723 + $0x84] sm:$0xf]
      %v3747 = vld [vmem:[%s3723 + $0x88] sm:$0xf]
      %v3748 = vld [vmem:[%s3723 + $0x90] sm:$0xf]
      %v3749 = vld [vmem:[%s3723 + $0x94] sm:$0xf]
      %v3750 = vld [vmem:[%s3723 + $0x9c] sm:$0xf]
      %v3751 = vld [vmem:[%s3723 + $0xa0] sm:$0xf]
      %v3752 = vld [vmem:[%s3723 + $0xa8] sm:$0xf]
      %v3753 = vld [vmem:[%s3723 + $0xac] sm:$0xf]
      %v3754 = vld [vmem:[%s3723 + $0xb4] sm:$0xf]
      %v3755 = vld [vmem:[%s3723 + $0xb8] sm:$0xf]
      %s3756 = scalar_lea.vmem %s3, 12
      %v3757 = vld [vmem:[%s3756] sm:$0x3]
      %v3790 = vunpack.c.l.b16 %v3724
      %v3791 = vunpack.c.l.b16 %v3725
      %v3792 = vunpack.c.l.b16 %v3726
      %v3793 = vunpack.c.l.b16 %v3727
      %v3794 = vunpack.c.l.b16 %v3728
      %v3795 = vunpack.c.l.b16 %v3729
      %v3796 = vunpack.c.l.b16 %v3730
      %v3797 = vunpack.c.l.b16 %v3731
      %v3798 = vunpack.c.l.b16 %v3732
      %v3799 = vunpack.c.l.b16 %v3733
      %v3800 = vunpack.c.l.b16 %v3734
      %v3801 = vunpack.c.l.b16 %v3735
      %v3802 = vunpack.c.l.b16 %v3736
      %v3803 = vunpack.c.l.b16 %v3737
      %v3804 = vunpack.c.l.b16 %v3738
      %v3805 = vunpack.c.l.b16 %v3739
      %v3806 = vunpack.c.l.b16 %v3740
      %v3807 = vunpack.c.l.b16 %v3741
      %v3808 = vunpack.c.l.b16 %v3742
      %v3809 = vunpack.c.l.b16 %v3743
      %v3810 = vunpack.c.l.b16 %v3744
      %v3811 = vunpack.c.l.b16 %v3745
      %v3812 = vunpack.c.l.b16 %v3746
      %v3813 = vunpack.c.l.b16 %v3747
      %v3814 = vunpack.c.l.b16 %v3748
      %v3815 = vunpack.c.l.b16 %v3749
      %v3816 = vunpack.c.l.b16 %v3750
      %v3817 = vunpack.c.l.b16 %v3751
      %v3818 = vunpack.c.l.b16 %v3752
      %v3819 = vunpack.c.l.b16 %v3753
      %v3820 = vunpack.c.l.b16 %v3754
      %v3821 = vunpack.c.l.b16 %v3755
      %v3822 = vpack.c.b16 %v3791, %v3790
      %v3823 = vpack.c.b16 %v3793, %v3792
      %v3824 = vpack.c.b16 %v3795, %v3794
      %v3825 = vpack.c.b16 %v3797, %v3796
      %v3826 = vpack.c.b16 %v3799, %v3798
      %v3827 = vpack.c.b16 %v3801, %v3800
      %v3828 = vpack.c.b16 %v3803, %v3802
      %v3829 = vpack.c.b16 %v3805, %v3804
      %v3830 = vpack.c.b16 %v3807, %v3806
      %v3831 = vpack.c.b16 %v3809, %v3808
      %v3832 = vpack.c.b16 %v3811, %v3810
      %v3833 = vpack.c.b16 %v3813, %v3812
      %v3834 = vpack.c.b16 %v3815, %v3814
      %v3835 = vpack.c.b16 %v3817, %v3816
      %v3836 = vpack.c.b16 %v3819, %v3818
      %v3837 = vpack.c.b16 %v3821, %v3820
      %v3839 = vsel %vm1205, %v3822, 0
      %v3842 = vsel %vm1205, %v3823, 0
      %v3845 = vsel %vm1205, %v3824, 0
      %v3848 = vsel %vm1205, %v3825, 0
      %v3851 = vsel %vm1205, %v3826, 0
      %v3854 = vsel %vm1205, %v3827, 0
      %v3857 = vsel %vm1205, %v3828, 0
      %v3860 = vsel %vm1205, %v3829, 0
      %v3863 = vsel %vm1205, %v3830, 0
      %v3866 = vsel %vm1205, %v3831, 0
      %v3869 = vsel %vm1205, %v3832, 0
      %v3872 = vsel %vm1205, %v3833, 0
      %v3875 = vsel %vm1205, %v3834, 0
      %v3878 = vsel %vm1205, %v3835, 0
      %v3881 = vsel %vm1205, %v3836, 0
      %v3884 = vsel %vm1205, %v3837, 0
      %v3887 = vsel %vm1254, %v3757, 0
      %3889 = vmatprep.subr.bf16.mxu0 0
      %3890 = vmatpush1.bf16.msra.mxu0 0
      %3891 = vmatprep.subr.bf16.mxu0 0
      %3892 = vmatpush1.bf16.msra.mxu0 0
      %3893 = vmatprep.subr.bf16.mxu0 0
      %3894 = vmatpush1.bf16.msra.mxu0 0
      %3895 = vmatprep.subr.bf16.mxu0 0
      %3896 = vmatpush1.bf16.msra.mxu0 0
      %3897 = vmatprep.subr.bf16.mxu0 0
      %3898 = vmatpush1.bf16.msra.mxu0 0
      %3899 = vmatprep.subr.bf16.mxu0 0
      %3900 = vmatpush1.bf16.msra.mxu0 0
      %3901 = vmatprep.subr.bf16.mxu0 0
      %3902 = vmatpush1.bf16.msra.mxu0 0
      %3903 = vmatprep.subr.bf16.mxu0 0
      %3904 = vmatpush1.bf16.msra.mxu0 %v3887
      %3905 = vmatprep.subr.bf16.mxu0 0
      %3906 = vmatpush2.bf16.msra.mxu0 0
      %3907 = vmatprep.subr.bf16.mxu0 0
      %3908 = vmatpush2.bf16.msra.mxu0 0
      %3909 = vmatprep.subr.bf16.mxu0 0
      %3910 = vmatpush2.bf16.msra.mxu0 0
      %3911 = vmatprep.subr.bf16.mxu0 0
      %3912 = vmatpush2.bf16.msra.mxu0 0
      %3913 = vmatprep.subr.bf16.mxu0 0
      %3914 = vmatpush2.bf16.msra.mxu0 0
      %3915 = vmatprep.subr.bf16.mxu0 0
      %3916 = vmatpush2.bf16.msra.mxu0 0
      %3917 = vmatprep.subr.bf16.mxu0 0
      %3918 = vmatpush2.bf16.msra.mxu0 0
      %3919 = vmatprep.subr.bf16.mxu0 0
      %3920 = vmatpush2.bf16.msra.mxu0 0
      %3921 = vmatprep.mubr.bf16.mxu0 0
      %3922 = vmatmul.mubr.bf16.gmra.mxu0 %v3839
      %v3923 = vpop.f32.mrf.mxu0
      %v3924 = vadd.f32 0.0, %v3923
      %v3925 = vpop.f32.mrf.mxu0
      %v3926 = vpop.f32.mrf.mxu0
      %v3927 = vadd.f32 0.0, %v3926
      %v3928 = vpop.f32.mrf.mxu0
      %3929 = vmatprep.mubr.bf16.mxu0 0
      %3930 = vmatmul.mubr.bf16.gmra.mxu0 %v3842
      %v3931 = vpop.f32.mrf.mxu0
      %v3932 = vadd.f32 0.0, %v3931
      %v3933 = vpop.f32.mrf.mxu0
      %v3934 = vpop.f32.mrf.mxu0
      %v3935 = vadd.f32 0.0, %v3934
      %v3936 = vpop.f32.mrf.mxu0
      %3937 = vmatprep.mubr.bf16.mxu0 0
      %3938 = vmatmul.mubr.bf16.gmra.mxu0 %v3845
      %v3939 = vpop.f32.mrf.mxu0
      %v3940 = vadd.f32 0.0, %v3939
      %v3941 = vpop.f32.mrf.mxu0
      %v3942 = vpop.f32.mrf.mxu0
      %v3943 = vadd.f32 0.0, %v3942
      %v3944 = vpop.f32.mrf.mxu0
      %3945 = vmatprep.mubr.bf16.mxu0 0
      %3946 = vmatmul.mubr.bf16.gmra.mxu0 %v3848
      %v3947 = vpop.f32.mrf.mxu0
      %v3948 = vadd.f32 0.0, %v3947
      %v3949 = vpop.f32.mrf.mxu0
      %v3950 = vpop.f32.mrf.mxu0
      %v3951 = vadd.f32 0.0, %v3950
      %v3952 = vpop.f32.mrf.mxu0
      %3953 = vmatprep.mubr.bf16.mxu0 0
      %3954 = vmatmul.mubr.bf16.gmra.mxu0 %v3851
      %v3955 = vpop.f32.mrf.mxu0
      %v3956 = vadd.f32 0.0, %v3955
      %v3957 = vpop.f32.mrf.mxu0
      %v3958 = vpop.f32.mrf.mxu0
      %v3959 = vadd.f32 0.0, %v3958
      %v3960 = vpop.f32.mrf.mxu0
      %3961 = vmatprep.mubr.bf16.mxu0 0
      %3962 = vmatmul.mubr.bf16.gmra.mxu0 %v3854
      %v3963 = vpop.f32.mrf.mxu0
      %v3964 = vadd.f32 0.0, %v3963
      %v3965 = vpop.f32.mrf.mxu0
      %v3966 = vpop.f32.mrf.mxu0
      %v3967 = vadd.f32 0.0, %v3966
      %v3968 = vpop.f32.mrf.mxu0
      %3969 = vmatprep.mubr.bf16.mxu0 0
      %3970 = vmatmul.mubr.bf16.gmra.mxu0 %v3857
      %v3971 = vpop.f32.mrf.mxu0
      %v3972 = vadd.f32 0.0, %v3971
      %v3973 = vpop.f32.mrf.mxu0
      %v3974 = vpop.f32.mrf.mxu0
      %v3975 = vadd.f32 0.0, %v3974
      %v3976 = vpop.f32.mrf.mxu0
      %3977 = vmatprep.mubr.bf16.mxu0 0
      %3978 = vmatmul.mubr.bf16.gmra.mxu0 %v3860
      %v3979 = vpop.f32.mrf.mxu0
      %v3980 = vadd.f32 0.0, %v3979
      %v3981 = vpop.f32.mrf.mxu0
      %v3982 = vpop.f32.mrf.mxu0
      %v3983 = vadd.f32 0.0, %v3982
      %v3984 = vpop.f32.mrf.mxu0
      %3985 = vmatprep.mubr.bf16.mxu0 0
      %3986 = vmatmul.mubr.bf16.gmra.mxu0 %v3863
      %v3987 = vpop.f32.mrf.mxu0
      %v3988 = vadd.f32 0.0, %v3987
      %v3989 = vpop.f32.mrf.mxu0
      %v3990 = vpop.f32.mrf.mxu0
      %v3991 = vadd.f32 0.0, %v3990
      %v3992 = vpop.f32.mrf.mxu0
      %3993 = vmatprep.mubr.bf16.mxu0 0
      %3994 = vmatmul.mubr.bf16.gmra.mxu0 %v3866
      %v3995 = vpop.f32.mrf.mxu0
      %v3996 = vadd.f32 0.0, %v3995
      %v3997 = vpop.f32.mrf.mxu0
      %v3998 = vpop.f32.mrf.mxu0
      %v3999 = vadd.f32 0.0, %v3998
      %v4000 = vpop.f32.mrf.mxu0
      %4001 = vmatprep.mubr.bf16.mxu0 0
      %4002 = vmatmul.mubr.bf16.gmra.mxu0 %v3869
      %v4003 = vpop.f32.mrf.mxu0
      %v4004 = vadd.f32 0.0, %v4003
      %v4005 = vpop.f32.mrf.mxu0
      %v4006 = vpop.f32.mrf.mxu0
      %v4007 = vadd.f32 0.0, %v4006
      %v4008 = vpop.f32.mrf.mxu0
      %4009 = vmatprep.mubr.bf16.mxu0 0
      %4010 = vmatmul.mubr.bf16.gmra.mxu0 %v3872
      %v4011 = vpop.f32.mrf.mxu0
      %v4012 = vadd.f32 0.0, %v4011
      %v4013 = vpop.f32.mrf.mxu0
      %v4014 = vpop.f32.mrf.mxu0
      %v4015 = vadd.f32 0.0, %v4014
      %v4016 = vpop.f32.mrf.mxu0
      %4017 = vmatprep.mubr.bf16.mxu0 0
      %4018 = vmatmul.mubr.bf16.gmra.mxu0 %v3875
      %v4019 = vpop.f32.mrf.mxu0
      %v4020 = vadd.f32 0.0, %v4019
      %v4021 = vpop.f32.mrf.mxu0
      %v4022 = vpop.f32.mrf.mxu0
      %v4023 = vadd.f32 0.0, %v4022
      %v4024 = vpop.f32.mrf.mxu0
      %4025 = vmatprep.mubr.bf16.mxu0 0
      %4026 = vmatmul.mubr.bf16.gmra.mxu0 %v3878
      %v4027 = vpop.f32.mrf.mxu0
      %v4028 = vadd.f32 0.0, %v4027
      %v4029 = vpop.f32.mrf.mxu0
      %v4030 = vpop.f32.mrf.mxu0
      %v4031 = vadd.f32 0.0, %v4030
      %v4032 = vpop.f32.mrf.mxu0
      %4033 = vmatprep.mubr.bf16.mxu0 0
      %4034 = vmatmul.mubr.bf16.gmra.mxu0 %v3881
      %v4035 = vpop.f32.mrf.mxu0
      %v4036 = vadd.f32 0.0, %v4035
      %v4037 = vpop.f32.mrf.mxu0
      %v4038 = vpop.f32.mrf.mxu0
      %v4039 = vadd.f32 0.0, %v4038
      %v4040 = vpop.f32.mrf.mxu0
      %4041 = vmatprep.mubr.bf16.mxu0 0
      %4042 = vmatmul.mubr.bf16.gmra.mxu0 %v3884
      %v4043 = vpop.f32.mrf.mxu0
      %v4044 = vadd.f32 0.0, %v4043
      %v4045 = vpop.f32.mrf.mxu0
      %v4046 = vpop.f32.mrf.mxu0
      %v4047 = vadd.f32 0.0, %v4046
      %v4048 = vpop.f32.mrf.mxu0
      %4049 = vdwg.mxu0
      %v4050 = vadd.f32 %v3691, %v3924
      %v4051 = vadd.f32 %v3692, %v3927
      %v4052 = vadd.f32 %v3693, %v3932
      %v4053 = vadd.f32 %v3694, %v3935
      %v4054 = vadd.f32 %v3695, %v3940
      %v4055 = vadd.f32 %v3696, %v3943
      %v4056 = vadd.f32 %v3697, %v3948
      %v4057 = vadd.f32 %v3698, %v3951
      %v4058 = vadd.f32 %v3699, %v3956
      %v4059 = vadd.f32 %v3700, %v3959
      %v4060 = vadd.f32 %v3701, %v3964
      %v4061 = vadd.f32 %v3702, %v3967
      %v4062 = vadd.f32 %v3703, %v3972
      %v4063 = vadd.f32 %v3704, %v3975
      %v4064 = vadd.f32 %v3705, %v3980
      %v4065 = vadd.f32 %v3706, %v3983
      %v4066 = vadd.f32 %v3707, %v3988
      %v4067 = vadd.f32 %v3708, %v3991
      %v4068 = vadd.f32 %v3709, %v3996
      %v4069 = vadd.f32 %v3710, %v3999
      %v4070 = vadd.f32 %v3711, %v4004
      %v4071 = vadd.f32 %v3712, %v4007
      %v4072 = vadd.f32 %v3713, %v4012
      %v4073 = vadd.f32 %v3714, %v4015
      %v4074 = vadd.f32 %v3715, %v4020
      %v4075 = vadd.f32 %v3716, %v4023
      %v4076 = vadd.f32 %v3717, %v4028
      %v4077 = vadd.f32 %v3718, %v4031
      %v4078 = vadd.f32 %v3719, %v4036
      %v4079 = vadd.f32 %v3720, %v4039
      %v4080 = vadd.f32 %v3721, %v4044
      %v4081 = vadd.f32 %v3722, %v4047
      %v4082 = vld [vmem:[%s3723] sm:$0xf]
      %v4083 = vld [vmem:[%s3723 + $0x4] sm:$0xf]
      %v4084 = vld [vmem:[%s3723 + $0x8] sm:$0x1]
      %v4085 = vld [vmem:[%s3723 + $0xc] sm:$0xf]
      %v4086 = vld [vmem:[%s3723 + $0x10] sm:$0xf]
      %v4087 = vld [vmem:[%s3723 + $0x14] sm:$0x1]
      %v4088 = vld [vmem:[%s3723 + $0x18] sm:$0xf]
      %v4089 = vld [vmem:[%s3723 + $0x1c] sm:$0xf]
      %v4090 = vld [vmem:[%s3723 + $0x20] sm:$0x1]
      %v4091 = vld [vmem:[%s3723 + $0x24] sm:$0xf]
      %v4092 = vld [vmem:[%s3723 + $0x28] sm:$0xf]
      %v4093 = vld [vmem:[%s3723 + $0x2c] sm:$0x1]
      %v4094 = vld [vmem:[%s3723 + $0x30] sm:$0xf]
      %v4095 = vld [vmem:[%s3723 + $0x34] sm:$0xf]
      %v4096 = vld [vmem:[%s3723 + $0x38] sm:$0x1]
      %v4097 = vld [vmem:[%s3723 + $0x3c] sm:$0xf]
      %v4098 = vld [vmem:[%s3723 + $0x40] sm:$0xf]
      %v4099 = vld [vmem:[%s3723 + $0x44] sm:$0x1]
      %v4100 = vld [vmem:[%s3723 + $0x48] sm:$0xf]
      %v4101 = vld [vmem:[%s3723 + $0x4c] sm:$0xf]
      %v4102 = vld [vmem:[%s3723 + $0x50] sm:$0x1]
      %v4103 = vld [vmem:[%s3723 + $0x54] sm:$0xf]
      %v4104 = vld [vmem:[%s3723 + $0x58] sm:$0xf]
      %v4105 = vld [vmem:[%s3723 + $0x5c] sm:$0x1]
      %v4106 = vld [vmem:[%s3723 + $0x60] sm:$0xf]
      %v4107 = vld [vmem:[%s3723 + $0x64] sm:$0xf]
      %v4108 = vld [vmem:[%s3723 + $0x68] sm:$0x1]
      %v4109 = vld [vmem:[%s3723 + $0x6c] sm:$0xf]
      %v4110 = vld [vmem:[%s3723 + $0x70] sm:$0xf]
      %v4111 = vld [vmem:[%s3723 + $0x74] sm:$0x1]
      %v4112 = vld [vmem:[%s3723 + $0x78] sm:$0xf]
      %v4113 = vld [vmem:[%s3723 + $0x7c] sm:$0xf]
      %v4114 = vld [vmem:[%s3723 + $0x80] sm:$0x1]
      %v4115 = vld [vmem:[%s3723 + $0x84] sm:$0xf]
      %v4116 = vld [vmem:[%s3723 + $0x88] sm:$0xf]
      %v4117 = vld [vmem:[%s3723 + $0x8c] sm:$0x1]
      %v4118 = vld [vmem:[%s3723 + $0x90] sm:$0xf]
      %v4119 = vld [vmem:[%s3723 + $0x94] sm:$0xf]
      %v4120 = vld [vmem:[%s3723 + $0x98] sm:$0x1]
      %v4121 = vld [vmem:[%s3723 + $0x9c] sm:$0xf]
      %v4122 = vld [vmem:[%s3723 + $0xa0] sm:$0xf]
      %v4123 = vld [vmem:[%s3723 + $0xa4] sm:$0x1]
      %v4124 = vld [vmem:[%s3723 + $0xa8] sm:$0xf]
      %v4125 = vld [vmem:[%s3723 + $0xac] sm:$0xf]
      %v4126 = vld [vmem:[%s3723 + $0xb0] sm:$0x1]
      %v4127 = vld [vmem:[%s3723 + $0xb4] sm:$0xf]
      %v4128 = vld [vmem:[%s3723 + $0xb8] sm:$0xf]
      %v4129 = vld [vmem:[%s3723 + $0xbc] sm:$0x1]
      %v4131 = vshrl.u32 %v4082, 16
      %v4133 = vrot.slane %v4131, 4
      %v4134 = vshll.u32 %v4082, 16
      %v4136 = vrot.slane %v4134, 5
      %v4137 = vor.u32 %v4133, %v4136
      %v4138 = vrot.slane %v4137, 4
      %v4140 = vshll.u32 %v4083, 16
      %v4142 = vrot.slane %v4140, 5
      %v4143 = vsel %vm770, %v4138, %v4142
      %v4144 = vshrl.u32 %v4083, 16
      %v4146 = vrot.slane %v4144, 4
      %v4147 = vor.u32 %v4146, %v4142
      %v4148 = vrot.slane %v4147, 4
      %v4150 = vshll.u32 %v4084, 16
      %v4152 = vrot.slane %v4150, 5
      %v4153 = vsel %vm770, %v4148, %v4152
      %v4155 = vshrl.u32 %v4085, 16
      %v4157 = vrot.slane %v4155, 4
      %v4158 = vshll.u32 %v4085, 16
      %v4160 = vrot.slane %v4158, 5
      %v4161 = vor.u32 %v4157, %v4160
      %v4162 = vrot.slane %v4161, 4
      %v4164 = vshll.u32 %v4086, 16
      %v4166 = vrot.slane %v4164, 5
      %v4167 = vsel %vm770, %v4162, %v4166
      %v4168 = vshrl.u32 %v4086, 16
      %v4170 = vrot.slane %v4168, 4
      %v4171 = vor.u32 %v4170, %v4166
      %v4172 = vrot.slane %v4171, 4
      %v4174 = vshll.u32 %v4087, 16
      %v4176 = vrot.slane %v4174, 5
      %v4177 = vsel %vm770, %v4172, %v4176
      %v4179 = vshrl.u32 %v4088, 16
      %v4181 = vrot.slane %v4179, 4
      %v4182 = vshll.u32 %v4088, 16
      %v4184 = vrot.slane %v4182, 5
      %v4185 = vor.u32 %v4181, %v4184
      %v4186 = vrot.slane %v4185, 4
      %v4188 = vshll.u32 %v4089, 16
      %v4190 = vrot.slane %v4188, 5
      %v4191 = vsel %vm770, %v4186, %v4190
      %v4192 = vshrl.u32 %v4089, 16
      %v4194 = vrot.slane %v4192, 4
      %v4195 = vor.u32 %v4194, %v4190
      %v4196 = vrot.slane %v4195, 4
      %v4198 = vshll.u32 %v4090, 16
      %v4200 = vrot.slane %v4198, 5
      %v4201 = vsel %vm770, %v4196, %v4200
      %v4203 = vshrl.u32 %v4091, 16
      %v4205 = vrot.slane %v4203, 4
      %v4206 = vshll.u32 %v4091, 16
      %v4208 = vrot.slane %v4206, 5
      %v4209 = vor.u32 %v4205, %v4208
      %v4210 = vrot.slane %v4209, 4
      %v4212 = vshll.u32 %v4092, 16
      %v4214 = vrot.slane %v4212, 5
      %v4215 = vsel %vm770, %v4210, %v4214
      %v4216 = vshrl.u32 %v4092, 16
      %v4218 = vrot.slane %v4216, 4
      %v4219 = vor.u32 %v4218, %v4214
      %v4220 = vrot.slane %v4219, 4
      %v4222 = vshll.u32 %v4093, 16
      %v4224 = vrot.slane %v4222, 5
      %v4225 = vsel %vm770, %v4220, %v4224
      %v4227 = vshrl.u32 %v4094, 16
      %v4229 = vrot.slane %v4227, 4
      %v4230 = vshll.u32 %v4094, 16
      %v4232 = vrot.slane %v4230, 5
      %v4233 = vor.u32 %v4229, %v4232
      %v4234 = vrot.slane %v4233, 4
      %v4236 = vshll.u32 %v4095, 16
      %v4238 = vrot.slane %v4236, 5
      %v4239 = vsel %vm770, %v4234, %v4238
      %v4240 = vshrl.u32 %v4095, 16
      %v4242 = vrot.slane %v4240, 4
      %v4243 = vor.u32 %v4242, %v4238
      %v4244 = vrot.slane %v4243, 4
      %v4246 = vshll.u32 %v4096, 16
      %v4248 = vrot.slane %v4246, 5
      %v4249 = vsel %vm770, %v4244, %v4248
      %v4251 = vshrl.u32 %v4097, 16
      %v4253 = vrot.slane %v4251, 4
      %v4254 = vshll.u32 %v4097, 16
      %v4256 = vrot.slane %v4254, 5
      %v4257 = vor.u32 %v4253, %v4256
      %v4258 = vrot.slane %v4257, 4
      %v4260 = vshll.u32 %v4098, 16
      %v4262 = vrot.slane %v4260, 5
      %v4263 = vsel %vm770, %v4258, %v4262
      %v4264 = vshrl.u32 %v4098, 16
      %v4266 = vrot.slane %v4264, 4
      %v4267 = vor.u32 %v4266, %v4262
      %v4268 = vrot.slane %v4267, 4
      %v4270 = vshll.u32 %v4099, 16
      %v4272 = vrot.slane %v4270, 5
      %v4273 = vsel %vm770, %v4268, %v4272
      %v4275 = vshrl.u32 %v4100, 16
      %v4277 = vrot.slane %v4275, 4
      %v4278 = vshll.u32 %v4100, 16
      %v4280 = vrot.slane %v4278, 5
      %v4281 = vor.u32 %v4277, %v4280
      %v4282 = vrot.slane %v4281, 4
      %v4284 = vshll.u32 %v4101, 16
      %v4286 = vrot.slane %v4284, 5
      %v4287 = vsel %vm770, %v4282, %v4286
      %v4288 = vshrl.u32 %v4101, 16
      %v4290 = vrot.slane %v4288, 4
      %v4291 = vor.u32 %v4290, %v4286
      %v4292 = vrot.slane %v4291, 4
      %v4294 = vshll.u32 %v4102, 16
      %v4296 = vrot.slane %v4294, 5
      %v4297 = vsel %vm770, %v4292, %v4296
      %v4299 = vshrl.u32 %v4103, 16
      %v4301 = vrot.slane %v4299, 4
      %v4302 = vshll.u32 %v4103, 16
      %v4304 = vrot.slane %v4302, 5
      %v4305 = vor.u32 %v4301, %v4304
      %v4306 = vrot.slane %v4305, 4
      %v4308 = vshll.u32 %v4104, 16
      %v4310 = vrot.slane %v4308, 5
      %v4311 = vsel %vm770, %v4306, %v4310
      %v4312 = vshrl.u32 %v4104, 16
      %v4314 = vrot.slane %v4312, 4
      %v4315 = vor.u32 %v4314, %v4310
      %v4316 = vrot.slane %v4315, 4
      %v4318 = vshll.u32 %v4105, 16
      %v4320 = vrot.slane %v4318, 5
      %v4321 = vsel %vm770, %v4316, %v4320
      %v4323 = vshrl.u32 %v4106, 16
      %v4325 = vrot.slane %v4323, 4
      %v4326 = vshll.u32 %v4106, 16
      %v4328 = vrot.slane %v4326, 5
      %v4329 = vor.u32 %v4325, %v4328
      %v4330 = vrot.slane %v4329, 4
      %v4332 = vshll.u32 %v4107, 16
      %v4334 = vrot.slane %v4332, 5
      %v4335 = vsel %vm770, %v4330, %v4334
      %v4336 = vshrl.u32 %v4107, 16
      %v4338 = vrot.slane %v4336, 4
      %v4339 = vor.u32 %v4338, %v4334
      %v4340 = vrot.slane %v4339, 4
      %v4342 = vshll.u32 %v4108, 16
      %v4344 = vrot.slane %v4342, 5
      %v4345 = vsel %vm770, %v4340, %v4344
      %v4347 = vshrl.u32 %v4109, 16
      %v4349 = vrot.slane %v4347, 4
      %v4350 = vshll.u32 %v4109, 16
      %v4352 = vrot.slane %v4350, 5
      %v4353 = vor.u32 %v4349, %v4352
      %v4354 = vrot.slane %v4353, 4
      %v4356 = vshll.u32 %v4110, 16
      %v4358 = vrot.slane %v4356, 5
      %v4359 = vsel %vm770, %v4354, %v4358
      %v4360 = vshrl.u32 %v4110, 16
      %v4362 = vrot.slane %v4360, 4
      %v4363 = vor.u32 %v4362, %v4358
      %v4364 = vrot.slane %v4363, 4
      %v4366 = vshll.u32 %v4111, 16
      %v4368 = vrot.slane %v4366, 5
      %v4369 = vsel %vm770, %v4364, %v4368
      %v4371 = vshrl.u32 %v4112, 16
      %v4373 = vrot.slane %v4371, 4
      %v4374 = vshll.u32 %v4112, 16
      %v4376 = vrot.slane %v4374, 5
      %v4377 = vor.u32 %v4373, %v4376
      %v4378 = vrot.slane %v4377, 4
      %v4380 = vshll.u32 %v4113, 16
      %v4382 = vrot.slane %v4380, 5
      %v4383 = vsel %vm770, %v4378, %v4382
      %v4384 = vshrl.u32 %v4113, 16
      %v4386 = vrot.slane %v4384, 4
      %v4387 = vor.u32 %v4386, %v4382
      %v4388 = vrot.slane %v4387, 4
      %v4390 = vshll.u32 %v4114, 16
      %v4392 = vrot.slane %v4390, 5
      %v4393 = vsel %vm770, %v4388, %v4392
      %v4395 = vshrl.u32 %v4115, 16
      %v4397 = vrot.slane %v4395, 4
      %v4398 = vshll.u32 %v4115, 16
      %v4400 = vrot.slane %v4398, 5
      %v4401 = vor.u32 %v4397, %v4400
      %v4402 = vrot.slane %v4401, 4
      %v4404 = vshll.u32 %v4116, 16
      %v4406 = vrot.slane %v4404, 5
      %v4407 = vsel %vm770, %v4402, %v4406
      %v4408 = vshrl.u32 %v4116, 16
      %v4410 = vrot.slane %v4408, 4
      %v4411 = vor.u32 %v4410, %v4406
      %v4412 = vrot.slane %v4411, 4
      %v4414 = vshll.u32 %v4117, 16
      %v4416 = vrot.slane %v4414, 5
      %v4417 = vsel %vm770, %v4412, %v4416
      %v4419 = vshrl.u32 %v4118, 16
      %v4421 = vrot.slane %v4419, 4
      %v4422 = vshll.u32 %v4118, 16
      %v4424 = vrot.slane %v4422, 5
      %v4425 = vor.u32 %v4421, %v4424
      %v4426 = vrot.slane %v4425, 4
      %v4428 = vshll.u32 %v4119, 16
      %v4430 = vrot.slane %v4428, 5
      %v4431 = vsel %vm770, %v4426, %v4430
      %v4432 = vshrl.u32 %v4119, 16
      %v4434 = vrot.slane %v4432, 4
      %v4435 = vor.u32 %v4434, %v4430
      %v4436 = vrot.slane %v4435, 4
      %v4438 = vshll.u32 %v4120, 16
      %v4440 = vrot.slane %v4438, 5
      %v4441 = vsel %vm770, %v4436, %v4440
      %v4443 = vshrl.u32 %v4121, 16
      %v4445 = vrot.slane %v4443, 4
      %v4446 = vshll.u32 %v4121, 16
      %v4448 = vrot.slane %v4446, 5
      %v4449 = vor.u32 %v4445, %v4448
      %v4450 = vrot.slane %v4449, 4
      %v4452 = vshll.u32 %v4122, 16
      %v4454 = vrot.slane %v4452, 5
      %v4455 = vsel %vm770, %v4450, %v4454
      %v4456 = vshrl.u32 %v4122, 16
      %v4458 = vrot.slane %v4456, 4
      %v4459 = vor.u32 %v4458, %v4454
      %v4460 = vrot.slane %v4459, 4
      %v4462 = vshll.u32 %v4123, 16
      %v4464 = vrot.slane %v4462, 5
      %v4465 = vsel %vm770, %v4460, %v4464
      %v4467 = vshrl.u32 %v4124, 16
      %v4469 = vrot.slane %v4467, 4
      %v4470 = vshll.u32 %v4124, 16
      %v4472 = vrot.slane %v4470, 5
      %v4473 = vor.u32 %v4469, %v4472
      %v4474 = vrot.slane %v4473, 4
      %v4476 = vshll.u32 %v4125, 16
      %v4478 = vrot.slane %v4476, 5
      %v4479 = vsel %vm770, %v4474, %v4478
      %v4480 = vshrl.u32 %v4125, 16
      %v4482 = vrot.slane %v4480, 4
      %v4483 = vor.u32 %v4482, %v4478
      %v4484 = vrot.slane %v4483, 4
      %v4486 = vshll.u32 %v4126, 16
      %v4488 = vrot.slane %v4486, 5
      %v4489 = vsel %vm770, %v4484, %v4488
      %v4491 = vshrl.u32 %v4127, 16
      %v4493 = vrot.slane %v4491, 4
      %v4494 = vshll.u32 %v4127, 16
      %v4496 = vrot.slane %v4494, 5
      %v4497 = vor.u32 %v4493, %v4496
      %v4498 = vrot.slane %v4497, 4
      %v4500 = vshll.u32 %v4128, 16
      %v4502 = vrot.slane %v4500, 5
      %v4503 = vsel %vm770, %v4498, %v4502
      %v4504 = vshrl.u32 %v4128, 16
      %v4506 = vrot.slane %v4504, 4
      %v4507 = vor.u32 %v4506, %v4502
      %v4508 = vrot.slane %v4507, 4
      %v4510 = vshll.u32 %v4129, 16
      %v4512 = vrot.slane %v4510, 5
      %v4513 = vsel %vm770, %v4508, %v4512
      %s4514 = scalar_lea.vmem %s3, 14
      %v4515 = vld [vmem:[%s4514] sm:$0x3]
      %v4516 = vunpack.c.l.b16 %v4143
      %v4517 = vunpack.c.l.b16 %v4153
      %v4518 = vunpack.c.l.b16 %v4167
      %v4519 = vunpack.c.l.b16 %v4177
      %v4520 = vunpack.c.l.b16 %v4191
      %v4521 = vunpack.c.l.b16 %v4201
      %v4522 = vunpack.c.l.b16 %v4215
      %v4523 = vunpack.c.l.b16 %v4225
      %v4524 = vunpack.c.l.b16 %v4239
      %v4525 = vunpack.c.l.b16 %v4249
      %v4526 = vunpack.c.l.b16 %v4263
      %v4527 = vunpack.c.l.b16 %v4273
      %v4528 = vunpack.c.l.b16 %v4287
      %v4529 = vunpack.c.l.b16 %v4297
      %v4530 = vunpack.c.l.b16 %v4311
      %v4531 = vunpack.c.l.b16 %v4321
      %v4532 = vunpack.c.l.b16 %v4335
      %v4533 = vunpack.c.l.b16 %v4345
      %v4534 = vunpack.c.l.b16 %v4359
      %v4535 = vunpack.c.l.b16 %v4369
      %v4536 = vunpack.c.l.b16 %v4383
      %v4537 = vunpack.c.l.b16 %v4393
      %v4538 = vunpack.c.l.b16 %v4407
      %v4539 = vunpack.c.l.b16 %v4417
      %v4540 = vunpack.c.l.b16 %v4431
      %v4541 = vunpack.c.l.b16 %v4441
      %v4542 = vunpack.c.l.b16 %v4455
      %v4543 = vunpack.c.l.b16 %v4465
      %v4544 = vunpack.c.l.b16 %v4479
      %v4545 = vunpack.c.l.b16 %v4489
      %v4546 = vunpack.c.l.b16 %v4503
      %v4547 = vunpack.c.l.b16 %v4513
      %v4548 = vpack.c.b16 %v4517, %v4516
      %v4549 = vpack.c.b16 %v4519, %v4518
      %v4550 = vpack.c.b16 %v4521, %v4520
      %v4551 = vpack.c.b16 %v4523, %v4522
      %v4552 = vpack.c.b16 %v4525, %v4524
      %v4553 = vpack.c.b16 %v4527, %v4526
      %v4554 = vpack.c.b16 %v4529, %v4528
      %v4555 = vpack.c.b16 %v4531, %v4530
      %v4556 = vpack.c.b16 %v4533, %v4532
      %v4557 = vpack.c.b16 %v4535, %v4534
      %v4558 = vpack.c.b16 %v4537, %v4536
      %v4559 = vpack.c.b16 %v4539, %v4538
      %v4560 = vpack.c.b16 %v4541, %v4540
      %v4561 = vpack.c.b16 %v4543, %v4542
      %v4562 = vpack.c.b16 %v4545, %v4544
      %v4563 = vpack.c.b16 %v4547, %v4546
      %v4565 = vsel %vm1205, %v4548, 0
      %v4568 = vsel %vm1205, %v4549, 0
      %v4571 = vsel %vm1205, %v4550, 0
      %v4574 = vsel %vm1205, %v4551, 0
      %v4577 = vsel %vm1205, %v4552, 0
      %v4580 = vsel %vm1205, %v4553, 0
      %v4583 = vsel %vm1205, %v4554, 0
      %v4586 = vsel %vm1205, %v4555, 0
      %v4589 = vsel %vm1205, %v4556, 0
      %v4592 = vsel %vm1205, %v4557, 0
      %v4595 = vsel %vm1205, %v4558, 0
      %v4598 = vsel %vm1205, %v4559, 0
      %v4601 = vsel %vm1205, %v4560, 0
      %v4604 = vsel %vm1205, %v4561, 0
      %v4607 = vsel %vm1205, %v4562, 0
      %v4610 = vsel %vm1205, %v4563, 0
      %v4613 = vsel %vm1254, %v4515, 0
      %4615 = vmatprep.subr.bf16.mxu0 0
      %4616 = vmatpush1.bf16.msra.mxu0 0
      %4617 = vmatprep.subr.bf16.mxu0 0
      %4618 = vmatpush1.bf16.msra.mxu0 0
      %4619 = vmatprep.subr.bf16.mxu0 0
      %4620 = vmatpush1.bf16.msra.mxu0 0
      %4621 = vmatprep.subr.bf16.mxu0 0
      %4622 = vmatpush1.bf16.msra.mxu0 0
      %4623 = vmatprep.subr.bf16.mxu0 0
      %4624 = vmatpush1.bf16.msra.mxu0 0
      %4625 = vmatprep.subr.bf16.mxu0 0
      %4626 = vmatpush1.bf16.msra.mxu0 0
      %4627 = vmatprep.subr.bf16.mxu0 0
      %4628 = vmatpush1.bf16.msra.mxu0 0
      %4629 = vmatprep.subr.bf16.mxu0 0
      %4630 = vmatpush1.bf16.msra.mxu0 %v4613
      %4631 = vmatprep.subr.bf16.mxu0 0
      %4632 = vmatpush2.bf16.msra.mxu0 0
      %4633 = vmatprep.subr.bf16.mxu0 0
      %4634 = vmatpush2.bf16.msra.mxu0 0
      %4635 = vmatprep.subr.bf16.mxu0 0
      %4636 = vmatpush2.bf16.msra.mxu0 0
      %4637 = vmatprep.subr.bf16.mxu0 0
      %4638 = vmatpush2.bf16.msra.mxu0 0
      %4639 = vmatprep.subr.bf16.mxu0 0
      %4640 = vmatpush2.bf16.msra.mxu0 0
      %4641 = vmatprep.subr.bf16.mxu0 0
      %4642 = vmatpush2.bf16.msra.mxu0 0
      %4643 = vmatprep.subr.bf16.mxu0 0
      %4644 = vmatpush2.bf16.msra.mxu0 0
      %4645 = vmatprep.subr.bf16.mxu0 0
      %4646 = vmatpush2.bf16.msra.mxu0 0
      %4647 = vmatprep.mubr.bf16.mxu0 0
      %4648 = vmatmul.mubr.bf16.gmra.mxu0 %v4565
      %v4649 = vpop.f32.mrf.mxu0
      %v4650 = vadd.f32 0.0, %v4649
      %v4651 = vpop.f32.mrf.mxu0
      %v4652 = vpop.f32.mrf.mxu0
      %v4653 = vadd.f32 0.0, %v4652
      %v4654 = vpop.f32.mrf.mxu0
      %4655 = vmatprep.mubr.bf16.mxu0 0
      %4656 = vmatmul.mubr.bf16.gmra.mxu0 %v4568
      %v4657 = vpop.f32.mrf.mxu0
      %v4658 = vadd.f32 0.0, %v4657
      %v4659 = vpop.f32.mrf.mxu0
      %v4660 = vpop.f32.mrf.mxu0
      %v4661 = vadd.f32 0.0, %v4660
      %v4662 = vpop.f32.mrf.mxu0
      %4663 = vmatprep.mubr.bf16.mxu0 0
      %4664 = vmatmul.mubr.bf16.gmra.mxu0 %v4571
      %v4665 = vpop.f32.mrf.mxu0
      %v4666 = vadd.f32 0.0, %v4665
      %v4667 = vpop.f32.mrf.mxu0
      %v4668 = vpop.f32.mrf.mxu0
      %v4669 = vadd.f32 0.0, %v4668
      %v4670 = vpop.f32.mrf.mxu0
      %4671 = vmatprep.mubr.bf16.mxu0 0
      %4672 = vmatmul.mubr.bf16.gmra.mxu0 %v4574
      %v4673 = vpop.f32.mrf.mxu0
      %v4674 = vadd.f32 0.0, %v4673
      %v4675 = vpop.f32.mrf.mxu0
      %v4676 = vpop.f32.mrf.mxu0
      %v4677 = vadd.f32 0.0, %v4676
      %v4678 = vpop.f32.mrf.mxu0
      %4679 = vmatprep.mubr.bf16.mxu0 0
      %4680 = vmatmul.mubr.bf16.gmra.mxu0 %v4577
      %v4681 = vpop.f32.mrf.mxu0
      %v4682 = vadd.f32 0.0, %v4681
      %v4683 = vpop.f32.mrf.mxu0
      %v4684 = vpop.f32.mrf.mxu0
      %v4685 = vadd.f32 0.0, %v4684
      %v4686 = vpop.f32.mrf.mxu0
      %4687 = vmatprep.mubr.bf16.mxu0 0
      %4688 = vmatmul.mubr.bf16.gmra.mxu0 %v4580
      %v4689 = vpop.f32.mrf.mxu0
      %v4690 = vadd.f32 0.0, %v4689
      %v4691 = vpop.f32.mrf.mxu0
      %v4692 = vpop.f32.mrf.mxu0
      %v4693 = vadd.f32 0.0, %v4692
      %v4694 = vpop.f32.mrf.mxu0
      %4695 = vmatprep.mubr.bf16.mxu0 0
      %4696 = vmatmul.mubr.bf16.gmra.mxu0 %v4583
      %v4697 = vpop.f32.mrf.mxu0
      %v4698 = vadd.f32 0.0, %v4697
      %v4699 = vpop.f32.mrf.mxu0
      %v4700 = vpop.f32.mrf.mxu0
      %v4701 = vadd.f32 0.0, %v4700
      %v4702 = vpop.f32.mrf.mxu0
      %4703 = vmatprep.mubr.bf16.mxu0 0
      %4704 = vmatmul.mubr.bf16.gmra.mxu0 %v4586
      %v4705 = vpop.f32.mrf.mxu0
      %v4706 = vadd.f32 0.0, %v4705
      %v4707 = vpop.f32.mrf.mxu0
      %v4708 = vpop.f32.mrf.mxu0
      %v4709 = vadd.f32 0.0, %v4708
      %v4710 = vpop.f32.mrf.mxu0
      %4711 = vmatprep.mubr.bf16.mxu0 0
      %4712 = vmatmul.mubr.bf16.gmra.mxu0 %v4589
      %v4713 = vpop.f32.mrf.mxu0
      %v4714 = vadd.f32 0.0, %v4713
      %v4715 = vpop.f32.mrf.mxu0
      %v4716 = vpop.f32.mrf.mxu0
      %v4717 = vadd.f32 0.0, %v4716
      %v4718 = vpop.f32.mrf.mxu0
      %4719 = vmatprep.mubr.bf16.mxu0 0
      %4720 = vmatmul.mubr.bf16.gmra.mxu0 %v4592
      %v4721 = vpop.f32.mrf.mxu0
      %v4722 = vadd.f32 0.0, %v4721
      %v4723 = vpop.f32.mrf.mxu0
      %v4724 = vpop.f32.mrf.mxu0
      %v4725 = vadd.f32 0.0, %v4724
      %v4726 = vpop.f32.mrf.mxu0
      %4727 = vmatprep.mubr.bf16.mxu0 0
      %4728 = vmatmul.mubr.bf16.gmra.mxu0 %v4595
      %v4729 = vpop.f32.mrf.mxu0
      %v4730 = vadd.f32 0.0, %v4729
      %v4731 = vpop.f32.mrf.mxu0
      %v4732 = vpop.f32.mrf.mxu0
      %v4733 = vadd.f32 0.0, %v4732
      %v4734 = vpop.f32.mrf.mxu0
      %4735 = vmatprep.mubr.bf16.mxu0 0
      %4736 = vmatmul.mubr.bf16.gmra.mxu0 %v4598
      %v4737 = vpop.f32.mrf.mxu0
      %v4738 = vadd.f32 0.0, %v4737
      %v4739 = vpop.f32.mrf.mxu0
      %v4740 = vpop.f32.mrf.mxu0
      %v4741 = vadd.f32 0.0, %v4740
      %v4742 = vpop.f32.mrf.mxu0
      %4743 = vmatprep.mubr.bf16.mxu0 0
      %4744 = vmatmul.mubr.bf16.gmra.mxu0 %v4601
      %v4745 = vpop.f32.mrf.mxu0
      %v4746 = vadd.f32 0.0, %v4745
      %v4747 = vpop.f32.mrf.mxu0
      %v4748 = vpop.f32.mrf.mxu0
      %v4749 = vadd.f32 0.0, %v4748
      %v4750 = vpop.f32.mrf.mxu0
      %4751 = vmatprep.mubr.bf16.mxu0 0
      %4752 = vmatmul.mubr.bf16.gmra.mxu0 %v4604
      %v4753 = vpop.f32.mrf.mxu0
      %v4754 = vadd.f32 0.0, %v4753
      %v4755 = vpop.f32.mrf.mxu0
      %v4756 = vpop.f32.mrf.mxu0
      %v4757 = vadd.f32 0.0, %v4756
      %v4758 = vpop.f32.mrf.mxu0
      %4759 = vmatprep.mubr.bf16.mxu0 0
      %4760 = vmatmul.mubr.bf16.gmra.mxu0 %v4607
      %v4761 = vpop.f32.mrf.mxu0
      %v4762 = vadd.f32 0.0, %v4761
      %v4763 = vpop.f32.mrf.mxu0
      %v4764 = vpop.f32.mrf.mxu0
      %v4765 = vadd.f32 0.0, %v4764
      %v4766 = vpop.f32.mrf.mxu0
      %4767 = vmatprep.mubr.bf16.mxu0 0
      %4768 = vmatmul.mubr.bf16.gmra.mxu0 %v4610
      %v4769 = vpop.f32.mrf.mxu0
      %v4770 = vadd.f32 0.0, %v4769
      %v4771 = vpop.f32.mrf.mxu0
      %v4772 = vpop.f32.mrf.mxu0
      %v4773 = vadd.f32 0.0, %v4772
      %v4774 = vpop.f32.mrf.mxu0
      %4775 = vdwg.mxu0
      %v4776 = vadd.f32 %v4050, %v4650
      %v4777 = vadd.f32 %v4051, %v4653
      %v4778 = vadd.f32 %v4052, %v4658
      %v4779 = vadd.f32 %v4053, %v4661
      %v4780 = vadd.f32 %v4054, %v4666
      %v4781 = vadd.f32 %v4055, %v4669
      %v4782 = vadd.f32 %v4056, %v4674
      %v4783 = vadd.f32 %v4057, %v4677
      %v4784 = vadd.f32 %v4058, %v4682
      %v4785 = vadd.f32 %v4059, %v4685
      %v4786 = vadd.f32 %v4060, %v4690
      %v4787 = vadd.f32 %v4061, %v4693
      %v4788 = vadd.f32 %v4062, %v4698
      %v4789 = vadd.f32 %v4063, %v4701
      %v4790 = vadd.f32 %v4064, %v4706
      %v4791 = vadd.f32 %v4065, %v4709
      %v4792 = vadd.f32 %v4066, %v4714
      %v4793 = vadd.f32 %v4067, %v4717
      %v4794 = vadd.f32 %v4068, %v4722
      %v4795 = vadd.f32 %v4069, %v4725
      %v4796 = vadd.f32 %v4070, %v4730
      %v4797 = vadd.f32 %v4071, %v4733
      %v4798 = vadd.f32 %v4072, %v4738
      %v4799 = vadd.f32 %v4073, %v4741
      %v4800 = vadd.f32 %v4074, %v4746
      %v4801 = vadd.f32 %v4075, %v4749
      %v4802 = vadd.f32 %v4076, %v4754
      %v4803 = vadd.f32 %v4077, %v4757
      %v4804 = vadd.f32 %v4078, %v4762
      %v4805 = vadd.f32 %v4079, %v4765
      %v4806 = vadd.f32 %v4080, %v4770
      %v4807 = vadd.f32 %v4081, %v4773
      %v4808 = vld [vmem:[%s3723] sm:$0xe]
      %v4809 = vld [vmem:[%s3723 + $0xc] sm:$0xe]
      %v4810 = vld [vmem:[%s3723 + $0x18] sm:$0xe]
      %v4811 = vld [vmem:[%s3723 + $0x24] sm:$0xe]
      %v4812 = vld [vmem:[%s3723 + $0x30] sm:$0xe]
      %v4813 = vld [vmem:[%s3723 + $0x3c] sm:$0xe]
      %v4814 = vld [vmem:[%s3723 + $0x48] sm:$0xe]
      %v4815 = vld [vmem:[%s3723 + $0x54] sm:$0xe]
      %v4816 = vld [vmem:[%s3723 + $0x60] sm:$0xe]
      %v4817 = vld [vmem:[%s3723 + $0x6c] sm:$0xe]
      %v4818 = vld [vmem:[%s3723 + $0x78] sm:$0xe]
      %v4819 = vld [vmem:[%s3723 + $0x84] sm:$0xe]
      %v4820 = vld [vmem:[%s3723 + $0x90] sm:$0xe]
      %v4821 = vld [vmem:[%s3723 + $0x9c] sm:$0xe]
      %v4822 = vld [vmem:[%s3723 + $0xa8] sm:$0xe]
      %v4823 = vld [vmem:[%s3723 + $0xb4] sm:$0xe]
      %v4872 = vrot.slane %v4808, 5
      %v4873 = vrot.slane %v4872, 4
      %v4874 = vrot.slane %v4083, 5
      %v4875 = vsel %vm1761, %v4873, %v4874
      %v4876 = vrot.slane %v4874, 4
      %v4877 = vrot.slane %v4084, 5
      %v4878 = vsel %vm1761, %v4876, %v4877
      %v4879 = vrot.slane %v4809, 5
      %v4880 = vrot.slane %v4879, 4
      %v4881 = vrot.slane %v4086, 5
      %v4882 = vsel %vm1761, %v4880, %v4881
      %v4883 = vrot.slane %v4881, 4
      %v4884 = vrot.slane %v4087, 5
      %v4885 = vsel %vm1761, %v4883, %v4884
      %v4886 = vrot.slane %v4810, 5
      %v4887 = vrot.slane %v4886, 4
      %v4888 = vrot.slane %v4089, 5
      %v4889 = vsel %vm1761, %v4887, %v4888
      %v4890 = vrot.slane %v4888, 4
      %v4891 = vrot.slane %v4090, 5
      %v4892 = vsel %vm1761, %v4890, %v4891
      %v4893 = vrot.slane %v4811, 5
      %v4894 = vrot.slane %v4893, 4
      %v4895 = vrot.slane %v4092, 5
      %v4896 = vsel %vm1761, %v4894, %v4895
      %v4897 = vrot.slane %v4895, 4
      %v4898 = vrot.slane %v4093, 5
      %v4899 = vsel %vm1761, %v4897, %v4898
      %v4900 = vrot.slane %v4812, 5
      %v4901 = vrot.slane %v4900, 4
      %v4902 = vrot.slane %v4095, 5
      %v4903 = vsel %vm1761, %v4901, %v4902
      %v4904 = vrot.slane %v4902, 4
      %v4905 = vrot.slane %v4096, 5
      %v4906 = vsel %vm1761, %v4904, %v4905
      %v4907 = vrot.slane %v4813, 5
      %v4908 = vrot.slane %v4907, 4
      %v4909 = vrot.slane %v4098, 5
      %v4910 = vsel %vm1761, %v4908, %v4909
      %v4911 = vrot.slane %v4909, 4
      %v4912 = vrot.slane %v4099, 5
      %v4913 = vsel %vm1761, %v4911, %v4912
      %v4914 = vrot.slane %v4814, 5
      %v4915 = vrot.slane %v4914, 4
      %v4916 = vrot.slane %v4101, 5
      %v4917 = vsel %vm1761, %v4915, %v4916
      %v4918 = vrot.slane %v4916, 4
      %v4919 = vrot.slane %v4102, 5
      %v4920 = vsel %vm1761, %v4918, %v4919
      %v4921 = vrot.slane %v4815, 5
      %v4922 = vrot.slane %v4921, 4
      %v4923 = vrot.slane %v4104, 5
      %v4924 = vsel %vm1761, %v4922, %v4923
      %v4925 = vrot.slane %v4923, 4
      %v4926 = vrot.slane %v4105, 5
      %v4927 = vsel %vm1761, %v4925, %v4926
      %v4928 = vrot.slane %v4816, 5
      %v4929 = vrot.slane %v4928, 4
      %v4930 = vrot.slane %v4107, 5
      %v4931 = vsel %vm1761, %v4929, %v4930
      %v4932 = vrot.slane %v4930, 4
      %v4933 = vrot.slane %v4108, 5
      %v4934 = vsel %vm1761, %v4932, %v4933
      %v4935 = vrot.slane %v4817, 5
      %v4936 = vrot.slane %v4935, 4
      %v4937 = vrot.slane %v4110, 5
      %v4938 = vsel %vm1761, %v4936, %v4937
      %v4939 = vrot.slane %v4937, 4
      %v4940 = vrot.slane %v4111, 5
      %v4941 = vsel %vm1761, %v4939, %v4940
      %v4942 = vrot.slane %v4818, 5
      %v4943 = vrot.slane %v4942, 4
      %v4944 = vrot.slane %v4113, 5
      %v4945 = vsel %vm1761, %v4943, %v4944
      %v4946 = vrot.slane %v4944, 4
      %v4947 = vrot.slane %v4114, 5
      %v4948 = vsel %vm1761, %v4946, %v4947
      %v4949 = vrot.slane %v4819, 5
      %v4950 = vrot.slane %v4949, 4
      %v4951 = vrot.slane %v4116, 5
      %v4952 = vsel %vm1761, %v4950, %v4951
      %v4953 = vrot.slane %v4951, 4
      %v4954 = vrot.slane %v4117, 5
      %v4955 = vsel %vm1761, %v4953, %v4954
      %v4956 = vrot.slane %v4820, 5
      %v4957 = vrot.slane %v4956, 4
      %v4958 = vrot.slane %v4119, 5
      %v4959 = vsel %vm1761, %v4957, %v4958
      %v4960 = vrot.slane %v4958, 4
      %v4961 = vrot.slane %v4120, 5
      %v4962 = vsel %vm1761, %v4960, %v4961
      %v4963 = vrot.slane %v4821, 5
      %v4964 = vrot.slane %v4963, 4
      %v4965 = vrot.slane %v4122, 5
      %v4966 = vsel %vm1761, %v4964, %v4965
      %v4967 = vrot.slane %v4965, 4
      %v4968 = vrot.slane %v4123, 5
      %v4969 = vsel %vm1761, %v4967, %v4968
      %v4970 = vrot.slane %v4822, 5
      %v4971 = vrot.slane %v4970, 4
      %v4972 = vrot.slane %v4125, 5
      %v4973 = vsel %vm1761, %v4971, %v4972
      %v4974 = vrot.slane %v4972, 4
      %v4975 = vrot.slane %v4126, 5
      %v4976 = vsel %vm1761, %v4974, %v4975
      %v4977 = vrot.slane %v4823, 5
      %v4978 = vrot.slane %v4977, 4
      %v4979 = vrot.slane %v4128, 5
      %v4980 = vsel %vm1761, %v4978, %v4979
      %v4981 = vrot.slane %v4979, 4
      %v4982 = vrot.slane %v4129, 5
      %v4983 = vsel %vm1761, %v4981, %v4982
      %s4984 = scalar_lea.vmem %s3, 16
      %v4985 = vld [vmem:[%s4984] sm:$0x3]
      %v4986 = vunpack.c.l.b16 %v4875
      %v4987 = vunpack.c.l.b16 %v4878
      %v4988 = vunpack.c.l.b16 %v4882
      %v4989 = vunpack.c.l.b16 %v4885
      %v4990 = vunpack.c.l.b16 %v4889
      %v4991 = vunpack.c.l.b16 %v4892
      %v4992 = vunpack.c.l.b16 %v4896
      %v4993 = vunpack.c.l.b16 %v4899
      %v4994 = vunpack.c.l.b16 %v4903
      %v4995 = vunpack.c.l.b16 %v4906
      %v4996 = vunpack.c.l.b16 %v4910
      %v4997 = vunpack.c.l.b16 %v4913
      %v4998 = vunpack.c.l.b16 %v4917
      %v4999 = vunpack.c.l.b16 %v4920
      %v5000 = vunpack.c.l.b16 %v4924
      %v5001 = vunpack.c.l.b16 %v4927
      %v5002 = vunpack.c.l.b16 %v4931
      %v5003 = vunpack.c.l.b16 %v4934
      %v5004 = vunpack.c.l.b16 %v4938
      %v5005 = vunpack.c.l.b16 %v4941
      %v5006 = vunpack.c.l.b16 %v4945
      %v5007 = vunpack.c.l.b16 %v4948
      %v5008 = vunpack.c.l.b16 %v4952
      %v5009 = vunpack.c.l.b16 %v4955
      %v5010 = vunpack.c.l.b16 %v4959
      %v5011 = vunpack.c.l.b16 %v4962
      %v5012 = vunpack.c.l.b16 %v4966
      %v5013 = vunpack.c.l.b16 %v4969
      %v5014 = vunpack.c.l.b16 %v4973
      %v5015 = vunpack.c.l.b16 %v4976
      %v5016 = vunpack.c.l.b16 %v4980
      %v5017 = vunpack.c.l.b16 %v4983
      %v5018 = vpack.c.b16 %v4987, %v4986
      %v5019 = vpack.c.b16 %v4989, %v4988
      %v5020 = vpack.c.b16 %v4991, %v4990
      %v5021 = vpack.c.b16 %v4993, %v4992
      %v5022 = vpack.c.b16 %v4995, %v4994
      %v5023 = vpack.c.b16 %v4997, %v4996
      %v5024 = vpack.c.b16 %v4999, %v4998
      %v5025 = vpack.c.b16 %v5001, %v5000
      %v5026 = vpack.c.b16 %v5003, %v5002
      %v5027 = vpack.c.b16 %v5005, %v5004
      %v5028 = vpack.c.b16 %v5007, %v5006
      %v5029 = vpack.c.b16 %v5009, %v5008
      %v5030 = vpack.c.b16 %v5011, %v5010
      %v5031 = vpack.c.b16 %v5013, %v5012
      %v5032 = vpack.c.b16 %v5015, %v5014
      %v5033 = vpack.c.b16 %v5017, %v5016
      %v5035 = vsel %vm1205, %v5018, 0
      %v5038 = vsel %vm1205, %v5019, 0
      %v5041 = vsel %vm1205, %v5020, 0
      %v5044 = vsel %vm1205, %v5021, 0
      %v5047 = vsel %vm1205, %v5022, 0
      %v5050 = vsel %vm1205, %v5023, 0
      %v5053 = vsel %vm1205, %v5024, 0
      %v5056 = vsel %vm1205, %v5025, 0
      %v5059 = vsel %vm1205, %v5026, 0
      %v5062 = vsel %vm1205, %v5027, 0
      %v5065 = vsel %vm1205, %v5028, 0
      %v5068 = vsel %vm1205, %v5029, 0
      %v5071 = vsel %vm1205, %v5030, 0
      %v5074 = vsel %vm1205, %v5031, 0
      %v5077 = vsel %vm1205, %v5032, 0
      %v5080 = vsel %vm1205, %v5033, 0
      %v5083 = vsel %vm1254, %v4985, 0
      %5085 = vmatprep.subr.bf16.mxu0 0
      %5086 = vmatpush1.bf16.msra.mxu0 0
      %5087 = vmatprep.subr.bf16.mxu0 0
      %5088 = vmatpush1.bf16.msra.mxu0 0
      %5089 = vmatprep.subr.bf16.mxu0 0
      %5090 = vmatpush1.bf16.msra.mxu0 0
      %5091 = vmatprep.subr.bf16.mxu0 0
      %5092 = vmatpush1.bf16.msra.mxu0 0
      %5093 = vmatprep.subr.bf16.mxu0 0
      %5094 = vmatpush1.bf16.msra.mxu0 0
      %5095 = vmatprep.subr.bf16.mxu0 0
      %5096 = vmatpush1.bf16.msra.mxu0 0
      %5097 = vmatprep.subr.bf16.mxu0 0
      %5098 = vmatpush1.bf16.msra.mxu0 0
      %5099 = vmatprep.subr.bf16.mxu0 0
      %5100 = vmatpush1.bf16.msra.mxu0 %v5083
      %5101 = vmatprep.subr.bf16.mxu0 0
      %5102 = vmatpush2.bf16.msra.mxu0 0
      %5103 = vmatprep.subr.bf16.mxu0 0
      %5104 = vmatpush2.bf16.msra.mxu0 0
      %5105 = vmatprep.subr.bf16.mxu0 0
      %5106 = vmatpush2.bf16.msra.mxu0 0
      %5107 = vmatprep.subr.bf16.mxu0 0
      %5108 = vmatpush2.bf16.msra.mxu0 0
      %5109 = vmatprep.subr.bf16.mxu0 0
      %5110 = vmatpush2.bf16.msra.mxu0 0
      %5111 = vmatprep.subr.bf16.mxu0 0
      %5112 = vmatpush2.bf16.msra.mxu0 0
      %5113 = vmatprep.subr.bf16.mxu0 0
      %5114 = vmatpush2.bf16.msra.mxu0 0
      %5115 = vmatprep.subr.bf16.mxu0 0
      %5116 = vmatpush2.bf16.msra.mxu0 0
      %5117 = vmatprep.mubr.bf16.mxu0 0
      %5118 = vmatmul.mubr.bf16.gmra.mxu0 %v5035
      %v5119 = vpop.f32.mrf.mxu0
      %v5120 = vadd.f32 0.0, %v5119
      %v5121 = vpop.f32.mrf.mxu0
      %v5122 = vpop.f32.mrf.mxu0
      %v5123 = vadd.f32 0.0, %v5122
      %v5124 = vpop.f32.mrf.mxu0
      %5125 = vmatprep.mubr.bf16.mxu0 0
      %5126 = vmatmul.mubr.bf16.gmra.mxu0 %v5038
      %v5127 = vpop.f32.mrf.mxu0
      %v5128 = vadd.f32 0.0, %v5127
      %v5129 = vpop.f32.mrf.mxu0
      %v5130 = vpop.f32.mrf.mxu0
      %v5131 = vadd.f32 0.0, %v5130
      %v5132 = vpop.f32.mrf.mxu0
      %5133 = vmatprep.mubr.bf16.mxu0 0
      %5134 = vmatmul.mubr.bf16.gmra.mxu0 %v5041
      %v5135 = vpop.f32.mrf.mxu0
      %v5136 = vadd.f32 0.0, %v5135
      %v5137 = vpop.f32.mrf.mxu0
      %v5138 = vpop.f32.mrf.mxu0
      %v5139 = vadd.f32 0.0, %v5138
      %v5140 = vpop.f32.mrf.mxu0
      %5141 = vmatprep.mubr.bf16.mxu0 0
      %5142 = vmatmul.mubr.bf16.gmra.mxu0 %v5044
      %v5143 = vpop.f32.mrf.mxu0
      %v5144 = vadd.f32 0.0, %v5143
      %v5145 = vpop.f32.mrf.mxu0
      %v5146 = vpop.f32.mrf.mxu0
      %v5147 = vadd.f32 0.0, %v5146
      %v5148 = vpop.f32.mrf.mxu0
      %5149 = vmatprep.mubr.bf16.mxu0 0
      %5150 = vmatmul.mubr.bf16.gmra.mxu0 %v5047
      %v5151 = vpop.f32.mrf.mxu0
      %v5152 = vadd.f32 0.0, %v5151
      %v5153 = vpop.f32.mrf.mxu0
      %v5154 = vpop.f32.mrf.mxu0
      %v5155 = vadd.f32 0.0, %v5154
      %v5156 = vpop.f32.mrf.mxu0
      %5157 = vmatprep.mubr.bf16.mxu0 0
      %5158 = vmatmul.mubr.bf16.gmra.mxu0 %v5050
      %v5159 = vpop.f32.mrf.mxu0
      %v5160 = vadd.f32 0.0, %v5159
      %v5161 = vpop.f32.mrf.mxu0
      %v5162 = vpop.f32.mrf.mxu0
      %v5163 = vadd.f32 0.0, %v5162
      %v5164 = vpop.f32.mrf.mxu0
      %5165 = vmatprep.mubr.bf16.mxu0 0
      %5166 = vmatmul.mubr.bf16.gmra.mxu0 %v5053
      %v5167 = vpop.f32.mrf.mxu0
      %v5168 = vadd.f32 0.0, %v5167
      %v5169 = vpop.f32.mrf.mxu0
      %v5170 = vpop.f32.mrf.mxu0
      %v5171 = vadd.f32 0.0, %v5170
      %v5172 = vpop.f32.mrf.mxu0
      %5173 = vmatprep.mubr.bf16.mxu0 0
      %5174 = vmatmul.mubr.bf16.gmra.mxu0 %v5056
      %v5175 = vpop.f32.mrf.mxu0
      %v5176 = vadd.f32 0.0, %v5175
      %v5177 = vpop.f32.mrf.mxu0
      %v5178 = vpop.f32.mrf.mxu0
      %v5179 = vadd.f32 0.0, %v5178
      %v5180 = vpop.f32.mrf.mxu0
      %5181 = vmatprep.mubr.bf16.mxu0 0
      %5182 = vmatmul.mubr.bf16.gmra.mxu0 %v5059
      %v5183 = vpop.f32.mrf.mxu0
      %v5184 = vadd.f32 0.0, %v5183
      %v5185 = vpop.f32.mrf.mxu0
      %v5186 = vpop.f32.mrf.mxu0
      %v5187 = vadd.f32 0.0, %v5186
      %v5188 = vpop.f32.mrf.mxu0
      %5189 = vmatprep.mubr.bf16.mxu0 0
      %5190 = vmatmul.mubr.bf16.gmra.mxu0 %v5062
      %v5191 = vpop.f32.mrf.mxu0
      %v5192 = vadd.f32 0.0, %v5191
      %v5193 = vpop.f32.mrf.mxu0
      %v5194 = vpop.f32.mrf.mxu0
      %v5195 = vadd.f32 0.0, %v5194
      %v5196 = vpop.f32.mrf.mxu0
      %5197 = vmatprep.mubr.bf16.mxu0 0
      %5198 = vmatmul.mubr.bf16.gmra.mxu0 %v5065
      %v5199 = vpop.f32.mrf.mxu0
      %v5200 = vadd.f32 0.0, %v5199
      %v5201 = vpop.f32.mrf.mxu0
      %v5202 = vpop.f32.mrf.mxu0
      %v5203 = vadd.f32 0.0, %v5202
      %v5204 = vpop.f32.mrf.mxu0
      %5205 = vmatprep.mubr.bf16.mxu0 0
      %5206 = vmatmul.mubr.bf16.gmra.mxu0 %v5068
      %v5207 = vpop.f32.mrf.mxu0
      %v5208 = vadd.f32 0.0, %v5207
      %v5209 = vpop.f32.mrf.mxu0
      %v5210 = vpop.f32.mrf.mxu0
      %v5211 = vadd.f32 0.0, %v5210
      %v5212 = vpop.f32.mrf.mxu0
      %5213 = vmatprep.mubr.bf16.mxu0 0
      %5214 = vmatmul.mubr.bf16.gmra.mxu0 %v5071
      %v5215 = vpop.f32.mrf.mxu0
      %v5216 = vadd.f32 0.0, %v5215
      %v5217 = vpop.f32.mrf.mxu0
      %v5218 = vpop.f32.mrf.mxu0
      %v5219 = vadd.f32 0.0, %v5218
      %v5220 = vpop.f32.mrf.mxu0
      %5221 = vmatprep.mubr.bf16.mxu0 0
      %5222 = vmatmul.mubr.bf16.gmra.mxu0 %v5074
      %v5223 = vpop.f32.mrf.mxu0
      %v5224 = vadd.f32 0.0, %v5223
      %v5225 = vpop.f32.mrf.mxu0
      %v5226 = vpop.f32.mrf.mxu0
      %v5227 = vadd.f32 0.0, %v5226
      %v5228 = vpop.f32.mrf.mxu0
      %5229 = vmatprep.mubr.bf16.mxu0 0
      %5230 = vmatmul.mubr.bf16.gmra.mxu0 %v5077
      %v5231 = vpop.f32.mrf.mxu0
      %v5232 = vadd.f32 0.0, %v5231
      %v5233 = vpop.f32.mrf.mxu0
      %v5234 = vpop.f32.mrf.mxu0
      %v5235 = vadd.f32 0.0, %v5234
      %v5236 = vpop.f32.mrf.mxu0
      %5237 = vmatprep.mubr.bf16.mxu0 0
      %5238 = vmatmul.mubr.bf16.gmra.mxu0 %v5080
      %v5239 = vpop.f32.mrf.mxu0
      %v5240 = vadd.f32 0.0, %v5239
      %v5241 = vpop.f32.mrf.mxu0
      %v5242 = vpop.f32.mrf.mxu0
      %v5243 = vadd.f32 0.0, %v5242
      %v5244 = vpop.f32.mrf.mxu0
      %5245 = vdwg.mxu0
      %v5246 = vadd.f32 %v4776, %v5120
      %v5247 = vadd.f32 %v4777, %v5123
      %v5248 = vadd.f32 %v4778, %v5128
      %v5249 = vadd.f32 %v4779, %v5131
      %v5250 = vadd.f32 %v4780, %v5136
      %v5251 = vadd.f32 %v4781, %v5139
      %v5252 = vadd.f32 %v4782, %v5144
      %v5253 = vadd.f32 %v4783, %v5147
      %v5254 = vadd.f32 %v4784, %v5152
      %v5255 = vadd.f32 %v4785, %v5155
      %v5256 = vadd.f32 %v4786, %v5160
      %v5257 = vadd.f32 %v4787, %v5163
      %v5258 = vadd.f32 %v4788, %v5168
      %v5259 = vadd.f32 %v4789, %v5171
      %v5260 = vadd.f32 %v4790, %v5176
      %v5261 = vadd.f32 %v4791, %v5179
      %v5262 = vadd.f32 %v4792, %v5184
      %v5263 = vadd.f32 %v4793, %v5187
      %v5264 = vadd.f32 %v4794, %v5192
      %v5265 = vadd.f32 %v4795, %v5195
      %v5266 = vadd.f32 %v4796, %v5200
      %v5267 = vadd.f32 %v4797, %v5203
      %v5268 = vadd.f32 %v4798, %v5208
      %v5269 = vadd.f32 %v4799, %v5211
      %v5270 = vadd.f32 %v4800, %v5216
      %v5271 = vadd.f32 %v4801, %v5219
      %v5272 = vadd.f32 %v4802, %v5224
      %v5273 = vadd.f32 %v4803, %v5227
      %v5274 = vadd.f32 %v4804, %v5232
      %v5275 = vadd.f32 %v4805, %v5235
      %v5276 = vadd.f32 %v4806, %v5240
      %v5277 = vadd.f32 %v4807, %v5243
      %vm5278 = vcmask 15360
      %5279 = vst.msk [vmem:[%s197] sm:$0xff] %vm5278, %v5246
      %5280 = vst.msk [vmem:[%s197 + $0x8] sm:$0xff] %vm5278, %v5247
      %5281 = vst.msk [vmem:[%s197 + $0x10] sm:$0xff] %vm5278, %v5248
      %5282 = vst.msk [vmem:[%s197 + $0x18] sm:$0xff] %vm5278, %v5249
      %5283 = vst.msk [vmem:[%s197 + $0x20] sm:$0xff] %vm5278, %v5250
      %5284 = vst.msk [vmem:[%s197 + $0x28] sm:$0xff] %vm5278, %v5251
      %5285 = vst.msk [vmem:[%s197 + $0x30] sm:$0xff] %vm5278, %v5252
      %5286 = vst.msk [vmem:[%s197 + $0x38] sm:$0xff] %vm5278, %v5253
      %5287 = vst.msk [vmem:[%s197 + $0x40] sm:$0xff] %vm5278, %v5254
      %5288 = vst.msk [vmem:[%s197 + $0x48] sm:$0xff] %vm5278, %v5255
      %5289 = vst.msk [vmem:[%s197 + $0x50] sm:$0xff] %vm5278, %v5256
      %5290 = vst.msk [vmem:[%s197 + $0x58] sm:$0xff] %vm5278, %v5257
      %5291 = vst.msk [vmem:[%s197 + $0x60] sm:$0xff] %vm5278, %v5258
      %5292 = vst.msk [vmem:[%s197 + $0x68] sm:$0xff] %vm5278, %v5259
      %5293 = vst.msk [vmem:[%s197 + $0x70] sm:$0xff] %vm5278, %v5260
      %5294 = vst.msk [vmem:[%s197 + $0x78] sm:$0xff] %vm5278, %v5261
      %5295 = vst.msk [vmem:[%s197 + $0x80] sm:$0xff] %vm5278, %v5262
      %5296 = vst.msk [vmem:[%s197 + $0x88] sm:$0xff] %vm5278, %v5263
      %5297 = vst.msk [vmem:[%s197 + $0x90] sm:$0xff] %vm5278, %v5264
      %5298 = vst.msk [vmem:[%s197 + $0x98] sm:$0xff] %vm5278, %v5265
      %5299 = vst.msk [vmem:[%s197 + $0xa0] sm:$0xff] %vm5278, %v5266
      %5300 = vst.msk [vmem:[%s197 + $0xa8] sm:$0xff] %vm5278, %v5267
      %5301 = vst.msk [vmem:[%s197 + $0xb0] sm:$0xff] %vm5278, %v5268
      %5302 = vst.msk [vmem:[%s197 + $0xb8] sm:$0xff] %vm5278, %v5269
      %5303 = vst.msk [vmem:[%s197 + $0xc0] sm:$0xff] %vm5278, %v5270
      %5304 = vst.msk [vmem:[%s197 + $0xc8] sm:$0xff] %vm5278, %v5271
      %5305 = vst.msk [vmem:[%s197 + $0xd0] sm:$0xff] %vm5278, %v5272
      %5306 = vst.msk [vmem:[%s197 + $0xd8] sm:$0xff] %vm5278, %v5273
      %5307 = vst.msk [vmem:[%s197 + $0xe0] sm:$0xff] %vm5278, %v5274
      %5308 = vst.msk [vmem:[%s197 + $0xe8] sm:$0xff] %vm5278, %v5275
      %5309 = vst.msk [vmem:[%s197 + $0xf0] sm:$0xff] %vm5278, %v5276
      %5310 = vst.msk [vmem:[%s197 + $0xf8] sm:$0xff] %vm5278, %v5277
      %p5311 = scmp.lt.s32.totalorder %s15, 1
      %s5312 = scalar_select %p5311, %s15, 1
      %s5313 = smul.addr %s5312, 32
      %s5314 = smul.addr %s5313, 8
      %s5315 = scalar_lea.vmem %s4, %s5314
      // Predicated region
      $region37: #{_lambda_.2} parent=35 // pred_check
        %p5316 = pneg %p122
      $region38: #{_lambda_.2} parent=35 // pred_check_branch
        %5318 = sbr.rel (%p5316) target = $region40
      $region39: #{_lambda_.2} parent=35 // pred_region
        _
      $region40: #{_lambda_.2} parent=35 // pred_fallthru
        _
    $region36: #{_lambda_.2} parent=5 // pred_fallthru
      _
    %p5319 = scmp.le.s32.totalorder 2, %s10
    // Predicated region
    $region41: #{_lambda_.2} parent=5 // pred_check
      %p5320 = pneg %p5319
    $region42: #{_lambda_.2} parent=5 // pred_check_branch
      %5322 = sbr.rel (%p5320) target = $region44
    $region43: #{_lambda_.2} parent=5 // pred_region
      %s5323 = ssub.s32 %s10, 2
      // Predicated region
      $region45: #{_lambda_.2} parent=43 // pred_check
        %p5324 = pneg %p128
      $region46: #{_lambda_.2} parent=43 // pred_check_branch
        %5326 = sbr.rel (%p5324) target = $region48
      $region47: #{_lambda_.2} parent=43 // pred_region
        %p5327 = scmp.lt.s32.totalorder %s16, 1
        %s5328 = scalar_select %p5327, %s16, 1
        %s5329 = smul.addr %s5328, 32
        %s5330 = smul.addr %s5329, 8
        %s5331 = scalar_lea.vmem %s4, %s5330
      $region48: #{_lambda_.2} parent=43 // pred_fallthru
        _
    $region44: #{_lambda_.2} parent=5 // pred_fallthru
      _
  $region6: #{_lambda_.2} parent=0 // loop_footer
    %s14 = sadd.s32 1, %s10
  $region7: #{_lambda_.2} parent=0 // loop_footer_branch
    %9 = sbr.rel target = $region3
  $region8: #{_lambda_.2} parent=0 // loop_exit
    _

</llo_original>
